<compile_context>
chip_gen: v7x
topology: tpu7x:2x2x1
jax: 0.10.0
libtpu: 0.0.40
codegen_flags: <defaults>
</compile_context>

<pallas_src>
import functools

import jax
import jax.numpy as jnp
from jax import lax
from jax.experimental import pallas as pl
from jax.experimental.pallas import tpu as pltpu


# ---------------------------------------------------------------------------
# Fused forward kernel (one grid step == B images, rows r = h*B + b)
# ---------------------------------------------------------------------------
def _fused_net_kernel(x_ref, w1b_ref, b1_ref, w2be_ref, w2bo_ref, b2_ref,
                      wf1_ref, bf1_ref, wf2_ref, bf2_ref, o_ref,
                      *, B, H, PH):
    OH1 = H - 2                      # rows after conv1 (per image)
    OH2 = H - 4                      # rows after conv2 (per image)

    x2 = x_ref[...]                  # (H*B, W) f32, rows h-major / image-minor

    # ---- conv1: 3 banded row-tap MXU matmuls (f32), + bias + ReLU ----------
    a1 = jnp.dot(x2[0:OH1 * B, :], w1b_ref[0],
                 preferred_element_type=jnp.float32)
    a1 = a1 + jnp.dot(x2[B:B + OH1 * B, :], w1b_ref[1],
                      preferred_element_type=jnp.float32)
    a1 = a1 + jnp.dot(x2[2 * B:2 * B + OH1 * B, :], w1b_ref[2],
                      preferred_element_type=jnp.float32)
    # (OH1*B, OW1*C1); single bf16 cast feeds the conv2 MXU matmuls.
    a1 = jnp.maximum(a1 + b1_ref[...], 0.0).astype(jnp.bfloat16)

    # ---- conv2: 3+3 banded bf16 MXU matmuls (even / odd output columns) ----
    a2e = jnp.dot(a1[0:OH2 * B, :], w2be_ref[0],
                  preferred_element_type=jnp.float32)
    a2o = jnp.dot(a1[0:OH2 * B, :], w2bo_ref[0],
                  preferred_element_type=jnp.float32)
    a2e = a2e + jnp.dot(a1[B:B + OH2 * B, :], w2be_ref[1],
                        preferred_element_type=jnp.float32)
    a2o = a2o + jnp.dot(a1[B:B + OH2 * B, :], w2bo_ref[1],
                        preferred_element_type=jnp.float32)
    a2e = a2e + jnp.dot(a1[2 * B:2 * B + OH2 * B, :], w2be_ref[2],
                        preferred_element_type=jnp.float32)
    a2o = a2o + jnp.dot(a1[2 * B:2 * B + OH2 * B, :], w2bo_ref[2],
                        preferred_element_type=jnp.float32)

    # w-direction 2x2 pool == element-wise max of the even/odd column results,
    # then bias + ReLU (bias identical for both parities; ReLU is monotone).
    mw = jnp.maximum(jnp.maximum(a2e, a2o) + b2_ref[...], 0.0)  # (OH2*B, PW*C2)

    # ---- h-direction pool fused with fc1 (accumulate over PH pooled rows) --
    h1 = jnp.zeros((B, bf1_ref.shape[1]), jnp.float32)
    for ph in range(PH):
        r0 = 2 * ph * B
        row = jnp.maximum(mw[r0:r0 + B, :], mw[r0 + B:r0 + 2 * B, :])  # (B, PW*C2)
        h1 = h1 + jnp.dot(row.astype(jnp.bfloat16), wf1_ref[ph],
                          preferred_element_type=jnp.float32)
    h1 = jnp.maximum(h1 + bf1_ref[...], 0.0)                         # (B, 128)

    # ---- fc2 + log_softmax (f32 element-wise) ------------------------------
    logits = jnp.dot(h1.astype(jnp.bfloat16), wf2_ref[...],
                     preferred_element_type=jnp.float32) + bf2_ref[...]
    mx = jnp.max(logits, axis=-1, keepdims=True)
    s = logits - mx
    lse = jnp.log(jnp.sum(jnp.exp(s), axis=-1, keepdims=True))
    o_ref[...] = (s - lse).astype(o_ref.dtype)                       # (B, NC)


# ---------------------------------------------------------------------------
# Wrapper: single fused pallas_call, batch blocked on a "parallel" grid axis
# ---------------------------------------------------------------------------
def _pick_block_batch(n):
    for cand in (32, 16, 8):
        if n % cand == 0:
            return cand
    return n


def net_forward(kp, x, block_batch=None):
    """x: (N, 1, H, W) f32; kp from prepare_params(). Returns (N, NC) log-probs."""
    N, C, H, W = x.shape
    assert C == 1
    OH1, OW1 = H - 2, W - 2
    OH2, OW2 = H - 4, W - 4
    assert OH2 % 2 == 0 and OW2 % 2 == 0
    PH, PW = OH2 // 2, OW2 // 2
    NC = kp["bf2"].shape[1]

    B = block_batch if block_batch is not None else _pick_block_batch(N)
    assert N % B == 0
    G = N // B

    # Per grid block: rows ordered h-major / image-minor -> row r = h*B + b.
    x2 = (x.astype(jnp.float32).reshape(G, B, H, W)
          .transpose(0, 2, 1, 3).reshape(G * H * B, W))

    kernel = functools.partial(_fused_net_kernel, B=B, H=H, PH=PH)

    def _const_spec(arr):  # weights: full-array blocks, resident across the grid
        zeros = (0,) * arr.ndim
        return pl.BlockSpec(arr.shape, lambda n, _z=zeros: _z)

    out = pl.pallas_call(
        kernel,
        out_shape=jax.ShapeDtypeStruct((N, NC), jnp.float32),
        grid=(G,),
        in_specs=[
            pl.BlockSpec((H * B, W), lambda n: (n, 0)),
            _const_spec(kp["w1b"]), _const_spec(kp["b1row"]),
            _const_spec(kp["w2be"]), _const_spec(kp["w2bo"]),
            _const_spec(kp["b2row"]),
            _const_spec(kp["wf1"]), _const_spec(kp["bf1"]),
            _const_spec(kp["wf2"]), _const_spec(kp["bf2"]),
        ],
        out_specs=pl.BlockSpec((B, NC), lambda n: (n, 0)),
        compiler_params=pltpu.CompilerParams(
            dimension_semantics=("parallel",),
            vmem_limit_bytes=64 * 1024 * 1024),
    )(x2, kp["w1b"], kp["b1row"], kp["w2be"], kp["w2bo"], kp["b2row"],
      kp["wf1"], kp["bf1"], kp["wf2"], kp["bf2"])
    return out


# ---------------------------------------------------------------------------
# Parameters: PyTorch-layout init + one-time conversion to the kernel layout
# ---------------------------------------------------------------------------
def init_params(key, feature_size_after_conv, num_classes=10):
    """PyTorch-layout parameters with PyTorch-default-style uniform init."""
    ks = jax.random.split(key, 8)

    def u(k, shape, fan_in):
        bound = 1.0 / jnp.sqrt(jnp.float32(fan_in))
        return jax.random.uniform(k, shape, jnp.float32, -bound, bound)

    return {
        "conv1_w": u(ks[0], (32, 1, 3, 3), 1 * 9),
        "conv1_b": u(ks[1], (32,), 1 * 9),
        "conv2_w": u(ks[2], (64, 32, 3, 3), 32 * 9),
        "conv2_b": u(ks[3], (64,), 32 * 9),
        "fc1_w": u(ks[4], (128, feature_size_after_conv), feature_size_after_conv),
        "fc1_b": u(ks[5], (128,), feature_size_after_conv),
        "fc2_w": u(ks[6], (num_classes, 128), 128),
        "fc2_b": u(ks[7], (num_classes,), 128),
    }


def prepare_params(tp, H, W):
    """One-time layout prep: block-banded conv matrices (row-tap form), even/odd
    column split for conv2 (folds the w-pool), fc1 permuted to (ph, pw*C2+c, o),
    bf16 cast of the MXU-bound weights."""
    C1 = tp["conv1_w"].shape[0]                 # 32
    C2 = tp["conv2_w"].shape[0]                 # 64
    OH1, OW1 = H - 2, W - 2
    OH2, OW2 = H - 4, W - 4
    PH, PW = OH2 // 2, OW2 // 2
    FH = tp["fc1_w"].shape[0]                   # 128
    NC = tp["fc2_w"].shape[0]                   # 10
    assert tp["fc1_w"].shape[1] == C2 * PH * PW, "feature_size_after_conv mismatch"

    # conv1 -> banded row-tap matrices: w1b[ki][w_in, w_out*C1 + c]
    k1 = tp["conv1_w"][:, 0, :, :].astype(jnp.float32)        # (C1, 3, 3)
    w1b = []
    for ki in range(3):
        m = jnp.zeros((W, OW1, C1), jnp.float32)
        for kj in range(3):
            e = jnp.eye(W, OW1, k=-kj, dtype=jnp.float32)     # e[w_out+kj, w_out]=1
            m = m + e[:, :, None] * k1[:, ki, kj][None, None, :]
        w1b.append(m.reshape(W, OW1 * C1))
    w1b = jnp.stack(w1b)                                      # (3, W, OW1*C1) f32

    # conv2 -> banded matrices, split by output-column parity (folds w-pooling)
    def conv2_band(parity):
        mats = []
        for ki in range(3):
            m = jnp.zeros((OW1, C1, PW, C2), jnp.float32)
            for kj in range(3):
                rows = jnp.arange(PW) * 2 + parity + kj       # w_in for each pw
                e = (jnp.zeros((OW1, PW), jnp.float32)
                     .at[rows, jnp.arange(PW)].set(1.0))
                wt = tp["conv2_w"][:, :, ki, kj].T.astype(jnp.float32)   # (C1, C2)
                m = m + e[:, None, :, None] * wt[None, :, None, :]
            mats.append(m.reshape(OW1 * C1, PW * C2))
        return jnp.stack(mats).astype(jnp.bfloat16)           # (3, OW1*C1, PW*C2)

    w2be = conv2_band(0)
    w2bo = conv2_band(1)

    # fc1: torch flatten order is (c, ph, pw); kernel pooled-row lanes are pw*C2+c
    fc1r = tp["fc1_w"].reshape(FH, C2, PH, PW)                # [o, c, ph, pw]
    wf1 = (fc1r.transpose(2, 3, 1, 0).reshape(PH, PW * C2, FH)
           .astype(jnp.bfloat16))                             # (PH, PW*C2, 128)
    wf2 = tp["fc2_w"].T.astype(jnp.bfloat16)                  # (128, NC)

    return {
        "w1b": w1b,
        "b1row": jnp.tile(tp["conv1_b"].astype(jnp.float32), OW1).reshape(1, OW1 * C1),
        "w2be": w2be, "w2bo": w2bo,
        "b2row": jnp.tile(tp["conv2_b"].astype(jnp.float32), PW).reshape(1, PW * C2),
        "wf1": wf1,
        "bf1": tp["fc1_b"].astype(jnp.float32).reshape(1, FH),
        "wf2": wf2,
        "bf2": tp["fc2_b"].astype(jnp.float32).reshape(1, NC),
    }


# ---------------------------------------------------------------------------
# Pure-JAX reference (PyTorch layouts), mirroring the kernel's bf16 MXU inputs
# ---------------------------------------------------------------------------
def net_forward_reference(tp, x):
    x = x.astype(jnp.float32)
    a1 = lax.conv_general_dilated(
        x, tp["conv1_w"], (1, 1), "VALID",
        dimension_numbers=("NCHW", "OIHW", "NCHW"))
    a1 = jnp.maximum(a1 + tp["conv1_b"][None, :, None, None], 0.0)
    a2 = lax.conv_general_dilated(
        a1.astype(jnp.bfloat16), tp["conv2_w"].astype(jnp.bfloat16),
        (1, 1), "VALID", dimension_numbers=("NCHW", "OIHW", "NCHW"),
        preferred_element_type=jnp.float32)
    a2 = jnp.maximum(a2 + tp["conv2_b"][None, :, None, None], 0.0)
    N, Cc, Hh, Ww = a2.shape
    pooled = a2.reshape(N, Cc, Hh // 2, 2, Ww // 2, 2).max(axis=(3, 5))
    f = pooled.reshape(N, -1)
    h1 = jnp.dot(f.astype(jnp.bfloat16), tp["fc1_w"].T.astype(jnp.bfloat16),
                 preferred_element_type=jnp.float32) + tp["fc1_b"]
    h1 = jnp.maximum(h1, 0.0)
    logits = jnp.dot(h1.astype(jnp.bfloat16), tp["fc2_w"].T.astype(jnp.bfloat16),
                     preferred_element_type=jnp.float32) + tp["fc2_b"]
    return jax.nn.log_softmax(logits, axis=-1)


if __name__ == "__main__":
    key = jax.random.PRNGKey(0)
    k_param, k_x = jax.random.split(key)

    # N=2, 1 channel, 16x16 input: conv1 -> 14x14x32, conv2 -> 12x12x64,
    # pool -> 6x6x64, flatten -> 2304 (the module's feature_size_after_conv).
    N, C, H, W = 2, 1, 16, 16
    PH, PW = (H - 4) // 2, (W - 4) // 2
    feature_size_after_conv = 64 * PH * PW     # 2304

    torch_params = init_params(k_param, feature_size_after_conv, num_classes=10)
    kp = prepare_params(torch_params, H, W)    # one-time layout / bf16 / band prep
    x = jax.random.normal(k_x, (N, C, H, W), dtype=jnp.float32)

    out = jax.block_until_ready(net_forward(kp, x))
    ref = jax.block_until_ready(net_forward_reference(torch_params, x))

    assert out.shape == (N, 10), out.shape
    # log_softmax rows should sum to ~1 in probability space
    assert jnp.allclose(jnp.sum(jnp.exp(out), axis=1), 1.0, atol=1e-4)
    # matches the (bf16-matmul) reference
    assert jnp.allclose(out, ref, atol=3e-2, rtol=3e-2), float(
        jnp.max(jnp.abs(out - ref)))
    print("KERNEL_OK")
</pallas_src>

<mosaic_0001>
module attributes {stable_mosaic.version = 11 : i64} {
  func.func @_fused_net_kernel(%arg0: i32, %arg1: memref<32x16xf32, #tpu.memory_space<vmem>>, %arg2: memref<3x16x448xf32, #tpu.memory_space<vmem>>, %arg3: memref<1x448xf32, #tpu.memory_space<vmem>>, %arg4: memref<3x448x384xbf16, #tpu.memory_space<vmem>>, %arg5: memref<3x448x384xbf16, #tpu.memory_space<vmem>>, %arg6: memref<1x384xf32, #tpu.memory_space<vmem>>, %arg7: memref<6x384x128xbf16, #tpu.memory_space<vmem>>, %arg8: memref<1x128xf32, #tpu.memory_space<vmem>>, %arg9: memref<128x10xbf16, #tpu.memory_space<vmem>>, %arg10: memref<1x10xf32, #tpu.memory_space<vmem>>, %arg11: memref<2x10xf32, #tpu.memory_space<vmem>>) attributes {dimension_semantics = [#tpu.dimension_semantics<parallel>], iteration_bounds = array<i64: 1>, scalar_prefetch = 0 : i64, scratch_operands = 0 : i64, tpu.core_type = #tpu.core_type<tc>, window_params = [{transform_indices = @transform_0, window_bounds = array<i64: 32, 16>}, {pipeline_mode = #tpu.pipeline_mode<synchronous>, transform_indices = @transform_1, window_bounds = array<i64: 3, 16, 448>}, {pipeline_mode = #tpu.pipeline_mode<synchronous>, transform_indices = @transform_2, window_bounds = array<i64: 1, 448>}, {pipeline_mode = #tpu.pipeline_mode<synchronous>, transform_indices = @transform_3, window_bounds = array<i64: 3, 448, 384>}, {pipeline_mode = #tpu.pipeline_mode<synchronous>, transform_indices = @transform_4, window_bounds = array<i64: 3, 448, 384>}, {pipeline_mode = #tpu.pipeline_mode<synchronous>, transform_indices = @transform_5, window_bounds = array<i64: 1, 384>}, {pipeline_mode = #tpu.pipeline_mode<synchronous>, transform_indices = @transform_6, window_bounds = array<i64: 6, 384, 128>}, {pipeline_mode = #tpu.pipeline_mode<synchronous>, transform_indices = @transform_7, window_bounds = array<i64: 1, 128>}, {pipeline_mode = #tpu.pipeline_mode<synchronous>, transform_indices = @transform_8, window_bounds = array<i64: 128, 10>}, {pipeline_mode = #tpu.pipeline_mode<synchronous>, transform_indices = @transform_9, window_bounds = array<i64: 1, 10>}, {transform_indices = @transform_10, window_bounds = array<i64: 2, 10>}]} {
    %c0 = arith.constant 0 : index
    %c0_0 = arith.constant 0 : index
    %0 = vector.load %arg1[%c0, %c0_0] : memref<32x16xf32, #tpu.memory_space<vmem>>, vector<32x16xf32>
    %1 = vector.extract_strided_slice %0 {offsets = [0, 0], sizes = [28, 16], strides = [1, 1]} : vector<32x16xf32> to vector<28x16xf32>
    %c0_1 = arith.constant 0 : index
    %c0_2 = arith.constant 0 : index
    %c0_3 = arith.constant 0 : index
    %2 = vector.load %arg2[%c0_1, %c0_2, %c0_3] : memref<3x16x448xf32, #tpu.memory_space<vmem>>, vector<1x16x448xf32>
    %3 = vector.shape_cast %2 : vector<1x16x448xf32> to vector<16x448xf32>
    %cst = arith.constant dense<0.000000e+00> : vector<28x448xf32>
    %4 = tpu.matmul %1, %3, %cst {dimension_numbers = #tpu.dot_dimension_numbers<[1], [0], [0], [1], [0, 0, 1, 1], [], []>} : vector<28x16xf32>, vector<16x448xf32>, vector<28x448xf32> -> vector<28x448xf32>
    %5 = vector.extract_strided_slice %0 {offsets = [2, 0], sizes = [28, 16], strides = [1, 1]} : vector<32x16xf32> to vector<28x16xf32>
    %c1 = arith.constant 1 : index
    %c0_4 = arith.constant 0 : index
    %c0_5 = arith.constant 0 : index
    %6 = vector.load %arg2[%c1, %c0_4, %c0_5] : memref<3x16x448xf32, #tpu.memory_space<vmem>>, vector<1x16x448xf32>
    %7 = vector.shape_cast %6 : vector<1x16x448xf32> to vector<16x448xf32>
    %cst_6 = arith.constant dense<0.000000e+00> : vector<28x448xf32>
    %8 = tpu.matmul %5, %7, %cst_6 {dimension_numbers = #tpu.dot_dimension_numbers<[1], [0], [0], [1], [0, 0, 1, 1], [], []>} : vector<28x16xf32>, vector<16x448xf32>, vector<28x448xf32> -> vector<28x448xf32>
    %9 = arith.addf %4, %8 : vector<28x448xf32>
    %10 = vector.extract_strided_slice %0 {offsets = [4, 0], sizes = [28, 16], strides = [1, 1]} : vector<32x16xf32> to vector<28x16xf32>
    %c2 = arith.constant 2 : index
    %c0_7 = arith.constant 0 : index
    %c0_8 = arith.constant 0 : index
    %11 = vector.load %arg2[%c2, %c0_7, %c0_8] : memref<3x16x448xf32, #tpu.memory_space<vmem>>, vector<1x16x448xf32>
    %12 = vector.shape_cast %11 : vector<1x16x448xf32> to vector<16x448xf32>
    %cst_9 = arith.constant dense<0.000000e+00> : vector<28x448xf32>
    %13 = tpu.matmul %10, %12, %cst_9 {dimension_numbers = #tpu.dot_dimension_numbers<[1], [0], [0], [1], [0, 0, 1, 1], [], []>} : vector<28x16xf32>, vector<16x448xf32>, vector<28x448xf32> -> vector<28x448xf32>
    %14 = arith.addf %9, %13 : vector<28x448xf32>
    %c0_10 = arith.constant 0 : index
    %c0_11 = arith.constant 0 : index
    %15 = vector.load %arg3[%c0_10, %c0_11] : memref<1x448xf32, #tpu.memory_space<vmem>>, vector<1x448xf32>
    %16 = vector.broadcast %15 : vector<1x448xf32> to vector<28x448xf32>
    %17 = arith.addf %14, %16 : vector<28x448xf32>
    %cst_12 = arith.constant 0.000000e+00 : f32
    %18 = vector.broadcast %cst_12 : f32 to vector<28x448xf32>
    %19 = arith.maximumf %17, %18 : vector<28x448xf32>
    %20 = arith.truncf %19 : vector<28x448xf32> to vector<28x448xbf16>
    %21 = vector.extract_strided_slice %20 {offsets = [0, 0], sizes = [24, 448], strides = [1, 1]} : vector<28x448xbf16> to vector<24x448xbf16>
    %c0_13 = arith.constant 0 : index
    %c0_14 = arith.constant 0 : index
    %c0_15 = arith.constant 0 : index
    %22 = vector.load %arg4[%c0_13, %c0_14, %c0_15] : memref<3x448x384xbf16, #tpu.memory_space<vmem>>, vector<1x448x384xbf16>
    %23 = vector.shape_cast %22 : vector<1x448x384xbf16> to vector<448x384xbf16>
    %cst_16 = arith.constant dense<0.000000e+00> : vector<24x384xf32>
    %24 = tpu.matmul %21, %23, %cst_16 {dimension_numbers = #tpu.dot_dimension_numbers<[1], [0], [0], [1], [0, 0, 1, 1], [], []>} : vector<24x448xbf16>, vector<448x384xbf16>, vector<24x384xf32> -> vector<24x384xf32>
    %25 = vector.extract_strided_slice %20 {offsets = [0, 0], sizes = [24, 448], strides = [1, 1]} : vector<28x448xbf16> to vector<24x448xbf16>
    %c0_17 = arith.constant 0 : index
    %c0_18 = arith.constant 0 : index
    %c0_19 = arith.constant 0 : index
    %26 = vector.load %arg5[%c0_17, %c0_18, %c0_19] : memref<3x448x384xbf16, #tpu.memory_space<vmem>>, vector<1x448x384xbf16>
    %27 = vector.shape_cast %26 : vector<1x448x384xbf16> to vector<448x384xbf16>
    %cst_20 = arith.constant dense<0.000000e+00> : vector<24x384xf32>
    %28 = tpu.matmul %25, %27, %cst_20 {dimension_numbers = #tpu.dot_dimension_numbers<[1], [0], [0], [1], [0, 0, 1, 1], [], []>} : vector<24x448xbf16>, vector<448x384xbf16>, vector<24x384xf32> -> vector<24x384xf32>
    %29 = vector.extract_strided_slice %20 {offsets = [2, 0], sizes = [24, 448], strides = [1, 1]} : vector<28x448xbf16> to vector<24x448xbf16>
    %c1_21 = arith.constant 1 : index
    %c0_22 = arith.constant 0 : index
    %c0_23 = arith.constant 0 : index
    %30 = vector.load %arg4[%c1_21, %c0_22, %c0_23] : memref<3x448x384xbf16, #tpu.memory_space<vmem>>, vector<1x448x384xbf16>
    %31 = vector.shape_cast %30 : vector<1x448x384xbf16> to vector<448x384xbf16>
    %cst_24 = arith.constant dense<0.000000e+00> : vector<24x384xf32>
    %32 = tpu.matmul %29, %31, %cst_24 {dimension_numbers = #tpu.dot_dimension_numbers<[1], [0], [0], [1], [0, 0, 1, 1], [], []>} : vector<24x448xbf16>, vector<448x384xbf16>, vector<24x384xf32> -> vector<24x384xf32>
    %33 = arith.addf %24, %32 : vector<24x384xf32>
    %34 = vector.extract_strided_slice %20 {offsets = [2, 0], sizes = [24, 448], strides = [1, 1]} : vector<28x448xbf16> to vector<24x448xbf16>
    %c1_25 = arith.constant 1 : index
    %c0_26 = arith.constant 0 : index
    %c0_27 = arith.constant 0 : index
    %35 = vector.load %arg5[%c1_25, %c0_26, %c0_27] : memref<3x448x384xbf16, #tpu.memory_space<vmem>>, vector<1x448x384xbf16>
    %36 = vector.shape_cast %35 : vector<1x448x384xbf16> to vector<448x384xbf16>
    %cst_28 = arith.constant dense<0.000000e+00> : vector<24x384xf32>
    %37 = tpu.matmul %34, %36, %cst_28 {dimension_numbers = #tpu.dot_dimension_numbers<[1], [0], [0], [1], [0, 0, 1, 1], [], []>} : vector<24x448xbf16>, vector<448x384xbf16>, vector<24x384xf32> -> vector<24x384xf32>
    %38 = arith.addf %28, %37 : vector<24x384xf32>
    %39 = vector.extract_strided_slice %20 {offsets = [4, 0], sizes = [24, 448], strides = [1, 1]} : vector<28x448xbf16> to vector<24x448xbf16>
    %c2_29 = arith.constant 2 : index
    %c0_30 = arith.constant 0 : index
    %c0_31 = arith.constant 0 : index
    %40 = vector.load %arg4[%c2_29, %c0_30, %c0_31] : memref<3x448x384xbf16, #tpu.memory_space<vmem>>, vector<1x448x384xbf16>
    %41 = vector.shape_cast %40 : vector<1x448x384xbf16> to vector<448x384xbf16>
    %cst_32 = arith.constant dense<0.000000e+00> : vector<24x384xf32>
    %42 = tpu.matmul %39, %41, %cst_32 {dimension_numbers = #tpu.dot_dimension_numbers<[1], [0], [0], [1], [0, 0, 1, 1], [], []>} : vector<24x448xbf16>, vector<448x384xbf16>, vector<24x384xf32> -> vector<24x384xf32>
    %43 = arith.addf %33, %42 : vector<24x384xf32>
    %44 = vector.extract_strided_slice %20 {offsets = [4, 0], sizes = [24, 448], strides = [1, 1]} : vector<28x448xbf16> to vector<24x448xbf16>
    %c2_33 = arith.constant 2 : index
    %c0_34 = arith.constant 0 : index
    %c0_35 = arith.constant 0 : index
    %45 = vector.load %arg5[%c2_33, %c0_34, %c0_35] : memref<3x448x384xbf16, #tpu.memory_space<vmem>>, vector<1x448x384xbf16>
    %46 = vector.shape_cast %45 : vector<1x448x384xbf16> to vector<448x384xbf16>
    %cst_36 = arith.constant dense<0.000000e+00> : vector<24x384xf32>
    %47 = tpu.matmul %44, %46, %cst_36 {dimension_numbers = #tpu.dot_dimension_numbers<[1], [0], [0], [1], [0, 0, 1, 1], [], []>} : vector<24x448xbf16>, vector<448x384xbf16>, vector<24x384xf32> -> vector<24x384xf32>
    %48 = arith.addf %38, %47 : vector<24x384xf32>
    %49 = arith.maximumf %43, %48 : vector<24x384xf32>
    %c0_37 = arith.constant 0 : index
    %c0_38 = arith.constant 0 : index
    %50 = vector.load %arg6[%c0_37, %c0_38] : memref<1x384xf32, #tpu.memory_space<vmem>>, vector<1x384xf32>
    %51 = vector.broadcast %50 : vector<1x384xf32> to vector<24x384xf32>
    %52 = arith.addf %49, %51 : vector<24x384xf32>
    %cst_39 = arith.constant 0.000000e+00 : f32
    %53 = vector.broadcast %cst_39 : f32 to vector<24x384xf32>
    %54 = arith.maximumf %52, %53 : vector<24x384xf32>
    %cst_40 = arith.constant 0.000000e+00 : f32
    %55 = vector.broadcast %cst_40 : f32 to vector<2x128xf32>
    %56 = vector.extract_strided_slice %54 {offsets = [0, 0], sizes = [2, 384], strides = [1, 1]} : vector<24x384xf32> to vector<2x384xf32>
    %57 = vector.extract_strided_slice %54 {offsets = [2, 0], sizes = [2, 384], strides = [1, 1]} : vector<24x384xf32> to vector<2x384xf32>
    %58 = arith.maximumf %56, %57 : vector<2x384xf32>
    %59 = arith.truncf %58 : vector<2x384xf32> to vector<2x384xbf16>
    %c0_41 = arith.constant 0 : index
    %c0_42 = arith.constant 0 : index
    %c0_43 = arith.constant 0 : index
    %60 = vector.load %arg7[%c0_41, %c0_42, %c0_43] : memref<6x384x128xbf16, #tpu.memory_space<vmem>>, vector<1x384x128xbf16>
    %61 = vector.shape_cast %60 : vector<1x384x128xbf16> to vector<384x128xbf16>
    %cst_44 = arith.constant dense<0.000000e+00> : vector<2x128xf32>
    %62 = tpu.matmul %59, %61, %cst_44 {dimension_numbers = #tpu.dot_dimension_numbers<[1], [0], [0], [1], [0, 0, 1, 1], [], []>} : vector<2x384xbf16>, vector<384x128xbf16>, vector<2x128xf32> -> vector<2x128xf32>
    %63 = arith.addf %55, %62 : vector<2x128xf32>
    %64 = vector.extract_strided_slice %54 {offsets = [4, 0], sizes = [2, 384], strides = [1, 1]} : vector<24x384xf32> to vector<2x384xf32>
    %65 = vector.extract_strided_slice %54 {offsets = [6, 0], sizes = [2, 384], strides = [1, 1]} : vector<24x384xf32> to vector<2x384xf32>
    %66 = arith.maximumf %64, %65 : vector<2x384xf32>
    %67 = arith.truncf %66 : vector<2x384xf32> to vector<2x384xbf16>
    %c1_45 = arith.constant 1 : index
    %c0_46 = arith.constant 0 : index
    %c0_47 = arith.constant 0 : index
    %68 = vector.load %arg7[%c1_45, %c0_46, %c0_47] : memref<6x384x128xbf16, #tpu.memory_space<vmem>>, vector<1x384x128xbf16>
    %69 = vector.shape_cast %68 : vector<1x384x128xbf16> to vector<384x128xbf16>
    %cst_48 = arith.constant dense<0.000000e+00> : vector<2x128xf32>
    %70 = tpu.matmul %67, %69, %cst_48 {dimension_numbers = #tpu.dot_dimension_numbers<[1], [0], [0], [1], [0, 0, 1, 1], [], []>} : vector<2x384xbf16>, vector<384x128xbf16>, vector<2x128xf32> -> vector<2x128xf32>
    %71 = arith.addf %63, %70 : vector<2x128xf32>
    %72 = vector.extract_strided_slice %54 {offsets = [8, 0], sizes = [2, 384], strides = [1, 1]} : vector<24x384xf32> to vector<2x384xf32>
    %73 = vector.extract_strided_slice %54 {offsets = [10, 0], sizes = [2, 384], strides = [1, 1]} : vector<24x384xf32> to vector<2x384xf32>
    %74 = arith.maximumf %72, %73 : vector<2x384xf32>
    %75 = arith.truncf %74 : vector<2x384xf32> to vector<2x384xbf16>
    %c2_49 = arith.constant 2 : index
    %c0_50 = arith.constant 0 : index
    %c0_51 = arith.constant 0 : index
    %76 = vector.load %arg7[%c2_49, %c0_50, %c0_51] : memref<6x384x128xbf16, #tpu.memory_space<vmem>>, vector<1x384x128xbf16>
    %77 = vector.shape_cast %76 : vector<1x384x128xbf16> to vector<384x128xbf16>
    %cst_52 = arith.constant dense<0.000000e+00> : vector<2x128xf32>
    %78 = tpu.matmul %75, %77, %cst_52 {dimension_numbers = #tpu.dot_dimension_numbers<[1], [0], [0], [1], [0, 0, 1, 1], [], []>} : vector<2x384xbf16>, vector<384x128xbf16>, vector<2x128xf32> -> vector<2x128xf32>
    %79 = arith.addf %71, %78 : vector<2x128xf32>
    %80 = vector.extract_strided_slice %54 {offsets = [12, 0], sizes = [2, 384], strides = [1, 1]} : vector<24x384xf32> to vector<2x384xf32>
    %81 = vector.extract_strided_slice %54 {offsets = [14, 0], sizes = [2, 384], strides = [1, 1]} : vector<24x384xf32> to vector<2x384xf32>
    %82 = arith.maximumf %80, %81 : vector<2x384xf32>
    %83 = arith.truncf %82 : vector<2x384xf32> to vector<2x384xbf16>
    %c3 = arith.constant 3 : index
    %c0_53 = arith.constant 0 : index
    %c0_54 = arith.constant 0 : index
    %84 = vector.load %arg7[%c3, %c0_53, %c0_54] : memref<6x384x128xbf16, #tpu.memory_space<vmem>>, vector<1x384x128xbf16>
    %85 = vector.shape_cast %84 : vector<1x384x128xbf16> to vector<384x128xbf16>
    %cst_55 = arith.constant dense<0.000000e+00> : vector<2x128xf32>
    %86 = tpu.matmul %83, %85, %cst_55 {dimension_numbers = #tpu.dot_dimension_numbers<[1], [0], [0], [1], [0, 0, 1, 1], [], []>} : vector<2x384xbf16>, vector<384x128xbf16>, vector<2x128xf32> -> vector<2x128xf32>
    %87 = arith.addf %79, %86 : vector<2x128xf32>
    %88 = vector.extract_strided_slice %54 {offsets = [16, 0], sizes = [2, 384], strides = [1, 1]} : vector<24x384xf32> to vector<2x384xf32>
    %89 = vector.extract_strided_slice %54 {offsets = [18, 0], sizes = [2, 384], strides = [1, 1]} : vector<24x384xf32> to vector<2x384xf32>
    %90 = arith.maximumf %88, %89 : vector<2x384xf32>
    %91 = arith.truncf %90 : vector<2x384xf32> to vector<2x384xbf16>
    %c4 = arith.constant 4 : index
    %c0_56 = arith.constant 0 : index
    %c0_57 = arith.constant 0 : index
    %92 = vector.load %arg7[%c4, %c0_56, %c0_57] : memref<6x384x128xbf16, #tpu.memory_space<vmem>>, vector<1x384x128xbf16>
    %93 = vector.shape_cast %92 : vector<1x384x128xbf16> to vector<384x128xbf16>
    %cst_58 = arith.constant dense<0.000000e+00> : vector<2x128xf32>
    %94 = tpu.matmul %91, %93, %cst_58 {dimension_numbers = #tpu.dot_dimension_numbers<[1], [0], [0], [1], [0, 0, 1, 1], [], []>} : vector<2x384xbf16>, vector<384x128xbf16>, vector<2x128xf32> -> vector<2x128xf32>
    %95 = arith.addf %87, %94 : vector<2x128xf32>
    %96 = vector.extract_strided_slice %54 {offsets = [20, 0], sizes = [2, 384], strides = [1, 1]} : vector<24x384xf32> to vector<2x384xf32>
    %97 = vector.extract_strided_slice %54 {offsets = [22, 0], sizes = [2, 384], strides = [1, 1]} : vector<24x384xf32> to vector<2x384xf32>
    %98 = arith.maximumf %96, %97 : vector<2x384xf32>
    %99 = arith.truncf %98 : vector<2x384xf32> to vector<2x384xbf16>
    %c5 = arith.constant 5 : index
    %c0_59 = arith.constant 0 : index
    %c0_60 = arith.constant 0 : index
    %100 = vector.load %arg7[%c5, %c0_59, %c0_60] : memref<6x384x128xbf16, #tpu.memory_space<vmem>>, vector<1x384x128xbf16>
    %101 = vector.shape_cast %100 : vector<1x384x128xbf16> to vector<384x128xbf16>
    %cst_61 = arith.constant dense<0.000000e+00> : vector<2x128xf32>
    %102 = tpu.matmul %99, %101, %cst_61 {dimension_numbers = #tpu.dot_dimension_numbers<[1], [0], [0], [1], [0, 0, 1, 1], [], []>} : vector<2x384xbf16>, vector<384x128xbf16>, vector<2x128xf32> -> vector<2x128xf32>
    %103 = arith.addf %95, %102 : vector<2x128xf32>
    %c0_62 = arith.constant 0 : index
    %c0_63 = arith.constant 0 : index
    %104 = vector.load %arg8[%c0_62, %c0_63] : memref<1x128xf32, #tpu.memory_space<vmem>>, vector<1x128xf32>
    %105 = vector.broadcast %104 : vector<1x128xf32> to vector<2x128xf32>
    %106 = arith.addf %103, %105 : vector<2x128xf32>
    %cst_64 = arith.constant 0.000000e+00 : f32
    %107 = vector.broadcast %cst_64 : f32 to vector<2x128xf32>
    %108 = arith.maximumf %106, %107 : vector<2x128xf32>
    %109 = arith.truncf %108 : vector<2x128xf32> to vector<2x128xbf16>
    %c0_65 = arith.constant 0 : index
    %c0_66 = arith.constant 0 : index
    %110 = vector.load %arg9[%c0_65, %c0_66] : memref<128x10xbf16, #tpu.memory_space<vmem>>, vector<128x10xbf16>
    %cst_67 = arith.constant dense<0.000000e+00> : vector<2x10xf32>
    %111 = tpu.matmul %109, %110, %cst_67 {dimension_numbers = #tpu.dot_dimension_numbers<[1], [0], [0], [1], [0, 0, 1, 1], [], []>} : vector<2x128xbf16>, vector<128x10xbf16>, vector<2x10xf32> -> vector<2x10xf32>
    %c0_68 = arith.constant 0 : index
    %c0_69 = arith.constant 0 : index
    %112 = vector.load %arg10[%c0_68, %c0_69] : memref<1x10xf32, #tpu.memory_space<vmem>>, vector<1x10xf32>
    %113 = vector.broadcast %112 : vector<1x10xf32> to vector<2x10xf32>
    %114 = arith.addf %111, %113 : vector<2x10xf32>
    %cst_70 = arith.constant dense<0xFF800000> : vector<2xf32>
    %115 = vector.multi_reduction <maximumf>, %114, %cst_70 [1] : vector<2x10xf32> to vector<2xf32>
    %116 = vector.shape_cast %115 : vector<2xf32> to vector<2x1xf32>
    %117 = vector.broadcast %116 : vector<2x1xf32> to vector<2x10xf32>
    %118 = arith.subf %114, %117 : vector<2x10xf32>
    %119 = math.exp %118 : vector<2x10xf32>
    %cst_71 = arith.constant dense<0.000000e+00> : vector<2xf32>
    %120 = vector.multi_reduction <add>, %119, %cst_71 [1] : vector<2x10xf32> to vector<2xf32>
    %121 = vector.shape_cast %120 : vector<2xf32> to vector<2x1xf32>
    %122 = math.log %121 : vector<2x1xf32>
    %123 = vector.broadcast %122 : vector<2x1xf32> to vector<2x10xf32>
    %124 = arith.subf %118, %123 : vector<2x10xf32>
    %c0_72 = arith.constant 0 : index
    %c0_73 = arith.constant 0 : index
    %125 = vector.load %arg11[%c0_72, %c0_73] : memref<2x10xf32, #tpu.memory_space<vmem>>, vector<2x10xf32>
    tpu.vector_store %arg11[%c0_72, %c0_73], %124 {strides = array<i32>} : memref<2x10xf32, #tpu.memory_space<vmem>>, vector<2x10xf32>,
    return
  }
  func.func @transform_0(%arg0: i32) -> (i32, i32) {
    %c0_i32 = arith.constant 0 : i32
    %c0_i32_0 = arith.constant 0 : i32
    return %arg0, %c0_i32 : i32, i32
  }
  func.func @transform_1(%arg0: i32) -> (i32, i32, i32) {
    %c0_i32 = arith.constant 0 : i32
    %c0_i32_0 = arith.constant 0 : i32
    %c0_i32_1 = arith.constant 0 : i32
    %c0_i32_2 = arith.constant 0 : i32
    return %c0_i32, %c0_i32_0, %c0_i32_1 : i32, i32, i32
  }
  func.func @transform_2(%arg0: i32) -> (i32, i32) {
    %c0_i32 = arith.constant 0 : i32
    %c0_i32_0 = arith.constant 0 : i32
    %c0_i32_1 = arith.constant 0 : i32
    return %c0_i32, %c0_i32_0 : i32, i32
  }
  func.func @transform_3(%arg0: i32) -> (i32, i32, i32) {
    %c0_i32 = arith.constant 0 : i32
    %c0_i32_0 = arith.constant 0 : i32
    %c0_i32_1 = arith.constant 0 : i32
    %c0_i32_2 = arith.constant 0 : i32
    return %c0_i32, %c0_i32_0, %c0_i32_1 : i32, i32, i32
  }
  func.func @transform_4(%arg0: i32) -> (i32, i32, i32) {
    %c0_i32 = arith.constant 0 : i32
    %c0_i32_0 = arith.constant 0 : i32
    %c0_i32_1 = arith.constant 0 : i32
    %c0_i32_2 = arith.constant 0 : i32
    return %c0_i32, %c0_i32_0, %c0_i32_1 : i32, i32, i32
  }
  func.func @transform_5(%arg0: i32) -> (i32, i32) {
    %c0_i32 = arith.constant 0 : i32
    %c0_i32_0 = arith.constant 0 : i32
    %c0_i32_1 = arith.constant 0 : i32
    return %c0_i32, %c0_i32_0 : i32, i32
  }
  func.func @transform_6(%arg0: i32) -> (i32, i32, i32) {
    %c0_i32 = arith.constant 0 : i32
    %c0_i32_0 = arith.constant 0 : i32
    %c0_i32_1 = arith.constant 0 : i32
    %c0_i32_2 = arith.constant 0 : i32
    return %c0_i32, %c0_i32_0, %c0_i32_1 : i32, i32, i32
  }
  func.func @transform_7(%arg0: i32) -> (i32, i32) {
    %c0_i32 = arith.constant 0 : i32
    %c0_i32_0 = arith.constant 0 : i32
    %c0_i32_1 = arith.constant 0 : i32
    return %c0_i32, %c0_i32_0 : i32, i32
  }
  func.func @transform_8(%arg0: i32) -> (i32, i32) {
    %c0_i32 = arith.constant 0 : i32
    %c0_i32_0 = arith.constant 0 : i32
    %c0_i32_1 = arith.constant 0 : i32
    return %c0_i32, %c0_i32_0 : i32, i32
  }
  func.func @transform_9(%arg0: i32) -> (i32, i32) {
    %c0_i32 = arith.constant 0 : i32
    %c0_i32_0 = arith.constant 0 : i32
    %c0_i32_1 = arith.constant 0 : i32
    return %c0_i32, %c0_i32_0 : i32, i32
  }
  func.func @transform_10(%arg0: i32) -> (i32, i32) {
    %c0_i32 = arith.constant 0 : i32
    %c0_i32_0 = arith.constant 0 : i32
    return %arg0, %c0_i32 : i32, i32
  }
}

</mosaic_0001>

<llo_original>
// kernel: tpu_custom_call.1
$region0: #{tpu_custom_call.1}
  #allocation0 [shape = 'u32[]', space=smem, size = 0x4, offset = 0x4, fixed_abs, tag = 'smem constant byte address 0x4 - core index']
  #allocation1 [shape = 'u32[144,128]{1,0:T(1,128)}', space=vmem, size = 0x12000, scoped, tag = 'internal scratch']
  %s0 = inlined_call_operand.hbm [shape: f32[32,16], index: 0, kind: input, shape index: {}]
  %s1 = inlined_call_operand.hbm [shape: f32[3,16,448], index: 1, kind: input, shape index: {}]
  %s2 = inlined_call_operand.hbm [shape: f32[1,448], index: 2, kind: input, shape index: {}]
  %s3 = inlined_call_operand.hbm [shape: bf16[3,448,384], index: 3, kind: input, shape index: {}]
  %s4 = inlined_call_operand.hbm [shape: bf16[3,448,384], index: 4, kind: input, shape index: {}]
  %s5 = inlined_call_operand.hbm [shape: f32[1,384], index: 5, kind: input, shape index: {}]
  %s6 = inlined_call_operand.hbm [shape: bf16[6,384,128], index: 6, kind: input, shape index: {}]
  %s7 = inlined_call_operand.hbm [shape: f32[1,128], index: 7, kind: input, shape index: {}]
  %s8 = inlined_call_operand.hbm [shape: bf16[128,10], index: 8, kind: input, shape index: {}]
  %s9 = inlined_call_operand.hbm [shape: f32[1,10], index: 9, kind: input, shape index: {}]
  %s10 = inlined_call_operand.hbm [shape: f32[2,10], index: 10, kind: output, shape index: {}]
  %s11 = sld [smem:[#allocation0]]
  $region90: #{tpu_custom_call.1} parent=0
    _
  %s13 = ssub.s32 1, %s11
  %s14 = scalar_select 0, %s13, %s11
  $region1: #{tpu_custom_call.1} parent=0
    #allocation2 [shape = 'u8[16384]{0}', space=vmem, size = 0x4000, scoped, tag = 'input window, operand 0, single buffered']
    #allocation3 [shape = 's32[1]{0}', space=sflag, size = 0x4, scoped, tag = 'scoped memory for tpu_custom_call.1']
    #allocation4 [shape = 's32[1]{0}', space=sflag, size = 0x4, scoped, tag = 'scoped memory for tpu_custom_call.1']
    #allocation5 [shape = 'u8[98304]{0}', space=vmem, size = 0x18000, scoped, tag = 'input window, operand 1, single buffered']
    #allocation6 [shape = 's32[1]{0}', space=sflag, size = 0x4, scoped, tag = 'scoped memory for tpu_custom_call.1']
    #allocation7 [shape = 'u8[2048]{0}', space=vmem, size = 0x800, scoped, tag = 'input window, operand 2, single buffered']
    #allocation8 [shape = 'u8[1032192]{0}', space=vmem, size = 0xfc000, scoped, tag = 'input window, operand 3, single buffered']
    #allocation9 [shape = 's32[1]{0}', space=sflag, size = 0x4, scoped, tag = 'scoped memory for tpu_custom_call.1']
    #allocation10 [shape = 'u8[1032192]{0}', space=vmem, size = 0xfc000, scoped, tag = 'input window, operand 4, single buffered']
    #allocation11 [shape = 'u8[1536]{0}', space=vmem, size = 0x800, scoped, tag = 'input window, operand 5, single buffered']
    #allocation12 [shape = 's32[1]{0}', space=sflag, size = 0x4, scoped, tag = 'scoped memory for tpu_custom_call.1']
    #allocation13 [shape = 'u8[589824]{0}', space=vmem, size = 0x90000, scoped, tag = 'input window, operand 6, single buffered']
    #allocation14 [shape = 'u8[512]{0}', space=vmem, size = 0x400, scoped, tag = 'input window, operand 7, single buffered']
    #allocation15 [shape = 's32[1]{0}', space=sflag, size = 0x4, scoped, tag = 'scoped memory for tpu_custom_call.1']
    #allocation16 [shape = 'u8[32768]{0}', space=vmem, size = 0x8000, scoped, tag = 'input window, operand 8, single buffered']
    #allocation17 [shape = 'u8[512]{0}', space=vmem, size = 0x400, scoped, tag = 'input window, operand 9, single buffered']
    #allocation18 [shape = 's32[1]{0}', space=sflag, size = 0x4, scoped, tag = 'scoped memory for tpu_custom_call.1']
    #allocation19 [shape = 'u8[1024]{0}', space=vmem, size = 0x400, scoped, tag = 'output window, operand 0, single buffered']
    %15 = vsyncpa [#allocation3], 0
    %16 = vsyncpa [#allocation6], 0
    %17 = vsyncpa [#allocation9], 0
    %18 = vsyncpa [#allocation12], 0
    %19 = vsyncpa [#allocation15], 0
    %20 = vsyncpa [#allocation18], 0
    %21 = vsyncpa [#allocation4], 0
    // Predicated region
    $region2: #{tpu_custom_call.1} parent=1 // pred_check
      _
    $region3: #{tpu_custom_call.1} parent=1 // pred_check_branch
      %23 = sbr.rel (0) target = $region5
    $region4: #{tpu_custom_call.1} parent=1 // pred_region
      %s25 = ssub.s32 512, 512
      %26 = vsyncadd [#allocation3], %s25
      %s27 = sshll.u32 [#allocation2], 4
      %s28 = int_to_ptr.vmem [resolvable:$true] %s27
      %33 = dma.hbm_to_vmem [thread:$0]  %s0, 512, %s28, [#allocation3], 128, 128, 8
    $region5: #{tpu_custom_call.1} parent=1 // pred_fallthru
      _
    // Predicated region
    $region6: #{tpu_custom_call.1} parent=1 // pred_check
      _
    $region7: #{tpu_custom_call.1} parent=1 // pred_check_branch
      %35 = sbr.rel (0) target = $region9
    $region8: #{tpu_custom_call.1} parent=1 // pred_region
      %s37 = ssub.s32 3072, 3072
      %38 = vsyncadd [#allocation6], %s37
      %s39 = sshll.u32 [#allocation5], 4
      %s40 = int_to_ptr.vmem [resolvable:$true] %s39
      %45 = dma.hbm_to_vmem [thread:$0]  %s1, 3072, %s40, [#allocation6], 512, 512, 32
    $region9: #{tpu_custom_call.1} parent=1 // pred_fallthru
      _
    // Predicated region
    $region10: #{tpu_custom_call.1} parent=1 // pred_check
      _
    $region11: #{tpu_custom_call.1} parent=1 // pred_check_branch
      %47 = sbr.rel (0) target = $region13
    $region12: #{tpu_custom_call.1} parent=1 // pred_region
      %s49 = ssub.s32 64, 64
      %50 = vsyncadd [#allocation6], %s49
      %s52 = sshll.u32 [#allocation7], 4
      %s53 = int_to_ptr.vmem [resolvable:$true] %s52
      %55 = dma.hbm_to_vmem [thread:$0]  %s2, 64, %s53, [#allocation6]
    $region13: #{tpu_custom_call.1} parent=1 // pred_fallthru
      _
    // Predicated region
    $region14: #{tpu_custom_call.1} parent=1 // pred_check
      _
    $region15: #{tpu_custom_call.1} parent=1 // pred_check_branch
      %57 = sbr.rel (0) target = $region17
    $region16: #{tpu_custom_call.1} parent=1 // pred_region
      %s59 = ssub.s32 32256, 32256
      %60 = vsyncadd [#allocation9], %s59
      %s61 = sshll.u32 [#allocation8], 4
      %s62 = int_to_ptr.vmem [resolvable:$true] %s61
      %67 = dma.hbm_to_vmem [thread:$0]  %s3, 32256, %s62, [#allocation9], 192, 192, 12
    $region17: #{tpu_custom_call.1} parent=1 // pred_fallthru
      _
    // Predicated region
    $region18: #{tpu_custom_call.1} parent=1 // pred_check
      _
    $region19: #{tpu_custom_call.1} parent=1 // pred_check_branch
      %69 = sbr.rel (0) target = $region21
    $region20: #{tpu_custom_call.1} parent=1 // pred_region
      %s71 = ssub.s32 32256, 32256
      %72 = vsyncadd [#allocation9], %s71
      %s73 = sshll.u32 [#allocation10], 4
      %s74 = int_to_ptr.vmem [resolvable:$true] %s73
      %79 = dma.hbm_to_vmem [thread:$0]  %s4, 32256, %s74, [#allocation9], 192, 192, 12
    $region21: #{tpu_custom_call.1} parent=1 // pred_fallthru
      _
    // Predicated region
    $region22: #{tpu_custom_call.1} parent=1 // pred_check
      _
    $region23: #{tpu_custom_call.1} parent=1 // pred_check_branch
      %81 = sbr.rel (0) target = $region25
    $region24: #{tpu_custom_call.1} parent=1 // pred_region
      %s83 = ssub.s32 48, 48
      %84 = vsyncadd [#allocation12], %s83
      %s86 = sshll.u32 [#allocation11], 4
      %s87 = int_to_ptr.vmem [resolvable:$true] %s86
      %89 = dma.hbm_to_vmem [thread:$0]  %s5, 48, %s87, [#allocation12]
    $region25: #{tpu_custom_call.1} parent=1 // pred_fallthru
      _
    // Predicated region
    $region26: #{tpu_custom_call.1} parent=1 // pred_check
      _
    $region27: #{tpu_custom_call.1} parent=1 // pred_check_branch
      %91 = sbr.rel (0) target = $region29
    $region28: #{tpu_custom_call.1} parent=1 // pred_region
      %s93 = ssub.s32 18432, 18432
      %94 = vsyncadd [#allocation12], %s93
      %s95 = sshll.u32 [#allocation13], 4
      %s96 = int_to_ptr.vmem [resolvable:$true] %s95
      %101 = dma.hbm_to_vmem [thread:$0]  %s6, 18432, %s96, [#allocation12], 64, 64, 4
    $region29: #{tpu_custom_call.1} parent=1 // pred_fallthru
      _
    // Predicated region
    $region30: #{tpu_custom_call.1} parent=1 // pred_check
      _
    $region31: #{tpu_custom_call.1} parent=1 // pred_check_branch
      %103 = sbr.rel (0) target = $region33
    $region32: #{tpu_custom_call.1} parent=1 // pred_region
      %s105 = ssub.s32 16, 16
      %106 = vsyncadd [#allocation15], %s105
      %s108 = sshll.u32 [#allocation14], 4
      %s109 = int_to_ptr.vmem [resolvable:$true] %s108
      %111 = dma.hbm_to_vmem [thread:$0]  %s7, 16, %s109, [#allocation15]
    $region33: #{tpu_custom_call.1} parent=1 // pred_fallthru
      _
    // Predicated region
    $region34: #{tpu_custom_call.1} parent=1 // pred_check
      _
    $region35: #{tpu_custom_call.1} parent=1 // pred_check_branch
      %113 = sbr.rel (0) target = $region37
    $region36: #{tpu_custom_call.1} parent=1 // pred_region
      %s115 = ssub.s32 1024, 1024
      %116 = vsyncadd [#allocation15], %s115
      %s117 = sshll.u32 [#allocation16], 4
      %s118 = int_to_ptr.vmem [resolvable:$true] %s117
      %123 = dma.hbm_to_vmem [thread:$0]  %s8, 1024, %s118, [#allocation15], 64, 64, 4
    $region37: #{tpu_custom_call.1} parent=1 // pred_fallthru
      _
    // Predicated region
    $region38: #{tpu_custom_call.1} parent=1 // pred_check
      _
    $region39: #{tpu_custom_call.1} parent=1 // pred_check_branch
      %125 = sbr.rel (0) target = $region41
    $region40: #{tpu_custom_call.1} parent=1 // pred_region
      %s127 = ssub.s32 16, 16
      %128 = vsyncadd [#allocation18], %s127
      %s130 = sshll.u32 [#allocation17], 4
      %s131 = int_to_ptr.vmem [resolvable:$true] %s130
      %133 = dma.hbm_to_vmem [thread:$0]  %s9, 16, %s131, [#allocation18]
    $region41: #{tpu_custom_call.1} parent=1 // pred_fallthru
      _
    // Predicated region
    $region42: #{tpu_custom_call.1} parent=1 // pred_check
      _
    $region43: #{tpu_custom_call.1} parent=1 // pred_check_branch
      %135 = sbr.rel (0) target = $region45
    $region44: #{tpu_custom_call.1} parent=1 // pred_region
      %136 = dma.done [#allocation3], 512
    $region45: #{tpu_custom_call.1} parent=1 // pred_fallthru
      _
    // Predicated region
    $region46: #{tpu_custom_call.1} parent=1 // pred_check
      _
    $region47: #{tpu_custom_call.1} parent=1 // pred_check_branch
      %138 = sbr.rel (0) target = $region49
    $region48: #{tpu_custom_call.1} parent=1 // pred_region
      %139 = dma.done [#allocation6], 3072
    $region49: #{tpu_custom_call.1} parent=1 // pred_fallthru
      _
    // Predicated region
    $region50: #{tpu_custom_call.1} parent=1 // pred_check
      _
    $region51: #{tpu_custom_call.1} parent=1 // pred_check_branch
      %141 = sbr.rel (0) target = $region53
    $region52: #{tpu_custom_call.1} parent=1 // pred_region
      %142 = dma.done [#allocation6], 64
    $region53: #{tpu_custom_call.1} parent=1 // pred_fallthru
      _
    // Predicated region
    $region54: #{tpu_custom_call.1} parent=1 // pred_check
      _
    $region55: #{tpu_custom_call.1} parent=1 // pred_check_branch
      %144 = sbr.rel (0) target = $region57
    $region56: #{tpu_custom_call.1} parent=1 // pred_region
      %145 = dma.done [#allocation9], 32256
    $region57: #{tpu_custom_call.1} parent=1 // pred_fallthru
      _
    // Predicated region
    $region58: #{tpu_custom_call.1} parent=1 // pred_check
      _
    $region59: #{tpu_custom_call.1} parent=1 // pred_check_branch
      %147 = sbr.rel (0) target = $region61
    $region60: #{tpu_custom_call.1} parent=1 // pred_region
      %148 = dma.done [#allocation9], 32256
    $region61: #{tpu_custom_call.1} parent=1 // pred_fallthru
      _
    // Predicated region
    $region62: #{tpu_custom_call.1} parent=1 // pred_check
      _
    $region63: #{tpu_custom_call.1} parent=1 // pred_check_branch
      %150 = sbr.rel (0) target = $region65
    $region64: #{tpu_custom_call.1} parent=1 // pred_region
      %151 = dma.done [#allocation12], 48
    $region65: #{tpu_custom_call.1} parent=1 // pred_fallthru
      _
    // Predicated region
    $region66: #{tpu_custom_call.1} parent=1 // pred_check
      _
    $region67: #{tpu_custom_call.1} parent=1 // pred_check_branch
      %153 = sbr.rel (0) target = $region69
    $region68: #{tpu_custom_call.1} parent=1 // pred_region
      %154 = dma.done [#allocation12], 18432
    $region69: #{tpu_custom_call.1} parent=1 // pred_fallthru
      _
    // Predicated region
    $region70: #{tpu_custom_call.1} parent=1 // pred_check
      _
    $region71: #{tpu_custom_call.1} parent=1 // pred_check_branch
      %156 = sbr.rel (0) target = $region73
    $region72: #{tpu_custom_call.1} parent=1 // pred_region
      %157 = dma.done [#allocation15], 16
    $region73: #{tpu_custom_call.1} parent=1 // pred_fallthru
      _
    // Predicated region
    $region74: #{tpu_custom_call.1} parent=1 // pred_check
      _
    $region75: #{tpu_custom_call.1} parent=1 // pred_check_branch
      %159 = sbr.rel (0) target = $region77
    $region76: #{tpu_custom_call.1} parent=1 // pred_region
      %160 = dma.done [#allocation15], 1024
    $region77: #{tpu_custom_call.1} parent=1 // pred_fallthru
      _
    // Predicated region
    $region78: #{tpu_custom_call.1} parent=1 // pred_check
      _
    $region79: #{tpu_custom_call.1} parent=1 // pred_check_branch
      %162 = sbr.rel (0) target = $region81
    $region80: #{tpu_custom_call.1} parent=1 // pred_region
      %163 = dma.done [#allocation18], 16
    $region81: #{tpu_custom_call.1} parent=1 // pred_fallthru
      _
    %v165 = vld [vmem:[#allocation2] sm:$0xff]
    %v166 = vld [vmem:[#allocation2 + $0x8] sm:$0xff]
    %v167 = vld [vmem:[#allocation2 + $0x10] sm:$0xff]
    %v168 = vld [vmem:[#allocation2 + $0x18] sm:$0xff]
    %v169 = vld [vmem:[#allocation5] sm:$0xff]
    %v170 = vld [vmem:[#allocation5 + $0x8] sm:$0xff]
    %v171 = vld [vmem:[#allocation5 + $0x10] sm:$0xff]
    %v172 = vld [vmem:[#allocation5 + $0x18] sm:$0xff]
    %v173 = vld [vmem:[#allocation5 + $0x20] sm:$0xff]
    %v174 = vld [vmem:[#allocation5 + $0x28] sm:$0xff]
    %v175 = vld [vmem:[#allocation5 + $0x30] sm:$0xff]
    %v176 = vld [vmem:[#allocation5 + $0x38] sm:$0xff]
    %s177 = scalar_lea.vmem [#allocation5], 64
    %v178 = vld [vmem:[%s177] sm:$0xff]
    %v179 = vld [vmem:[%s177 + $0x8] sm:$0xff]
    %v180 = vld [vmem:[%s177 + $0x10] sm:$0xff]
    %v181 = vld [vmem:[%s177 + $0x18] sm:$0xff]
    %v182 = vld [vmem:[%s177 + $0x20] sm:$0xff]
    %v183 = vld [vmem:[%s177 + $0x28] sm:$0xff]
    %v184 = vld [vmem:[%s177 + $0x30] sm:$0xff]
    %v185 = vld [vmem:[%s177 + $0x38] sm:$0xff]
    %vm190 = vcmask 1045504
    %v191 = vrot.slane %v165, 2
    %v192 = vrot.slane %v166, 2
    %v193 = vsel %vm190, %v191, %v192
    %v194 = vrot.slane %v167, 2
    %v195 = vsel %vm190, %v192, %v194
    %v196 = vrot.slane %v168, 2
    %v197 = vsel %vm190, %v194, %v196
    %vm198 = vcmask 130048
    %v199 = vsel %vm198, %v193, 0
    %v201 = vsel %vm198, %v195, 0
    %v203 = vsel %vm198, %v197, 0
    %v205 = vsel %vm198, %v196, 0
    %207 = vmatprep.subr.mxu0 %v179
    %208 = vmatpush1.msra.mxu0 %v178
    %209 = vmatprep.subr.mxu0 %v183
    %210 = vmatpush1.msra.mxu0 %v182
    %211 = vmatprep.subr.mxu0 0.0
    %212 = vmatpush1.msra.mxu0 0.0
    %213 = vmatprep.subr.mxu0 0.0
    %214 = vmatpush1.msra.mxu0 0.0
    %215 = vmatprep.subr.mxu0 0.0
    %216 = vmatpush1.msra.mxu0 0.0
    %217 = vmatprep.subr.mxu0 0.0
    %218 = vmatpush1.msra.mxu0 0.0
    %219 = vmatprep.subr.mxu0 0.0
    %220 = vmatpush1.msra.mxu0 0.0
    %221 = vmatprep.subr.mxu0 0.0
    %222 = vmatpush1.msra.mxu0 0.0
    %223 = vmatprep.subr.mxu0 0.0
    %224 = vmatpush1.msra.mxu0 0.0
    %225 = vmatprep.subr.mxu0 0.0
    %226 = vmatpush1.msra.mxu0 0.0
    %227 = vmatprep.subr.mxu0 0.0
    %228 = vmatpush1.msra.mxu0 0.0
    %229 = vmatprep.subr.mxu0 0.0
    %230 = vmatpush1.msra.mxu0 0.0
    %231 = vmatprep.subr.mxu0 0.0
    %232 = vmatpush1.msra.mxu0 0.0
    %233 = vmatprep.subr.mxu0 0.0
    %234 = vmatpush1.msra.mxu0 0.0
    %235 = vmatprep.subr.mxu0 0.0
    %236 = vmatpush1.msra.mxu0 0.0
    %237 = vmatprep.subr.mxu0 0.0
    %238 = vmatpush1.msra.mxu0 0.0
    %239 = vmatprep.subr.mxu0 0.0
    %240 = vmatpush1.msra.mxu0 0.0
    %241 = vmatprep.subr.mxu0 0.0
    %242 = vmatpush1.msra.mxu0 0.0
    %243 = vmatprep.subr.mxu0 0.0
    %244 = vmatpush1.msra.mxu0 0.0
    %245 = vmatprep.subr.mxu0 0.0
    %246 = vmatpush1.msra.mxu0 0.0
    %247 = vmatprep.subr.mxu0 0.0
    %248 = vmatpush1.msra.mxu0 0.0
    %249 = vmatprep.subr.mxu0 0.0
    %250 = vmatpush1.msra.mxu0 0.0
    %251 = vmatprep.subr.mxu0 0.0
    %252 = vmatpush1.msra.mxu0 0.0
    %253 = vmatprep.subr.mxu0 0.0
    %254 = vmatpush1.msra.mxu0 0.0
    %255 = vmatprep.subr.mxu0 0.0
    %256 = vmatpush1.msra.mxu0 0.0
    %257 = vmatprep.subr.mxu0 0.0
    %258 = vmatpush1.msra.mxu0 0.0
    %259 = vmatprep.subr.mxu0 0.0
    %260 = vmatpush1.msra.mxu0 0.0
    %261 = vmatprep.subr.mxu0 0.0
    %262 = vmatpush1.msra.mxu0 0.0
    %263 = vmatprep.subr.mxu0 0.0
    %264 = vmatpush1.msra.mxu0 0.0
    %265 = vmatprep.subr.mxu0 0.0
    %266 = vmatpush1.msra.mxu0 0.0
    %267 = vmatprep.subr.mxu0 0.0
    %268 = vmatpush1.msra.mxu0 0.0
    %269 = vmatprep.subr.mxu0 0.0
    %270 = vmatpush1.msra.mxu0 0.0
    %271 = vmatprep.mubr.f32.mxu0 0.0
    %272 = vmatmul.mubr.f32.gmra.mrb[0].mxu0 %v199
    %v273 = vpop.f32.mrb[0].mxu0
    %v274 = vadd.f32 0.0, %v273
    %v275 = vpop.f32.mrb[0].mxu0
    %v276 = vadd.f32 0.0, %v275
    %277 = vmatprep.mubr.f32.mxu0 0.0
    %278 = vmatmul.mubr.f32.gmra.mrb[0].mxu0 %v201
    %v279 = vpop.f32.mrb[0].mxu0
    %v280 = vadd.f32 0.0, %v279
    %v281 = vpop.f32.mrb[0].mxu0
    %v282 = vadd.f32 0.0, %v281
    %283 = vmatprep.mubr.f32.mxu0 0.0
    %284 = vmatmul.mubr.f32.gmra.mrb[0].mxu0 %v203
    %v285 = vpop.f32.mrb[0].mxu0
    %v286 = vadd.f32 0.0, %v285
    %v287 = vpop.f32.mrb[0].mxu0
    %v288 = vadd.f32 0.0, %v287
    %289 = vmatprep.mubr.f32.mxu0 0.0
    %290 = vmatmul.mubr.f32.gmra.mrb[0].mxu0 %v205
    %v291 = vpop.f32.mrb[0].mxu0
    %v292 = vadd.f32 0.0, %v291
    %v293 = vpop.f32.mrb[0].mxu0
    %v294 = vadd.f32 0.0, %v293
    %295 = vdwg.mxu0
    %296 = vmatprep.subr.mxu0 %v181
    %297 = vmatpush1.msra.mxu0 %v180
    %298 = vmatprep.subr.mxu0 %v185
    %299 = vmatpush1.msra.mxu0 %v184
    %300 = vmatprep.subr.mxu0 0.0
    %301 = vmatpush1.msra.mxu0 0.0
    %302 = vmatprep.subr.mxu0 0.0
    %303 = vmatpush1.msra.mxu0 0.0
    %304 = vmatprep.subr.mxu0 0.0
    %305 = vmatpush1.msra.mxu0 0.0
    %306 = vmatprep.subr.mxu0 0.0
    %307 = vmatpush1.msra.mxu0 0.0
    %308 = vmatprep.subr.mxu0 0.0
    %309 = vmatpush1.msra.mxu0 0.0
    %310 = vmatprep.subr.mxu0 0.0
    %311 = vmatpush1.msra.mxu0 0.0
    %312 = vmatprep.subr.mxu0 0.0
    %313 = vmatpush1.msra.mxu0 0.0
    %314 = vmatprep.subr.mxu0 0.0
    %315 = vmatpush1.msra.mxu0 0.0
    %316 = vmatprep.subr.mxu0 0.0
    %317 = vmatpush1.msra.mxu0 0.0
    %318 = vmatprep.subr.mxu0 0.0
    %319 = vmatpush1.msra.mxu0 0.0
    %320 = vmatprep.subr.mxu0 0.0
    %321 = vmatpush1.msra.mxu0 0.0
    %322 = vmatprep.subr.mxu0 0.0
    %323 = vmatpush1.msra.mxu0 0.0
    %324 = vmatprep.subr.mxu0 0.0
    %325 = vmatpush1.msra.mxu0 0.0
    %326 = vmatprep.subr.mxu0 0.0
    %327 = vmatpush1.msra.mxu0 0.0
    %328 = vmatprep.subr.mxu0 0.0
    %329 = vmatpush1.msra.mxu0 0.0
    %330 = vmatprep.subr.mxu0 0.0
    %331 = vmatpush1.msra.mxu0 0.0
    %332 = vmatprep.subr.mxu0 0.0
    %333 = vmatpush1.msra.mxu0 0.0
    %334 = vmatprep.subr.mxu0 0.0
    %335 = vmatpush1.msra.mxu0 0.0
    %336 = vmatprep.subr.mxu0 0.0
    %337 = vmatpush1.msra.mxu0 0.0
    %338 = vmatprep.subr.mxu0 0.0
    %339 = vmatpush1.msra.mxu0 0.0
    %340 = vmatprep.subr.mxu0 0.0
    %341 = vmatpush1.msra.mxu0 0.0
    %342 = vmatprep.subr.mxu0 0.0
    %343 = vmatpush1.msra.mxu0 0.0
    %344 = vmatprep.subr.mxu0 0.0
    %345 = vmatpush1.msra.mxu0 0.0
    %346 = vmatprep.subr.mxu0 0.0
    %347 = vmatpush1.msra.mxu0 0.0
    %348 = vmatprep.subr.mxu0 0.0
    %349 = vmatpush1.msra.mxu0 0.0
    %350 = vmatprep.subr.mxu0 0.0
    %351 = vmatpush1.msra.mxu0 0.0
    %352 = vmatprep.subr.mxu0 0.0
    %353 = vmatpush1.msra.mxu0 0.0
    %354 = vmatprep.subr.mxu0 0.0
    %355 = vmatpush1.msra.mxu0 0.0
    %356 = vmatprep.subr.mxu0 0.0
    %357 = vmatpush1.msra.mxu0 0.0
    %358 = vmatprep.subr.mxu0 0.0
    %359 = vmatpush1.msra.mxu0 0.0
    %360 = vmatprep.mubr.f32.mxu0 0.0
    %361 = vmatmul.mubr.f32.gmra.mrb[0].mxu0 %v199
    %v362 = vpop.f32.mrb[0].mxu0
    %v363 = vadd.f32 0.0, %v362
    %v364 = vpop.f32.mrb[0].mxu0
    %v365 = vadd.f32 0.0, %v364
    %366 = vmatprep.mubr.f32.mxu0 0.0
    %367 = vmatmul.mubr.f32.gmra.mrb[0].mxu0 %v201
    %v368 = vpop.f32.mrb[0].mxu0
    %v369 = vadd.f32 0.0, %v368
    %v370 = vpop.f32.mrb[0].mxu0
    %v371 = vadd.f32 0.0, %v370
    %372 = vmatprep.mubr.f32.mxu0 0.0
    %373 = vmatmul.mubr.f32.gmra.mrb[0].mxu0 %v203
    %v374 = vpop.f32.mrb[0].mxu0
    %v375 = vadd.f32 0.0, %v374
    %v376 = vpop.f32.mrb[0].mxu0
    %v377 = vadd.f32 0.0, %v376
    %378 = vmatprep.mubr.f32.mxu0 0.0
    %379 = vmatmul.mubr.f32.gmra.mrb[0].mxu0 %v205
    %v380 = vpop.f32.mrb[0].mxu0
    %v381 = vadd.f32 0.0, %v380
    %v382 = vpop.f32.mrb[0].mxu0
    %v383 = vadd.f32 0.0, %v382
    %384 = vdwg.mxu0
    %v385 = vsel %vm198, %v165, 0
    %v387 = vsel %vm198, %v166, 0
    %v389 = vsel %vm198, %v167, 0
    %v391 = vsel %vm198, %v168, 0
    %393 = vmatprep.subr.mxu0 %v170
    %394 = vmatpush1.msra.mxu0 %v169
    %395 = vmatprep.subr.mxu0 %v174
    %396 = vmatpush1.msra.mxu0 %v173
    %397 = vmatprep.subr.mxu0 0.0
    %398 = vmatpush1.msra.mxu0 0.0
    %399 = vmatprep.subr.mxu0 0.0
    %400 = vmatpush1.msra.mxu0 0.0
    %401 = vmatprep.subr.mxu0 0.0
    %402 = vmatpush1.msra.mxu0 0.0
    %403 = vmatprep.subr.mxu0 0.0
    %404 = vmatpush1.msra.mxu0 0.0
    %405 = vmatprep.subr.mxu0 0.0
    %406 = vmatpush1.msra.mxu0 0.0
    %407 = vmatprep.subr.mxu0 0.0
    %408 = vmatpush1.msra.mxu0 0.0
    %409 = vmatprep.subr.mxu0 0.0
    %410 = vmatpush1.msra.mxu0 0.0
    %411 = vmatprep.subr.mxu0 0.0
    %412 = vmatpush1.msra.mxu0 0.0
    %413 = vmatprep.subr.mxu0 0.0
    %414 = vmatpush1.msra.mxu0 0.0
    %415 = vmatprep.subr.mxu0 0.0
    %416 = vmatpush1.msra.mxu0 0.0
    %417 = vmatprep.subr.mxu0 0.0
    %418 = vmatpush1.msra.mxu0 0.0
    %419 = vmatprep.subr.mxu0 0.0
    %420 = vmatpush1.msra.mxu0 0.0
    %421 = vmatprep.subr.mxu0 0.0
    %422 = vmatpush1.msra.mxu0 0.0
    %423 = vmatprep.subr.mxu0 0.0
    %424 = vmatpush1.msra.mxu0 0.0
    %425 = vmatprep.subr.mxu0 0.0
    %426 = vmatpush1.msra.mxu0 0.0
    %427 = vmatprep.subr.mxu0 0.0
    %428 = vmatpush1.msra.mxu0 0.0
    %429 = vmatprep.subr.mxu0 0.0
    %430 = vmatpush1.msra.mxu0 0.0
    %431 = vmatprep.subr.mxu0 0.0
    %432 = vmatpush1.msra.mxu0 0.0
    %433 = vmatprep.subr.mxu0 0.0
    %434 = vmatpush1.msra.mxu0 0.0
    %435 = vmatprep.subr.mxu0 0.0
    %436 = vmatpush1.msra.mxu0 0.0
    %437 = vmatprep.subr.mxu0 0.0
    %438 = vmatpush1.msra.mxu0 0.0
    %439 = vmatprep.subr.mxu0 0.0
    %440 = vmatpush1.msra.mxu0 0.0
    %441 = vmatprep.subr.mxu0 0.0
    %442 = vmatpush1.msra.mxu0 0.0
    %443 = vmatprep.subr.mxu0 0.0
    %444 = vmatpush1.msra.mxu0 0.0
    %445 = vmatprep.subr.mxu0 0.0
    %446 = vmatpush1.msra.mxu0 0.0
    %447 = vmatprep.subr.mxu0 0.0
    %448 = vmatpush1.msra.mxu0 0.0
    %449 = vmatprep.subr.mxu0 0.0
    %450 = vmatpush1.msra.mxu0 0.0
    %451 = vmatprep.subr.mxu0 0.0
    %452 = vmatpush1.msra.mxu0 0.0
    %453 = vmatprep.subr.mxu0 0.0
    %454 = vmatpush1.msra.mxu0 0.0
    %455 = vmatprep.subr.mxu0 0.0
    %456 = vmatpush1.msra.mxu0 0.0
    %457 = vmatprep.mubr.f32.mxu0 0.0
    %458 = vmatmul.mubr.f32.gmra.mrb[0].mxu0 %v385
    %v459 = vpop.f32.mrb[0].mxu0
    %v460 = vadd.f32 %v274, %v459
    %v461 = vpop.f32.mrb[0].mxu0
    %v462 = vadd.f32 %v276, %v461
    %463 = vmatprep.mubr.f32.mxu0 0.0
    %464 = vmatmul.mubr.f32.gmra.mrb[0].mxu0 %v387
    %v465 = vpop.f32.mrb[0].mxu0
    %v466 = vadd.f32 %v280, %v465
    %v467 = vpop.f32.mrb[0].mxu0
    %v468 = vadd.f32 %v282, %v467
    %469 = vmatprep.mubr.f32.mxu0 0.0
    %470 = vmatmul.mubr.f32.gmra.mrb[0].mxu0 %v389
    %v471 = vpop.f32.mrb[0].mxu0
    %v472 = vadd.f32 %v286, %v471
    %v473 = vpop.f32.mrb[0].mxu0
    %v474 = vadd.f32 %v288, %v473
    %475 = vmatprep.mubr.f32.mxu0 0.0
    %476 = vmatmul.mubr.f32.gmra.mrb[0].mxu0 %v391
    %v477 = vpop.f32.mrb[0].mxu0
    %v478 = vadd.f32 %v292, %v477
    %v479 = vpop.f32.mrb[0].mxu0
    %v480 = vadd.f32 %v294, %v479
    %481 = vdwg.mxu0
    %482 = vmatprep.subr.mxu0 %v172
    %483 = vmatpush1.msra.mxu0 %v171
    %484 = vmatprep.subr.mxu0 %v176
    %485 = vmatpush1.msra.mxu0 %v175
    %486 = vmatprep.subr.mxu0 0.0
    %487 = vmatpush1.msra.mxu0 0.0
    %488 = vmatprep.subr.mxu0 0.0
    %489 = vmatpush1.msra.mxu0 0.0
    %490 = vmatprep.subr.mxu0 0.0
    %491 = vmatpush1.msra.mxu0 0.0
    %492 = vmatprep.subr.mxu0 0.0
    %493 = vmatpush1.msra.mxu0 0.0
    %494 = vmatprep.subr.mxu0 0.0
    %495 = vmatpush1.msra.mxu0 0.0
    %496 = vmatprep.subr.mxu0 0.0
    %497 = vmatpush1.msra.mxu0 0.0
    %498 = vmatprep.subr.mxu0 0.0
    %499 = vmatpush1.msra.mxu0 0.0
    %500 = vmatprep.subr.mxu0 0.0
    %501 = vmatpush1.msra.mxu0 0.0
    %502 = vmatprep.subr.mxu0 0.0
    %503 = vmatpush1.msra.mxu0 0.0
    %504 = vmatprep.subr.mxu0 0.0
    %505 = vmatpush1.msra.mxu0 0.0
    %506 = vmatprep.subr.mxu0 0.0
    %507 = vmatpush1.msra.mxu0 0.0
    %508 = vmatprep.subr.mxu0 0.0
    %509 = vmatpush1.msra.mxu0 0.0
    %510 = vmatprep.subr.mxu0 0.0
    %511 = vmatpush1.msra.mxu0 0.0
    %512 = vmatprep.subr.mxu0 0.0
    %513 = vmatpush1.msra.mxu0 0.0
    %514 = vmatprep.subr.mxu0 0.0
    %515 = vmatpush1.msra.mxu0 0.0
    %516 = vmatprep.subr.mxu0 0.0
    %517 = vmatpush1.msra.mxu0 0.0
    %518 = vmatprep.subr.mxu0 0.0
    %519 = vmatpush1.msra.mxu0 0.0
    %520 = vmatprep.subr.mxu0 0.0
    %521 = vmatpush1.msra.mxu0 0.0
    %522 = vmatprep.subr.mxu0 0.0
    %523 = vmatpush1.msra.mxu0 0.0
    %524 = vmatprep.subr.mxu0 0.0
    %525 = vmatpush1.msra.mxu0 0.0
    %526 = vmatprep.subr.mxu0 0.0
    %527 = vmatpush1.msra.mxu0 0.0
    %528 = vmatprep.subr.mxu0 0.0
    %529 = vmatpush1.msra.mxu0 0.0
    %530 = vmatprep.subr.mxu0 0.0
    %531 = vmatpush1.msra.mxu0 0.0
    %532 = vmatprep.subr.mxu0 0.0
    %533 = vmatpush1.msra.mxu0 0.0
    %534 = vmatprep.subr.mxu0 0.0
    %535 = vmatpush1.msra.mxu0 0.0
    %536 = vmatprep.subr.mxu0 0.0
    %537 = vmatpush1.msra.mxu0 0.0
    %538 = vmatprep.subr.mxu0 0.0
    %539 = vmatpush1.msra.mxu0 0.0
    %540 = vmatprep.subr.mxu0 0.0
    %541 = vmatpush1.msra.mxu0 0.0
    %542 = vmatprep.subr.mxu0 0.0
    %543 = vmatpush1.msra.mxu0 0.0
    %544 = vmatprep.subr.mxu0 0.0
    %545 = vmatpush1.msra.mxu0 0.0
    %546 = vmatprep.mubr.f32.mxu0 0.0
    %547 = vmatmul.mubr.f32.gmra.mrb[0].mxu0 %v385
    %v548 = vpop.f32.mrb[0].mxu0
    %v549 = vadd.f32 %v363, %v548
    %v550 = vpop.f32.mrb[0].mxu0
    %v551 = vadd.f32 %v365, %v550
    %552 = vmatprep.mubr.f32.mxu0 0.0
    %553 = vmatmul.mubr.f32.gmra.mrb[0].mxu0 %v387
    %v554 = vpop.f32.mrb[0].mxu0
    %v555 = vadd.f32 %v369, %v554
    %v556 = vpop.f32.mrb[0].mxu0
    %v557 = vadd.f32 %v371, %v556
    %558 = vmatprep.mubr.f32.mxu0 0.0
    %559 = vmatmul.mubr.f32.gmra.mrb[0].mxu0 %v389
    %v560 = vpop.f32.mrb[0].mxu0
    %v561 = vadd.f32 %v375, %v560
    %v562 = vpop.f32.mrb[0].mxu0
    %v563 = vadd.f32 %v377, %v562
    %564 = vmatprep.mubr.f32.mxu0 0.0
    %565 = vmatmul.mubr.f32.gmra.mrb[0].mxu0 %v391
    %v566 = vpop.f32.mrb[0].mxu0
    %v567 = vadd.f32 %v381, %v566
    %v568 = vpop.f32.mrb[0].mxu0
    %v569 = vadd.f32 %v383, %v568
    %570 = vdwg.mxu0
    %s571 = scalar_lea.vmem [#allocation5], 128
    %v572 = vld [vmem:[%s571] sm:$0xff]
    %v573 = vld [vmem:[%s571 + $0x8] sm:$0xff]
    %v574 = vld [vmem:[%s571 + $0x10] sm:$0xff]
    %v575 = vld [vmem:[%s571 + $0x18] sm:$0xff]
    %v576 = vld [vmem:[%s571 + $0x20] sm:$0xff]
    %v577 = vld [vmem:[%s571 + $0x28] sm:$0xff]
    %v578 = vld [vmem:[%s571 + $0x30] sm:$0xff]
    %v579 = vld [vmem:[%s571 + $0x38] sm:$0xff]
    %vm580 = vcmask 1043456
    %v581 = vrot.slane %v165, 4
    %v582 = vrot.slane %v166, 4
    %v583 = vsel %vm580, %v581, %v582
    %v584 = vrot.slane %v167, 4
    %v585 = vsel %vm580, %v582, %v584
    %v586 = vrot.slane %v168, 4
    %v587 = vsel %vm580, %v584, %v586
    %v588 = vsel %vm198, %v583, 0
    %v590 = vsel %vm198, %v585, 0
    %v592 = vsel %vm198, %v587, 0
    %v594 = vsel %vm198, %v586, 0
    %596 = vmatprep.subr.mxu0 %v573
    %597 = vmatpush1.msra.mxu0 %v572
    %598 = vmatprep.subr.mxu0 %v577
    %599 = vmatpush1.msra.mxu0 %v576
    %600 = vmatprep.subr.mxu0 0.0
    %601 = vmatpush1.msra.mxu0 0.0
    %602 = vmatprep.subr.mxu0 0.0
    %603 = vmatpush1.msra.mxu0 0.0
    %604 = vmatprep.subr.mxu0 0.0
    %605 = vmatpush1.msra.mxu0 0.0
    %606 = vmatprep.subr.mxu0 0.0
    %607 = vmatpush1.msra.mxu0 0.0
    %608 = vmatprep.subr.mxu0 0.0
    %609 = vmatpush1.msra.mxu0 0.0
    %610 = vmatprep.subr.mxu0 0.0
    %611 = vmatpush1.msra.mxu0 0.0
    %612 = vmatprep.subr.mxu0 0.0
    %613 = vmatpush1.msra.mxu0 0.0
    %614 = vmatprep.subr.mxu0 0.0
    %615 = vmatpush1.msra.mxu0 0.0
    %616 = vmatprep.subr.mxu0 0.0
    %617 = vmatpush1.msra.mxu0 0.0
    %618 = vmatprep.subr.mxu0 0.0
    %619 = vmatpush1.msra.mxu0 0.0
    %620 = vmatprep.subr.mxu0 0.0
    %621 = vmatpush1.msra.mxu0 0.0
    %622 = vmatprep.subr.mxu0 0.0
    %623 = vmatpush1.msra.mxu0 0.0
    %624 = vmatprep.subr.mxu0 0.0
    %625 = vmatpush1.msra.mxu0 0.0
    %626 = vmatprep.subr.mxu0 0.0
    %627 = vmatpush1.msra.mxu0 0.0
    %628 = vmatprep.subr.mxu0 0.0
    %629 = vmatpush1.msra.mxu0 0.0
    %630 = vmatprep.subr.mxu0 0.0
    %631 = vmatpush1.msra.mxu0 0.0
    %632 = vmatprep.subr.mxu0 0.0
    %633 = vmatpush1.msra.mxu0 0.0
    %634 = vmatprep.subr.mxu0 0.0
    %635 = vmatpush1.msra.mxu0 0.0
    %636 = vmatprep.subr.mxu0 0.0
    %637 = vmatpush1.msra.mxu0 0.0
    %638 = vmatprep.subr.mxu0 0.0
    %639 = vmatpush1.msra.mxu0 0.0
    %640 = vmatprep.subr.mxu0 0.0
    %641 = vmatpush1.msra.mxu0 0.0
    %642 = vmatprep.subr.mxu0 0.0
    %643 = vmatpush1.msra.mxu0 0.0
    %644 = vmatprep.subr.mxu0 0.0
    %645 = vmatpush1.msra.mxu0 0.0
    %646 = vmatprep.subr.mxu0 0.0
    %647 = vmatpush1.msra.mxu0 0.0
    %648 = vmatprep.subr.mxu0 0.0
    %649 = vmatpush1.msra.mxu0 0.0
    %650 = vmatprep.subr.mxu0 0.0
    %651 = vmatpush1.msra.mxu0 0.0
    %652 = vmatprep.subr.mxu0 0.0
    %653 = vmatpush1.msra.mxu0 0.0
    %654 = vmatprep.subr.mxu0 0.0
    %655 = vmatpush1.msra.mxu0 0.0
    %656 = vmatprep.subr.mxu0 0.0
    %657 = vmatpush1.msra.mxu0 0.0
    %658 = vmatprep.subr.mxu0 0.0
    %659 = vmatpush1.msra.mxu0 0.0
    %660 = vmatprep.mubr.f32.mxu0 0.0
    %661 = vmatmul.mubr.f32.gmra.mrb[0].mxu0 %v588
    %v662 = vpop.f32.mrb[0].mxu0
    %v663 = vadd.f32 0.0, %v662
    %v664 = vpop.f32.mrb[0].mxu0
    %v665 = vadd.f32 0.0, %v664
    %666 = vmatprep.mubr.f32.mxu0 0.0
    %667 = vmatmul.mubr.f32.gmra.mrb[0].mxu0 %v590
    %v668 = vpop.f32.mrb[0].mxu0
    %v669 = vadd.f32 0.0, %v668
    %v670 = vpop.f32.mrb[0].mxu0
    %v671 = vadd.f32 0.0, %v670
    %672 = vmatprep.mubr.f32.mxu0 0.0
    %673 = vmatmul.mubr.f32.gmra.mrb[0].mxu0 %v592
    %v674 = vpop.f32.mrb[0].mxu0
    %v675 = vadd.f32 0.0, %v674
    %v676 = vpop.f32.mrb[0].mxu0
    %v677 = vadd.f32 0.0, %v676
    %678 = vmatprep.mubr.f32.mxu0 0.0
    %679 = vmatmul.mubr.f32.gmra.mrb[0].mxu0 %v594
    %v680 = vpop.f32.mrb[0].mxu0
    %v681 = vadd.f32 0.0, %v680
    %v682 = vpop.f32.mrb[0].mxu0
    %v683 = vadd.f32 0.0, %v682
    %684 = vdwg.mxu0
    %685 = vmatprep.subr.mxu0 %v575
    %686 = vmatpush1.msra.mxu0 %v574
    %687 = vmatprep.subr.mxu0 %v579
    %688 = vmatpush1.msra.mxu0 %v578
    %689 = vmatprep.subr.mxu0 0.0
    %690 = vmatpush1.msra.mxu0 0.0
    %691 = vmatprep.subr.mxu0 0.0
    %692 = vmatpush1.msra.mxu0 0.0
    %693 = vmatprep.subr.mxu0 0.0
    %694 = vmatpush1.msra.mxu0 0.0
    %695 = vmatprep.subr.mxu0 0.0
    %696 = vmatpush1.msra.mxu0 0.0
    %697 = vmatprep.subr.mxu0 0.0
    %698 = vmatpush1.msra.mxu0 0.0
    %699 = vmatprep.subr.mxu0 0.0
    %700 = vmatpush1.msra.mxu0 0.0
    %701 = vmatprep.subr.mxu0 0.0
    %702 = vmatpush1.msra.mxu0 0.0
    %703 = vmatprep.subr.mxu0 0.0
    %704 = vmatpush1.msra.mxu0 0.0
    %705 = vmatprep.subr.mxu0 0.0
    %706 = vmatpush1.msra.mxu0 0.0
    %707 = vmatprep.subr.mxu0 0.0
    %708 = vmatpush1.msra.mxu0 0.0
    %709 = vmatprep.subr.mxu0 0.0
    %710 = vmatpush1.msra.mxu0 0.0
    %711 = vmatprep.subr.mxu0 0.0
    %712 = vmatpush1.msra.mxu0 0.0
    %713 = vmatprep.subr.mxu0 0.0
    %714 = vmatpush1.msra.mxu0 0.0
    %715 = vmatprep.subr.mxu0 0.0
    %716 = vmatpush1.msra.mxu0 0.0
    %717 = vmatprep.subr.mxu0 0.0
    %718 = vmatpush1.msra.mxu0 0.0
    %719 = vmatprep.subr.mxu0 0.0
    %720 = vmatpush1.msra.mxu0 0.0
    %721 = vmatprep.subr.mxu0 0.0
    %722 = vmatpush1.msra.mxu0 0.0
    %723 = vmatprep.subr.mxu0 0.0
    %724 = vmatpush1.msra.mxu0 0.0
    %725 = vmatprep.subr.mxu0 0.0
    %726 = vmatpush1.msra.mxu0 0.0
    %727 = vmatprep.subr.mxu0 0.0
    %728 = vmatpush1.msra.mxu0 0.0
    %729 = vmatprep.subr.mxu0 0.0
    %730 = vmatpush1.msra.mxu0 0.0
    %731 = vmatprep.subr.mxu0 0.0
    %732 = vmatpush1.msra.mxu0 0.0
    %733 = vmatprep.subr.mxu0 0.0
    %734 = vmatpush1.msra.mxu0 0.0
    %735 = vmatprep.subr.mxu0 0.0
    %736 = vmatpush1.msra.mxu0 0.0
    %737 = vmatprep.subr.mxu0 0.0
    %738 = vmatpush1.msra.mxu0 0.0
    %739 = vmatprep.subr.mxu0 0.0
    %740 = vmatpush1.msra.mxu0 0.0
    %741 = vmatprep.subr.mxu0 0.0
    %742 = vmatpush1.msra.mxu0 0.0
    %743 = vmatprep.subr.mxu0 0.0
    %744 = vmatpush1.msra.mxu0 0.0
    %745 = vmatprep.subr.mxu0 0.0
    %746 = vmatpush1.msra.mxu0 0.0
    %747 = vmatprep.subr.mxu0 0.0
    %748 = vmatpush1.msra.mxu0 0.0
    %749 = vmatprep.mubr.f32.mxu0 0.0
    %750 = vmatmul.mubr.f32.gmra.mrb[0].mxu0 %v588
    %v751 = vpop.f32.mrb[0].mxu0
    %v752 = vadd.f32 0.0, %v751
    %v753 = vpop.f32.mrb[0].mxu0
    %v754 = vadd.f32 0.0, %v753
    %755 = vmatprep.mubr.f32.mxu0 0.0
    %756 = vmatmul.mubr.f32.gmra.mrb[0].mxu0 %v590
    %v757 = vpop.f32.mrb[0].mxu0
    %v758 = vadd.f32 0.0, %v757
    %v759 = vpop.f32.mrb[0].mxu0
    %v760 = vadd.f32 0.0, %v759
    %761 = vmatprep.mubr.f32.mxu0 0.0
    %762 = vmatmul.mubr.f32.gmra.mrb[0].mxu0 %v592
    %v763 = vpop.f32.mrb[0].mxu0
    %v764 = vadd.f32 0.0, %v763
    %v765 = vpop.f32.mrb[0].mxu0
    %v766 = vadd.f32 0.0, %v765
    %767 = vmatprep.mubr.f32.mxu0 0.0
    %768 = vmatmul.mubr.f32.gmra.mrb[0].mxu0 %v594
    %v769 = vpop.f32.mrb[0].mxu0
    %v770 = vadd.f32 0.0, %v769
    %v771 = vpop.f32.mrb[0].mxu0
    %v772 = vadd.f32 0.0, %v771
    %773 = vdwg.mxu0
    %v774 = vadd.f32 %v460, %v663
    %v775 = vadd.f32 %v462, %v665
    %v776 = vadd.f32 %v549, %v752
    %v777 = vadd.f32 %v551, %v754
    %v778 = vadd.f32 %v466, %v669
    %v779 = vadd.f32 %v468, %v671
    %v780 = vadd.f32 %v555, %v758
    %v781 = vadd.f32 %v557, %v760
    %v782 = vadd.f32 %v472, %v675
    %v783 = vadd.f32 %v474, %v677
    %v784 = vadd.f32 %v561, %v764
    %v785 = vadd.f32 %v563, %v766
    %v786 = vadd.f32 %v478, %v681
    %v787 = vadd.f32 %v480, %v683
    %v788 = vadd.f32 %v567, %v770
    %v789 = vadd.f32 %v569, %v772
    %v790 = vld [vmem:[#allocation7] sm:$0xf]
    %v792 = vlaneseq
    %v793 = vshrl.u32 %v792, 7
    %v794 = vsub.s32 0, %v793
    %v795 = vrot.slane %v790, %v794
    %v796 = vlaneseq
    %v797 = vshrl.u32 %v796, 7
    %v798 = vsub.s32 1, %v797
    %v799 = vrot.slane %v790, %v798
    %v800 = vlaneseq
    %v801 = vshrl.u32 %v800, 7
    %v802 = vsub.s32 2, %v801
    %v803 = vrot.slane %v790, %v802
    %v804 = vlaneseq
    %v805 = vshrl.u32 %v804, 7
    %v806 = vsub.s32 3, %v805
    %v807 = vrot.slane %v790, %v806
    %v812 = vadd.f32 %v774, %v795
    %v813 = vadd.f32 %v775, %v799
    %v814 = vadd.f32 %v776, %v803
    %v815 = vadd.f32 %v777, %v807
    %v816 = vadd.f32 %v778, %v795
    %v817 = vadd.f32 %v779, %v799
    %v818 = vadd.f32 %v780, %v803
    %v819 = vadd.f32 %v781, %v807
    %v820 = vadd.f32 %v782, %v795
    %v821 = vadd.f32 %v783, %v799
    %v822 = vadd.f32 %v784, %v803
    %v823 = vadd.f32 %v785, %v807
    %v824 = vadd.f32 %v786, %v795
    %v825 = vadd.f32 %v787, %v799
    %v826 = vadd.f32 %v788, %v803
    %v827 = vadd.f32 %v789, %v807
    %v828 = vmax.f32 %v812, 0.0
    %v829 = vmax.f32 %v813, 0.0
    %v830 = vmax.f32 %v814, 0.0
    %v831 = vmax.f32 %v815, 0.0
    %v832 = vmax.f32 %v816, 0.0
    %v833 = vmax.f32 %v817, 0.0
    %v834 = vmax.f32 %v818, 0.0
    %v835 = vmax.f32 %v819, 0.0
    %v836 = vmax.f32 %v820, 0.0
    %v837 = vmax.f32 %v821, 0.0
    %v838 = vmax.f32 %v822, 0.0
    %v839 = vmax.f32 %v823, 0.0
    %v840 = vmax.f32 %v824, 0.0
    %v841 = vmax.f32 %v825, 0.0
    %v842 = vmax.f32 %v826, 0.0
    %v843 = vmax.f32 %v827, 0.0
    %v844 = vpack.c.bf16 %v832, %v828
    %v845 = vpack.c.bf16 %v833, %v829
    %v846 = vpack.c.bf16 %v834, %v830
    %v847 = vpack.c.bf16 %v835, %v831
    %v848 = vpack.c.bf16 %v840, %v836
    %v849 = vpack.c.bf16 %v841, %v837
    %v850 = vpack.c.bf16 %v842, %v838
    %v851 = vpack.c.bf16 %v843, %v839
    %v852 = vld [vmem:[#allocation8] sm:$0xff]
    %v853 = vld [vmem:[#allocation8 + $0x8] sm:$0xf]
    %v854 = vld [vmem:[#allocation8 + $0xc] sm:$0xff]
    %v855 = vld [vmem:[#allocation8 + $0x14] sm:$0xf]
    %v856 = vld [vmem:[#allocation8 + $0x18] sm:$0xff]
    %v857 = vld [vmem:[#allocation8 + $0x20] sm:$0xf]
    %v858 = vld [vmem:[#allocation8 + $0x24] sm:$0xff]
    %v859 = vld [vmem:[#allocation8 + $0x2c] sm:$0xf]
    %v860 = vld [vmem:[#allocation8 + $0x30] sm:$0xff]
    %v861 = vld [vmem:[#allocation8 + $0x38] sm:$0xf]
    %v862 = vld [vmem:[#allocation8 + $0x3c] sm:$0xff]
    %v863 = vld [vmem:[#allocation8 + $0x44] sm:$0xf]
    %v864 = vld [vmem:[#allocation8 + $0x48] sm:$0xff]
    %v865 = vld [vmem:[#allocation8 + $0x50] sm:$0xf]
    %v866 = vld [vmem:[#allocation8 + $0x54] sm:$0xff]
    %v867 = vld [vmem:[#allocation8 + $0x5c] sm:$0xf]
    %v868 = vld [vmem:[#allocation8 + $0x60] sm:$0xff]
    %v869 = vld [vmem:[#allocation8 + $0x68] sm:$0xf]
    %v870 = vld [vmem:[#allocation8 + $0x6c] sm:$0xff]
    %v871 = vld [vmem:[#allocation8 + $0x74] sm:$0xf]
    %v872 = vld [vmem:[#allocation8 + $0x78] sm:$0xff]
    %v873 = vld [vmem:[#allocation8 + $0x80] sm:$0xf]
    %v874 = vld [vmem:[#allocation8 + $0x84] sm:$0xff]
    %v875 = vld [vmem:[#allocation8 + $0x8c] sm:$0xf]
    %v876 = vld [vmem:[#allocation8 + $0x90] sm:$0xff]
    %v877 = vld [vmem:[#allocation8 + $0x98] sm:$0xf]
    %v878 = vld [vmem:[#allocation8 + $0x9c] sm:$0xff]
    %v879 = vld [vmem:[#allocation8 + $0xa4] sm:$0xf]
    %v880 = vld [vmem:[#allocation8 + $0xa8] sm:$0xff]
    %v881 = vld [vmem:[#allocation8 + $0xb0] sm:$0xf]
    %v882 = vld [vmem:[#allocation8 + $0xb4] sm:$0xff]
    %v883 = vld [vmem:[#allocation8 + $0xbc] sm:$0xf]
    %v884 = vld [vmem:[#allocation8 + $0xc0] sm:$0xff]
    %v885 = vld [vmem:[#allocation8 + $0xc8] sm:$0xf]
    %v886 = vld [vmem:[#allocation8 + $0xcc] sm:$0xff]
    %v887 = vld [vmem:[#allocation8 + $0xd4] sm:$0xf]
    %v888 = vld [vmem:[#allocation8 + $0xd8] sm:$0xff]
    %v889 = vld [vmem:[#allocation8 + $0xe0] sm:$0xf]
    %v890 = vld [vmem:[#allocation8 + $0xe4] sm:$0xff]
    %v891 = vld [vmem:[#allocation8 + $0xec] sm:$0xf]
    %v892 = vld [vmem:[#allocation8 + $0xf0] sm:$0xff]
    %v893 = vld [vmem:[#allocation8 + $0xf8] sm:$0xf]
    %v894 = vld [vmem:[#allocation8 + $0xfc] sm:$0xff]
    %v895 = vld [vmem:[#allocation8 + $0x104] sm:$0xf]
    %v896 = vld [vmem:[#allocation8 + $0x108] sm:$0xff]
    %v897 = vld [vmem:[#allocation8 + $0x110] sm:$0xf]
    %v898 = vld [vmem:[#allocation8 + $0x114] sm:$0xff]
    %v899 = vld [vmem:[#allocation8 + $0x11c] sm:$0xf]
    %v900 = vld [vmem:[#allocation8 + $0x120] sm:$0xff]
    %v901 = vld [vmem:[#allocation8 + $0x128] sm:$0xf]
    %v902 = vld [vmem:[#allocation8 + $0x12c] sm:$0xff]
    %v903 = vld [vmem:[#allocation8 + $0x134] sm:$0xf]
    %v904 = vld [vmem:[#allocation8 + $0x138] sm:$0xff]
    %v905 = vld [vmem:[#allocation8 + $0x140] sm:$0xf]
    %v906 = vld [vmem:[#allocation8 + $0x144] sm:$0xff]
    %v907 = vld [vmem:[#allocation8 + $0x14c] sm:$0xf]
    %v908 = vld [vmem:[#allocation8 + $0x150] sm:$0xff]
    %v909 = vld [vmem:[#allocation8 + $0x158] sm:$0xf]
    %v910 = vld [vmem:[#allocation8 + $0x15c] sm:$0xff]
    %v911 = vld [vmem:[#allocation8 + $0x164] sm:$0xf]
    %v912 = vld [vmem:[#allocation8 + $0x168] sm:$0xff]
    %v913 = vld [vmem:[#allocation8 + $0x170] sm:$0xf]
    %v914 = vld [vmem:[#allocation8 + $0x174] sm:$0xff]
    %v915 = vld [vmem:[#allocation8 + $0x17c] sm:$0xf]
    %v916 = vld [vmem:[#allocation8 + $0x180] sm:$0xff]
    %v917 = vld [vmem:[#allocation8 + $0x188] sm:$0xf]
    %v918 = vld [vmem:[#allocation8 + $0x18c] sm:$0xff]
    %v919 = vld [vmem:[#allocation8 + $0x194] sm:$0xf]
    %v920 = vld [vmem:[#allocation8 + $0x198] sm:$0xff]
    %v921 = vld [vmem:[#allocation8 + $0x1a0] sm:$0xf]
    %v922 = vld [vmem:[#allocation8 + $0x1a4] sm:$0xff]
    %v923 = vld [vmem:[#allocation8 + $0x1ac] sm:$0xf]
    %v924 = vld [vmem:[#allocation8 + $0x1b0] sm:$0xff]
    %v925 = vld [vmem:[#allocation8 + $0x1b8] sm:$0xf]
    %v926 = vld [vmem:[#allocation8 + $0x1bc] sm:$0xff]
    %v927 = vld [vmem:[#allocation8 + $0x1c4] sm:$0xf]
    %v928 = vld [vmem:[#allocation8 + $0x1c8] sm:$0xff]
    %v929 = vld [vmem:[#allocation8 + $0x1d0] sm:$0xf]
    %v930 = vld [vmem:[#allocation8 + $0x1d4] sm:$0xff]
    %v931 = vld [vmem:[#allocation8 + $0x1dc] sm:$0xf]
    %v932 = vld [vmem:[#allocation8 + $0x1e0] sm:$0xff]
    %v933 = vld [vmem:[#allocation8 + $0x1e8] sm:$0xf]
    %v934 = vld [vmem:[#allocation8 + $0x1ec] sm:$0xff]
    %v935 = vld [vmem:[#allocation8 + $0x1f4] sm:$0xf]
    %v936 = vld [vmem:[#allocation8 + $0x1f8] sm:$0xff]
    %v937 = vld [vmem:[#allocation8 + $0x200] sm:$0xf]
    %v938 = vld [vmem:[#allocation8 + $0x204] sm:$0xff]
    %v939 = vld [vmem:[#allocation8 + $0x20c] sm:$0xf]
    %v940 = vld [vmem:[#allocation8 + $0x210] sm:$0xff]
    %v941 = vld [vmem:[#allocation8 + $0x218] sm:$0xf]
    %v942 = vld [vmem:[#allocation8 + $0x21c] sm:$0xff]
    %v943 = vld [vmem:[#allocation8 + $0x224] sm:$0xf]
    %v944 = vld [vmem:[#allocation8 + $0x228] sm:$0xff]
    %v945 = vld [vmem:[#allocation8 + $0x230] sm:$0xf]
    %v946 = vld [vmem:[#allocation8 + $0x234] sm:$0xff]
    %v947 = vld [vmem:[#allocation8 + $0x23c] sm:$0xf]
    %v948 = vld [vmem:[#allocation8 + $0x240] sm:$0xff]
    %v949 = vld [vmem:[#allocation8 + $0x248] sm:$0xf]
    %v950 = vld [vmem:[#allocation8 + $0x24c] sm:$0xff]
    %v951 = vld [vmem:[#allocation8 + $0x254] sm:$0xf]
    %v952 = vld [vmem:[#allocation8 + $0x258] sm:$0xff]
    %v953 = vld [vmem:[#allocation8 + $0x260] sm:$0xf]
    %v954 = vld [vmem:[#allocation8 + $0x264] sm:$0xff]
    %v955 = vld [vmem:[#allocation8 + $0x26c] sm:$0xf]
    %v956 = vld [vmem:[#allocation8 + $0x270] sm:$0xff]
    %v957 = vld [vmem:[#allocation8 + $0x278] sm:$0xf]
    %v958 = vld [vmem:[#allocation8 + $0x27c] sm:$0xff]
    %v959 = vld [vmem:[#allocation8 + $0x284] sm:$0xf]
    %v960 = vld [vmem:[#allocation8 + $0x288] sm:$0xff]
    %v961 = vld [vmem:[#allocation8 + $0x290] sm:$0xf]
    %v962 = vld [vmem:[#allocation8 + $0x294] sm:$0xff]
    %v963 = vld [vmem:[#allocation8 + $0x29c] sm:$0xf]
    %v964 = vld [vmem:[#allocation10] sm:$0xff]
    %v965 = vld [vmem:[#allocation10 + $0x8] sm:$0xf]
    %v966 = vld [vmem:[#allocation10 + $0xc] sm:$0xff]
    %v967 = vld [vmem:[#allocation10 + $0x14] sm:$0xf]
    %v968 = vld [vmem:[#allocation10 + $0x18] sm:$0xff]
    %v969 = vld [vmem:[#allocation10 + $0x20] sm:$0xf]
    %v970 = vld [vmem:[#allocation10 + $0x24] sm:$0xff]
    %v971 = vld [vmem:[#allocation10 + $0x2c] sm:$0xf]
    %v972 = vld [vmem:[#allocation10 + $0x30] sm:$0xff]
    %v973 = vld [vmem:[#allocation10 + $0x38] sm:$0xf]
    %v974 = vld [vmem:[#allocation10 + $0x3c] sm:$0xff]
    %v975 = vld [vmem:[#allocation10 + $0x44] sm:$0xf]
    %v976 = vld [vmem:[#allocation10 + $0x48] sm:$0xff]
    %v977 = vld [vmem:[#allocation10 + $0x50] sm:$0xf]
    %v978 = vld [vmem:[#allocation10 + $0x54] sm:$0xff]
    %v979 = vld [vmem:[#allocation10 + $0x5c] sm:$0xf]
    %v980 = vld [vmem:[#allocation10 + $0x60] sm:$0xff]
    %v981 = vld [vmem:[#allocation10 + $0x68] sm:$0xf]
    %v982 = vld [vmem:[#allocation10 + $0x6c] sm:$0xff]
    %v983 = vld [vmem:[#allocation10 + $0x74] sm:$0xf]
    %v984 = vld [vmem:[#allocation10 + $0x78] sm:$0xff]
    %v985 = vld [vmem:[#allocation10 + $0x80] sm:$0xf]
    %v986 = vld [vmem:[#allocation10 + $0x84] sm:$0xff]
    %v987 = vld [vmem:[#allocation10 + $0x8c] sm:$0xf]
    %v988 = vld [vmem:[#allocation10 + $0x90] sm:$0xff]
    %v989 = vld [vmem:[#allocation10 + $0x98] sm:$0xf]
    %v990 = vld [vmem:[#allocation10 + $0x9c] sm:$0xff]
    %v991 = vld [vmem:[#allocation10 + $0xa4] sm:$0xf]
    %v992 = vld [vmem:[#allocation10 + $0xa8] sm:$0xff]
    %v993 = vld [vmem:[#allocation10 + $0xb0] sm:$0xf]
    %v994 = vld [vmem:[#allocation10 + $0xb4] sm:$0xff]
    %v995 = vld [vmem:[#allocation10 + $0xbc] sm:$0xf]
    %v996 = vld [vmem:[#allocation10 + $0xc0] sm:$0xff]
    %v997 = vld [vmem:[#allocation10 + $0xc8] sm:$0xf]
    %v998 = vld [vmem:[#allocation10 + $0xcc] sm:$0xff]
    %v999 = vld [vmem:[#allocation10 + $0xd4] sm:$0xf]
    %v1000 = vld [vmem:[#allocation10 + $0xd8] sm:$0xff]
    %v1001 = vld [vmem:[#allocation10 + $0xe0] sm:$0xf]
    %v1002 = vld [vmem:[#allocation10 + $0xe4] sm:$0xff]
    %v1003 = vld [vmem:[#allocation10 + $0xec] sm:$0xf]
    %v1004 = vld [vmem:[#allocation10 + $0xf0] sm:$0xff]
    %v1005 = vld [vmem:[#allocation10 + $0xf8] sm:$0xf]
    %v1006 = vld [vmem:[#allocation10 + $0xfc] sm:$0xff]
    %v1007 = vld [vmem:[#allocation10 + $0x104] sm:$0xf]
    %v1008 = vld [vmem:[#allocation10 + $0x108] sm:$0xff]
    %v1009 = vld [vmem:[#allocation10 + $0x110] sm:$0xf]
    %v1010 = vld [vmem:[#allocation10 + $0x114] sm:$0xff]
    %v1011 = vld [vmem:[#allocation10 + $0x11c] sm:$0xf]
    %v1012 = vld [vmem:[#allocation10 + $0x120] sm:$0xff]
    %v1013 = vld [vmem:[#allocation10 + $0x128] sm:$0xf]
    %v1014 = vld [vmem:[#allocation10 + $0x12c] sm:$0xff]
    %v1015 = vld [vmem:[#allocation10 + $0x134] sm:$0xf]
    %v1016 = vld [vmem:[#allocation10 + $0x138] sm:$0xff]
    %v1017 = vld [vmem:[#allocation10 + $0x140] sm:$0xf]
    %v1018 = vld [vmem:[#allocation10 + $0x144] sm:$0xff]
    %v1019 = vld [vmem:[#allocation10 + $0x14c] sm:$0xf]
    %v1020 = vld [vmem:[#allocation10 + $0x150] sm:$0xff]
    %v1021 = vld [vmem:[#allocation10 + $0x158] sm:$0xf]
    %v1022 = vld [vmem:[#allocation10 + $0x15c] sm:$0xff]
    %v1023 = vld [vmem:[#allocation10 + $0x164] sm:$0xf]
    %v1024 = vld [vmem:[#allocation10 + $0x168] sm:$0xff]
    %v1025 = vld [vmem:[#allocation10 + $0x170] sm:$0xf]
    %v1026 = vld [vmem:[#allocation10 + $0x174] sm:$0xff]
    %v1027 = vld [vmem:[#allocation10 + $0x17c] sm:$0xf]
    %v1028 = vld [vmem:[#allocation10 + $0x180] sm:$0xff]
    %v1029 = vld [vmem:[#allocation10 + $0x188] sm:$0xf]
    %v1030 = vld [vmem:[#allocation10 + $0x18c] sm:$0xff]
    %v1031 = vld [vmem:[#allocation10 + $0x194] sm:$0xf]
    %v1032 = vld [vmem:[#allocation10 + $0x198] sm:$0xff]
    %v1033 = vld [vmem:[#allocation10 + $0x1a0] sm:$0xf]
    %v1034 = vld [vmem:[#allocation10 + $0x1a4] sm:$0xff]
    %v1035 = vld [vmem:[#allocation10 + $0x1ac] sm:$0xf]
    %v1036 = vld [vmem:[#allocation10 + $0x1b0] sm:$0xff]
    %v1037 = vld [vmem:[#allocation10 + $0x1b8] sm:$0xf]
    %v1038 = vld [vmem:[#allocation10 + $0x1bc] sm:$0xff]
    %v1039 = vld [vmem:[#allocation10 + $0x1c4] sm:$0xf]
    %v1040 = vld [vmem:[#allocation10 + $0x1c8] sm:$0xff]
    %v1041 = vld [vmem:[#allocation10 + $0x1d0] sm:$0xf]
    %v1042 = vld [vmem:[#allocation10 + $0x1d4] sm:$0xff]
    %v1043 = vld [vmem:[#allocation10 + $0x1dc] sm:$0xf]
    %v1044 = vld [vmem:[#allocation10 + $0x1e0] sm:$0xff]
    %v1045 = vld [vmem:[#allocation10 + $0x1e8] sm:$0xf]
    %v1046 = vld [vmem:[#allocation10 + $0x1ec] sm:$0xff]
    %v1047 = vld [vmem:[#allocation10 + $0x1f4] sm:$0xf]
    %v1048 = vld [vmem:[#allocation10 + $0x1f8] sm:$0xff]
    %v1049 = vld [vmem:[#allocation10 + $0x200] sm:$0xf]
    %v1050 = vld [vmem:[#allocation10 + $0x204] sm:$0xff]
    %v1051 = vld [vmem:[#allocation10 + $0x20c] sm:$0xf]
    %v1052 = vld [vmem:[#allocation10 + $0x210] sm:$0xff]
    %v1053 = vld [vmem:[#allocation10 + $0x218] sm:$0xf]
    %v1054 = vld [vmem:[#allocation10 + $0x21c] sm:$0xff]
    %v1055 = vld [vmem:[#allocation10 + $0x224] sm:$0xf]
    %v1056 = vld [vmem:[#allocation10 + $0x228] sm:$0xff]
    %v1057 = vld [vmem:[#allocation10 + $0x230] sm:$0xf]
    %v1058 = vld [vmem:[#allocation10 + $0x234] sm:$0xff]
    %v1059 = vld [vmem:[#allocation10 + $0x23c] sm:$0xf]
    %v1060 = vld [vmem:[#allocation10 + $0x240] sm:$0xff]
    %v1061 = vld [vmem:[#allocation10 + $0x248] sm:$0xf]
    %v1062 = vld [vmem:[#allocation10 + $0x24c] sm:$0xff]
    %v1063 = vld [vmem:[#allocation10 + $0x254] sm:$0xf]
    %v1064 = vld [vmem:[#allocation10 + $0x258] sm:$0xff]
    %v1065 = vld [vmem:[#allocation10 + $0x260] sm:$0xf]
    %v1066 = vld [vmem:[#allocation10 + $0x264] sm:$0xff]
    %v1067 = vld [vmem:[#allocation10 + $0x26c] sm:$0xf]
    %v1068 = vld [vmem:[#allocation10 + $0x270] sm:$0xff]
    %v1069 = vld [vmem:[#allocation10 + $0x278] sm:$0xf]
    %v1070 = vld [vmem:[#allocation10 + $0x27c] sm:$0xff]
    %v1071 = vld [vmem:[#allocation10 + $0x284] sm:$0xf]
    %v1072 = vld [vmem:[#allocation10 + $0x288] sm:$0xff]
    %v1073 = vld [vmem:[#allocation10 + $0x290] sm:$0xf]
    %v1074 = vld [vmem:[#allocation10 + $0x294] sm:$0xff]
    %v1075 = vld [vmem:[#allocation10 + $0x29c] sm:$0xf]
    %s1076 = scalar_lea.vmem [#allocation8], 672
    %v1077 = vld [vmem:[%s1076] sm:$0xff]
    %v1078 = vld [vmem:[%s1076 + $0x8] sm:$0xf]
    %v1079 = vld [vmem:[%s1076 + $0xc] sm:$0xff]
    %v1080 = vld [vmem:[%s1076 + $0x14] sm:$0xf]
    %v1081 = vld [vmem:[%s1076 + $0x18] sm:$0xff]
    %v1082 = vld [vmem:[%s1076 + $0x20] sm:$0xf]
    %v1083 = vld [vmem:[%s1076 + $0x24] sm:$0xff]
    %v1084 = vld [vmem:[%s1076 + $0x2c] sm:$0xf]
    %v1085 = vld [vmem:[%s1076 + $0x30] sm:$0xff]
    %v1086 = vld [vmem:[%s1076 + $0x38] sm:$0xf]
    %v1087 = vld [vmem:[%s1076 + $0x3c] sm:$0xff]
    %v1088 = vld [vmem:[%s1076 + $0x44] sm:$0xf]
    %v1089 = vld [vmem:[%s1076 + $0x48] sm:$0xff]
    %v1090 = vld [vmem:[%s1076 + $0x50] sm:$0xf]
    %v1091 = vld [vmem:[%s1076 + $0x54] sm:$0xff]
    %v1092 = vld [vmem:[%s1076 + $0x5c] sm:$0xf]
    %v1093 = vld [vmem:[%s1076 + $0x60] sm:$0xff]
    %v1094 = vld [vmem:[%s1076 + $0x68] sm:$0xf]
    %v1095 = vld [vmem:[%s1076 + $0x6c] sm:$0xff]
    %v1096 = vld [vmem:[%s1076 + $0x74] sm:$0xf]
    %v1097 = vld [vmem:[%s1076 + $0x78] sm:$0xff]
    %v1098 = vld [vmem:[%s1076 + $0x80] sm:$0xf]
    %v1099 = vld [vmem:[%s1076 + $0x84] sm:$0xff]
    %v1100 = vld [vmem:[%s1076 + $0x8c] sm:$0xf]
    %v1101 = vld [vmem:[%s1076 + $0x90] sm:$0xff]
    %v1102 = vld [vmem:[%s1076 + $0x98] sm:$0xf]
    %v1103 = vld [vmem:[%s1076 + $0x9c] sm:$0xff]
    %v1104 = vld [vmem:[%s1076 + $0xa4] sm:$0xf]
    %v1105 = vld [vmem:[%s1076 + $0xa8] sm:$0xff]
    %v1106 = vld [vmem:[%s1076 + $0xb0] sm:$0xf]
    %v1107 = vld [vmem:[%s1076 + $0xb4] sm:$0xff]
    %v1108 = vld [vmem:[%s1076 + $0xbc] sm:$0xf]
    %v1109 = vld [vmem:[%s1076 + $0xc0] sm:$0xff]
    %v1110 = vld [vmem:[%s1076 + $0xc8] sm:$0xf]
    %v1111 = vld [vmem:[%s1076 + $0xcc] sm:$0xff]
    %v1112 = vld [vmem:[%s1076 + $0xd4] sm:$0xf]
    %v1113 = vld [vmem:[%s1076 + $0xd8] sm:$0xff]
    %v1114 = vld [vmem:[%s1076 + $0xe0] sm:$0xf]
    %v1115 = vld [vmem:[%s1076 + $0xe4] sm:$0xff]
    %v1116 = vld [vmem:[%s1076 + $0xec] sm:$0xf]
    %v1117 = vld [vmem:[%s1076 + $0xf0] sm:$0xff]
    %v1118 = vld [vmem:[%s1076 + $0xf8] sm:$0xf]
    %v1119 = vld [vmem:[%s1076 + $0xfc] sm:$0xff]
    %v1120 = vld [vmem:[%s1076 + $0x104] sm:$0xf]
    %v1121 = vld [vmem:[%s1076 + $0x108] sm:$0xff]
    %v1122 = vld [vmem:[%s1076 + $0x110] sm:$0xf]
    %v1123 = vld [vmem:[%s1076 + $0x114] sm:$0xff]
    %v1124 = vld [vmem:[%s1076 + $0x11c] sm:$0xf]
    %v1125 = vld [vmem:[%s1076 + $0x120] sm:$0xff]
    %v1126 = vld [vmem:[%s1076 + $0x128] sm:$0xf]
    %v1127 = vld [vmem:[%s1076 + $0x12c] sm:$0xff]
    %v1128 = vld [vmem:[%s1076 + $0x134] sm:$0xf]
    %v1129 = vld [vmem:[%s1076 + $0x138] sm:$0xff]
    %v1130 = vld [vmem:[%s1076 + $0x140] sm:$0xf]
    %v1131 = vld [vmem:[%s1076 + $0x144] sm:$0xff]
    %v1132 = vld [vmem:[%s1076 + $0x14c] sm:$0xf]
    %v1133 = vld [vmem:[%s1076 + $0x150] sm:$0xff]
    %v1134 = vld [vmem:[%s1076 + $0x158] sm:$0xf]
    %v1135 = vld [vmem:[%s1076 + $0x15c] sm:$0xff]
    %v1136 = vld [vmem:[%s1076 + $0x164] sm:$0xf]
    %v1137 = vld [vmem:[%s1076 + $0x168] sm:$0xff]
    %v1138 = vld [vmem:[%s1076 + $0x170] sm:$0xf]
    %v1139 = vld [vmem:[%s1076 + $0x174] sm:$0xff]
    %v1140 = vld [vmem:[%s1076 + $0x17c] sm:$0xf]
    %v1141 = vld [vmem:[%s1076 + $0x180] sm:$0xff]
    %v1142 = vld [vmem:[%s1076 + $0x188] sm:$0xf]
    %v1143 = vld [vmem:[%s1076 + $0x18c] sm:$0xff]
    %v1144 = vld [vmem:[%s1076 + $0x194] sm:$0xf]
    %v1145 = vld [vmem:[%s1076 + $0x198] sm:$0xff]
    %v1146 = vld [vmem:[%s1076 + $0x1a0] sm:$0xf]
    %v1147 = vld [vmem:[%s1076 + $0x1a4] sm:$0xff]
    %v1148 = vld [vmem:[%s1076 + $0x1ac] sm:$0xf]
    %v1149 = vld [vmem:[%s1076 + $0x1b0] sm:$0xff]
    %v1150 = vld [vmem:[%s1076 + $0x1b8] sm:$0xf]
    %v1151 = vld [vmem:[%s1076 + $0x1bc] sm:$0xff]
    %v1152 = vld [vmem:[%s1076 + $0x1c4] sm:$0xf]
    %v1153 = vld [vmem:[%s1076 + $0x1c8] sm:$0xff]
    %v1154 = vld [vmem:[%s1076 + $0x1d0] sm:$0xf]
    %v1155 = vld [vmem:[%s1076 + $0x1d4] sm:$0xff]
    %v1156 = vld [vmem:[%s1076 + $0x1dc] sm:$0xf]
    %v1157 = vld [vmem:[%s1076 + $0x1e0] sm:$0xff]
    %v1158 = vld [vmem:[%s1076 + $0x1e8] sm:$0xf]
    %v1159 = vld [vmem:[%s1076 + $0x1ec] sm:$0xff]
    %v1160 = vld [vmem:[%s1076 + $0x1f4] sm:$0xf]
    %v1161 = vld [vmem:[%s1076 + $0x1f8] sm:$0xff]
    %v1162 = vld [vmem:[%s1076 + $0x200] sm:$0xf]
    %v1163 = vld [vmem:[%s1076 + $0x204] sm:$0xff]
    %v1164 = vld [vmem:[%s1076 + $0x20c] sm:$0xf]
    %v1165 = vld [vmem:[%s1076 + $0x210] sm:$0xff]
    %v1166 = vld [vmem:[%s1076 + $0x218] sm:$0xf]
    %v1167 = vld [vmem:[%s1076 + $0x21c] sm:$0xff]
    %v1168 = vld [vmem:[%s1076 + $0x224] sm:$0xf]
    %v1169 = vld [vmem:[%s1076 + $0x228] sm:$0xff]
    %v1170 = vld [vmem:[%s1076 + $0x230] sm:$0xf]
    %v1171 = vld [vmem:[%s1076 + $0x234] sm:$0xff]
    %v1172 = vld [vmem:[%s1076 + $0x23c] sm:$0xf]
    %v1173 = vld [vmem:[%s1076 + $0x240] sm:$0xff]
    %v1174 = vld [vmem:[%s1076 + $0x248] sm:$0xf]
    %v1175 = vld [vmem:[%s1076 + $0x24c] sm:$0xff]
    %v1176 = vld [vmem:[%s1076 + $0x254] sm:$0xf]
    %v1177 = vld [vmem:[%s1076 + $0x258] sm:$0xff]
    %v1178 = vld [vmem:[%s1076 + $0x260] sm:$0xf]
    %v1179 = vld [vmem:[%s1076 + $0x264] sm:$0xff]
    %v1180 = vld [vmem:[%s1076 + $0x26c] sm:$0xf]
    %v1181 = vld [vmem:[%s1076 + $0x270] sm:$0xff]
    %v1182 = vld [vmem:[%s1076 + $0x278] sm:$0xf]
    %v1183 = vld [vmem:[%s1076 + $0x27c] sm:$0xff]
    %v1184 = vld [vmem:[%s1076 + $0x284] sm:$0xf]
    %v1185 = vld [vmem:[%s1076 + $0x288] sm:$0xff]
    %v1186 = vld [vmem:[%s1076 + $0x290] sm:$0xf]
    %v1187 = vld [vmem:[%s1076 + $0x294] sm:$0xff]
    %v1188 = vld [vmem:[%s1076 + $0x29c] sm:$0xf]
    %vm1197 = vcmask 1046528
    %v1198 = vrot.slane %v844, 1
    %v1199 = vrot.slane %v848, 1
    %v1200 = vsel %vm1197, %v1198, %v1199
    %v1201 = vrot.slane %v845, 1
    %v1202 = vrot.slane %v849, 1
    %v1203 = vsel %vm1197, %v1201, %v1202
    %v1204 = vrot.slane %v846, 1
    %v1205 = vrot.slane %v850, 1
    %v1206 = vsel %vm1197, %v1204, %v1205
    %v1207 = vrot.slane %v847, 1
    %v1208 = vrot.slane %v851, 1
    %v1209 = vsel %vm1197, %v1207, %v1208
    %v1328 = vunpack.c.l.b16 %v1077
    %v1329 = vunpack.c.h.b16 %v1077
    %v1330 = vunpack.c.l.b16 %v1078
    %v1331 = vunpack.c.l.b16 %v1079
    %v1332 = vunpack.c.h.b16 %v1079
    %v1333 = vunpack.c.l.b16 %v1080
    %v1334 = vunpack.c.l.b16 %v1081
    %v1335 = vunpack.c.h.b16 %v1081
    %v1336 = vunpack.c.l.b16 %v1082
    %v1337 = vunpack.c.l.b16 %v1083
    %v1338 = vunpack.c.h.b16 %v1083
    %v1339 = vunpack.c.l.b16 %v1084
    %v1340 = vunpack.c.l.b16 %v1085
    %v1341 = vunpack.c.h.b16 %v1085
    %v1342 = vunpack.c.l.b16 %v1086
    %v1343 = vunpack.c.l.b16 %v1087
    %v1344 = vunpack.c.h.b16 %v1087
    %v1345 = vunpack.c.l.b16 %v1088
    %v1346 = vunpack.c.l.b16 %v1089
    %v1347 = vunpack.c.h.b16 %v1089
    %v1348 = vunpack.c.l.b16 %v1090
    %v1349 = vunpack.c.l.b16 %v1091
    %v1350 = vunpack.c.h.b16 %v1091
    %v1351 = vunpack.c.l.b16 %v1092
    %v1352 = vunpack.c.l.b16 %v1093
    %v1353 = vunpack.c.h.b16 %v1093
    %v1354 = vunpack.c.l.b16 %v1094
    %v1355 = vunpack.c.l.b16 %v1095
    %v1356 = vunpack.c.h.b16 %v1095
    %v1357 = vunpack.c.l.b16 %v1096
    %v1358 = vunpack.c.l.b16 %v1097
    %v1359 = vunpack.c.h.b16 %v1097
    %v1360 = vunpack.c.l.b16 %v1098
    %v1361 = vunpack.c.l.b16 %v1099
    %v1362 = vunpack.c.h.b16 %v1099
    %v1363 = vunpack.c.l.b16 %v1100
    %v1364 = vunpack.c.l.b16 %v1101
    %v1365 = vunpack.c.h.b16 %v1101
    %v1366 = vunpack.c.l.b16 %v1102
    %v1367 = vunpack.c.l.b16 %v1103
    %v1368 = vunpack.c.h.b16 %v1103
    %v1369 = vunpack.c.l.b16 %v1104
    %v1370 = vunpack.c.l.b16 %v1105
    %v1371 = vunpack.c.h.b16 %v1105
    %v1372 = vunpack.c.l.b16 %v1106
    %v1373 = vunpack.c.l.b16 %v1107
    %v1374 = vunpack.c.h.b16 %v1107
    %v1375 = vunpack.c.l.b16 %v1108
    %v1376 = vunpack.c.l.b16 %v1109
    %v1377 = vunpack.c.h.b16 %v1109
    %v1378 = vunpack.c.l.b16 %v1110
    %v1379 = vunpack.c.l.b16 %v1111
    %v1380 = vunpack.c.h.b16 %v1111
    %v1381 = vunpack.c.l.b16 %v1112
    %v1382 = vunpack.c.l.b16 %v1113
    %v1383 = vunpack.c.h.b16 %v1113
    %v1384 = vunpack.c.l.b16 %v1114
    %v1385 = vunpack.c.l.b16 %v1115
    %v1386 = vunpack.c.h.b16 %v1115
    %v1387 = vunpack.c.l.b16 %v1116
    %v1388 = vunpack.c.l.b16 %v1117
    %v1389 = vunpack.c.h.b16 %v1117
    %v1390 = vunpack.c.l.b16 %v1118
    %v1391 = vunpack.c.l.b16 %v1119
    %v1392 = vunpack.c.h.b16 %v1119
    %v1393 = vunpack.c.l.b16 %v1120
    %v1394 = vunpack.c.l.b16 %v1121
    %v1395 = vunpack.c.h.b16 %v1121
    %v1396 = vunpack.c.l.b16 %v1122
    %v1397 = vunpack.c.l.b16 %v1123
    %v1398 = vunpack.c.h.b16 %v1123
    %v1399 = vunpack.c.l.b16 %v1124
    %v1400 = vunpack.c.l.b16 %v1125
    %v1401 = vunpack.c.h.b16 %v1125
    %v1402 = vunpack.c.l.b16 %v1126
    %v1403 = vunpack.c.l.b16 %v1127
    %v1404 = vunpack.c.h.b16 %v1127
    %v1405 = vunpack.c.l.b16 %v1128
    %v1406 = vunpack.c.l.b16 %v1129
    %v1407 = vunpack.c.h.b16 %v1129
    %v1408 = vunpack.c.l.b16 %v1130
    %v1409 = vunpack.c.l.b16 %v1131
    %v1410 = vunpack.c.h.b16 %v1131
    %v1411 = vunpack.c.l.b16 %v1132
    %v1412 = vunpack.c.l.b16 %v1133
    %v1413 = vunpack.c.h.b16 %v1133
    %v1414 = vunpack.c.l.b16 %v1134
    %v1415 = vunpack.c.l.b16 %v1135
    %v1416 = vunpack.c.h.b16 %v1135
    %v1417 = vunpack.c.l.b16 %v1136
    %v1418 = vunpack.c.l.b16 %v1137
    %v1419 = vunpack.c.h.b16 %v1137
    %v1420 = vunpack.c.l.b16 %v1138
    %v1421 = vunpack.c.l.b16 %v1139
    %v1422 = vunpack.c.h.b16 %v1139
    %v1423 = vunpack.c.l.b16 %v1140
    %v1424 = vunpack.c.l.b16 %v1141
    %v1425 = vunpack.c.h.b16 %v1141
    %v1426 = vunpack.c.l.b16 %v1142
    %v1427 = vunpack.c.l.b16 %v1143
    %v1428 = vunpack.c.h.b16 %v1143
    %v1429 = vunpack.c.l.b16 %v1144
    %v1430 = vunpack.c.l.b16 %v1145
    %v1431 = vunpack.c.h.b16 %v1145
    %v1432 = vunpack.c.l.b16 %v1146
    %v1433 = vunpack.c.l.b16 %v1147
    %v1434 = vunpack.c.h.b16 %v1147
    %v1435 = vunpack.c.l.b16 %v1148
    %v1436 = vunpack.c.l.b16 %v1149
    %v1437 = vunpack.c.h.b16 %v1149
    %v1438 = vunpack.c.l.b16 %v1150
    %v1439 = vunpack.c.l.b16 %v1151
    %v1440 = vunpack.c.h.b16 %v1151
    %v1441 = vunpack.c.l.b16 %v1152
    %v1442 = vunpack.c.l.b16 %v1153
    %v1443 = vunpack.c.h.b16 %v1153
    %v1444 = vunpack.c.l.b16 %v1154
    %v1445 = vunpack.c.l.b16 %v1155
    %v1446 = vunpack.c.h.b16 %v1155
    %v1447 = vunpack.c.l.b16 %v1156
    %v1448 = vunpack.c.l.b16 %v1157
    %v1449 = vunpack.c.h.b16 %v1157
    %v1450 = vunpack.c.l.b16 %v1158
    %v1451 = vunpack.c.l.b16 %v1159
    %v1452 = vunpack.c.h.b16 %v1159
    %v1453 = vunpack.c.l.b16 %v1160
    %v1454 = vunpack.c.l.b16 %v1161
    %v1455 = vunpack.c.h.b16 %v1161
    %v1456 = vunpack.c.l.b16 %v1162
    %v1457 = vunpack.c.l.b16 %v1163
    %v1458 = vunpack.c.h.b16 %v1163
    %v1459 = vunpack.c.l.b16 %v1164
    %v1460 = vunpack.c.l.b16 %v1165
    %v1461 = vunpack.c.h.b16 %v1165
    %v1462 = vunpack.c.l.b16 %v1166
    %v1463 = vunpack.c.l.b16 %v1167
    %v1464 = vunpack.c.h.b16 %v1167
    %v1465 = vunpack.c.l.b16 %v1168
    %v1466 = vunpack.c.l.b16 %v1169
    %v1467 = vunpack.c.h.b16 %v1169
    %v1468 = vunpack.c.l.b16 %v1170
    %v1469 = vunpack.c.l.b16 %v1171
    %v1470 = vunpack.c.h.b16 %v1171
    %v1471 = vunpack.c.l.b16 %v1172
    %v1472 = vunpack.c.l.b16 %v1173
    %v1473 = vunpack.c.h.b16 %v1173
    %v1474 = vunpack.c.l.b16 %v1174
    %v1475 = vunpack.c.l.b16 %v1175
    %v1476 = vunpack.c.h.b16 %v1175
    %v1477 = vunpack.c.l.b16 %v1176
    %v1478 = vunpack.c.l.b16 %v1177
    %v1479 = vunpack.c.h.b16 %v1177
    %v1480 = vunpack.c.l.b16 %v1178
    %v1481 = vunpack.c.l.b16 %v1179
    %v1482 = vunpack.c.h.b16 %v1179
    %v1483 = vunpack.c.l.b16 %v1180
    %v1484 = vunpack.c.l.b16 %v1181
    %v1485 = vunpack.c.h.b16 %v1181
    %v1486 = vunpack.c.l.b16 %v1182
    %v1487 = vunpack.c.l.b16 %v1183
    %v1488 = vunpack.c.h.b16 %v1183
    %v1489 = vunpack.c.l.b16 %v1184
    %v1490 = vunpack.c.l.b16 %v1185
    %v1491 = vunpack.c.h.b16 %v1185
    %v1492 = vunpack.c.l.b16 %v1186
    %v1493 = vunpack.c.l.b16 %v1187
    %v1494 = vunpack.c.h.b16 %v1187
    %v1495 = vunpack.c.l.b16 %v1188
    %v1496 = vpack.c.b16 %v1331, %v1328
    %v1497 = vpack.c.b16 %v1332, %v1329
    %v1498 = vpack.c.b16 %v1333, %v1330
    %v1499 = vpack.c.b16 %v1337, %v1334
    %v1500 = vpack.c.b16 %v1338, %v1335
    %v1501 = vpack.c.b16 %v1339, %v1336
    %v1502 = vpack.c.b16 %v1343, %v1340
    %v1503 = vpack.c.b16 %v1344, %v1341
    %v1504 = vpack.c.b16 %v1345, %v1342
    %v1505 = vpack.c.b16 %v1349, %v1346
    %v1506 = vpack.c.b16 %v1350, %v1347
    %v1507 = vpack.c.b16 %v1351, %v1348
    %v1508 = vpack.c.b16 %v1355, %v1352
    %v1509 = vpack.c.b16 %v1356, %v1353
    %v1510 = vpack.c.b16 %v1357, %v1354
    %v1511 = vpack.c.b16 %v1361, %v1358
    %v1512 = vpack.c.b16 %v1362, %v1359
    %v1513 = vpack.c.b16 %v1363, %v1360
    %v1514 = vpack.c.b16 %v1367, %v1364
    %v1515 = vpack.c.b16 %v1368, %v1365
    %v1516 = vpack.c.b16 %v1369, %v1366
    %v1517 = vpack.c.b16 %v1373, %v1370
    %v1518 = vpack.c.b16 %v1374, %v1371
    %v1519 = vpack.c.b16 %v1375, %v1372
    %v1520 = vpack.c.b16 %v1379, %v1376
    %v1521 = vpack.c.b16 %v1380, %v1377
    %v1522 = vpack.c.b16 %v1381, %v1378
    %v1523 = vpack.c.b16 %v1385, %v1382
    %v1524 = vpack.c.b16 %v1386, %v1383
    %v1525 = vpack.c.b16 %v1387, %v1384
    %v1526 = vpack.c.b16 %v1391, %v1388
    %v1527 = vpack.c.b16 %v1392, %v1389
    %v1528 = vpack.c.b16 %v1393, %v1390
    %v1529 = vpack.c.b16 %v1397, %v1394
    %v1530 = vpack.c.b16 %v1398, %v1395
    %v1531 = vpack.c.b16 %v1399, %v1396
    %v1532 = vpack.c.b16 %v1403, %v1400
    %v1533 = vpack.c.b16 %v1404, %v1401
    %v1534 = vpack.c.b16 %v1405, %v1402
    %v1535 = vpack.c.b16 %v1409, %v1406
    %v1536 = vpack.c.b16 %v1410, %v1407
    %v1537 = vpack.c.b16 %v1411, %v1408
    %v1538 = vpack.c.b16 %v1415, %v1412
    %v1539 = vpack.c.b16 %v1416, %v1413
    %v1540 = vpack.c.b16 %v1417, %v1414
    %v1541 = vpack.c.b16 %v1421, %v1418
    %v1542 = vpack.c.b16 %v1422, %v1419
    %v1543 = vpack.c.b16 %v1423, %v1420
    %v1544 = vpack.c.b16 %v1427, %v1424
    %v1545 = vpack.c.b16 %v1428, %v1425
    %v1546 = vpack.c.b16 %v1429, %v1426
    %v1547 = vpack.c.b16 %v1433, %v1430
    %v1548 = vpack.c.b16 %v1434, %v1431
    %v1549 = vpack.c.b16 %v1435, %v1432
    %v1550 = vpack.c.b16 %v1439, %v1436
    %v1551 = vpack.c.b16 %v1440, %v1437
    %v1552 = vpack.c.b16 %v1441, %v1438
    %v1553 = vpack.c.b16 %v1445, %v1442
    %v1554 = vpack.c.b16 %v1446, %v1443
    %v1555 = vpack.c.b16 %v1447, %v1444
    %v1556 = vpack.c.b16 %v1451, %v1448
    %v1557 = vpack.c.b16 %v1452, %v1449
    %v1558 = vpack.c.b16 %v1453, %v1450
    %v1559 = vpack.c.b16 %v1457, %v1454
    %v1560 = vpack.c.b16 %v1458, %v1455
    %v1561 = vpack.c.b16 %v1459, %v1456
    %v1562 = vpack.c.b16 %v1463, %v1460
    %v1563 = vpack.c.b16 %v1464, %v1461
    %v1564 = vpack.c.b16 %v1465, %v1462
    %v1565 = vpack.c.b16 %v1469, %v1466
    %v1566 = vpack.c.b16 %v1470, %v1467
    %v1567 = vpack.c.b16 %v1471, %v1468
    %v1568 = vpack.c.b16 %v1475, %v1472
    %v1569 = vpack.c.b16 %v1476, %v1473
    %v1570 = vpack.c.b16 %v1477, %v1474
    %v1571 = vpack.c.b16 %v1481, %v1478
    %v1572 = vpack.c.b16 %v1482, %v1479
    %v1573 = vpack.c.b16 %v1483, %v1480
    %v1574 = vpack.c.b16 %v1487, %v1484
    %v1575 = vpack.c.b16 %v1488, %v1485
    %v1576 = vpack.c.b16 %v1489, %v1486
    %v1577 = vpack.c.b16 %v1493, %v1490
    %v1578 = vpack.c.b16 %v1494, %v1491
    %v1579 = vpack.c.b16 %v1495, %v1492
    %vm1664 = vcmask 523264
    %v1666 = vsel %vm1664, %v1209, 0
    %v1669 = vsel %vm1664, %v1208, 0
    %1671 = vmatprep.subr.bf16.mxu0 %v1497
    %1672 = vmatpush1.bf16.msra.mxu0 %v1496
    %1673 = vmatprep.subr.bf16.mxu0 %v1500
    %1674 = vmatpush1.bf16.msra.mxu0 %v1499
    %1675 = vmatprep.subr.bf16.mxu0 %v1503
    %1676 = vmatpush1.bf16.msra.mxu0 %v1502
    %1677 = vmatprep.subr.bf16.mxu0 %v1506
    %1678 = vmatpush1.bf16.msra.mxu0 %v1505
    %1679 = vmatprep.subr.bf16.mxu0 %v1509
    %1680 = vmatpush1.bf16.msra.mxu0 %v1508
    %1681 = vmatprep.subr.bf16.mxu0 %v1512
    %1682 = vmatpush1.bf16.msra.mxu0 %v1511
    %1683 = vmatprep.subr.bf16.mxu0 %v1515
    %1684 = vmatpush1.bf16.msra.mxu0 %v1514
    %1685 = vmatprep.subr.bf16.mxu0 %v1518
    %1686 = vmatpush1.bf16.msra.mxu0 %v1517
    %1687 = vmatprep.subr.bf16.mxu0 %v1521
    %1688 = vmatpush1.bf16.msra.mxu0 %v1520
    %1689 = vmatprep.subr.bf16.mxu0 %v1524
    %1690 = vmatpush1.bf16.msra.mxu0 %v1523
    %1691 = vmatprep.subr.bf16.mxu0 %v1527
    %1692 = vmatpush1.bf16.msra.mxu0 %v1526
    %1693 = vmatprep.subr.bf16.mxu0 %v1530
    %1694 = vmatpush1.bf16.msra.mxu0 %v1529
    %1695 = vmatprep.subr.bf16.mxu0 %v1533
    %1696 = vmatpush1.bf16.msra.mxu0 %v1532
    %1697 = vmatprep.subr.bf16.mxu0 %v1536
    %1698 = vmatpush1.bf16.msra.mxu0 %v1535
    %1699 = vmatprep.subr.bf16.mxu0 %v1539
    %1700 = vmatpush1.bf16.msra.mxu0 %v1538
    %1701 = vmatprep.subr.bf16.mxu0 %v1542
    %1702 = vmatpush1.bf16.msra.mxu0 %v1541
    %1703 = vmatprep.mubr.bf16.mxu0 %v1203
    %1704 = vmatmul.mubr.bf16.gmra.mrb[0].mxu0 %v1200
    %v1705 = vpop.f32.mrb[0].mxu0
    %v1706 = vadd.f32 0.0, %v1705
    %v1707 = vpop.f32.mrb[0].mxu0
    %v1708 = vadd.f32 0.0, %v1707
    %v1709 = vpop.f32.mrb[0].mxu0
    %v1710 = vadd.f32 0.0, %v1709
    %v1711 = vpop.f32.mrb[0].mxu0
    %v1712 = vadd.f32 0.0, %v1711
    %1713 = vmatprep.mubr.bf16.mxu0 %v1202
    %1714 = vmatmul.mubr.bf16.gmra.mrb[0].mxu0 %v1199
    %v1715 = vpop.f32.mrb[0].mxu0
    %v1716 = vadd.f32 0.0, %v1715
    %v1717 = vpop.f32.mrb[0].mxu0
    %v1718 = vadd.f32 0.0, %v1717
    %v1719 = vpop.f32.mrb[0].mxu0
    %v1720 = vpop.f32.mrb[0].mxu0
    %1721 = vdwg.mxu0
    %1722 = vmatprep.subr.bf16.mxu0 %v1545
    %1723 = vmatpush1.bf16.msra.mxu0 %v1544
    %1724 = vmatprep.subr.bf16.mxu0 %v1548
    %1725 = vmatpush1.bf16.msra.mxu0 %v1547
    %1726 = vmatprep.subr.bf16.mxu0 %v1551
    %1727 = vmatpush1.bf16.msra.mxu0 %v1550
    %1728 = vmatprep.subr.bf16.mxu0 %v1554
    %1729 = vmatpush1.bf16.msra.mxu0 %v1553
    %1730 = vmatprep.subr.bf16.mxu0 %v1557
    %1731 = vmatpush1.bf16.msra.mxu0 %v1556
    %1732 = vmatprep.subr.bf16.mxu0 %v1560
    %1733 = vmatpush1.bf16.msra.mxu0 %v1559
    %1734 = vmatprep.subr.bf16.mxu0 %v1563
    %1735 = vmatpush1.bf16.msra.mxu0 %v1562
    %1736 = vmatprep.subr.bf16.mxu0 %v1566
    %1737 = vmatpush1.bf16.msra.mxu0 %v1565
    %1738 = vmatprep.subr.bf16.mxu0 %v1569
    %1739 = vmatpush1.bf16.msra.mxu0 %v1568
    %1740 = vmatprep.subr.bf16.mxu0 %v1572
    %1741 = vmatpush1.bf16.msra.mxu0 %v1571
    %1742 = vmatprep.subr.bf16.mxu0 %v1575
    %1743 = vmatpush1.bf16.msra.mxu0 %v1574
    %1744 = vmatprep.subr.bf16.mxu0 %v1578
    %1745 = vmatpush1.bf16.msra.mxu0 %v1577
    %1746 = vmatprep.subr.bf16.mxu0 0
    %1747 = vmatpush1.bf16.msra.mxu0 0
    %1748 = vmatprep.subr.bf16.mxu0 0
    %1749 = vmatpush1.bf16.msra.mxu0 0
    %1750 = vmatprep.subr.bf16.mxu0 0
    %1751 = vmatpush1.bf16.msra.mxu0 0
    %1752 = vmatprep.subr.bf16.mxu0 0
    %1753 = vmatpush1.bf16.msra.mxu0 0
    %1754 = vmatprep.mubr.bf16.mxu0 %v1666
    %1755 = vmatmul.mubr.bf16.gmra.mrb[0].mxu0 %v1206
    %v1756 = vpop.f32.mrb[0].mxu0
    %v1757 = vadd.f32 %v1706, %v1756
    %v1758 = vpop.f32.mrb[0].mxu0
    %v1759 = vadd.f32 %v1708, %v1758
    %v1760 = vpop.f32.mrb[0].mxu0
    %v1761 = vadd.f32 %v1710, %v1760
    %v1762 = vpop.f32.mrb[0].mxu0
    %v1763 = vadd.f32 %v1712, %v1762
    %1764 = vmatprep.mubr.bf16.mxu0 %v1669
    %1765 = vmatmul.mubr.bf16.gmra.mrb[0].mxu0 %v1205
    %v1766 = vpop.f32.mrb[0].mxu0
    %v1767 = vadd.f32 %v1716, %v1766
    %v1768 = vpop.f32.mrb[0].mxu0
    %v1769 = vadd.f32 %v1718, %v1768
    %v1770 = vpop.f32.mrb[0].mxu0
    %v1771 = vpop.f32.mrb[0].mxu0
    %1772 = vdwg.mxu0
    %1773 = vmatprep.subr.bf16.mxu0 0
    %1774 = vmatpush1.bf16.msra.mxu0 %v1498
    %1775 = vmatprep.subr.bf16.mxu0 0
    %1776 = vmatpush1.bf16.msra.mxu0 %v1501
    %1777 = vmatprep.subr.bf16.mxu0 0
    %1778 = vmatpush1.bf16.msra.mxu0 %v1504
    %1779 = vmatprep.subr.bf16.mxu0 0
    %1780 = vmatpush1.bf16.msra.mxu0 %v1507
    %1781 = vmatprep.subr.bf16.mxu0 0
    %1782 = vmatpush1.bf16.msra.mxu0 %v1510
    %1783 = vmatprep.subr.bf16.mxu0 0
    %1784 = vmatpush1.bf16.msra.mxu0 %v1513
    %1785 = vmatprep.subr.bf16.mxu0 0
    %1786 = vmatpush1.bf16.msra.mxu0 %v1516
    %1787 = vmatprep.subr.bf16.mxu0 0
    %1788 = vmatpush1.bf16.msra.mxu0 %v1519
    %1789 = vmatprep.subr.bf16.mxu0 0
    %1790 = vmatpush1.bf16.msra.mxu0 %v1522
    %1791 = vmatprep.subr.bf16.mxu0 0
    %1792 = vmatpush1.bf16.msra.mxu0 %v1525
    %1793 = vmatprep.subr.bf16.mxu0 0
    %1794 = vmatpush1.bf16.msra.mxu0 %v1528
    %1795 = vmatprep.subr.bf16.mxu0 0
    %1796 = vmatpush1.bf16.msra.mxu0 %v1531
    %1797 = vmatprep.subr.bf16.mxu0 0
    %1798 = vmatpush1.bf16.msra.mxu0 %v1534
    %1799 = vmatprep.subr.bf16.mxu0 0
    %1800 = vmatpush1.bf16.msra.mxu0 %v1537
    %1801 = vmatprep.subr.bf16.mxu0 0
    %1802 = vmatpush1.bf16.msra.mxu0 %v1540
    %1803 = vmatprep.subr.bf16.mxu0 0
    %1804 = vmatpush1.bf16.msra.mxu0 %v1543
    %1805 = vmatprep.mubr.bf16.mxu0 %v1203
    %1806 = vmatmul.mubr.bf16.gmra.mrb[0].mxu0 %v1200
    %v1807 = vpop.f32.mrb[0].mxu0
    %v1808 = vadd.f32 0.0, %v1807
    %v1809 = vpop.f32.mrb[0].mxu0
    %v1810 = vpop.f32.mrb[0].mxu0
    %v1811 = vadd.f32 0.0, %v1810
    %v1812 = vpop.f32.mrb[0].mxu0
    %1813 = vmatprep.mubr.bf16.mxu0 %v1202
    %1814 = vmatmul.mubr.bf16.gmra.mrb[0].mxu0 %v1199
    %v1815 = vpop.f32.mrb[0].mxu0
    %v1816 = vadd.f32 0.0, %v1815
    %v1817 = vpop.f32.mrb[0].mxu0
    %v1818 = vpop.f32.mrb[0].mxu0
    %v1819 = vpop.f32.mrb[0].mxu0
    %1820 = vdwg.mxu0
    %1821 = vmatprep.subr.bf16.mxu0 0
    %1822 = vmatpush1.bf16.msra.mxu0 %v1546
    %1823 = vmatprep.subr.bf16.mxu0 0
    %1824 = vmatpush1.bf16.msra.mxu0 %v1549
    %1825 = vmatprep.subr.bf16.mxu0 0
    %1826 = vmatpush1.bf16.msra.mxu0 %v1552
    %1827 = vmatprep.subr.bf16.mxu0 0
    %1828 = vmatpush1.bf16.msra.mxu0 %v1555
    %1829 = vmatprep.subr.bf16.mxu0 0
    %1830 = vmatpush1.bf16.msra.mxu0 %v1558
    %1831 = vmatprep.subr.bf16.mxu0 0
    %1832 = vmatpush1.bf16.msra.mxu0 %v1561
    %1833 = vmatprep.subr.bf16.mxu0 0
    %1834 = vmatpush1.bf16.msra.mxu0 %v1564
    %1835 = vmatprep.subr.bf16.mxu0 0
    %1836 = vmatpush1.bf16.msra.mxu0 %v1567
    %1837 = vmatprep.subr.bf16.mxu0 0
    %1838 = vmatpush1.bf16.msra.mxu0 %v1570
    %1839 = vmatprep.subr.bf16.mxu0 0
    %1840 = vmatpush1.bf16.msra.mxu0 %v1573
    %1841 = vmatprep.subr.bf16.mxu0 0
    %1842 = vmatpush1.bf16.msra.mxu0 %v1576
    %1843 = vmatprep.subr.bf16.mxu0 0
    %1844 = vmatpush1.bf16.msra.mxu0 %v1579
    %1845 = vmatprep.subr.bf16.mxu0 0
    %1846 = vmatpush1.bf16.msra.mxu0 0
    %1847 = vmatprep.subr.bf16.mxu0 0
    %1848 = vmatpush1.bf16.msra.mxu0 0
    %1849 = vmatprep.subr.bf16.mxu0 0
    %1850 = vmatpush1.bf16.msra.mxu0 0
    %1851 = vmatprep.subr.bf16.mxu0 0
    %1852 = vmatpush1.bf16.msra.mxu0 0
    %1853 = vmatprep.mubr.bf16.mxu0 %v1666
    %1854 = vmatmul.mubr.bf16.gmra.mrb[0].mxu0 %v1206
    %v1855 = vpop.f32.mrb[0].mxu0
    %v1856 = vadd.f32 %v1808, %v1855
    %v1857 = vpop.f32.mrb[0].mxu0
    %v1858 = vpop.f32.mrb[0].mxu0
    %v1859 = vadd.f32 %v1811, %v1858
    %v1860 = vpop.f32.mrb[0].mxu0
    %1861 = vmatprep.mubr.bf16.mxu0 %v1669
    %1862 = vmatmul.mubr.bf16.gmra.mrb[0].mxu0 %v1205
    %v1863 = vpop.f32.mrb[0].mxu0
    %v1864 = vadd.f32 %v1816, %v1863
    %v1865 = vpop.f32.mrb[0].mxu0
    %v1866 = vpop.f32.mrb[0].mxu0
    %v1867 = vpop.f32.mrb[0].mxu0
    %1868 = vdwg.mxu0
    %v1981 = vunpack.c.l.b16 %v852
    %v1982 = vunpack.c.h.b16 %v852
    %v1983 = vunpack.c.l.b16 %v853
    %v1984 = vunpack.c.l.b16 %v854
    %v1985 = vunpack.c.h.b16 %v854
    %v1986 = vunpack.c.l.b16 %v855
    %v1987 = vunpack.c.l.b16 %v856
    %v1988 = vunpack.c.h.b16 %v856
    %v1989 = vunpack.c.l.b16 %v857
    %v1990 = vunpack.c.l.b16 %v858
    %v1991 = vunpack.c.h.b16 %v858
    %v1992 = vunpack.c.l.b16 %v859
    %v1993 = vunpack.c.l.b16 %v860
    %v1994 = vunpack.c.h.b16 %v860
    %v1995 = vunpack.c.l.b16 %v861
    %v1996 = vunpack.c.l.b16 %v862
    %v1997 = vunpack.c.h.b16 %v862
    %v1998 = vunpack.c.l.b16 %v863
    %v1999 = vunpack.c.l.b16 %v864
    %v2000 = vunpack.c.h.b16 %v864
    %v2001 = vunpack.c.l.b16 %v865
    %v2002 = vunpack.c.l.b16 %v866
    %v2003 = vunpack.c.h.b16 %v866
    %v2004 = vunpack.c.l.b16 %v867
    %v2005 = vunpack.c.l.b16 %v868
    %v2006 = vunpack.c.h.b16 %v868
    %v2007 = vunpack.c.l.b16 %v869
    %v2008 = vunpack.c.l.b16 %v870
    %v2009 = vunpack.c.h.b16 %v870
    %v2010 = vunpack.c.l.b16 %v871
    %v2011 = vunpack.c.l.b16 %v872
    %v2012 = vunpack.c.h.b16 %v872
    %v2013 = vunpack.c.l.b16 %v873
    %v2014 = vunpack.c.l.b16 %v874
    %v2015 = vunpack.c.h.b16 %v874
    %v2016 = vunpack.c.l.b16 %v875
    %v2017 = vunpack.c.l.b16 %v876
    %v2018 = vunpack.c.h.b16 %v876
    %v2019 = vunpack.c.l.b16 %v877
    %v2020 = vunpack.c.l.b16 %v878
    %v2021 = vunpack.c.h.b16 %v878
    %v2022 = vunpack.c.l.b16 %v879
    %v2023 = vunpack.c.l.b16 %v880
    %v2024 = vunpack.c.h.b16 %v880
    %v2025 = vunpack.c.l.b16 %v881
    %v2026 = vunpack.c.l.b16 %v882
    %v2027 = vunpack.c.h.b16 %v882
    %v2028 = vunpack.c.l.b16 %v883
    %v2029 = vunpack.c.l.b16 %v884
    %v2030 = vunpack.c.h.b16 %v884
    %v2031 = vunpack.c.l.b16 %v885
    %v2032 = vunpack.c.l.b16 %v886
    %v2033 = vunpack.c.h.b16 %v886
    %v2034 = vunpack.c.l.b16 %v887
    %v2035 = vunpack.c.l.b16 %v888
    %v2036 = vunpack.c.h.b16 %v888
    %v2037 = vunpack.c.l.b16 %v889
    %v2038 = vunpack.c.l.b16 %v890
    %v2039 = vunpack.c.h.b16 %v890
    %v2040 = vunpack.c.l.b16 %v891
    %v2041 = vunpack.c.l.b16 %v892
    %v2042 = vunpack.c.h.b16 %v892
    %v2043 = vunpack.c.l.b16 %v893
    %v2044 = vunpack.c.l.b16 %v894
    %v2045 = vunpack.c.h.b16 %v894
    %v2046 = vunpack.c.l.b16 %v895
    %v2047 = vunpack.c.l.b16 %v896
    %v2048 = vunpack.c.h.b16 %v896
    %v2049 = vunpack.c.l.b16 %v897
    %v2050 = vunpack.c.l.b16 %v898
    %v2051 = vunpack.c.h.b16 %v898
    %v2052 = vunpack.c.l.b16 %v899
    %v2053 = vunpack.c.l.b16 %v900
    %v2054 = vunpack.c.h.b16 %v900
    %v2055 = vunpack.c.l.b16 %v901
    %v2056 = vunpack.c.l.b16 %v902
    %v2057 = vunpack.c.h.b16 %v902
    %v2058 = vunpack.c.l.b16 %v903
    %v2059 = vunpack.c.l.b16 %v904
    %v2060 = vunpack.c.h.b16 %v904
    %v2061 = vunpack.c.l.b16 %v905
    %v2062 = vunpack.c.l.b16 %v906
    %v2063 = vunpack.c.h.b16 %v906
    %v2064 = vunpack.c.l.b16 %v907
    %v2065 = vunpack.c.l.b16 %v908
    %v2066 = vunpack.c.h.b16 %v908
    %v2067 = vunpack.c.l.b16 %v909
    %v2068 = vunpack.c.l.b16 %v910
    %v2069 = vunpack.c.h.b16 %v910
    %v2070 = vunpack.c.l.b16 %v911
    %v2071 = vunpack.c.l.b16 %v912
    %v2072 = vunpack.c.h.b16 %v912
    %v2073 = vunpack.c.l.b16 %v913
    %v2074 = vunpack.c.l.b16 %v914
    %v2075 = vunpack.c.h.b16 %v914
    %v2076 = vunpack.c.l.b16 %v915
    %v2077 = vunpack.c.l.b16 %v916
    %v2078 = vunpack.c.h.b16 %v916
    %v2079 = vunpack.c.l.b16 %v917
    %v2080 = vunpack.c.l.b16 %v918
    %v2081 = vunpack.c.h.b16 %v918
    %v2082 = vunpack.c.l.b16 %v919
    %v2083 = vunpack.c.l.b16 %v920
    %v2084 = vunpack.c.h.b16 %v920
    %v2085 = vunpack.c.l.b16 %v921
    %v2086 = vunpack.c.l.b16 %v922
    %v2087 = vunpack.c.h.b16 %v922
    %v2088 = vunpack.c.l.b16 %v923
    %v2089 = vunpack.c.l.b16 %v924
    %v2090 = vunpack.c.h.b16 %v924
    %v2091 = vunpack.c.l.b16 %v925
    %v2092 = vunpack.c.l.b16 %v926
    %v2093 = vunpack.c.h.b16 %v926
    %v2094 = vunpack.c.l.b16 %v927
    %v2095 = vunpack.c.l.b16 %v928
    %v2096 = vunpack.c.h.b16 %v928
    %v2097 = vunpack.c.l.b16 %v929
    %v2098 = vunpack.c.l.b16 %v930
    %v2099 = vunpack.c.h.b16 %v930
    %v2100 = vunpack.c.l.b16 %v931
    %v2101 = vunpack.c.l.b16 %v932
    %v2102 = vunpack.c.h.b16 %v932
    %v2103 = vunpack.c.l.b16 %v933
    %v2104 = vunpack.c.l.b16 %v934
    %v2105 = vunpack.c.h.b16 %v934
    %v2106 = vunpack.c.l.b16 %v935
    %v2107 = vunpack.c.l.b16 %v936
    %v2108 = vunpack.c.h.b16 %v936
    %v2109 = vunpack.c.l.b16 %v937
    %v2110 = vunpack.c.l.b16 %v938
    %v2111 = vunpack.c.h.b16 %v938
    %v2112 = vunpack.c.l.b16 %v939
    %v2113 = vunpack.c.l.b16 %v940
    %v2114 = vunpack.c.h.b16 %v940
    %v2115 = vunpack.c.l.b16 %v941
    %v2116 = vunpack.c.l.b16 %v942
    %v2117 = vunpack.c.h.b16 %v942
    %v2118 = vunpack.c.l.b16 %v943
    %v2119 = vunpack.c.l.b16 %v944
    %v2120 = vunpack.c.h.b16 %v944
    %v2121 = vunpack.c.l.b16 %v945
    %v2122 = vunpack.c.l.b16 %v946
    %v2123 = vunpack.c.h.b16 %v946
    %v2124 = vunpack.c.l.b16 %v947
    %v2125 = vunpack.c.l.b16 %v948
    %v2126 = vunpack.c.h.b16 %v948
    %v2127 = vunpack.c.l.b16 %v949
    %v2128 = vunpack.c.l.b16 %v950
    %v2129 = vunpack.c.h.b16 %v950
    %v2130 = vunpack.c.l.b16 %v951
    %v2131 = vunpack.c.l.b16 %v952
    %v2132 = vunpack.c.h.b16 %v952
    %v2133 = vunpack.c.l.b16 %v953
    %v2134 = vunpack.c.l.b16 %v954
    %v2135 = vunpack.c.h.b16 %v954
    %v2136 = vunpack.c.l.b16 %v955
    %v2137 = vunpack.c.l.b16 %v956
    %v2138 = vunpack.c.h.b16 %v956
    %v2139 = vunpack.c.l.b16 %v957
    %v2140 = vunpack.c.l.b16 %v958
    %v2141 = vunpack.c.h.b16 %v958
    %v2142 = vunpack.c.l.b16 %v959
    %v2143 = vunpack.c.l.b16 %v960
    %v2144 = vunpack.c.h.b16 %v960
    %v2145 = vunpack.c.l.b16 %v961
    %v2146 = vunpack.c.l.b16 %v962
    %v2147 = vunpack.c.h.b16 %v962
    %v2148 = vunpack.c.l.b16 %v963
    %v2149 = vpack.c.b16 %v1984, %v1981
    %v2150 = vpack.c.b16 %v1985, %v1982
    %v2151 = vpack.c.b16 %v1986, %v1983
    %v2152 = vpack.c.b16 %v1990, %v1987
    %v2153 = vpack.c.b16 %v1991, %v1988
    %v2154 = vpack.c.b16 %v1992, %v1989
    %v2155 = vpack.c.b16 %v1996, %v1993
    %v2156 = vpack.c.b16 %v1997, %v1994
    %v2157 = vpack.c.b16 %v1998, %v1995
    %v2158 = vpack.c.b16 %v2002, %v1999
    %v2159 = vpack.c.b16 %v2003, %v2000
    %v2160 = vpack.c.b16 %v2004, %v2001
    %v2161 = vpack.c.b16 %v2008, %v2005
    %v2162 = vpack.c.b16 %v2009, %v2006
    %v2163 = vpack.c.b16 %v2010, %v2007
    %v2164 = vpack.c.b16 %v2014, %v2011
    %v2165 = vpack.c.b16 %v2015, %v2012
    %v2166 = vpack.c.b16 %v2016, %v2013
    %v2167 = vpack.c.b16 %v2020, %v2017
    %v2168 = vpack.c.b16 %v2021, %v2018
    %v2169 = vpack.c.b16 %v2022, %v2019
    %v2170 = vpack.c.b16 %v2026, %v2023
    %v2171 = vpack.c.b16 %v2027, %v2024
    %v2172 = vpack.c.b16 %v2028, %v2025
    %v2173 = vpack.c.b16 %v2032, %v2029
    %v2174 = vpack.c.b16 %v2033, %v2030
    %v2175 = vpack.c.b16 %v2034, %v2031
    %v2176 = vpack.c.b16 %v2038, %v2035
    %v2177 = vpack.c.b16 %v2039, %v2036
    %v2178 = vpack.c.b16 %v2040, %v2037
    %v2179 = vpack.c.b16 %v2044, %v2041
    %v2180 = vpack.c.b16 %v2045, %v2042
    %v2181 = vpack.c.b16 %v2046, %v2043
    %v2182 = vpack.c.b16 %v2050, %v2047
    %v2183 = vpack.c.b16 %v2051, %v2048
    %v2184 = vpack.c.b16 %v2052, %v2049
    %v2185 = vpack.c.b16 %v2056, %v2053
    %v2186 = vpack.c.b16 %v2057, %v2054
    %v2187 = vpack.c.b16 %v2058, %v2055
    %v2188 = vpack.c.b16 %v2062, %v2059
    %v2189 = vpack.c.b16 %v2063, %v2060
    %v2190 = vpack.c.b16 %v2064, %v2061
    %v2191 = vpack.c.b16 %v2068, %v2065
    %v2192 = vpack.c.b16 %v2069, %v2066
    %v2193 = vpack.c.b16 %v2070, %v2067
    %v2194 = vpack.c.b16 %v2074, %v2071
    %v2195 = vpack.c.b16 %v2075, %v2072
    %v2196 = vpack.c.b16 %v2076, %v2073
    %v2197 = vpack.c.b16 %v2080, %v2077
    %v2198 = vpack.c.b16 %v2081, %v2078
    %v2199 = vpack.c.b16 %v2082, %v2079
    %v2200 = vpack.c.b16 %v2086, %v2083
    %v2201 = vpack.c.b16 %v2087, %v2084
    %v2202 = vpack.c.b16 %v2088, %v2085
    %v2203 = vpack.c.b16 %v2092, %v2089
    %v2204 = vpack.c.b16 %v2093, %v2090
    %v2205 = vpack.c.b16 %v2094, %v2091
    %v2206 = vpack.c.b16 %v2098, %v2095
    %v2207 = vpack.c.b16 %v2099, %v2096
    %v2208 = vpack.c.b16 %v2100, %v2097
    %v2209 = vpack.c.b16 %v2104, %v2101
    %v2210 = vpack.c.b16 %v2105, %v2102
    %v2211 = vpack.c.b16 %v2106, %v2103
    %v2212 = vpack.c.b16 %v2110, %v2107
    %v2213 = vpack.c.b16 %v2111, %v2108
    %v2214 = vpack.c.b16 %v2112, %v2109
    %v2215 = vpack.c.b16 %v2116, %v2113
    %v2216 = vpack.c.b16 %v2117, %v2114
    %v2217 = vpack.c.b16 %v2118, %v2115
    %v2218 = vpack.c.b16 %v2122, %v2119
    %v2219 = vpack.c.b16 %v2123, %v2120
    %v2220 = vpack.c.b16 %v2124, %v2121
    %v2221 = vpack.c.b16 %v2128, %v2125
    %v2222 = vpack.c.b16 %v2129, %v2126
    %v2223 = vpack.c.b16 %v2130, %v2127
    %v2224 = vpack.c.b16 %v2134, %v2131
    %v2225 = vpack.c.b16 %v2135, %v2132
    %v2226 = vpack.c.b16 %v2136, %v2133
    %v2227 = vpack.c.b16 %v2140, %v2137
    %v2228 = vpack.c.b16 %v2141, %v2138
    %v2229 = vpack.c.b16 %v2142, %v2139
    %v2230 = vpack.c.b16 %v2146, %v2143
    %v2231 = vpack.c.b16 %v2147, %v2144
    %v2232 = vpack.c.b16 %v2148, %v2145
    %v2318 = vsel %vm1664, %v847, 0
    %v2321 = vsel %vm1664, %v851, 0
    %2323 = vmatprep.subr.bf16.mxu0 %v2150
    %2324 = vmatpush1.bf16.msra.mxu0 %v2149
    %2325 = vmatprep.subr.bf16.mxu0 %v2153
    %2326 = vmatpush1.bf16.msra.mxu0 %v2152
    %2327 = vmatprep.subr.bf16.mxu0 %v2156
    %2328 = vmatpush1.bf16.msra.mxu0 %v2155
    %2329 = vmatprep.subr.bf16.mxu0 %v2159
    %2330 = vmatpush1.bf16.msra.mxu0 %v2158
    %2331 = vmatprep.subr.bf16.mxu0 %v2162
    %2332 = vmatpush1.bf16.msra.mxu0 %v2161
    %2333 = vmatprep.subr.bf16.mxu0 %v2165
    %2334 = vmatpush1.bf16.msra.mxu0 %v2164
    %2335 = vmatprep.subr.bf16.mxu0 %v2168
    %2336 = vmatpush1.bf16.msra.mxu0 %v2167
    %2337 = vmatprep.subr.bf16.mxu0 %v2171
    %2338 = vmatpush1.bf16.msra.mxu0 %v2170
    %2339 = vmatprep.subr.bf16.mxu0 %v2174
    %2340 = vmatpush1.bf16.msra.mxu0 %v2173
    %2341 = vmatprep.subr.bf16.mxu0 %v2177
    %2342 = vmatpush1.bf16.msra.mxu0 %v2176
    %2343 = vmatprep.subr.bf16.mxu0 %v2180
    %2344 = vmatpush1.bf16.msra.mxu0 %v2179
    %2345 = vmatprep.subr.bf16.mxu0 %v2183
    %2346 = vmatpush1.bf16.msra.mxu0 %v2182
    %2347 = vmatprep.subr.bf16.mxu0 %v2186
    %2348 = vmatpush1.bf16.msra.mxu0 %v2185
    %2349 = vmatprep.subr.bf16.mxu0 %v2189
    %2350 = vmatpush1.bf16.msra.mxu0 %v2188
    %2351 = vmatprep.subr.bf16.mxu0 %v2192
    %2352 = vmatpush1.bf16.msra.mxu0 %v2191
    %2353 = vmatprep.subr.bf16.mxu0 %v2195
    %2354 = vmatpush1.bf16.msra.mxu0 %v2194
    %2355 = vmatprep.mubr.bf16.mxu0 %v845
    %2356 = vmatmul.mubr.bf16.gmra.mrb[0].mxu0 %v844
    %v2357 = vpop.f32.mrb[0].mxu0
    %v2358 = vadd.f32 %v1757, %v2357
    %v2359 = vpop.f32.mrb[0].mxu0
    %v2360 = vadd.f32 %v1759, %v2359
    %v2361 = vpop.f32.mrb[0].mxu0
    %v2362 = vadd.f32 %v1761, %v2361
    %v2363 = vpop.f32.mrb[0].mxu0
    %v2364 = vadd.f32 %v1763, %v2363
    %2365 = vmatprep.mubr.bf16.mxu0 %v849
    %2366 = vmatmul.mubr.bf16.gmra.mrb[0].mxu0 %v848
    %v2367 = vpop.f32.mrb[0].mxu0
    %v2368 = vadd.f32 %v1767, %v2367
    %v2369 = vpop.f32.mrb[0].mxu0
    %v2370 = vadd.f32 %v1769, %v2369
    %v2371 = vpop.f32.mrb[0].mxu0
    %v2372 = vpop.f32.mrb[0].mxu0
    %2373 = vdwg.mxu0
    %2374 = vmatprep.subr.bf16.mxu0 %v2198
    %2375 = vmatpush1.bf16.msra.mxu0 %v2197
    %2376 = vmatprep.subr.bf16.mxu0 %v2201
    %2377 = vmatpush1.bf16.msra.mxu0 %v2200
    %2378 = vmatprep.subr.bf16.mxu0 %v2204
    %2379 = vmatpush1.bf16.msra.mxu0 %v2203
    %2380 = vmatprep.subr.bf16.mxu0 %v2207
    %2381 = vmatpush1.bf16.msra.mxu0 %v2206
    %2382 = vmatprep.subr.bf16.mxu0 %v2210
    %2383 = vmatpush1.bf16.msra.mxu0 %v2209
    %2384 = vmatprep.subr.bf16.mxu0 %v2213
    %2385 = vmatpush1.bf16.msra.mxu0 %v2212
    %2386 = vmatprep.subr.bf16.mxu0 %v2216
    %2387 = vmatpush1.bf16.msra.mxu0 %v2215
    %2388 = vmatprep.subr.bf16.mxu0 %v2219
    %2389 = vmatpush1.bf16.msra.mxu0 %v2218
    %2390 = vmatprep.subr.bf16.mxu0 %v2222
    %2391 = vmatpush1.bf16.msra.mxu0 %v2221
    %2392 = vmatprep.subr.bf16.mxu0 %v2225
    %2393 = vmatpush1.bf16.msra.mxu0 %v2224
    %2394 = vmatprep.subr.bf16.mxu0 %v2228
    %2395 = vmatpush1.bf16.msra.mxu0 %v2227
    %2396 = vmatprep.subr.bf16.mxu0 %v2231
    %2397 = vmatpush1.bf16.msra.mxu0 %v2230
    %2398 = vmatprep.subr.bf16.mxu0 0
    %2399 = vmatpush1.bf16.msra.mxu0 0
    %2400 = vmatprep.subr.bf16.mxu0 0
    %2401 = vmatpush1.bf16.msra.mxu0 0
    %2402 = vmatprep.subr.bf16.mxu0 0
    %2403 = vmatpush1.bf16.msra.mxu0 0
    %2404 = vmatprep.subr.bf16.mxu0 0
    %2405 = vmatpush1.bf16.msra.mxu0 0
    %2406 = vmatprep.mubr.bf16.mxu0 %v2318
    %2407 = vmatmul.mubr.bf16.gmra.mrb[0].mxu0 %v846
    %v2408 = vpop.f32.mrb[0].mxu0
    %v2409 = vadd.f32 %v2358, %v2408
    %v2410 = vpop.f32.mrb[0].mxu0
    %v2411 = vadd.f32 %v2360, %v2410
    %v2412 = vpop.f32.mrb[0].mxu0
    %v2413 = vadd.f32 %v2362, %v2412
    %v2414 = vpop.f32.mrb[0].mxu0
    %v2415 = vadd.f32 %v2364, %v2414
    %2416 = vmatprep.mubr.bf16.mxu0 %v2321
    %2417 = vmatmul.mubr.bf16.gmra.mrb[0].mxu0 %v850
    %v2418 = vpop.f32.mrb[0].mxu0
    %v2419 = vadd.f32 %v2368, %v2418
    %v2420 = vpop.f32.mrb[0].mxu0
    %v2421 = vadd.f32 %v2370, %v2420
    %v2422 = vpop.f32.mrb[0].mxu0
    %v2423 = vpop.f32.mrb[0].mxu0
    %2424 = vdwg.mxu0
    %2425 = vmatprep.subr.bf16.mxu0 0
    %2426 = vmatpush1.bf16.msra.mxu0 %v2151
    %2427 = vmatprep.subr.bf16.mxu0 0
    %2428 = vmatpush1.bf16.msra.mxu0 %v2154
    %2429 = vmatprep.subr.bf16.mxu0 0
    %2430 = vmatpush1.bf16.msra.mxu0 %v2157
    %2431 = vmatprep.subr.bf16.mxu0 0
    %2432 = vmatpush1.bf16.msra.mxu0 %v2160
    %2433 = vmatprep.subr.bf16.mxu0 0
    %2434 = vmatpush1.bf16.msra.mxu0 %v2163
    %2435 = vmatprep.subr.bf16.mxu0 0
    %2436 = vmatpush1.bf16.msra.mxu0 %v2166
    %2437 = vmatprep.subr.bf16.mxu0 0
    %2438 = vmatpush1.bf16.msra.mxu0 %v2169
    %2439 = vmatprep.subr.bf16.mxu0 0
    %2440 = vmatpush1.bf16.msra.mxu0 %v2172
    %2441 = vmatprep.subr.bf16.mxu0 0
    %2442 = vmatpush1.bf16.msra.mxu0 %v2175
    %2443 = vmatprep.subr.bf16.mxu0 0
    %2444 = vmatpush1.bf16.msra.mxu0 %v2178
    %2445 = vmatprep.subr.bf16.mxu0 0
    %2446 = vmatpush1.bf16.msra.mxu0 %v2181
    %2447 = vmatprep.subr.bf16.mxu0 0
    %2448 = vmatpush1.bf16.msra.mxu0 %v2184
    %2449 = vmatprep.subr.bf16.mxu0 0
    %2450 = vmatpush1.bf16.msra.mxu0 %v2187
    %2451 = vmatprep.subr.bf16.mxu0 0
    %2452 = vmatpush1.bf16.msra.mxu0 %v2190
    %2453 = vmatprep.subr.bf16.mxu0 0
    %2454 = vmatpush1.bf16.msra.mxu0 %v2193
    %2455 = vmatprep.subr.bf16.mxu0 0
    %2456 = vmatpush1.bf16.msra.mxu0 %v2196
    %2457 = vmatprep.mubr.bf16.mxu0 %v845
    %2458 = vmatmul.mubr.bf16.gmra.mrb[0].mxu0 %v844
    %v2459 = vpop.f32.mrb[0].mxu0
    %v2460 = vadd.f32 %v1856, %v2459
    %v2461 = vpop.f32.mrb[0].mxu0
    %v2462 = vpop.f32.mrb[0].mxu0
    %v2463 = vadd.f32 %v1859, %v2462
    %v2464 = vpop.f32.mrb[0].mxu0
    %2465 = vmatprep.mubr.bf16.mxu0 %v849
    %2466 = vmatmul.mubr.bf16.gmra.mrb[0].mxu0 %v848
    %v2467 = vpop.f32.mrb[0].mxu0
    %v2468 = vadd.f32 %v1864, %v2467
    %v2469 = vpop.f32.mrb[0].mxu0
    %v2470 = vpop.f32.mrb[0].mxu0
    %v2471 = vpop.f32.mrb[0].mxu0
    %2472 = vdwg.mxu0
    %2473 = vmatprep.subr.bf16.mxu0 0
    %2474 = vmatpush1.bf16.msra.mxu0 %v2199
    %2475 = vmatprep.subr.bf16.mxu0 0
    %2476 = vmatpush1.bf16.msra.mxu0 %v2202
    %2477 = vmatprep.subr.bf16.mxu0 0
    %2478 = vmatpush1.bf16.msra.mxu0 %v2205
    %2479 = vmatprep.subr.bf16.mxu0 0
    %2480 = vmatpush1.bf16.msra.mxu0 %v2208
    %2481 = vmatprep.subr.bf16.mxu0 0
    %2482 = vmatpush1.bf16.msra.mxu0 %v2211
    %2483 = vmatprep.subr.bf16.mxu0 0
    %2484 = vmatpush1.bf16.msra.mxu0 %v2214
    %2485 = vmatprep.subr.bf16.mxu0 0
    %2486 = vmatpush1.bf16.msra.mxu0 %v2217
    %2487 = vmatprep.subr.bf16.mxu0 0
    %2488 = vmatpush1.bf16.msra.mxu0 %v2220
    %2489 = vmatprep.subr.bf16.mxu0 0
    %2490 = vmatpush1.bf16.msra.mxu0 %v2223
    %2491 = vmatprep.subr.bf16.mxu0 0
    %2492 = vmatpush1.bf16.msra.mxu0 %v2226
    %2493 = vmatprep.subr.bf16.mxu0 0
    %2494 = vmatpush1.bf16.msra.mxu0 %v2229
    %2495 = vmatprep.subr.bf16.mxu0 0
    %2496 = vmatpush1.bf16.msra.mxu0 %v2232
    %2497 = vmatprep.subr.bf16.mxu0 0
    %2498 = vmatpush1.bf16.msra.mxu0 0
    %2499 = vmatprep.subr.bf16.mxu0 0
    %2500 = vmatpush1.bf16.msra.mxu0 0
    %2501 = vmatprep.subr.bf16.mxu0 0
    %2502 = vmatpush1.bf16.msra.mxu0 0
    %2503 = vmatprep.subr.bf16.mxu0 0
    %2504 = vmatpush1.bf16.msra.mxu0 0
    %2505 = vmatprep.mubr.bf16.mxu0 %v2318
    %2506 = vmatmul.mubr.bf16.gmra.mrb[0].mxu0 %v846
    %v2507 = vpop.f32.mrb[0].mxu0
    %v2508 = vadd.f32 %v2460, %v2507
    %v2509 = vpop.f32.mrb[0].mxu0
    %v2510 = vpop.f32.mrb[0].mxu0
    %v2511 = vadd.f32 %v2463, %v2510
    %v2512 = vpop.f32.mrb[0].mxu0
    %2513 = vmatprep.mubr.bf16.mxu0 %v2321
    %2514 = vmatmul.mubr.bf16.gmra.mrb[0].mxu0 %v850
    %v2515 = vpop.f32.mrb[0].mxu0
    %v2516 = vadd.f32 %v2468, %v2515
    %v2517 = vpop.f32.mrb[0].mxu0
    %v2518 = vpop.f32.mrb[0].mxu0
    %v2519 = vpop.f32.mrb[0].mxu0
    %2520 = vdwg.mxu0
    %s2521 = scalar_lea.vmem [#allocation10], 672
    %v2522 = vld [vmem:[%s2521] sm:$0xff]
    %v2523 = vld [vmem:[%s2521 + $0x8] sm:$0xf]
    %v2524 = vld [vmem:[%s2521 + $0xc] sm:$0xff]
    %v2525 = vld [vmem:[%s2521 + $0x14] sm:$0xf]
    %v2526 = vld [vmem:[%s2521 + $0x18] sm:$0xff]
    %v2527 = vld [vmem:[%s2521 + $0x20] sm:$0xf]
    %v2528 = vld [vmem:[%s2521 + $0x24] sm:$0xff]
    %v2529 = vld [vmem:[%s2521 + $0x2c] sm:$0xf]
    %v2530 = vld [vmem:[%s2521 + $0x30] sm:$0xff]
    %v2531 = vld [vmem:[%s2521 + $0x38] sm:$0xf]
    %v2532 = vld [vmem:[%s2521 + $0x3c] sm:$0xff]
    %v2533 = vld [vmem:[%s2521 + $0x44] sm:$0xf]
    %v2534 = vld [vmem:[%s2521 + $0x48] sm:$0xff]
    %v2535 = vld [vmem:[%s2521 + $0x50] sm:$0xf]
    %v2536 = vld [vmem:[%s2521 + $0x54] sm:$0xff]
    %v2537 = vld [vmem:[%s2521 + $0x5c] sm:$0xf]
    %v2538 = vld [vmem:[%s2521 + $0x60] sm:$0xff]
    %v2539 = vld [vmem:[%s2521 + $0x68] sm:$0xf]
    %v2540 = vld [vmem:[%s2521 + $0x6c] sm:$0xff]
    %v2541 = vld [vmem:[%s2521 + $0x74] sm:$0xf]
    %v2542 = vld [vmem:[%s2521 + $0x78] sm:$0xff]
    %v2543 = vld [vmem:[%s2521 + $0x80] sm:$0xf]
    %v2544 = vld [vmem:[%s2521 + $0x84] sm:$0xff]
    %v2545 = vld [vmem:[%s2521 + $0x8c] sm:$0xf]
    %v2546 = vld [vmem:[%s2521 + $0x90] sm:$0xff]
    %v2547 = vld [vmem:[%s2521 + $0x98] sm:$0xf]
    %v2548 = vld [vmem:[%s2521 + $0x9c] sm:$0xff]
    %v2549 = vld [vmem:[%s2521 + $0xa4] sm:$0xf]
    %v2550 = vld [vmem:[%s2521 + $0xa8] sm:$0xff]
    %v2551 = vld [vmem:[%s2521 + $0xb0] sm:$0xf]
    %v2552 = vld [vmem:[%s2521 + $0xb4] sm:$0xff]
    %v2553 = vld [vmem:[%s2521 + $0xbc] sm:$0xf]
    %v2554 = vld [vmem:[%s2521 + $0xc0] sm:$0xff]
    %v2555 = vld [vmem:[%s2521 + $0xc8] sm:$0xf]
    %v2556 = vld [vmem:[%s2521 + $0xcc] sm:$0xff]
    %v2557 = vld [vmem:[%s2521 + $0xd4] sm:$0xf]
    %v2558 = vld [vmem:[%s2521 + $0xd8] sm:$0xff]
    %v2559 = vld [vmem:[%s2521 + $0xe0] sm:$0xf]
    %v2560 = vld [vmem:[%s2521 + $0xe4] sm:$0xff]
    %v2561 = vld [vmem:[%s2521 + $0xec] sm:$0xf]
    %v2562 = vld [vmem:[%s2521 + $0xf0] sm:$0xff]
    %v2563 = vld [vmem:[%s2521 + $0xf8] sm:$0xf]
    %v2564 = vld [vmem:[%s2521 + $0xfc] sm:$0xff]
    %v2565 = vld [vmem:[%s2521 + $0x104] sm:$0xf]
    %v2566 = vld [vmem:[%s2521 + $0x108] sm:$0xff]
    %v2567 = vld [vmem:[%s2521 + $0x110] sm:$0xf]
    %v2568 = vld [vmem:[%s2521 + $0x114] sm:$0xff]
    %v2569 = vld [vmem:[%s2521 + $0x11c] sm:$0xf]
    %v2570 = vld [vmem:[%s2521 + $0x120] sm:$0xff]
    %v2571 = vld [vmem:[%s2521 + $0x128] sm:$0xf]
    %v2572 = vld [vmem:[%s2521 + $0x12c] sm:$0xff]
    %v2573 = vld [vmem:[%s2521 + $0x134] sm:$0xf]
    %v2574 = vld [vmem:[%s2521 + $0x138] sm:$0xff]
    %v2575 = vld [vmem:[%s2521 + $0x140] sm:$0xf]
    %v2576 = vld [vmem:[%s2521 + $0x144] sm:$0xff]
    %v2577 = vld [vmem:[%s2521 + $0x14c] sm:$0xf]
    %v2578 = vld [vmem:[%s2521 + $0x150] sm:$0xff]
    %v2579 = vld [vmem:[%s2521 + $0x158] sm:$0xf]
    %v2580 = vld [vmem:[%s2521 + $0x15c] sm:$0xff]
    %v2581 = vld [vmem:[%s2521 + $0x164] sm:$0xf]
    %v2582 = vld [vmem:[%s2521 + $0x168] sm:$0xff]
    %v2583 = vld [vmem:[%s2521 + $0x170] sm:$0xf]
    %v2584 = vld [vmem:[%s2521 + $0x174] sm:$0xff]
    %v2585 = vld [vmem:[%s2521 + $0x17c] sm:$0xf]
    %v2586 = vld [vmem:[%s2521 + $0x180] sm:$0xff]
    %v2587 = vld [vmem:[%s2521 + $0x188] sm:$0xf]
    %v2588 = vld [vmem:[%s2521 + $0x18c] sm:$0xff]
    %v2589 = vld [vmem:[%s2521 + $0x194] sm:$0xf]
    %v2590 = vld [vmem:[%s2521 + $0x198] sm:$0xff]
    %v2591 = vld [vmem:[%s2521 + $0x1a0] sm:$0xf]
    %v2592 = vld [vmem:[%s2521 + $0x1a4] sm:$0xff]
    %v2593 = vld [vmem:[%s2521 + $0x1ac] sm:$0xf]
    %v2594 = vld [vmem:[%s2521 + $0x1b0] sm:$0xff]
    %v2595 = vld [vmem:[%s2521 + $0x1b8] sm:$0xf]
    %v2596 = vld [vmem:[%s2521 + $0x1bc] sm:$0xff]
    %v2597 = vld [vmem:[%s2521 + $0x1c4] sm:$0xf]
    %v2598 = vld [vmem:[%s2521 + $0x1c8] sm:$0xff]
    %v2599 = vld [vmem:[%s2521 + $0x1d0] sm:$0xf]
    %v2600 = vld [vmem:[%s2521 + $0x1d4] sm:$0xff]
    %v2601 = vld [vmem:[%s2521 + $0x1dc] sm:$0xf]
    %v2602 = vld [vmem:[%s2521 + $0x1e0] sm:$0xff]
    %v2603 = vld [vmem:[%s2521 + $0x1e8] sm:$0xf]
    %v2604 = vld [vmem:[%s2521 + $0x1ec] sm:$0xff]
    %v2605 = vld [vmem:[%s2521 + $0x1f4] sm:$0xf]
    %v2606 = vld [vmem:[%s2521 + $0x1f8] sm:$0xff]
    %v2607 = vld [vmem:[%s2521 + $0x200] sm:$0xf]
    %v2608 = vld [vmem:[%s2521 + $0x204] sm:$0xff]
    %v2609 = vld [vmem:[%s2521 + $0x20c] sm:$0xf]
    %v2610 = vld [vmem:[%s2521 + $0x210] sm:$0xff]
    %v2611 = vld [vmem:[%s2521 + $0x218] sm:$0xf]
    %v2612 = vld [vmem:[%s2521 + $0x21c] sm:$0xff]
    %v2613 = vld [vmem:[%s2521 + $0x224] sm:$0xf]
    %v2614 = vld [vmem:[%s2521 + $0x228] sm:$0xff]
    %v2615 = vld [vmem:[%s2521 + $0x230] sm:$0xf]
    %v2616 = vld [vmem:[%s2521 + $0x234] sm:$0xff]
    %v2617 = vld [vmem:[%s2521 + $0x23c] sm:$0xf]
    %v2618 = vld [vmem:[%s2521 + $0x240] sm:$0xff]
    %v2619 = vld [vmem:[%s2521 + $0x248] sm:$0xf]
    %v2620 = vld [vmem:[%s2521 + $0x24c] sm:$0xff]
    %v2621 = vld [vmem:[%s2521 + $0x254] sm:$0xf]
    %v2622 = vld [vmem:[%s2521 + $0x258] sm:$0xff]
    %v2623 = vld [vmem:[%s2521 + $0x260] sm:$0xf]
    %v2624 = vld [vmem:[%s2521 + $0x264] sm:$0xff]
    %v2625 = vld [vmem:[%s2521 + $0x26c] sm:$0xf]
    %v2626 = vld [vmem:[%s2521 + $0x270] sm:$0xff]
    %v2627 = vld [vmem:[%s2521 + $0x278] sm:$0xf]
    %v2628 = vld [vmem:[%s2521 + $0x27c] sm:$0xff]
    %v2629 = vld [vmem:[%s2521 + $0x284] sm:$0xf]
    %v2630 = vld [vmem:[%s2521 + $0x288] sm:$0xff]
    %v2631 = vld [vmem:[%s2521 + $0x290] sm:$0xf]
    %v2632 = vld [vmem:[%s2521 + $0x294] sm:$0xff]
    %v2633 = vld [vmem:[%s2521 + $0x29c] sm:$0xf]
    %v2746 = vunpack.c.l.b16 %v2522
    %v2747 = vunpack.c.h.b16 %v2522
    %v2748 = vunpack.c.l.b16 %v2523
    %v2749 = vunpack.c.l.b16 %v2524
    %v2750 = vunpack.c.h.b16 %v2524
    %v2751 = vunpack.c.l.b16 %v2525
    %v2752 = vunpack.c.l.b16 %v2526
    %v2753 = vunpack.c.h.b16 %v2526
    %v2754 = vunpack.c.l.b16 %v2527
    %v2755 = vunpack.c.l.b16 %v2528
    %v2756 = vunpack.c.h.b16 %v2528
    %v2757 = vunpack.c.l.b16 %v2529
    %v2758 = vunpack.c.l.b16 %v2530
    %v2759 = vunpack.c.h.b16 %v2530
    %v2760 = vunpack.c.l.b16 %v2531
    %v2761 = vunpack.c.l.b16 %v2532
    %v2762 = vunpack.c.h.b16 %v2532
    %v2763 = vunpack.c.l.b16 %v2533
    %v2764 = vunpack.c.l.b16 %v2534
    %v2765 = vunpack.c.h.b16 %v2534
    %v2766 = vunpack.c.l.b16 %v2535
    %v2767 = vunpack.c.l.b16 %v2536
    %v2768 = vunpack.c.h.b16 %v2536
    %v2769 = vunpack.c.l.b16 %v2537
    %v2770 = vunpack.c.l.b16 %v2538
    %v2771 = vunpack.c.h.b16 %v2538
    %v2772 = vunpack.c.l.b16 %v2539
    %v2773 = vunpack.c.l.b16 %v2540
    %v2774 = vunpack.c.h.b16 %v2540
    %v2775 = vunpack.c.l.b16 %v2541
    %v2776 = vunpack.c.l.b16 %v2542
    %v2777 = vunpack.c.h.b16 %v2542
    %v2778 = vunpack.c.l.b16 %v2543
    %v2779 = vunpack.c.l.b16 %v2544
    %v2780 = vunpack.c.h.b16 %v2544
    %v2781 = vunpack.c.l.b16 %v2545
    %v2782 = vunpack.c.l.b16 %v2546
    %v2783 = vunpack.c.h.b16 %v2546
    %v2784 = vunpack.c.l.b16 %v2547
    %v2785 = vunpack.c.l.b16 %v2548
    %v2786 = vunpack.c.h.b16 %v2548
    %v2787 = vunpack.c.l.b16 %v2549
    %v2788 = vunpack.c.l.b16 %v2550
    %v2789 = vunpack.c.h.b16 %v2550
    %v2790 = vunpack.c.l.b16 %v2551
    %v2791 = vunpack.c.l.b16 %v2552
    %v2792 = vunpack.c.h.b16 %v2552
    %v2793 = vunpack.c.l.b16 %v2553
    %v2794 = vunpack.c.l.b16 %v2554
    %v2795 = vunpack.c.h.b16 %v2554
    %v2796 = vunpack.c.l.b16 %v2555
    %v2797 = vunpack.c.l.b16 %v2556
    %v2798 = vunpack.c.h.b16 %v2556
    %v2799 = vunpack.c.l.b16 %v2557
    %v2800 = vunpack.c.l.b16 %v2558
    %v2801 = vunpack.c.h.b16 %v2558
    %v2802 = vunpack.c.l.b16 %v2559
    %v2803 = vunpack.c.l.b16 %v2560
    %v2804 = vunpack.c.h.b16 %v2560
    %v2805 = vunpack.c.l.b16 %v2561
    %v2806 = vunpack.c.l.b16 %v2562
    %v2807 = vunpack.c.h.b16 %v2562
    %v2808 = vunpack.c.l.b16 %v2563
    %v2809 = vunpack.c.l.b16 %v2564
    %v2810 = vunpack.c.h.b16 %v2564
    %v2811 = vunpack.c.l.b16 %v2565
    %v2812 = vunpack.c.l.b16 %v2566
    %v2813 = vunpack.c.h.b16 %v2566
    %v2814 = vunpack.c.l.b16 %v2567
    %v2815 = vunpack.c.l.b16 %v2568
    %v2816 = vunpack.c.h.b16 %v2568
    %v2817 = vunpack.c.l.b16 %v2569
    %v2818 = vunpack.c.l.b16 %v2570
    %v2819 = vunpack.c.h.b16 %v2570
    %v2820 = vunpack.c.l.b16 %v2571
    %v2821 = vunpack.c.l.b16 %v2572
    %v2822 = vunpack.c.h.b16 %v2572
    %v2823 = vunpack.c.l.b16 %v2573
    %v2824 = vunpack.c.l.b16 %v2574
    %v2825 = vunpack.c.h.b16 %v2574
    %v2826 = vunpack.c.l.b16 %v2575
    %v2827 = vunpack.c.l.b16 %v2576
    %v2828 = vunpack.c.h.b16 %v2576
    %v2829 = vunpack.c.l.b16 %v2577
    %v2830 = vunpack.c.l.b16 %v2578
    %v2831 = vunpack.c.h.b16 %v2578
    %v2832 = vunpack.c.l.b16 %v2579
    %v2833 = vunpack.c.l.b16 %v2580
    %v2834 = vunpack.c.h.b16 %v2580
    %v2835 = vunpack.c.l.b16 %v2581
    %v2836 = vunpack.c.l.b16 %v2582
    %v2837 = vunpack.c.h.b16 %v2582
    %v2838 = vunpack.c.l.b16 %v2583
    %v2839 = vunpack.c.l.b16 %v2584
    %v2840 = vunpack.c.h.b16 %v2584
    %v2841 = vunpack.c.l.b16 %v2585
    %v2842 = vunpack.c.l.b16 %v2586
    %v2843 = vunpack.c.h.b16 %v2586
    %v2844 = vunpack.c.l.b16 %v2587
    %v2845 = vunpack.c.l.b16 %v2588
    %v2846 = vunpack.c.h.b16 %v2588
    %v2847 = vunpack.c.l.b16 %v2589
    %v2848 = vunpack.c.l.b16 %v2590
    %v2849 = vunpack.c.h.b16 %v2590
    %v2850 = vunpack.c.l.b16 %v2591
    %v2851 = vunpack.c.l.b16 %v2592
    %v2852 = vunpack.c.h.b16 %v2592
    %v2853 = vunpack.c.l.b16 %v2593
    %v2854 = vunpack.c.l.b16 %v2594
    %v2855 = vunpack.c.h.b16 %v2594
    %v2856 = vunpack.c.l.b16 %v2595
    %v2857 = vunpack.c.l.b16 %v2596
    %v2858 = vunpack.c.h.b16 %v2596
    %v2859 = vunpack.c.l.b16 %v2597
    %v2860 = vunpack.c.l.b16 %v2598
    %v2861 = vunpack.c.h.b16 %v2598
    %v2862 = vunpack.c.l.b16 %v2599
    %v2863 = vunpack.c.l.b16 %v2600
    %v2864 = vunpack.c.h.b16 %v2600
    %v2865 = vunpack.c.l.b16 %v2601
    %v2866 = vunpack.c.l.b16 %v2602
    %v2867 = vunpack.c.h.b16 %v2602
    %v2868 = vunpack.c.l.b16 %v2603
    %v2869 = vunpack.c.l.b16 %v2604
    %v2870 = vunpack.c.h.b16 %v2604
    %v2871 = vunpack.c.l.b16 %v2605
    %v2872 = vunpack.c.l.b16 %v2606
    %v2873 = vunpack.c.h.b16 %v2606
    %v2874 = vunpack.c.l.b16 %v2607
    %v2875 = vunpack.c.l.b16 %v2608
    %v2876 = vunpack.c.h.b16 %v2608
    %v2877 = vunpack.c.l.b16 %v2609
    %v2878 = vunpack.c.l.b16 %v2610
    %v2879 = vunpack.c.h.b16 %v2610
    %v2880 = vunpack.c.l.b16 %v2611
    %v2881 = vunpack.c.l.b16 %v2612
    %v2882 = vunpack.c.h.b16 %v2612
    %v2883 = vunpack.c.l.b16 %v2613
    %v2884 = vunpack.c.l.b16 %v2614
    %v2885 = vunpack.c.h.b16 %v2614
    %v2886 = vunpack.c.l.b16 %v2615
    %v2887 = vunpack.c.l.b16 %v2616
    %v2888 = vunpack.c.h.b16 %v2616
    %v2889 = vunpack.c.l.b16 %v2617
    %v2890 = vunpack.c.l.b16 %v2618
    %v2891 = vunpack.c.h.b16 %v2618
    %v2892 = vunpack.c.l.b16 %v2619
    %v2893 = vunpack.c.l.b16 %v2620
    %v2894 = vunpack.c.h.b16 %v2620
    %v2895 = vunpack.c.l.b16 %v2621
    %v2896 = vunpack.c.l.b16 %v2622
    %v2897 = vunpack.c.h.b16 %v2622
    %v2898 = vunpack.c.l.b16 %v2623
    %v2899 = vunpack.c.l.b16 %v2624
    %v2900 = vunpack.c.h.b16 %v2624
    %v2901 = vunpack.c.l.b16 %v2625
    %v2902 = vunpack.c.l.b16 %v2626
    %v2903 = vunpack.c.h.b16 %v2626
    %v2904 = vunpack.c.l.b16 %v2627
    %v2905 = vunpack.c.l.b16 %v2628
    %v2906 = vunpack.c.h.b16 %v2628
    %v2907 = vunpack.c.l.b16 %v2629
    %v2908 = vunpack.c.l.b16 %v2630
    %v2909 = vunpack.c.h.b16 %v2630
    %v2910 = vunpack.c.l.b16 %v2631
    %v2911 = vunpack.c.l.b16 %v2632
    %v2912 = vunpack.c.h.b16 %v2632
    %v2913 = vunpack.c.l.b16 %v2633
    %v2914 = vpack.c.b16 %v2749, %v2746
    %v2915 = vpack.c.b16 %v2750, %v2747
    %v2916 = vpack.c.b16 %v2751, %v2748
    %v2917 = vpack.c.b16 %v2755, %v2752
    %v2918 = vpack.c.b16 %v2756, %v2753
    %v2919 = vpack.c.b16 %v2757, %v2754
    %v2920 = vpack.c.b16 %v2761, %v2758
    %v2921 = vpack.c.b16 %v2762, %v2759
    %v2922 = vpack.c.b16 %v2763, %v2760
    %v2923 = vpack.c.b16 %v2767, %v2764
    %v2924 = vpack.c.b16 %v2768, %v2765
    %v2925 = vpack.c.b16 %v2769, %v2766
    %v2926 = vpack.c.b16 %v2773, %v2770
    %v2927 = vpack.c.b16 %v2774, %v2771
    %v2928 = vpack.c.b16 %v2775, %v2772
    %v2929 = vpack.c.b16 %v2779, %v2776
    %v2930 = vpack.c.b16 %v2780, %v2777
    %v2931 = vpack.c.b16 %v2781, %v2778
    %v2932 = vpack.c.b16 %v2785, %v2782
    %v2933 = vpack.c.b16 %v2786, %v2783
    %v2934 = vpack.c.b16 %v2787, %v2784
    %v2935 = vpack.c.b16 %v2791, %v2788
    %v2936 = vpack.c.b16 %v2792, %v2789
    %v2937 = vpack.c.b16 %v2793, %v2790
    %v2938 = vpack.c.b16 %v2797, %v2794
    %v2939 = vpack.c.b16 %v2798, %v2795
    %v2940 = vpack.c.b16 %v2799, %v2796
    %v2941 = vpack.c.b16 %v2803, %v2800
    %v2942 = vpack.c.b16 %v2804, %v2801
    %v2943 = vpack.c.b16 %v2805, %v2802
    %v2944 = vpack.c.b16 %v2809, %v2806
    %v2945 = vpack.c.b16 %v2810, %v2807
    %v2946 = vpack.c.b16 %v2811, %v2808
    %v2947 = vpack.c.b16 %v2815, %v2812
    %v2948 = vpack.c.b16 %v2816, %v2813
    %v2949 = vpack.c.b16 %v2817, %v2814
    %v2950 = vpack.c.b16 %v2821, %v2818
    %v2951 = vpack.c.b16 %v2822, %v2819
    %v2952 = vpack.c.b16 %v2823, %v2820
    %v2953 = vpack.c.b16 %v2827, %v2824
    %v2954 = vpack.c.b16 %v2828, %v2825
    %v2955 = vpack.c.b16 %v2829, %v2826
    %v2956 = vpack.c.b16 %v2833, %v2830
    %v2957 = vpack.c.b16 %v2834, %v2831
    %v2958 = vpack.c.b16 %v2835, %v2832
    %v2959 = vpack.c.b16 %v2839, %v2836
    %v2960 = vpack.c.b16 %v2840, %v2837
    %v2961 = vpack.c.b16 %v2841, %v2838
    %v2962 = vpack.c.b16 %v2845, %v2842
    %v2963 = vpack.c.b16 %v2846, %v2843
    %v2964 = vpack.c.b16 %v2847, %v2844
    %v2965 = vpack.c.b16 %v2851, %v2848
    %v2966 = vpack.c.b16 %v2852, %v2849
    %v2967 = vpack.c.b16 %v2853, %v2850
    %v2968 = vpack.c.b16 %v2857, %v2854
    %v2969 = vpack.c.b16 %v2858, %v2855
    %v2970 = vpack.c.b16 %v2859, %v2856
    %v2971 = vpack.c.b16 %v2863, %v2860
    %v2972 = vpack.c.b16 %v2864, %v2861
    %v2973 = vpack.c.b16 %v2865, %v2862
    %v2974 = vpack.c.b16 %v2869, %v2866
    %v2975 = vpack.c.b16 %v2870, %v2867
    %v2976 = vpack.c.b16 %v2871, %v2868
    %v2977 = vpack.c.b16 %v2875, %v2872
    %v2978 = vpack.c.b16 %v2876, %v2873
    %v2979 = vpack.c.b16 %v2877, %v2874
    %v2980 = vpack.c.b16 %v2881, %v2878
    %v2981 = vpack.c.b16 %v2882, %v2879
    %v2982 = vpack.c.b16 %v2883, %v2880
    %v2983 = vpack.c.b16 %v2887, %v2884
    %v2984 = vpack.c.b16 %v2888, %v2885
    %v2985 = vpack.c.b16 %v2889, %v2886
    %v2986 = vpack.c.b16 %v2893, %v2890
    %v2987 = vpack.c.b16 %v2894, %v2891
    %v2988 = vpack.c.b16 %v2895, %v2892
    %v2989 = vpack.c.b16 %v2899, %v2896
    %v2990 = vpack.c.b16 %v2900, %v2897
    %v2991 = vpack.c.b16 %v2901, %v2898
    %v2992 = vpack.c.b16 %v2905, %v2902
    %v2993 = vpack.c.b16 %v2906, %v2903
    %v2994 = vpack.c.b16 %v2907, %v2904
    %v2995 = vpack.c.b16 %v2911, %v2908
    %v2996 = vpack.c.b16 %v2912, %v2909
    %v2997 = vpack.c.b16 %v2913, %v2910
    %3082 = vmatprep.subr.bf16.mxu0 %v2915
    %3083 = vmatpush1.bf16.msra.mxu0 %v2914
    %3084 = vmatprep.subr.bf16.mxu0 %v2918
    %3085 = vmatpush1.bf16.msra.mxu0 %v2917
    %3086 = vmatprep.subr.bf16.mxu0 %v2921
    %3087 = vmatpush1.bf16.msra.mxu0 %v2920
    %3088 = vmatprep.subr.bf16.mxu0 %v2924
    %3089 = vmatpush1.bf16.msra.mxu0 %v2923
    %3090 = vmatprep.subr.bf16.mxu0 %v2927
    %3091 = vmatpush1.bf16.msra.mxu0 %v2926
    %3092 = vmatprep.subr.bf16.mxu0 %v2930
    %3093 = vmatpush1.bf16.msra.mxu0 %v2929
    %3094 = vmatprep.subr.bf16.mxu0 %v2933
    %3095 = vmatpush1.bf16.msra.mxu0 %v2932
    %3096 = vmatprep.subr.bf16.mxu0 %v2936
    %3097 = vmatpush1.bf16.msra.mxu0 %v2935
    %3098 = vmatprep.subr.bf16.mxu0 %v2939
    %3099 = vmatpush1.bf16.msra.mxu0 %v2938
    %3100 = vmatprep.subr.bf16.mxu0 %v2942
    %3101 = vmatpush1.bf16.msra.mxu0 %v2941
    %3102 = vmatprep.subr.bf16.mxu0 %v2945
    %3103 = vmatpush1.bf16.msra.mxu0 %v2944
    %3104 = vmatprep.subr.bf16.mxu0 %v2948
    %3105 = vmatpush1.bf16.msra.mxu0 %v2947
    %3106 = vmatprep.subr.bf16.mxu0 %v2951
    %3107 = vmatpush1.bf16.msra.mxu0 %v2950
    %3108 = vmatprep.subr.bf16.mxu0 %v2954
    %3109 = vmatpush1.bf16.msra.mxu0 %v2953
    %3110 = vmatprep.subr.bf16.mxu0 %v2957
    %3111 = vmatpush1.bf16.msra.mxu0 %v2956
    %3112 = vmatprep.subr.bf16.mxu0 %v2960
    %3113 = vmatpush1.bf16.msra.mxu0 %v2959
    %3114 = vmatprep.mubr.bf16.mxu0 %v1203
    %3115 = vmatmul.mubr.bf16.gmra.mrb[0].mxu0 %v1200
    %v3116 = vpop.f32.mrb[0].mxu0
    %v3117 = vadd.f32 0.0, %v3116
    %v3118 = vpop.f32.mrb[0].mxu0
    %v3119 = vadd.f32 0.0, %v3118
    %v3120 = vpop.f32.mrb[0].mxu0
    %v3121 = vadd.f32 0.0, %v3120
    %v3122 = vpop.f32.mrb[0].mxu0
    %v3123 = vadd.f32 0.0, %v3122
    %3124 = vmatprep.mubr.bf16.mxu0 %v1202
    %3125 = vmatmul.mubr.bf16.gmra.mrb[0].mxu0 %v1199
    %v3126 = vpop.f32.mrb[0].mxu0
    %v3127 = vadd.f32 0.0, %v3126
    %v3128 = vpop.f32.mrb[0].mxu0
    %v3129 = vadd.f32 0.0, %v3128
    %v3130 = vpop.f32.mrb[0].mxu0
    %v3131 = vpop.f32.mrb[0].mxu0
    %3132 = vdwg.mxu0
    %3133 = vmatprep.subr.bf16.mxu0 %v2963
    %3134 = vmatpush1.bf16.msra.mxu0 %v2962
    %3135 = vmatprep.subr.bf16.mxu0 %v2966
    %3136 = vmatpush1.bf16.msra.mxu0 %v2965
    %3137 = vmatprep.subr.bf16.mxu0 %v2969
    %3138 = vmatpush1.bf16.msra.mxu0 %v2968
    %3139 = vmatprep.subr.bf16.mxu0 %v2972
    %3140 = vmatpush1.bf16.msra.mxu0 %v2971
    %3141 = vmatprep.subr.bf16.mxu0 %v2975
    %3142 = vmatpush1.bf16.msra.mxu0 %v2974
    %3143 = vmatprep.subr.bf16.mxu0 %v2978
    %3144 = vmatpush1.bf16.msra.mxu0 %v2977
    %3145 = vmatprep.subr.bf16.mxu0 %v2981
    %3146 = vmatpush1.bf16.msra.mxu0 %v2980
    %3147 = vmatprep.subr.bf16.mxu0 %v2984
    %3148 = vmatpush1.bf16.msra.mxu0 %v2983
    %3149 = vmatprep.subr.bf16.mxu0 %v2987
    %3150 = vmatpush1.bf16.msra.mxu0 %v2986
    %3151 = vmatprep.subr.bf16.mxu0 %v2990
    %3152 = vmatpush1.bf16.msra.mxu0 %v2989
    %3153 = vmatprep.subr.bf16.mxu0 %v2993
    %3154 = vmatpush1.bf16.msra.mxu0 %v2992
    %3155 = vmatprep.subr.bf16.mxu0 %v2996
    %3156 = vmatpush1.bf16.msra.mxu0 %v2995
    %3157 = vmatprep.subr.bf16.mxu0 0
    %3158 = vmatpush1.bf16.msra.mxu0 0
    %3159 = vmatprep.subr.bf16.mxu0 0
    %3160 = vmatpush1.bf16.msra.mxu0 0
    %3161 = vmatprep.subr.bf16.mxu0 0
    %3162 = vmatpush1.bf16.msra.mxu0 0
    %3163 = vmatprep.subr.bf16.mxu0 0
    %3164 = vmatpush1.bf16.msra.mxu0 0
    %3165 = vmatprep.mubr.bf16.mxu0 %v1666
    %3166 = vmatmul.mubr.bf16.gmra.mrb[0].mxu0 %v1206
    %v3167 = vpop.f32.mrb[0].mxu0
    %v3168 = vadd.f32 %v3117, %v3167
    %v3169 = vpop.f32.mrb[0].mxu0
    %v3170 = vadd.f32 %v3119, %v3169
    %v3171 = vpop.f32.mrb[0].mxu0
    %v3172 = vadd.f32 %v3121, %v3171
    %v3173 = vpop.f32.mrb[0].mxu0
    %v3174 = vadd.f32 %v3123, %v3173
    %3175 = vmatprep.mubr.bf16.mxu0 %v1669
    %3176 = vmatmul.mubr.bf16.gmra.mrb[0].mxu0 %v1205
    %v3177 = vpop.f32.mrb[0].mxu0
    %v3178 = vadd.f32 %v3127, %v3177
    %v3179 = vpop.f32.mrb[0].mxu0
    %v3180 = vadd.f32 %v3129, %v3179
    %v3181 = vpop.f32.mrb[0].mxu0
    %v3182 = vpop.f32.mrb[0].mxu0
    %3183 = vdwg.mxu0
    %3184 = vmatprep.subr.bf16.mxu0 0
    %3185 = vmatpush1.bf16.msra.mxu0 %v2916
    %3186 = vmatprep.subr.bf16.mxu0 0
    %3187 = vmatpush1.bf16.msra.mxu0 %v2919
    %3188 = vmatprep.subr.bf16.mxu0 0
    %3189 = vmatpush1.bf16.msra.mxu0 %v2922
    %3190 = vmatprep.subr.bf16.mxu0 0
    %3191 = vmatpush1.bf16.msra.mxu0 %v2925
    %3192 = vmatprep.subr.bf16.mxu0 0
    %3193 = vmatpush1.bf16.msra.mxu0 %v2928
    %3194 = vmatprep.subr.bf16.mxu0 0
    %3195 = vmatpush1.bf16.msra.mxu0 %v2931
    %3196 = vmatprep.subr.bf16.mxu0 0
    %3197 = vmatpush1.bf16.msra.mxu0 %v2934
    %3198 = vmatprep.subr.bf16.mxu0 0
    %3199 = vmatpush1.bf16.msra.mxu0 %v2937
    %3200 = vmatprep.subr.bf16.mxu0 0
    %3201 = vmatpush1.bf16.msra.mxu0 %v2940
    %3202 = vmatprep.subr.bf16.mxu0 0
    %3203 = vmatpush1.bf16.msra.mxu0 %v2943
    %3204 = vmatprep.subr.bf16.mxu0 0
    %3205 = vmatpush1.bf16.msra.mxu0 %v2946
    %3206 = vmatprep.subr.bf16.mxu0 0
    %3207 = vmatpush1.bf16.msra.mxu0 %v2949
    %3208 = vmatprep.subr.bf16.mxu0 0
    %3209 = vmatpush1.bf16.msra.mxu0 %v2952
    %3210 = vmatprep.subr.bf16.mxu0 0
    %3211 = vmatpush1.bf16.msra.mxu0 %v2955
    %3212 = vmatprep.subr.bf16.mxu0 0
    %3213 = vmatpush1.bf16.msra.mxu0 %v2958
    %3214 = vmatprep.subr.bf16.mxu0 0
    %3215 = vmatpush1.bf16.msra.mxu0 %v2961
    %3216 = vmatprep.mubr.bf16.mxu0 %v1203
    %3217 = vmatmul.mubr.bf16.gmra.mrb[0].mxu0 %v1200
    %v3218 = vpop.f32.mrb[0].mxu0
    %v3219 = vadd.f32 0.0, %v3218
    %v3220 = vpop.f32.mrb[0].mxu0
    %v3221 = vpop.f32.mrb[0].mxu0
    %v3222 = vadd.f32 0.0, %v3221
    %v3223 = vpop.f32.mrb[0].mxu0
    %3224 = vmatprep.mubr.bf16.mxu0 %v1202
    %3225 = vmatmul.mubr.bf16.gmra.mrb[0].mxu0 %v1199
    %v3226 = vpop.f32.mrb[0].mxu0
    %v3227 = vadd.f32 0.0, %v3226
    %v3228 = vpop.f32.mrb[0].mxu0
    %v3229 = vpop.f32.mrb[0].mxu0
    %v3230 = vpop.f32.mrb[0].mxu0
    %3231 = vdwg.mxu0
    %3232 = vmatprep.subr.bf16.mxu0 0
    %3233 = vmatpush1.bf16.msra.mxu0 %v2964
    %3234 = vmatprep.subr.bf16.mxu0 0
    %3235 = vmatpush1.bf16.msra.mxu0 %v2967
    %3236 = vmatprep.subr.bf16.mxu0 0
    %3237 = vmatpush1.bf16.msra.mxu0 %v2970
    %3238 = vmatprep.subr.bf16.mxu0 0
    %3239 = vmatpush1.bf16.msra.mxu0 %v2973
    %3240 = vmatprep.subr.bf16.mxu0 0
    %3241 = vmatpush1.bf16.msra.mxu0 %v2976
    %3242 = vmatprep.subr.bf16.mxu0 0
    %3243 = vmatpush1.bf16.msra.mxu0 %v2979
    %3244 = vmatprep.subr.bf16.mxu0 0
    %3245 = vmatpush1.bf16.msra.mxu0 %v2982
    %3246 = vmatprep.subr.bf16.mxu0 0
    %3247 = vmatpush1.bf16.msra.mxu0 %v2985
    %3248 = vmatprep.subr.bf16.mxu0 0
    %3249 = vmatpush1.bf16.msra.mxu0 %v2988
    %3250 = vmatprep.subr.bf16.mxu0 0
    %3251 = vmatpush1.bf16.msra.mxu0 %v2991
    %3252 = vmatprep.subr.bf16.mxu0 0
    %3253 = vmatpush1.bf16.msra.mxu0 %v2994
    %3254 = vmatprep.subr.bf16.mxu0 0
    %3255 = vmatpush1.bf16.msra.mxu0 %v2997
    %3256 = vmatprep.subr.bf16.mxu0 0
    %3257 = vmatpush1.bf16.msra.mxu0 0
    %3258 = vmatprep.subr.bf16.mxu0 0
    %3259 = vmatpush1.bf16.msra.mxu0 0
    %3260 = vmatprep.subr.bf16.mxu0 0
    %3261 = vmatpush1.bf16.msra.mxu0 0
    %3262 = vmatprep.subr.bf16.mxu0 0
    %3263 = vmatpush1.bf16.msra.mxu0 0
    %3264 = vmatprep.mubr.bf16.mxu0 %v1666
    %3265 = vmatmul.mubr.bf16.gmra.mrb[0].mxu0 %v1206
    %v3266 = vpop.f32.mrb[0].mxu0
    %v3267 = vadd.f32 %v3219, %v3266
    %v3268 = vpop.f32.mrb[0].mxu0
    %v3269 = vpop.f32.mrb[0].mxu0
    %v3270 = vadd.f32 %v3222, %v3269
    %v3271 = vpop.f32.mrb[0].mxu0
    %3272 = vmatprep.mubr.bf16.mxu0 %v1669
    %3273 = vmatmul.mubr.bf16.gmra.mrb[0].mxu0 %v1205
    %v3274 = vpop.f32.mrb[0].mxu0
    %v3275 = vadd.f32 %v3227, %v3274
    %v3276 = vpop.f32.mrb[0].mxu0
    %v3277 = vpop.f32.mrb[0].mxu0
    %v3278 = vpop.f32.mrb[0].mxu0
    %3279 = vdwg.mxu0
    %v3392 = vunpack.c.l.b16 %v964
    %v3393 = vunpack.c.h.b16 %v964
    %v3394 = vunpack.c.l.b16 %v965
    %v3395 = vunpack.c.l.b16 %v966
    %v3396 = vunpack.c.h.b16 %v966
    %v3397 = vunpack.c.l.b16 %v967
    %v3398 = vunpack.c.l.b16 %v968
    %v3399 = vunpack.c.h.b16 %v968
    %v3400 = vunpack.c.l.b16 %v969
    %v3401 = vunpack.c.l.b16 %v970
    %v3402 = vunpack.c.h.b16 %v970
    %v3403 = vunpack.c.l.b16 %v971
    %v3404 = vunpack.c.l.b16 %v972
    %v3405 = vunpack.c.h.b16 %v972
    %v3406 = vunpack.c.l.b16 %v973
    %v3407 = vunpack.c.l.b16 %v974
    %v3408 = vunpack.c.h.b16 %v974
    %v3409 = vunpack.c.l.b16 %v975
    %v3410 = vunpack.c.l.b16 %v976
    %v3411 = vunpack.c.h.b16 %v976
    %v3412 = vunpack.c.l.b16 %v977
    %v3413 = vunpack.c.l.b16 %v978
    %v3414 = vunpack.c.h.b16 %v978
    %v3415 = vunpack.c.l.b16 %v979
    %v3416 = vunpack.c.l.b16 %v980
    %v3417 = vunpack.c.h.b16 %v980
    %v3418 = vunpack.c.l.b16 %v981
    %v3419 = vunpack.c.l.b16 %v982
    %v3420 = vunpack.c.h.b16 %v982
    %v3421 = vunpack.c.l.b16 %v983
    %v3422 = vunpack.c.l.b16 %v984
    %v3423 = vunpack.c.h.b16 %v984
    %v3424 = vunpack.c.l.b16 %v985
    %v3425 = vunpack.c.l.b16 %v986
    %v3426 = vunpack.c.h.b16 %v986
    %v3427 = vunpack.c.l.b16 %v987
    %v3428 = vunpack.c.l.b16 %v988
    %v3429 = vunpack.c.h.b16 %v988
    %v3430 = vunpack.c.l.b16 %v989
    %v3431 = vunpack.c.l.b16 %v990
    %v3432 = vunpack.c.h.b16 %v990
    %v3433 = vunpack.c.l.b16 %v991
    %v3434 = vunpack.c.l.b16 %v992
    %v3435 = vunpack.c.h.b16 %v992
    %v3436 = vunpack.c.l.b16 %v993
    %v3437 = vunpack.c.l.b16 %v994
    %v3438 = vunpack.c.h.b16 %v994
    %v3439 = vunpack.c.l.b16 %v995
    %v3440 = vunpack.c.l.b16 %v996
    %v3441 = vunpack.c.h.b16 %v996
    %v3442 = vunpack.c.l.b16 %v997
    %v3443 = vunpack.c.l.b16 %v998
    %v3444 = vunpack.c.h.b16 %v998
    %v3445 = vunpack.c.l.b16 %v999
    %v3446 = vunpack.c.l.b16 %v1000
    %v3447 = vunpack.c.h.b16 %v1000
    %v3448 = vunpack.c.l.b16 %v1001
    %v3449 = vunpack.c.l.b16 %v1002
    %v3450 = vunpack.c.h.b16 %v1002
    %v3451 = vunpack.c.l.b16 %v1003
    %v3452 = vunpack.c.l.b16 %v1004
    %v3453 = vunpack.c.h.b16 %v1004
    %v3454 = vunpack.c.l.b16 %v1005
    %v3455 = vunpack.c.l.b16 %v1006
    %v3456 = vunpack.c.h.b16 %v1006
    %v3457 = vunpack.c.l.b16 %v1007
    %v3458 = vunpack.c.l.b16 %v1008
    %v3459 = vunpack.c.h.b16 %v1008
    %v3460 = vunpack.c.l.b16 %v1009
    %v3461 = vunpack.c.l.b16 %v1010
    %v3462 = vunpack.c.h.b16 %v1010
    %v3463 = vunpack.c.l.b16 %v1011
    %v3464 = vunpack.c.l.b16 %v1012
    %v3465 = vunpack.c.h.b16 %v1012
    %v3466 = vunpack.c.l.b16 %v1013
    %v3467 = vunpack.c.l.b16 %v1014
    %v3468 = vunpack.c.h.b16 %v1014
    %v3469 = vunpack.c.l.b16 %v1015
    %v3470 = vunpack.c.l.b16 %v1016
    %v3471 = vunpack.c.h.b16 %v1016
    %v3472 = vunpack.c.l.b16 %v1017
    %v3473 = vunpack.c.l.b16 %v1018
    %v3474 = vunpack.c.h.b16 %v1018
    %v3475 = vunpack.c.l.b16 %v1019
    %v3476 = vunpack.c.l.b16 %v1020
    %v3477 = vunpack.c.h.b16 %v1020
    %v3478 = vunpack.c.l.b16 %v1021
    %v3479 = vunpack.c.l.b16 %v1022
    %v3480 = vunpack.c.h.b16 %v1022
    %v3481 = vunpack.c.l.b16 %v1023
    %v3482 = vunpack.c.l.b16 %v1024
    %v3483 = vunpack.c.h.b16 %v1024
    %v3484 = vunpack.c.l.b16 %v1025
    %v3485 = vunpack.c.l.b16 %v1026
    %v3486 = vunpack.c.h.b16 %v1026
    %v3487 = vunpack.c.l.b16 %v1027
    %v3488 = vunpack.c.l.b16 %v1028
    %v3489 = vunpack.c.h.b16 %v1028
    %v3490 = vunpack.c.l.b16 %v1029
    %v3491 = vunpack.c.l.b16 %v1030
    %v3492 = vunpack.c.h.b16 %v1030
    %v3493 = vunpack.c.l.b16 %v1031
    %v3494 = vunpack.c.l.b16 %v1032
    %v3495 = vunpack.c.h.b16 %v1032
    %v3496 = vunpack.c.l.b16 %v1033
    %v3497 = vunpack.c.l.b16 %v1034
    %v3498 = vunpack.c.h.b16 %v1034
    %v3499 = vunpack.c.l.b16 %v1035
    %v3500 = vunpack.c.l.b16 %v1036
    %v3501 = vunpack.c.h.b16 %v1036
    %v3502 = vunpack.c.l.b16 %v1037
    %v3503 = vunpack.c.l.b16 %v1038
    %v3504 = vunpack.c.h.b16 %v1038
    %v3505 = vunpack.c.l.b16 %v1039
    %v3506 = vunpack.c.l.b16 %v1040
    %v3507 = vunpack.c.h.b16 %v1040
    %v3508 = vunpack.c.l.b16 %v1041
    %v3509 = vunpack.c.l.b16 %v1042
    %v3510 = vunpack.c.h.b16 %v1042
    %v3511 = vunpack.c.l.b16 %v1043
    %v3512 = vunpack.c.l.b16 %v1044
    %v3513 = vunpack.c.h.b16 %v1044
    %v3514 = vunpack.c.l.b16 %v1045
    %v3515 = vunpack.c.l.b16 %v1046
    %v3516 = vunpack.c.h.b16 %v1046
    %v3517 = vunpack.c.l.b16 %v1047
    %v3518 = vunpack.c.l.b16 %v1048
    %v3519 = vunpack.c.h.b16 %v1048
    %v3520 = vunpack.c.l.b16 %v1049
    %v3521 = vunpack.c.l.b16 %v1050
    %v3522 = vunpack.c.h.b16 %v1050
    %v3523 = vunpack.c.l.b16 %v1051
    %v3524 = vunpack.c.l.b16 %v1052
    %v3525 = vunpack.c.h.b16 %v1052
    %v3526 = vunpack.c.l.b16 %v1053
    %v3527 = vunpack.c.l.b16 %v1054
    %v3528 = vunpack.c.h.b16 %v1054
    %v3529 = vunpack.c.l.b16 %v1055
    %v3530 = vunpack.c.l.b16 %v1056
    %v3531 = vunpack.c.h.b16 %v1056
    %v3532 = vunpack.c.l.b16 %v1057
    %v3533 = vunpack.c.l.b16 %v1058
    %v3534 = vunpack.c.h.b16 %v1058
    %v3535 = vunpack.c.l.b16 %v1059
    %v3536 = vunpack.c.l.b16 %v1060
    %v3537 = vunpack.c.h.b16 %v1060
    %v3538 = vunpack.c.l.b16 %v1061
    %v3539 = vunpack.c.l.b16 %v1062
    %v3540 = vunpack.c.h.b16 %v1062
    %v3541 = vunpack.c.l.b16 %v1063
    %v3542 = vunpack.c.l.b16 %v1064
    %v3543 = vunpack.c.h.b16 %v1064
    %v3544 = vunpack.c.l.b16 %v1065
    %v3545 = vunpack.c.l.b16 %v1066
    %v3546 = vunpack.c.h.b16 %v1066
    %v3547 = vunpack.c.l.b16 %v1067
    %v3548 = vunpack.c.l.b16 %v1068
    %v3549 = vunpack.c.h.b16 %v1068
    %v3550 = vunpack.c.l.b16 %v1069
    %v3551 = vunpack.c.l.b16 %v1070
    %v3552 = vunpack.c.h.b16 %v1070
    %v3553 = vunpack.c.l.b16 %v1071
    %v3554 = vunpack.c.l.b16 %v1072
    %v3555 = vunpack.c.h.b16 %v1072
    %v3556 = vunpack.c.l.b16 %v1073
    %v3557 = vunpack.c.l.b16 %v1074
    %v3558 = vunpack.c.h.b16 %v1074
    %v3559 = vunpack.c.l.b16 %v1075
    %v3560 = vpack.c.b16 %v3395, %v3392
    %v3561 = vpack.c.b16 %v3396, %v3393
    %v3562 = vpack.c.b16 %v3397, %v3394
    %v3563 = vpack.c.b16 %v3401, %v3398
    %v3564 = vpack.c.b16 %v3402, %v3399
    %v3565 = vpack.c.b16 %v3403, %v3400
    %v3566 = vpack.c.b16 %v3407, %v3404
    %v3567 = vpack.c.b16 %v3408, %v3405
    %v3568 = vpack.c.b16 %v3409, %v3406
    %v3569 = vpack.c.b16 %v3413, %v3410
    %v3570 = vpack.c.b16 %v3414, %v3411
    %v3571 = vpack.c.b16 %v3415, %v3412
    %v3572 = vpack.c.b16 %v3419, %v3416
    %v3573 = vpack.c.b16 %v3420, %v3417
    %v3574 = vpack.c.b16 %v3421, %v3418
    %v3575 = vpack.c.b16 %v3425, %v3422
    %v3576 = vpack.c.b16 %v3426, %v3423
    %v3577 = vpack.c.b16 %v3427, %v3424
    %v3578 = vpack.c.b16 %v3431, %v3428
    %v3579 = vpack.c.b16 %v3432, %v3429
    %v3580 = vpack.c.b16 %v3433, %v3430
    %v3581 = vpack.c.b16 %v3437, %v3434
    %v3582 = vpack.c.b16 %v3438, %v3435
    %v3583 = vpack.c.b16 %v3439, %v3436
    %v3584 = vpack.c.b16 %v3443, %v3440
    %v3585 = vpack.c.b16 %v3444, %v3441
    %v3586 = vpack.c.b16 %v3445, %v3442
    %v3587 = vpack.c.b16 %v3449, %v3446
    %v3588 = vpack.c.b16 %v3450, %v3447
    %v3589 = vpack.c.b16 %v3451, %v3448
    %v3590 = vpack.c.b16 %v3455, %v3452
    %v3591 = vpack.c.b16 %v3456, %v3453
    %v3592 = vpack.c.b16 %v3457, %v3454
    %v3593 = vpack.c.b16 %v3461, %v3458
    %v3594 = vpack.c.b16 %v3462, %v3459
    %v3595 = vpack.c.b16 %v3463, %v3460
    %v3596 = vpack.c.b16 %v3467, %v3464
    %v3597 = vpack.c.b16 %v3468, %v3465
    %v3598 = vpack.c.b16 %v3469, %v3466
    %v3599 = vpack.c.b16 %v3473, %v3470
    %v3600 = vpack.c.b16 %v3474, %v3471
    %v3601 = vpack.c.b16 %v3475, %v3472
    %v3602 = vpack.c.b16 %v3479, %v3476
    %v3603 = vpack.c.b16 %v3480, %v3477
    %v3604 = vpack.c.b16 %v3481, %v3478
    %v3605 = vpack.c.b16 %v3485, %v3482
    %v3606 = vpack.c.b16 %v3486, %v3483
    %v3607 = vpack.c.b16 %v3487, %v3484
    %v3608 = vpack.c.b16 %v3491, %v3488
    %v3609 = vpack.c.b16 %v3492, %v3489
    %v3610 = vpack.c.b16 %v3493, %v3490
    %v3611 = vpack.c.b16 %v3497, %v3494
    %v3612 = vpack.c.b16 %v3498, %v3495
    %v3613 = vpack.c.b16 %v3499, %v3496
    %v3614 = vpack.c.b16 %v3503, %v3500
    %v3615 = vpack.c.b16 %v3504, %v3501
    %v3616 = vpack.c.b16 %v3505, %v3502
    %v3617 = vpack.c.b16 %v3509, %v3506
    %v3618 = vpack.c.b16 %v3510, %v3507
    %v3619 = vpack.c.b16 %v3511, %v3508
    %v3620 = vpack.c.b16 %v3515, %v3512
    %v3621 = vpack.c.b16 %v3516, %v3513
    %v3622 = vpack.c.b16 %v3517, %v3514
    %v3623 = vpack.c.b16 %v3521, %v3518
    %v3624 = vpack.c.b16 %v3522, %v3519
    %v3625 = vpack.c.b16 %v3523, %v3520
    %v3626 = vpack.c.b16 %v3527, %v3524
    %v3627 = vpack.c.b16 %v3528, %v3525
    %v3628 = vpack.c.b16 %v3529, %v3526
    %v3629 = vpack.c.b16 %v3533, %v3530
    %v3630 = vpack.c.b16 %v3534, %v3531
    %v3631 = vpack.c.b16 %v3535, %v3532
    %v3632 = vpack.c.b16 %v3539, %v3536
    %v3633 = vpack.c.b16 %v3540, %v3537
    %v3634 = vpack.c.b16 %v3541, %v3538
    %v3635 = vpack.c.b16 %v3545, %v3542
    %v3636 = vpack.c.b16 %v3546, %v3543
    %v3637 = vpack.c.b16 %v3547, %v3544
    %v3638 = vpack.c.b16 %v3551, %v3548
    %v3639 = vpack.c.b16 %v3552, %v3549
    %v3640 = vpack.c.b16 %v3553, %v3550
    %v3641 = vpack.c.b16 %v3557, %v3554
    %v3642 = vpack.c.b16 %v3558, %v3555
    %v3643 = vpack.c.b16 %v3559, %v3556
    %3728 = vmatprep.subr.bf16.mxu0 %v3561
    %3729 = vmatpush1.bf16.msra.mxu0 %v3560
    %3730 = vmatprep.subr.bf16.mxu0 %v3564
    %3731 = vmatpush1.bf16.msra.mxu0 %v3563
    %3732 = vmatprep.subr.bf16.mxu0 %v3567
    %3733 = vmatpush1.bf16.msra.mxu0 %v3566
    %3734 = vmatprep.subr.bf16.mxu0 %v3570
    %3735 = vmatpush1.bf16.msra.mxu0 %v3569
    %3736 = vmatprep.subr.bf16.mxu0 %v3573
    %3737 = vmatpush1.bf16.msra.mxu0 %v3572
    %3738 = vmatprep.subr.bf16.mxu0 %v3576
    %3739 = vmatpush1.bf16.msra.mxu0 %v3575
    %3740 = vmatprep.subr.bf16.mxu0 %v3579
    %3741 = vmatpush1.bf16.msra.mxu0 %v3578
    %3742 = vmatprep.subr.bf16.mxu0 %v3582
    %3743 = vmatpush1.bf16.msra.mxu0 %v3581
    %3744 = vmatprep.subr.bf16.mxu0 %v3585
    %3745 = vmatpush1.bf16.msra.mxu0 %v3584
    %3746 = vmatprep.subr.bf16.mxu0 %v3588
    %3747 = vmatpush1.bf16.msra.mxu0 %v3587
    %3748 = vmatprep.subr.bf16.mxu0 %v3591
    %3749 = vmatpush1.bf16.msra.mxu0 %v3590
    %3750 = vmatprep.subr.bf16.mxu0 %v3594
    %3751 = vmatpush1.bf16.msra.mxu0 %v3593
    %3752 = vmatprep.subr.bf16.mxu0 %v3597
    %3753 = vmatpush1.bf16.msra.mxu0 %v3596
    %3754 = vmatprep.subr.bf16.mxu0 %v3600
    %3755 = vmatpush1.bf16.msra.mxu0 %v3599
    %3756 = vmatprep.subr.bf16.mxu0 %v3603
    %3757 = vmatpush1.bf16.msra.mxu0 %v3602
    %3758 = vmatprep.subr.bf16.mxu0 %v3606
    %3759 = vmatpush1.bf16.msra.mxu0 %v3605
    %3760 = vmatprep.mubr.bf16.mxu0 %v845
    %3761 = vmatmul.mubr.bf16.gmra.mrb[0].mxu0 %v844
    %v3762 = vpop.f32.mrb[0].mxu0
    %v3763 = vadd.f32 %v3168, %v3762
    %v3764 = vpop.f32.mrb[0].mxu0
    %v3765 = vadd.f32 %v3170, %v3764
    %v3766 = vpop.f32.mrb[0].mxu0
    %v3767 = vadd.f32 %v3172, %v3766
    %v3768 = vpop.f32.mrb[0].mxu0
    %v3769 = vadd.f32 %v3174, %v3768
    %3770 = vmatprep.mubr.bf16.mxu0 %v849
    %3771 = vmatmul.mubr.bf16.gmra.mrb[0].mxu0 %v848
    %v3772 = vpop.f32.mrb[0].mxu0
    %v3773 = vadd.f32 %v3178, %v3772
    %v3774 = vpop.f32.mrb[0].mxu0
    %v3775 = vadd.f32 %v3180, %v3774
    %v3776 = vpop.f32.mrb[0].mxu0
    %v3777 = vpop.f32.mrb[0].mxu0
    %3778 = vdwg.mxu0
    %3779 = vmatprep.subr.bf16.mxu0 %v3609
    %3780 = vmatpush1.bf16.msra.mxu0 %v3608
    %3781 = vmatprep.subr.bf16.mxu0 %v3612
    %3782 = vmatpush1.bf16.msra.mxu0 %v3611
    %3783 = vmatprep.subr.bf16.mxu0 %v3615
    %3784 = vmatpush1.bf16.msra.mxu0 %v3614
    %3785 = vmatprep.subr.bf16.mxu0 %v3618
    %3786 = vmatpush1.bf16.msra.mxu0 %v3617
    %3787 = vmatprep.subr.bf16.mxu0 %v3621
    %3788 = vmatpush1.bf16.msra.mxu0 %v3620
    %3789 = vmatprep.subr.bf16.mxu0 %v3624
    %3790 = vmatpush1.bf16.msra.mxu0 %v3623
    %3791 = vmatprep.subr.bf16.mxu0 %v3627
    %3792 = vmatpush1.bf16.msra.mxu0 %v3626
    %3793 = vmatprep.subr.bf16.mxu0 %v3630
    %3794 = vmatpush1.bf16.msra.mxu0 %v3629
    %3795 = vmatprep.subr.bf16.mxu0 %v3633
    %3796 = vmatpush1.bf16.msra.mxu0 %v3632
    %3797 = vmatprep.subr.bf16.mxu0 %v3636
    %3798 = vmatpush1.bf16.msra.mxu0 %v3635
    %3799 = vmatprep.subr.bf16.mxu0 %v3639
    %3800 = vmatpush1.bf16.msra.mxu0 %v3638
    %3801 = vmatprep.subr.bf16.mxu0 %v3642
    %3802 = vmatpush1.bf16.msra.mxu0 %v3641
    %3803 = vmatprep.subr.bf16.mxu0 0
    %3804 = vmatpush1.bf16.msra.mxu0 0
    %3805 = vmatprep.subr.bf16.mxu0 0
    %3806 = vmatpush1.bf16.msra.mxu0 0
    %3807 = vmatprep.subr.bf16.mxu0 0
    %3808 = vmatpush1.bf16.msra.mxu0 0
    %3809 = vmatprep.subr.bf16.mxu0 0
    %3810 = vmatpush1.bf16.msra.mxu0 0
    %3811 = vmatprep.mubr.bf16.mxu0 %v2318
    %3812 = vmatmul.mubr.bf16.gmra.mrb[0].mxu0 %v846
    %v3813 = vpop.f32.mrb[0].mxu0
    %v3814 = vadd.f32 %v3763, %v3813
    %v3815 = vpop.f32.mrb[0].mxu0
    %v3816 = vadd.f32 %v3765, %v3815
    %v3817 = vpop.f32.mrb[0].mxu0
    %v3818 = vadd.f32 %v3767, %v3817
    %v3819 = vpop.f32.mrb[0].mxu0
    %v3820 = vadd.f32 %v3769, %v3819
    %3821 = vmatprep.mubr.bf16.mxu0 %v2321
    %3822 = vmatmul.mubr.bf16.gmra.mrb[0].mxu0 %v850
    %v3823 = vpop.f32.mrb[0].mxu0
    %v3824 = vadd.f32 %v3773, %v3823
    %v3825 = vpop.f32.mrb[0].mxu0
    %v3826 = vadd.f32 %v3775, %v3825
    %v3827 = vpop.f32.mrb[0].mxu0
    %v3828 = vpop.f32.mrb[0].mxu0
    %3829 = vdwg.mxu0
    %3830 = vmatprep.subr.bf16.mxu0 0
    %3831 = vmatpush1.bf16.msra.mxu0 %v3562
    %3832 = vmatprep.subr.bf16.mxu0 0
    %3833 = vmatpush1.bf16.msra.mxu0 %v3565
    %3834 = vmatprep.subr.bf16.mxu0 0
    %3835 = vmatpush1.bf16.msra.mxu0 %v3568
    %3836 = vmatprep.subr.bf16.mxu0 0
    %3837 = vmatpush1.bf16.msra.mxu0 %v3571
    %3838 = vmatprep.subr.bf16.mxu0 0
    %3839 = vmatpush1.bf16.msra.mxu0 %v3574
    %3840 = vmatprep.subr.bf16.mxu0 0
    %3841 = vmatpush1.bf16.msra.mxu0 %v3577
    %3842 = vmatprep.subr.bf16.mxu0 0
    %3843 = vmatpush1.bf16.msra.mxu0 %v3580
    %3844 = vmatprep.subr.bf16.mxu0 0
    %3845 = vmatpush1.bf16.msra.mxu0 %v3583
    %3846 = vmatprep.subr.bf16.mxu0 0
    %3847 = vmatpush1.bf16.msra.mxu0 %v3586
    %3848 = vmatprep.subr.bf16.mxu0 0
    %3849 = vmatpush1.bf16.msra.mxu0 %v3589
    %3850 = vmatprep.subr.bf16.mxu0 0
    %3851 = vmatpush1.bf16.msra.mxu0 %v3592
    %3852 = vmatprep.subr.bf16.mxu0 0
    %3853 = vmatpush1.bf16.msra.mxu0 %v3595
    %3854 = vmatprep.subr.bf16.mxu0 0
    %3855 = vmatpush1.bf16.msra.mxu0 %v3598
    %3856 = vmatprep.subr.bf16.mxu0 0
    %3857 = vmatpush1.bf16.msra.mxu0 %v3601
    %3858 = vmatprep.subr.bf16.mxu0 0
    %3859 = vmatpush1.bf16.msra.mxu0 %v3604
    %3860 = vmatprep.subr.bf16.mxu0 0
    %3861 = vmatpush1.bf16.msra.mxu0 %v3607
    %3862 = vmatprep.mubr.bf16.mxu0 %v845
    %3863 = vmatmul.mubr.bf16.gmra.mrb[0].mxu0 %v844
    %v3864 = vpop.f32.mrb[0].mxu0
    %v3865 = vadd.f32 %v3267, %v3864
    %v3866 = vpop.f32.mrb[0].mxu0
    %v3867 = vpop.f32.mrb[0].mxu0
    %v3868 = vadd.f32 %v3270, %v3867
    %v3869 = vpop.f32.mrb[0].mxu0
    %3870 = vmatprep.mubr.bf16.mxu0 %v849
    %3871 = vmatmul.mubr.bf16.gmra.mrb[0].mxu0 %v848
    %v3872 = vpop.f32.mrb[0].mxu0
    %v3873 = vadd.f32 %v3275, %v3872
    %v3874 = vpop.f32.mrb[0].mxu0
    %v3875 = vpop.f32.mrb[0].mxu0
    %v3876 = vpop.f32.mrb[0].mxu0
    %3877 = vdwg.mxu0
    %3878 = vmatprep.subr.bf16.mxu0 0
    %3879 = vmatpush1.bf16.msra.mxu0 %v3610
    %3880 = vmatprep.subr.bf16.mxu0 0
    %3881 = vmatpush1.bf16.msra.mxu0 %v3613
    %3882 = vmatprep.subr.bf16.mxu0 0
    %3883 = vmatpush1.bf16.msra.mxu0 %v3616
    %3884 = vmatprep.subr.bf16.mxu0 0
    %3885 = vmatpush1.bf16.msra.mxu0 %v3619
    %3886 = vmatprep.subr.bf16.mxu0 0
    %3887 = vmatpush1.bf16.msra.mxu0 %v3622
    %3888 = vmatprep.subr.bf16.mxu0 0
    %3889 = vmatpush1.bf16.msra.mxu0 %v3625
    %3890 = vmatprep.subr.bf16.mxu0 0
    %3891 = vmatpush1.bf16.msra.mxu0 %v3628
    %3892 = vmatprep.subr.bf16.mxu0 0
    %3893 = vmatpush1.bf16.msra.mxu0 %v3631
    %3894 = vmatprep.subr.bf16.mxu0 0
    %3895 = vmatpush1.bf16.msra.mxu0 %v3634
    %3896 = vmatprep.subr.bf16.mxu0 0
    %3897 = vmatpush1.bf16.msra.mxu0 %v3637
    %3898 = vmatprep.subr.bf16.mxu0 0
    %3899 = vmatpush1.bf16.msra.mxu0 %v3640
    %3900 = vmatprep.subr.bf16.mxu0 0
    %3901 = vmatpush1.bf16.msra.mxu0 %v3643
    %3902 = vmatprep.subr.bf16.mxu0 0
    %3903 = vmatpush1.bf16.msra.mxu0 0
    %3904 = vmatprep.subr.bf16.mxu0 0
    %3905 = vmatpush1.bf16.msra.mxu0 0
    %3906 = vmatprep.subr.bf16.mxu0 0
    %3907 = vmatpush1.bf16.msra.mxu0 0
    %3908 = vmatprep.subr.bf16.mxu0 0
    %3909 = vmatpush1.bf16.msra.mxu0 0
    %3910 = vmatprep.mubr.bf16.mxu0 %v2318
    %3911 = vmatmul.mubr.bf16.gmra.mrb[0].mxu0 %v846
    %v3912 = vpop.f32.mrb[0].mxu0
    %v3913 = vadd.f32 %v3865, %v3912
    %v3914 = vpop.f32.mrb[0].mxu0
    %v3915 = vpop.f32.mrb[0].mxu0
    %v3916 = vadd.f32 %v3868, %v3915
    %v3917 = vpop.f32.mrb[0].mxu0
    %3918 = vmatprep.mubr.bf16.mxu0 %v2321
    %3919 = vmatmul.mubr.bf16.gmra.mrb[0].mxu0 %v850
    %v3920 = vpop.f32.mrb[0].mxu0
    %v3921 = vadd.f32 %v3873, %v3920
    %v3922 = vpop.f32.mrb[0].mxu0
    %v3923 = vpop.f32.mrb[0].mxu0
    %v3924 = vpop.f32.mrb[0].mxu0
    %3925 = vdwg.mxu0
    %s3926 = scalar_lea.vmem [#allocation8], 1344
    %v3927 = vld [vmem:[%s3926] sm:$0xff]
    %v3928 = vld [vmem:[%s3926 + $0x8] sm:$0xf]
    %v3929 = vld [vmem:[%s3926 + $0xc] sm:$0xff]
    %v3930 = vld [vmem:[%s3926 + $0x14] sm:$0xf]
    %v3931 = vld [vmem:[%s3926 + $0x18] sm:$0xff]
    %v3932 = vld [vmem:[%s3926 + $0x20] sm:$0xf]
    %v3933 = vld [vmem:[%s3926 + $0x24] sm:$0xff]
    %v3934 = vld [vmem:[%s3926 + $0x2c] sm:$0xf]
    %v3935 = vld [vmem:[%s3926 + $0x30] sm:$0xff]
    %v3936 = vld [vmem:[%s3926 + $0x38] sm:$0xf]
    %v3937 = vld [vmem:[%s3926 + $0x3c] sm:$0xff]
    %v3938 = vld [vmem:[%s3926 + $0x44] sm:$0xf]
    %v3939 = vld [vmem:[%s3926 + $0x48] sm:$0xff]
    %v3940 = vld [vmem:[%s3926 + $0x50] sm:$0xf]
    %v3941 = vld [vmem:[%s3926 + $0x54] sm:$0xff]
    %v3942 = vld [vmem:[%s3926 + $0x5c] sm:$0xf]
    %v3943 = vld [vmem:[%s3926 + $0x60] sm:$0xff]
    %v3944 = vld [vmem:[%s3926 + $0x68] sm:$0xf]
    %v3945 = vld [vmem:[%s3926 + $0x6c] sm:$0xff]
    %v3946 = vld [vmem:[%s3926 + $0x74] sm:$0xf]
    %v3947 = vld [vmem:[%s3926 + $0x78] sm:$0xff]
    %v3948 = vld [vmem:[%s3926 + $0x80] sm:$0xf]
    %v3949 = vld [vmem:[%s3926 + $0x84] sm:$0xff]
    %v3950 = vld [vmem:[%s3926 + $0x8c] sm:$0xf]
    %v3951 = vld [vmem:[%s3926 + $0x90] sm:$0xff]
    %v3952 = vld [vmem:[%s3926 + $0x98] sm:$0xf]
    %v3953 = vld [vmem:[%s3926 + $0x9c] sm:$0xff]
    %v3954 = vld [vmem:[%s3926 + $0xa4] sm:$0xf]
    %v3955 = vld [vmem:[%s3926 + $0xa8] sm:$0xff]
    %v3956 = vld [vmem:[%s3926 + $0xb0] sm:$0xf]
    %v3957 = vld [vmem:[%s3926 + $0xb4] sm:$0xff]
    %v3958 = vld [vmem:[%s3926 + $0xbc] sm:$0xf]
    %v3959 = vld [vmem:[%s3926 + $0xc0] sm:$0xff]
    %v3960 = vld [vmem:[%s3926 + $0xc8] sm:$0xf]
    %v3961 = vld [vmem:[%s3926 + $0xcc] sm:$0xff]
    %v3962 = vld [vmem:[%s3926 + $0xd4] sm:$0xf]
    %v3963 = vld [vmem:[%s3926 + $0xd8] sm:$0xff]
    %v3964 = vld [vmem:[%s3926 + $0xe0] sm:$0xf]
    %v3965 = vld [vmem:[%s3926 + $0xe4] sm:$0xff]
    %v3966 = vld [vmem:[%s3926 + $0xec] sm:$0xf]
    %v3967 = vld [vmem:[%s3926 + $0xf0] sm:$0xff]
    %v3968 = vld [vmem:[%s3926 + $0xf8] sm:$0xf]
    %v3969 = vld [vmem:[%s3926 + $0xfc] sm:$0xff]
    %v3970 = vld [vmem:[%s3926 + $0x104] sm:$0xf]
    %v3971 = vld [vmem:[%s3926 + $0x108] sm:$0xff]
    %v3972 = vld [vmem:[%s3926 + $0x110] sm:$0xf]
    %v3973 = vld [vmem:[%s3926 + $0x114] sm:$0xff]
    %v3974 = vld [vmem:[%s3926 + $0x11c] sm:$0xf]
    %v3975 = vld [vmem:[%s3926 + $0x120] sm:$0xff]
    %v3976 = vld [vmem:[%s3926 + $0x128] sm:$0xf]
    %v3977 = vld [vmem:[%s3926 + $0x12c] sm:$0xff]
    %v3978 = vld [vmem:[%s3926 + $0x134] sm:$0xf]
    %v3979 = vld [vmem:[%s3926 + $0x138] sm:$0xff]
    %v3980 = vld [vmem:[%s3926 + $0x140] sm:$0xf]
    %v3981 = vld [vmem:[%s3926 + $0x144] sm:$0xff]
    %v3982 = vld [vmem:[%s3926 + $0x14c] sm:$0xf]
    %v3983 = vld [vmem:[%s3926 + $0x150] sm:$0xff]
    %v3984 = vld [vmem:[%s3926 + $0x158] sm:$0xf]
    %v3985 = vld [vmem:[%s3926 + $0x15c] sm:$0xff]
    %v3986 = vld [vmem:[%s3926 + $0x164] sm:$0xf]
    %v3987 = vld [vmem:[%s3926 + $0x168] sm:$0xff]
    %v3988 = vld [vmem:[%s3926 + $0x170] sm:$0xf]
    %v3989 = vld [vmem:[%s3926 + $0x174] sm:$0xff]
    %v3990 = vld [vmem:[%s3926 + $0x17c] sm:$0xf]
    %v3991 = vld [vmem:[%s3926 + $0x180] sm:$0xff]
    %v3992 = vld [vmem:[%s3926 + $0x188] sm:$0xf]
    %v3993 = vld [vmem:[%s3926 + $0x18c] sm:$0xff]
    %v3994 = vld [vmem:[%s3926 + $0x194] sm:$0xf]
    %v3995 = vld [vmem:[%s3926 + $0x198] sm:$0xff]
    %v3996 = vld [vmem:[%s3926 + $0x1a0] sm:$0xf]
    %v3997 = vld [vmem:[%s3926 + $0x1a4] sm:$0xff]
    %v3998 = vld [vmem:[%s3926 + $0x1ac] sm:$0xf]
    %v3999 = vld [vmem:[%s3926 + $0x1b0] sm:$0xff]
    %v4000 = vld [vmem:[%s3926 + $0x1b8] sm:$0xf]
    %v4001 = vld [vmem:[%s3926 + $0x1bc] sm:$0xff]
    %v4002 = vld [vmem:[%s3926 + $0x1c4] sm:$0xf]
    %v4003 = vld [vmem:[%s3926 + $0x1c8] sm:$0xff]
    %v4004 = vld [vmem:[%s3926 + $0x1d0] sm:$0xf]
    %v4005 = vld [vmem:[%s3926 + $0x1d4] sm:$0xff]
    %v4006 = vld [vmem:[%s3926 + $0x1dc] sm:$0xf]
    %v4007 = vld [vmem:[%s3926 + $0x1e0] sm:$0xff]
    %v4008 = vld [vmem:[%s3926 + $0x1e8] sm:$0xf]
    %v4009 = vld [vmem:[%s3926 + $0x1ec] sm:$0xff]
    %v4010 = vld [vmem:[%s3926 + $0x1f4] sm:$0xf]
    %v4011 = vld [vmem:[%s3926 + $0x1f8] sm:$0xff]
    %v4012 = vld [vmem:[%s3926 + $0x200] sm:$0xf]
    %v4013 = vld [vmem:[%s3926 + $0x204] sm:$0xff]
    %v4014 = vld [vmem:[%s3926 + $0x20c] sm:$0xf]
    %v4015 = vld [vmem:[%s3926 + $0x210] sm:$0xff]
    %v4016 = vld [vmem:[%s3926 + $0x218] sm:$0xf]
    %v4017 = vld [vmem:[%s3926 + $0x21c] sm:$0xff]
    %v4018 = vld [vmem:[%s3926 + $0x224] sm:$0xf]
    %v4019 = vld [vmem:[%s3926 + $0x228] sm:$0xff]
    %v4020 = vld [vmem:[%s3926 + $0x230] sm:$0xf]
    %v4021 = vld [vmem:[%s3926 + $0x234] sm:$0xff]
    %v4022 = vld [vmem:[%s3926 + $0x23c] sm:$0xf]
    %v4023 = vld [vmem:[%s3926 + $0x240] sm:$0xff]
    %v4024 = vld [vmem:[%s3926 + $0x248] sm:$0xf]
    %v4025 = vld [vmem:[%s3926 + $0x24c] sm:$0xff]
    %v4026 = vld [vmem:[%s3926 + $0x254] sm:$0xf]
    %v4027 = vld [vmem:[%s3926 + $0x258] sm:$0xff]
    %v4028 = vld [vmem:[%s3926 + $0x260] sm:$0xf]
    %v4029 = vld [vmem:[%s3926 + $0x264] sm:$0xff]
    %v4030 = vld [vmem:[%s3926 + $0x26c] sm:$0xf]
    %v4031 = vld [vmem:[%s3926 + $0x270] sm:$0xff]
    %v4032 = vld [vmem:[%s3926 + $0x278] sm:$0xf]
    %v4033 = vld [vmem:[%s3926 + $0x27c] sm:$0xff]
    %v4034 = vld [vmem:[%s3926 + $0x284] sm:$0xf]
    %v4035 = vld [vmem:[%s3926 + $0x288] sm:$0xff]
    %v4036 = vld [vmem:[%s3926 + $0x290] sm:$0xf]
    %v4037 = vld [vmem:[%s3926 + $0x294] sm:$0xff]
    %v4038 = vld [vmem:[%s3926 + $0x29c] sm:$0xf]
    %vm4039 = vcmask 1045504
    %v4040 = vrot.slane %v844, 2
    %v4041 = vrot.slane %v848, 2
    %v4042 = vsel %vm4039, %v4040, %v4041
    %v4043 = vrot.slane %v845, 2
    %v4044 = vrot.slane %v849, 2
    %v4045 = vsel %vm4039, %v4043, %v4044
    %v4046 = vrot.slane %v846, 2
    %v4047 = vrot.slane %v850, 2
    %v4048 = vsel %vm4039, %v4046, %v4047
    %v4049 = vrot.slane %v847, 2
    %v4050 = vrot.slane %v851, 2
    %v4051 = vsel %vm4039, %v4049, %v4050
    %v4170 = vunpack.c.l.b16 %v3927
    %v4171 = vunpack.c.h.b16 %v3927
    %v4172 = vunpack.c.l.b16 %v3928
    %v4173 = vunpack.c.l.b16 %v3929
    %v4174 = vunpack.c.h.b16 %v3929
    %v4175 = vunpack.c.l.b16 %v3930
    %v4176 = vunpack.c.l.b16 %v3931
    %v4177 = vunpack.c.h.b16 %v3931
    %v4178 = vunpack.c.l.b16 %v3932
    %v4179 = vunpack.c.l.b16 %v3933
    %v4180 = vunpack.c.h.b16 %v3933
    %v4181 = vunpack.c.l.b16 %v3934
    %v4182 = vunpack.c.l.b16 %v3935
    %v4183 = vunpack.c.h.b16 %v3935
    %v4184 = vunpack.c.l.b16 %v3936
    %v4185 = vunpack.c.l.b16 %v3937
    %v4186 = vunpack.c.h.b16 %v3937
    %v4187 = vunpack.c.l.b16 %v3938
    %v4188 = vunpack.c.l.b16 %v3939
    %v4189 = vunpack.c.h.b16 %v3939
    %v4190 = vunpack.c.l.b16 %v3940
    %v4191 = vunpack.c.l.b16 %v3941
    %v4192 = vunpack.c.h.b16 %v3941
    %v4193 = vunpack.c.l.b16 %v3942
    %v4194 = vunpack.c.l.b16 %v3943
    %v4195 = vunpack.c.h.b16 %v3943
    %v4196 = vunpack.c.l.b16 %v3944
    %v4197 = vunpack.c.l.b16 %v3945
    %v4198 = vunpack.c.h.b16 %v3945
    %v4199 = vunpack.c.l.b16 %v3946
    %v4200 = vunpack.c.l.b16 %v3947
    %v4201 = vunpack.c.h.b16 %v3947
    %v4202 = vunpack.c.l.b16 %v3948
    %v4203 = vunpack.c.l.b16 %v3949
    %v4204 = vunpack.c.h.b16 %v3949
    %v4205 = vunpack.c.l.b16 %v3950
    %v4206 = vunpack.c.l.b16 %v3951
    %v4207 = vunpack.c.h.b16 %v3951
    %v4208 = vunpack.c.l.b16 %v3952
    %v4209 = vunpack.c.l.b16 %v3953
    %v4210 = vunpack.c.h.b16 %v3953
    %v4211 = vunpack.c.l.b16 %v3954
    %v4212 = vunpack.c.l.b16 %v3955
    %v4213 = vunpack.c.h.b16 %v3955
    %v4214 = vunpack.c.l.b16 %v3956
    %v4215 = vunpack.c.l.b16 %v3957
    %v4216 = vunpack.c.h.b16 %v3957
    %v4217 = vunpack.c.l.b16 %v3958
    %v4218 = vunpack.c.l.b16 %v3959
    %v4219 = vunpack.c.h.b16 %v3959
    %v4220 = vunpack.c.l.b16 %v3960
    %v4221 = vunpack.c.l.b16 %v3961
    %v4222 = vunpack.c.h.b16 %v3961
    %v4223 = vunpack.c.l.b16 %v3962
    %v4224 = vunpack.c.l.b16 %v3963
    %v4225 = vunpack.c.h.b16 %v3963
    %v4226 = vunpack.c.l.b16 %v3964
    %v4227 = vunpack.c.l.b16 %v3965
    %v4228 = vunpack.c.h.b16 %v3965
    %v4229 = vunpack.c.l.b16 %v3966
    %v4230 = vunpack.c.l.b16 %v3967
    %v4231 = vunpack.c.h.b16 %v3967
    %v4232 = vunpack.c.l.b16 %v3968
    %v4233 = vunpack.c.l.b16 %v3969
    %v4234 = vunpack.c.h.b16 %v3969
    %v4235 = vunpack.c.l.b16 %v3970
    %v4236 = vunpack.c.l.b16 %v3971
    %v4237 = vunpack.c.h.b16 %v3971
    %v4238 = vunpack.c.l.b16 %v3972
    %v4239 = vunpack.c.l.b16 %v3973
    %v4240 = vunpack.c.h.b16 %v3973
    %v4241 = vunpack.c.l.b16 %v3974
    %v4242 = vunpack.c.l.b16 %v3975
    %v4243 = vunpack.c.h.b16 %v3975
    %v4244 = vunpack.c.l.b16 %v3976
    %v4245 = vunpack.c.l.b16 %v3977
    %v4246 = vunpack.c.h.b16 %v3977
    %v4247 = vunpack.c.l.b16 %v3978
    %v4248 = vunpack.c.l.b16 %v3979
    %v4249 = vunpack.c.h.b16 %v3979
    %v4250 = vunpack.c.l.b16 %v3980
    %v4251 = vunpack.c.l.b16 %v3981
    %v4252 = vunpack.c.h.b16 %v3981
    %v4253 = vunpack.c.l.b16 %v3982
    %v4254 = vunpack.c.l.b16 %v3983
    %v4255 = vunpack.c.h.b16 %v3983
    %v4256 = vunpack.c.l.b16 %v3984
    %v4257 = vunpack.c.l.b16 %v3985
    %v4258 = vunpack.c.h.b16 %v3985
    %v4259 = vunpack.c.l.b16 %v3986
    %v4260 = vunpack.c.l.b16 %v3987
    %v4261 = vunpack.c.h.b16 %v3987
    %v4262 = vunpack.c.l.b16 %v3988
    %v4263 = vunpack.c.l.b16 %v3989
    %v4264 = vunpack.c.h.b16 %v3989
    %v4265 = vunpack.c.l.b16 %v3990
    %v4266 = vunpack.c.l.b16 %v3991
    %v4267 = vunpack.c.h.b16 %v3991
    %v4268 = vunpack.c.l.b16 %v3992
    %v4269 = vunpack.c.l.b16 %v3993
    %v4270 = vunpack.c.h.b16 %v3993
    %v4271 = vunpack.c.l.b16 %v3994
    %v4272 = vunpack.c.l.b16 %v3995
    %v4273 = vunpack.c.h.b16 %v3995
    %v4274 = vunpack.c.l.b16 %v3996
    %v4275 = vunpack.c.l.b16 %v3997
    %v4276 = vunpack.c.h.b16 %v3997
    %v4277 = vunpack.c.l.b16 %v3998
    %v4278 = vunpack.c.l.b16 %v3999
    %v4279 = vunpack.c.h.b16 %v3999
    %v4280 = vunpack.c.l.b16 %v4000
    %v4281 = vunpack.c.l.b16 %v4001
    %v4282 = vunpack.c.h.b16 %v4001
    %v4283 = vunpack.c.l.b16 %v4002
    %v4284 = vunpack.c.l.b16 %v4003
    %v4285 = vunpack.c.h.b16 %v4003
    %v4286 = vunpack.c.l.b16 %v4004
    %v4287 = vunpack.c.l.b16 %v4005
    %v4288 = vunpack.c.h.b16 %v4005
    %v4289 = vunpack.c.l.b16 %v4006
    %v4290 = vunpack.c.l.b16 %v4007
    %v4291 = vunpack.c.h.b16 %v4007
    %v4292 = vunpack.c.l.b16 %v4008
    %v4293 = vunpack.c.l.b16 %v4009
    %v4294 = vunpack.c.h.b16 %v4009
    %v4295 = vunpack.c.l.b16 %v4010
    %v4296 = vunpack.c.l.b16 %v4011
    %v4297 = vunpack.c.h.b16 %v4011
    %v4298 = vunpack.c.l.b16 %v4012
    %v4299 = vunpack.c.l.b16 %v4013
    %v4300 = vunpack.c.h.b16 %v4013
    %v4301 = vunpack.c.l.b16 %v4014
    %v4302 = vunpack.c.l.b16 %v4015
    %v4303 = vunpack.c.h.b16 %v4015
    %v4304 = vunpack.c.l.b16 %v4016
    %v4305 = vunpack.c.l.b16 %v4017
    %v4306 = vunpack.c.h.b16 %v4017
    %v4307 = vunpack.c.l.b16 %v4018
    %v4308 = vunpack.c.l.b16 %v4019
    %v4309 = vunpack.c.h.b16 %v4019
    %v4310 = vunpack.c.l.b16 %v4020
    %v4311 = vunpack.c.l.b16 %v4021
    %v4312 = vunpack.c.h.b16 %v4021
    %v4313 = vunpack.c.l.b16 %v4022
    %v4314 = vunpack.c.l.b16 %v4023
    %v4315 = vunpack.c.h.b16 %v4023
    %v4316 = vunpack.c.l.b16 %v4024
    %v4317 = vunpack.c.l.b16 %v4025
    %v4318 = vunpack.c.h.b16 %v4025
    %v4319 = vunpack.c.l.b16 %v4026
    %v4320 = vunpack.c.l.b16 %v4027
    %v4321 = vunpack.c.h.b16 %v4027
    %v4322 = vunpack.c.l.b16 %v4028
    %v4323 = vunpack.c.l.b16 %v4029
    %v4324 = vunpack.c.h.b16 %v4029
    %v4325 = vunpack.c.l.b16 %v4030
    %v4326 = vunpack.c.l.b16 %v4031
    %v4327 = vunpack.c.h.b16 %v4031
    %v4328 = vunpack.c.l.b16 %v4032
    %v4329 = vunpack.c.l.b16 %v4033
    %v4330 = vunpack.c.h.b16 %v4033
    %v4331 = vunpack.c.l.b16 %v4034
    %v4332 = vunpack.c.l.b16 %v4035
    %v4333 = vunpack.c.h.b16 %v4035
    %v4334 = vunpack.c.l.b16 %v4036
    %v4335 = vunpack.c.l.b16 %v4037
    %v4336 = vunpack.c.h.b16 %v4037
    %v4337 = vunpack.c.l.b16 %v4038
    %v4338 = vpack.c.b16 %v4173, %v4170
    %v4339 = vpack.c.b16 %v4174, %v4171
    %v4340 = vpack.c.b16 %v4175, %v4172
    %v4341 = vpack.c.b16 %v4179, %v4176
    %v4342 = vpack.c.b16 %v4180, %v4177
    %v4343 = vpack.c.b16 %v4181, %v4178
    %v4344 = vpack.c.b16 %v4185, %v4182
    %v4345 = vpack.c.b16 %v4186, %v4183
    %v4346 = vpack.c.b16 %v4187, %v4184
    %v4347 = vpack.c.b16 %v4191, %v4188
    %v4348 = vpack.c.b16 %v4192, %v4189
    %v4349 = vpack.c.b16 %v4193, %v4190
    %v4350 = vpack.c.b16 %v4197, %v4194
    %v4351 = vpack.c.b16 %v4198, %v4195
    %v4352 = vpack.c.b16 %v4199, %v4196
    %v4353 = vpack.c.b16 %v4203, %v4200
    %v4354 = vpack.c.b16 %v4204, %v4201
    %v4355 = vpack.c.b16 %v4205, %v4202
    %v4356 = vpack.c.b16 %v4209, %v4206
    %v4357 = vpack.c.b16 %v4210, %v4207
    %v4358 = vpack.c.b16 %v4211, %v4208
    %v4359 = vpack.c.b16 %v4215, %v4212
    %v4360 = vpack.c.b16 %v4216, %v4213
    %v4361 = vpack.c.b16 %v4217, %v4214
    %v4362 = vpack.c.b16 %v4221, %v4218
    %v4363 = vpack.c.b16 %v4222, %v4219
    %v4364 = vpack.c.b16 %v4223, %v4220
    %v4365 = vpack.c.b16 %v4227, %v4224
    %v4366 = vpack.c.b16 %v4228, %v4225
    %v4367 = vpack.c.b16 %v4229, %v4226
    %v4368 = vpack.c.b16 %v4233, %v4230
    %v4369 = vpack.c.b16 %v4234, %v4231
    %v4370 = vpack.c.b16 %v4235, %v4232
    %v4371 = vpack.c.b16 %v4239, %v4236
    %v4372 = vpack.c.b16 %v4240, %v4237
    %v4373 = vpack.c.b16 %v4241, %v4238
    %v4374 = vpack.c.b16 %v4245, %v4242
    %v4375 = vpack.c.b16 %v4246, %v4243
    %v4376 = vpack.c.b16 %v4247, %v4244
    %v4377 = vpack.c.b16 %v4251, %v4248
    %v4378 = vpack.c.b16 %v4252, %v4249
    %v4379 = vpack.c.b16 %v4253, %v4250
    %v4380 = vpack.c.b16 %v4257, %v4254
    %v4381 = vpack.c.b16 %v4258, %v4255
    %v4382 = vpack.c.b16 %v4259, %v4256
    %v4383 = vpack.c.b16 %v4263, %v4260
    %v4384 = vpack.c.b16 %v4264, %v4261
    %v4385 = vpack.c.b16 %v4265, %v4262
    %v4386 = vpack.c.b16 %v4269, %v4266
    %v4387 = vpack.c.b16 %v4270, %v4267
    %v4388 = vpack.c.b16 %v4271, %v4268
    %v4389 = vpack.c.b16 %v4275, %v4272
    %v4390 = vpack.c.b16 %v4276, %v4273
    %v4391 = vpack.c.b16 %v4277, %v4274
    %v4392 = vpack.c.b16 %v4281, %v4278
    %v4393 = vpack.c.b16 %v4282, %v4279
    %v4394 = vpack.c.b16 %v4283, %v4280
    %v4395 = vpack.c.b16 %v4287, %v4284
    %v4396 = vpack.c.b16 %v4288, %v4285
    %v4397 = vpack.c.b16 %v4289, %v4286
    %v4398 = vpack.c.b16 %v4293, %v4290
    %v4399 = vpack.c.b16 %v4294, %v4291
    %v4400 = vpack.c.b16 %v4295, %v4292
    %v4401 = vpack.c.b16 %v4299, %v4296
    %v4402 = vpack.c.b16 %v4300, %v4297
    %v4403 = vpack.c.b16 %v4301, %v4298
    %v4404 = vpack.c.b16 %v4305, %v4302
    %v4405 = vpack.c.b16 %v4306, %v4303
    %v4406 = vpack.c.b16 %v4307, %v4304
    %v4407 = vpack.c.b16 %v4311, %v4308
    %v4408 = vpack.c.b16 %v4312, %v4309
    %v4409 = vpack.c.b16 %v4313, %v4310
    %v4410 = vpack.c.b16 %v4317, %v4314
    %v4411 = vpack.c.b16 %v4318, %v4315
    %v4412 = vpack.c.b16 %v4319, %v4316
    %v4413 = vpack.c.b16 %v4323, %v4320
    %v4414 = vpack.c.b16 %v4324, %v4321
    %v4415 = vpack.c.b16 %v4325, %v4322
    %v4416 = vpack.c.b16 %v4329, %v4326
    %v4417 = vpack.c.b16 %v4330, %v4327
    %v4418 = vpack.c.b16 %v4331, %v4328
    %v4419 = vpack.c.b16 %v4335, %v4332
    %v4420 = vpack.c.b16 %v4336, %v4333
    %v4421 = vpack.c.b16 %v4337, %v4334
    %v4507 = vsel %vm1664, %v4051, 0
    %v4510 = vsel %vm1664, %v4050, 0
    %4512 = vmatprep.subr.bf16.mxu0 %v4339
    %4513 = vmatpush1.bf16.msra.mxu0 %v4338
    %4514 = vmatprep.subr.bf16.mxu0 %v4342
    %4515 = vmatpush1.bf16.msra.mxu0 %v4341
    %4516 = vmatprep.subr.bf16.mxu0 %v4345
    %4517 = vmatpush1.bf16.msra.mxu0 %v4344
    %4518 = vmatprep.subr.bf16.mxu0 %v4348
    %4519 = vmatpush1.bf16.msra.mxu0 %v4347
    %4520 = vmatprep.subr.bf16.mxu0 %v4351
    %4521 = vmatpush1.bf16.msra.mxu0 %v4350
    %4522 = vmatprep.subr.bf16.mxu0 %v4354
    %4523 = vmatpush1.bf16.msra.mxu0 %v4353
    %4524 = vmatprep.subr.bf16.mxu0 %v4357
    %4525 = vmatpush1.bf16.msra.mxu0 %v4356
    %4526 = vmatprep.subr.bf16.mxu0 %v4360
    %4527 = vmatpush1.bf16.msra.mxu0 %v4359
    %4528 = vmatprep.subr.bf16.mxu0 %v4363
    %4529 = vmatpush1.bf16.msra.mxu0 %v4362
    %4530 = vmatprep.subr.bf16.mxu0 %v4366
    %4531 = vmatpush1.bf16.msra.mxu0 %v4365
    %4532 = vmatprep.subr.bf16.mxu0 %v4369
    %4533 = vmatpush1.bf16.msra.mxu0 %v4368
    %4534 = vmatprep.subr.bf16.mxu0 %v4372
    %4535 = vmatpush1.bf16.msra.mxu0 %v4371
    %4536 = vmatprep.subr.bf16.mxu0 %v4375
    %4537 = vmatpush1.bf16.msra.mxu0 %v4374
    %4538 = vmatprep.subr.bf16.mxu0 %v4378
    %4539 = vmatpush1.bf16.msra.mxu0 %v4377
    %4540 = vmatprep.subr.bf16.mxu0 %v4381
    %4541 = vmatpush1.bf16.msra.mxu0 %v4380
    %4542 = vmatprep.subr.bf16.mxu0 %v4384
    %4543 = vmatpush1.bf16.msra.mxu0 %v4383
    %4544 = vmatprep.mubr.bf16.mxu0 %v4045
    %4545 = vmatmul.mubr.bf16.gmra.mrb[0].mxu0 %v4042
    %v4546 = vpop.f32.mrb[0].mxu0
    %v4547 = vadd.f32 0.0, %v4546
    %v4548 = vpop.f32.mrb[0].mxu0
    %v4549 = vadd.f32 0.0, %v4548
    %v4550 = vpop.f32.mrb[0].mxu0
    %v4551 = vadd.f32 0.0, %v4550
    %v4552 = vpop.f32.mrb[0].mxu0
    %v4553 = vadd.f32 0.0, %v4552
    %4554 = vmatprep.mubr.bf16.mxu0 %v4044
    %4555 = vmatmul.mubr.bf16.gmra.mrb[0].mxu0 %v4041
    %v4556 = vpop.f32.mrb[0].mxu0
    %v4557 = vadd.f32 0.0, %v4556
    %v4558 = vpop.f32.mrb[0].mxu0
    %v4559 = vadd.f32 0.0, %v4558
    %v4560 = vpop.f32.mrb[0].mxu0
    %v4561 = vpop.f32.mrb[0].mxu0
    %4562 = vdwg.mxu0
    %4563 = vmatprep.subr.bf16.mxu0 %v4387
    %4564 = vmatpush1.bf16.msra.mxu0 %v4386
    %4565 = vmatprep.subr.bf16.mxu0 %v4390
    %4566 = vmatpush1.bf16.msra.mxu0 %v4389
    %4567 = vmatprep.subr.bf16.mxu0 %v4393
    %4568 = vmatpush1.bf16.msra.mxu0 %v4392
    %4569 = vmatprep.subr.bf16.mxu0 %v4396
    %4570 = vmatpush1.bf16.msra.mxu0 %v4395
    %4571 = vmatprep.subr.bf16.mxu0 %v4399
    %4572 = vmatpush1.bf16.msra.mxu0 %v4398
    %4573 = vmatprep.subr.bf16.mxu0 %v4402
    %4574 = vmatpush1.bf16.msra.mxu0 %v4401
    %4575 = vmatprep.subr.bf16.mxu0 %v4405
    %4576 = vmatpush1.bf16.msra.mxu0 %v4404
    %4577 = vmatprep.subr.bf16.mxu0 %v4408
    %4578 = vmatpush1.bf16.msra.mxu0 %v4407
    %4579 = vmatprep.subr.bf16.mxu0 %v4411
    %4580 = vmatpush1.bf16.msra.mxu0 %v4410
    %4581 = vmatprep.subr.bf16.mxu0 %v4414
    %4582 = vmatpush1.bf16.msra.mxu0 %v4413
    %4583 = vmatprep.subr.bf16.mxu0 %v4417
    %4584 = vmatpush1.bf16.msra.mxu0 %v4416
    %4585 = vmatprep.subr.bf16.mxu0 %v4420
    %4586 = vmatpush1.bf16.msra.mxu0 %v4419
    %4587 = vmatprep.subr.bf16.mxu0 0
    %4588 = vmatpush1.bf16.msra.mxu0 0
    %4589 = vmatprep.subr.bf16.mxu0 0
    %4590 = vmatpush1.bf16.msra.mxu0 0
    %4591 = vmatprep.subr.bf16.mxu0 0
    %4592 = vmatpush1.bf16.msra.mxu0 0
    %4593 = vmatprep.subr.bf16.mxu0 0
    %4594 = vmatpush1.bf16.msra.mxu0 0
    %4595 = vmatprep.mubr.bf16.mxu0 %v4507
    %4596 = vmatmul.mubr.bf16.gmra.mrb[0].mxu0 %v4048
    %v4597 = vpop.f32.mrb[0].mxu0
    %v4598 = vadd.f32 %v4547, %v4597
    %v4599 = vpop.f32.mrb[0].mxu0
    %v4600 = vadd.f32 %v4549, %v4599
    %v4601 = vpop.f32.mrb[0].mxu0
    %v4602 = vadd.f32 %v4551, %v4601
    %v4603 = vpop.f32.mrb[0].mxu0
    %v4604 = vadd.f32 %v4553, %v4603
    %4605 = vmatprep.mubr.bf16.mxu0 %v4510
    %4606 = vmatmul.mubr.bf16.gmra.mrb[0].mxu0 %v4047
    %v4607 = vpop.f32.mrb[0].mxu0
    %v4608 = vadd.f32 %v4557, %v4607
    %v4609 = vpop.f32.mrb[0].mxu0
    %v4610 = vadd.f32 %v4559, %v4609
    %v4611 = vpop.f32.mrb[0].mxu0
    %v4612 = vpop.f32.mrb[0].mxu0
    %4613 = vdwg.mxu0
    %4614 = vmatprep.subr.bf16.mxu0 0
    %4615 = vmatpush1.bf16.msra.mxu0 %v4340
    %4616 = vmatprep.subr.bf16.mxu0 0
    %4617 = vmatpush1.bf16.msra.mxu0 %v4343
    %4618 = vmatprep.subr.bf16.mxu0 0
    %4619 = vmatpush1.bf16.msra.mxu0 %v4346
    %4620 = vmatprep.subr.bf16.mxu0 0
    %4621 = vmatpush1.bf16.msra.mxu0 %v4349
    %4622 = vmatprep.subr.bf16.mxu0 0
    %4623 = vmatpush1.bf16.msra.mxu0 %v4352
    %4624 = vmatprep.subr.bf16.mxu0 0
    %4625 = vmatpush1.bf16.msra.mxu0 %v4355
    %4626 = vmatprep.subr.bf16.mxu0 0
    %4627 = vmatpush1.bf16.msra.mxu0 %v4358
    %4628 = vmatprep.subr.bf16.mxu0 0
    %4629 = vmatpush1.bf16.msra.mxu0 %v4361
    %4630 = vmatprep.subr.bf16.mxu0 0
    %4631 = vmatpush1.bf16.msra.mxu0 %v4364
    %4632 = vmatprep.subr.bf16.mxu0 0
    %4633 = vmatpush1.bf16.msra.mxu0 %v4367
    %4634 = vmatprep.subr.bf16.mxu0 0
    %4635 = vmatpush1.bf16.msra.mxu0 %v4370
    %4636 = vmatprep.subr.bf16.mxu0 0
    %4637 = vmatpush1.bf16.msra.mxu0 %v4373
    %4638 = vmatprep.subr.bf16.mxu0 0
    %4639 = vmatpush1.bf16.msra.mxu0 %v4376
    %4640 = vmatprep.subr.bf16.mxu0 0
    %4641 = vmatpush1.bf16.msra.mxu0 %v4379
    %4642 = vmatprep.subr.bf16.mxu0 0
    %4643 = vmatpush1.bf16.msra.mxu0 %v4382
    %4644 = vmatprep.subr.bf16.mxu0 0
    %4645 = vmatpush1.bf16.msra.mxu0 %v4385
    %4646 = vmatprep.mubr.bf16.mxu0 %v4045
    %4647 = vmatmul.mubr.bf16.gmra.mrb[0].mxu0 %v4042
    %v4648 = vpop.f32.mrb[0].mxu0
    %v4649 = vadd.f32 0.0, %v4648
    %v4650 = vpop.f32.mrb[0].mxu0
    %v4651 = vpop.f32.mrb[0].mxu0
    %v4652 = vadd.f32 0.0, %v4651
    %v4653 = vpop.f32.mrb[0].mxu0
    %4654 = vmatprep.mubr.bf16.mxu0 %v4044
    %4655 = vmatmul.mubr.bf16.gmra.mrb[0].mxu0 %v4041
    %v4656 = vpop.f32.mrb[0].mxu0
    %v4657 = vadd.f32 0.0, %v4656
    %v4658 = vpop.f32.mrb[0].mxu0
    %v4659 = vpop.f32.mrb[0].mxu0
    %v4660 = vpop.f32.mrb[0].mxu0
    %4661 = vdwg.mxu0
    %4662 = vmatprep.subr.bf16.mxu0 0
    %4663 = vmatpush1.bf16.msra.mxu0 %v4388
    %4664 = vmatprep.subr.bf16.mxu0 0
    %4665 = vmatpush1.bf16.msra.mxu0 %v4391
    %4666 = vmatprep.subr.bf16.mxu0 0
    %4667 = vmatpush1.bf16.msra.mxu0 %v4394
    %4668 = vmatprep.subr.bf16.mxu0 0
    %4669 = vmatpush1.bf16.msra.mxu0 %v4397
    %4670 = vmatprep.subr.bf16.mxu0 0
    %4671 = vmatpush1.bf16.msra.mxu0 %v4400
    %4672 = vmatprep.subr.bf16.mxu0 0
    %4673 = vmatpush1.bf16.msra.mxu0 %v4403
    %4674 = vmatprep.subr.bf16.mxu0 0
    %4675 = vmatpush1.bf16.msra.mxu0 %v4406
    %4676 = vmatprep.subr.bf16.mxu0 0
    %4677 = vmatpush1.bf16.msra.mxu0 %v4409
    %4678 = vmatprep.subr.bf16.mxu0 0
    %4679 = vmatpush1.bf16.msra.mxu0 %v4412
    %4680 = vmatprep.subr.bf16.mxu0 0
    %4681 = vmatpush1.bf16.msra.mxu0 %v4415
    %4682 = vmatprep.subr.bf16.mxu0 0
    %4683 = vmatpush1.bf16.msra.mxu0 %v4418
    %4684 = vmatprep.subr.bf16.mxu0 0
    %4685 = vmatpush1.bf16.msra.mxu0 %v4421
    %4686 = vmatprep.subr.bf16.mxu0 0
    %4687 = vmatpush1.bf16.msra.mxu0 0
    %4688 = vmatprep.subr.bf16.mxu0 0
    %4689 = vmatpush1.bf16.msra.mxu0 0
    %4690 = vmatprep.subr.bf16.mxu0 0
    %4691 = vmatpush1.bf16.msra.mxu0 0
    %4692 = vmatprep.subr.bf16.mxu0 0
    %4693 = vmatpush1.bf16.msra.mxu0 0
    %4694 = vmatprep.mubr.bf16.mxu0 %v4507
    %4695 = vmatmul.mubr.bf16.gmra.mrb[0].mxu0 %v4048
    %v4696 = vpop.f32.mrb[0].mxu0
    %v4697 = vadd.f32 %v4649, %v4696
    %v4698 = vpop.f32.mrb[0].mxu0
    %v4699 = vpop.f32.mrb[0].mxu0
    %v4700 = vadd.f32 %v4652, %v4699
    %v4701 = vpop.f32.mrb[0].mxu0
    %4702 = vmatprep.mubr.bf16.mxu0 %v4510
    %4703 = vmatmul.mubr.bf16.gmra.mrb[0].mxu0 %v4047
    %v4704 = vpop.f32.mrb[0].mxu0
    %v4705 = vadd.f32 %v4657, %v4704
    %v4706 = vpop.f32.mrb[0].mxu0
    %v4707 = vpop.f32.mrb[0].mxu0
    %v4708 = vpop.f32.mrb[0].mxu0
    %4709 = vdwg.mxu0
    %v4710 = vadd.f32 %v2409, %v4598
    %v4711 = vadd.f32 %v2411, %v4600
    %v4712 = vadd.f32 %v2508, %v4697
    %v4713 = vadd.f32 %v2413, %v4602
    %v4714 = vadd.f32 %v2415, %v4604
    %v4715 = vadd.f32 %v2511, %v4700
    %v4716 = vadd.f32 %v2419, %v4608
    %v4717 = vadd.f32 %v2421, %v4610
    %v4718 = vadd.f32 %v2516, %v4705
    %s4719 = scalar_lea.vmem [#allocation10], 1344
    %v4720 = vld [vmem:[%s4719] sm:$0xff]
    %v4721 = vld [vmem:[%s4719 + $0x8] sm:$0xf]
    %v4722 = vld [vmem:[%s4719 + $0xc] sm:$0xff]
    %v4723 = vld [vmem:[%s4719 + $0x14] sm:$0xf]
    %v4724 = vld [vmem:[%s4719 + $0x18] sm:$0xff]
    %v4725 = vld [vmem:[%s4719 + $0x20] sm:$0xf]
    %v4726 = vld [vmem:[%s4719 + $0x24] sm:$0xff]
    %v4727 = vld [vmem:[%s4719 + $0x2c] sm:$0xf]
    %v4728 = vld [vmem:[%s4719 + $0x30] sm:$0xff]
    %v4729 = vld [vmem:[%s4719 + $0x38] sm:$0xf]
    %v4730 = vld [vmem:[%s4719 + $0x3c] sm:$0xff]
    %v4731 = vld [vmem:[%s4719 + $0x44] sm:$0xf]
    %v4732 = vld [vmem:[%s4719 + $0x48] sm:$0xff]
    %v4733 = vld [vmem:[%s4719 + $0x50] sm:$0xf]
    %v4734 = vld [vmem:[%s4719 + $0x54] sm:$0xff]
    %v4735 = vld [vmem:[%s4719 + $0x5c] sm:$0xf]
    %v4736 = vld [vmem:[%s4719 + $0x60] sm:$0xff]
    %v4737 = vld [vmem:[%s4719 + $0x68] sm:$0xf]
    %v4738 = vld [vmem:[%s4719 + $0x6c] sm:$0xff]
    %v4739 = vld [vmem:[%s4719 + $0x74] sm:$0xf]
    %v4740 = vld [vmem:[%s4719 + $0x78] sm:$0xff]
    %v4741 = vld [vmem:[%s4719 + $0x80] sm:$0xf]
    %v4742 = vld [vmem:[%s4719 + $0x84] sm:$0xff]
    %v4743 = vld [vmem:[%s4719 + $0x8c] sm:$0xf]
    %v4744 = vld [vmem:[%s4719 + $0x90] sm:$0xff]
    %v4745 = vld [vmem:[%s4719 + $0x98] sm:$0xf]
    %v4746 = vld [vmem:[%s4719 + $0x9c] sm:$0xff]
    %v4747 = vld [vmem:[%s4719 + $0xa4] sm:$0xf]
    %v4748 = vld [vmem:[%s4719 + $0xa8] sm:$0xff]
    %v4749 = vld [vmem:[%s4719 + $0xb0] sm:$0xf]
    %v4750 = vld [vmem:[%s4719 + $0xb4] sm:$0xff]
    %v4751 = vld [vmem:[%s4719 + $0xbc] sm:$0xf]
    %v4752 = vld [vmem:[%s4719 + $0xc0] sm:$0xff]
    %v4753 = vld [vmem:[%s4719 + $0xc8] sm:$0xf]
    %v4754 = vld [vmem:[%s4719 + $0xcc] sm:$0xff]
    %v4755 = vld [vmem:[%s4719 + $0xd4] sm:$0xf]
    %v4756 = vld [vmem:[%s4719 + $0xd8] sm:$0xff]
    %v4757 = vld [vmem:[%s4719 + $0xe0] sm:$0xf]
    %v4758 = vld [vmem:[%s4719 + $0xe4] sm:$0xff]
    %v4759 = vld [vmem:[%s4719 + $0xec] sm:$0xf]
    %v4760 = vld [vmem:[%s4719 + $0xf0] sm:$0xff]
    %v4761 = vld [vmem:[%s4719 + $0xf8] sm:$0xf]
    %v4762 = vld [vmem:[%s4719 + $0xfc] sm:$0xff]
    %v4763 = vld [vmem:[%s4719 + $0x104] sm:$0xf]
    %v4764 = vld [vmem:[%s4719 + $0x108] sm:$0xff]
    %v4765 = vld [vmem:[%s4719 + $0x110] sm:$0xf]
    %v4766 = vld [vmem:[%s4719 + $0x114] sm:$0xff]
    %v4767 = vld [vmem:[%s4719 + $0x11c] sm:$0xf]
    %v4768 = vld [vmem:[%s4719 + $0x120] sm:$0xff]
    %v4769 = vld [vmem:[%s4719 + $0x128] sm:$0xf]
    %v4770 = vld [vmem:[%s4719 + $0x12c] sm:$0xff]
    %v4771 = vld [vmem:[%s4719 + $0x134] sm:$0xf]
    %v4772 = vld [vmem:[%s4719 + $0x138] sm:$0xff]
    %v4773 = vld [vmem:[%s4719 + $0x140] sm:$0xf]
    %v4774 = vld [vmem:[%s4719 + $0x144] sm:$0xff]
    %v4775 = vld [vmem:[%s4719 + $0x14c] sm:$0xf]
    %v4776 = vld [vmem:[%s4719 + $0x150] sm:$0xff]
    %v4777 = vld [vmem:[%s4719 + $0x158] sm:$0xf]
    %v4778 = vld [vmem:[%s4719 + $0x15c] sm:$0xff]
    %v4779 = vld [vmem:[%s4719 + $0x164] sm:$0xf]
    %v4780 = vld [vmem:[%s4719 + $0x168] sm:$0xff]
    %v4781 = vld [vmem:[%s4719 + $0x170] sm:$0xf]
    %v4782 = vld [vmem:[%s4719 + $0x174] sm:$0xff]
    %v4783 = vld [vmem:[%s4719 + $0x17c] sm:$0xf]
    %v4784 = vld [vmem:[%s4719 + $0x180] sm:$0xff]
    %v4785 = vld [vmem:[%s4719 + $0x188] sm:$0xf]
    %v4786 = vld [vmem:[%s4719 + $0x18c] sm:$0xff]
    %v4787 = vld [vmem:[%s4719 + $0x194] sm:$0xf]
    %v4788 = vld [vmem:[%s4719 + $0x198] sm:$0xff]
    %v4789 = vld [vmem:[%s4719 + $0x1a0] sm:$0xf]
    %v4790 = vld [vmem:[%s4719 + $0x1a4] sm:$0xff]
    %v4791 = vld [vmem:[%s4719 + $0x1ac] sm:$0xf]
    %v4792 = vld [vmem:[%s4719 + $0x1b0] sm:$0xff]
    %v4793 = vld [vmem:[%s4719 + $0x1b8] sm:$0xf]
    %v4794 = vld [vmem:[%s4719 + $0x1bc] sm:$0xff]
    %v4795 = vld [vmem:[%s4719 + $0x1c4] sm:$0xf]
    %v4796 = vld [vmem:[%s4719 + $0x1c8] sm:$0xff]
    %v4797 = vld [vmem:[%s4719 + $0x1d0] sm:$0xf]
    %v4798 = vld [vmem:[%s4719 + $0x1d4] sm:$0xff]
    %v4799 = vld [vmem:[%s4719 + $0x1dc] sm:$0xf]
    %v4800 = vld [vmem:[%s4719 + $0x1e0] sm:$0xff]
    %v4801 = vld [vmem:[%s4719 + $0x1e8] sm:$0xf]
    %v4802 = vld [vmem:[%s4719 + $0x1ec] sm:$0xff]
    %v4803 = vld [vmem:[%s4719 + $0x1f4] sm:$0xf]
    %v4804 = vld [vmem:[%s4719 + $0x1f8] sm:$0xff]
    %v4805 = vld [vmem:[%s4719 + $0x200] sm:$0xf]
    %v4806 = vld [vmem:[%s4719 + $0x204] sm:$0xff]
    %v4807 = vld [vmem:[%s4719 + $0x20c] sm:$0xf]
    %v4808 = vld [vmem:[%s4719 + $0x210] sm:$0xff]
    %v4809 = vld [vmem:[%s4719 + $0x218] sm:$0xf]
    %v4810 = vld [vmem:[%s4719 + $0x21c] sm:$0xff]
    %v4811 = vld [vmem:[%s4719 + $0x224] sm:$0xf]
    %v4812 = vld [vmem:[%s4719 + $0x228] sm:$0xff]
    %v4813 = vld [vmem:[%s4719 + $0x230] sm:$0xf]
    %v4814 = vld [vmem:[%s4719 + $0x234] sm:$0xff]
    %v4815 = vld [vmem:[%s4719 + $0x23c] sm:$0xf]
    %v4816 = vld [vmem:[%s4719 + $0x240] sm:$0xff]
    %v4817 = vld [vmem:[%s4719 + $0x248] sm:$0xf]
    %v4818 = vld [vmem:[%s4719 + $0x24c] sm:$0xff]
    %v4819 = vld [vmem:[%s4719 + $0x254] sm:$0xf]
    %v4820 = vld [vmem:[%s4719 + $0x258] sm:$0xff]
    %v4821 = vld [vmem:[%s4719 + $0x260] sm:$0xf]
    %v4822 = vld [vmem:[%s4719 + $0x264] sm:$0xff]
    %v4823 = vld [vmem:[%s4719 + $0x26c] sm:$0xf]
    %v4824 = vld [vmem:[%s4719 + $0x270] sm:$0xff]
    %v4825 = vld [vmem:[%s4719 + $0x278] sm:$0xf]
    %v4826 = vld [vmem:[%s4719 + $0x27c] sm:$0xff]
    %v4827 = vld [vmem:[%s4719 + $0x284] sm:$0xf]
    %v4828 = vld [vmem:[%s4719 + $0x288] sm:$0xff]
    %v4829 = vld [vmem:[%s4719 + $0x290] sm:$0xf]
    %v4830 = vld [vmem:[%s4719 + $0x294] sm:$0xff]
    %v4831 = vld [vmem:[%s4719 + $0x29c] sm:$0xf]
    %v4944 = vunpack.c.l.b16 %v4720
    %v4945 = vunpack.c.h.b16 %v4720
    %v4946 = vunpack.c.l.b16 %v4721
    %v4947 = vunpack.c.l.b16 %v4722
    %v4948 = vunpack.c.h.b16 %v4722
    %v4949 = vunpack.c.l.b16 %v4723
    %v4950 = vunpack.c.l.b16 %v4724
    %v4951 = vunpack.c.h.b16 %v4724
    %v4952 = vunpack.c.l.b16 %v4725
    %v4953 = vunpack.c.l.b16 %v4726
    %v4954 = vunpack.c.h.b16 %v4726
    %v4955 = vunpack.c.l.b16 %v4727
    %v4956 = vunpack.c.l.b16 %v4728
    %v4957 = vunpack.c.h.b16 %v4728
    %v4958 = vunpack.c.l.b16 %v4729
    %v4959 = vunpack.c.l.b16 %v4730
    %v4960 = vunpack.c.h.b16 %v4730
    %v4961 = vunpack.c.l.b16 %v4731
    %v4962 = vunpack.c.l.b16 %v4732
    %v4963 = vunpack.c.h.b16 %v4732
    %v4964 = vunpack.c.l.b16 %v4733
    %v4965 = vunpack.c.l.b16 %v4734
    %v4966 = vunpack.c.h.b16 %v4734
    %v4967 = vunpack.c.l.b16 %v4735
    %v4968 = vunpack.c.l.b16 %v4736
    %v4969 = vunpack.c.h.b16 %v4736
    %v4970 = vunpack.c.l.b16 %v4737
    %v4971 = vunpack.c.l.b16 %v4738
    %v4972 = vunpack.c.h.b16 %v4738
    %v4973 = vunpack.c.l.b16 %v4739
    %v4974 = vunpack.c.l.b16 %v4740
    %v4975 = vunpack.c.h.b16 %v4740
    %v4976 = vunpack.c.l.b16 %v4741
    %v4977 = vunpack.c.l.b16 %v4742
    %v4978 = vunpack.c.h.b16 %v4742
    %v4979 = vunpack.c.l.b16 %v4743
    %v4980 = vunpack.c.l.b16 %v4744
    %v4981 = vunpack.c.h.b16 %v4744
    %v4982 = vunpack.c.l.b16 %v4745
    %v4983 = vunpack.c.l.b16 %v4746
    %v4984 = vunpack.c.h.b16 %v4746
    %v4985 = vunpack.c.l.b16 %v4747
    %v4986 = vunpack.c.l.b16 %v4748
    %v4987 = vunpack.c.h.b16 %v4748
    %v4988 = vunpack.c.l.b16 %v4749
    %v4989 = vunpack.c.l.b16 %v4750
    %v4990 = vunpack.c.h.b16 %v4750
    %v4991 = vunpack.c.l.b16 %v4751
    %v4992 = vunpack.c.l.b16 %v4752
    %v4993 = vunpack.c.h.b16 %v4752
    %v4994 = vunpack.c.l.b16 %v4753
    %v4995 = vunpack.c.l.b16 %v4754
    %v4996 = vunpack.c.h.b16 %v4754
    %v4997 = vunpack.c.l.b16 %v4755
    %v4998 = vunpack.c.l.b16 %v4756
    %v4999 = vunpack.c.h.b16 %v4756
    %v5000 = vunpack.c.l.b16 %v4757
    %v5001 = vunpack.c.l.b16 %v4758
    %v5002 = vunpack.c.h.b16 %v4758
    %v5003 = vunpack.c.l.b16 %v4759
    %v5004 = vunpack.c.l.b16 %v4760
    %v5005 = vunpack.c.h.b16 %v4760
    %v5006 = vunpack.c.l.b16 %v4761
    %v5007 = vunpack.c.l.b16 %v4762
    %v5008 = vunpack.c.h.b16 %v4762
    %v5009 = vunpack.c.l.b16 %v4763
    %v5010 = vunpack.c.l.b16 %v4764
    %v5011 = vunpack.c.h.b16 %v4764
    %v5012 = vunpack.c.l.b16 %v4765
    %v5013 = vunpack.c.l.b16 %v4766
    %v5014 = vunpack.c.h.b16 %v4766
    %v5015 = vunpack.c.l.b16 %v4767
    %v5016 = vunpack.c.l.b16 %v4768
    %v5017 = vunpack.c.h.b16 %v4768
    %v5018 = vunpack.c.l.b16 %v4769
    %v5019 = vunpack.c.l.b16 %v4770
    %v5020 = vunpack.c.h.b16 %v4770
    %v5021 = vunpack.c.l.b16 %v4771
    %v5022 = vunpack.c.l.b16 %v4772
    %v5023 = vunpack.c.h.b16 %v4772
    %v5024 = vunpack.c.l.b16 %v4773
    %v5025 = vunpack.c.l.b16 %v4774
    %v5026 = vunpack.c.h.b16 %v4774
    %v5027 = vunpack.c.l.b16 %v4775
    %v5028 = vunpack.c.l.b16 %v4776
    %v5029 = vunpack.c.h.b16 %v4776
    %v5030 = vunpack.c.l.b16 %v4777
    %v5031 = vunpack.c.l.b16 %v4778
    %v5032 = vunpack.c.h.b16 %v4778
    %v5033 = vunpack.c.l.b16 %v4779
    %v5034 = vunpack.c.l.b16 %v4780
    %v5035 = vunpack.c.h.b16 %v4780
    %v5036 = vunpack.c.l.b16 %v4781
    %v5037 = vunpack.c.l.b16 %v4782
    %v5038 = vunpack.c.h.b16 %v4782
    %v5039 = vunpack.c.l.b16 %v4783
    %v5040 = vunpack.c.l.b16 %v4784
    %v5041 = vunpack.c.h.b16 %v4784
    %v5042 = vunpack.c.l.b16 %v4785
    %v5043 = vunpack.c.l.b16 %v4786
    %v5044 = vunpack.c.h.b16 %v4786
    %v5045 = vunpack.c.l.b16 %v4787
    %v5046 = vunpack.c.l.b16 %v4788
    %v5047 = vunpack.c.h.b16 %v4788
    %v5048 = vunpack.c.l.b16 %v4789
    %v5049 = vunpack.c.l.b16 %v4790
    %v5050 = vunpack.c.h.b16 %v4790
    %v5051 = vunpack.c.l.b16 %v4791
    %v5052 = vunpack.c.l.b16 %v4792
    %v5053 = vunpack.c.h.b16 %v4792
    %v5054 = vunpack.c.l.b16 %v4793
    %v5055 = vunpack.c.l.b16 %v4794
    %v5056 = vunpack.c.h.b16 %v4794
    %v5057 = vunpack.c.l.b16 %v4795
    %v5058 = vunpack.c.l.b16 %v4796
    %v5059 = vunpack.c.h.b16 %v4796
    %v5060 = vunpack.c.l.b16 %v4797
    %v5061 = vunpack.c.l.b16 %v4798
    %v5062 = vunpack.c.h.b16 %v4798
    %v5063 = vunpack.c.l.b16 %v4799
    %v5064 = vunpack.c.l.b16 %v4800
    %v5065 = vunpack.c.h.b16 %v4800
    %v5066 = vunpack.c.l.b16 %v4801
    %v5067 = vunpack.c.l.b16 %v4802
    %v5068 = vunpack.c.h.b16 %v4802
    %v5069 = vunpack.c.l.b16 %v4803
    %v5070 = vunpack.c.l.b16 %v4804
    %v5071 = vunpack.c.h.b16 %v4804
    %v5072 = vunpack.c.l.b16 %v4805
    %v5073 = vunpack.c.l.b16 %v4806
    %v5074 = vunpack.c.h.b16 %v4806
    %v5075 = vunpack.c.l.b16 %v4807
    %v5076 = vunpack.c.l.b16 %v4808
    %v5077 = vunpack.c.h.b16 %v4808
    %v5078 = vunpack.c.l.b16 %v4809
    %v5079 = vunpack.c.l.b16 %v4810
    %v5080 = vunpack.c.h.b16 %v4810
    %v5081 = vunpack.c.l.b16 %v4811
    %v5082 = vunpack.c.l.b16 %v4812
    %v5083 = vunpack.c.h.b16 %v4812
    %v5084 = vunpack.c.l.b16 %v4813
    %v5085 = vunpack.c.l.b16 %v4814
    %v5086 = vunpack.c.h.b16 %v4814
    %v5087 = vunpack.c.l.b16 %v4815
    %v5088 = vunpack.c.l.b16 %v4816
    %v5089 = vunpack.c.h.b16 %v4816
    %v5090 = vunpack.c.l.b16 %v4817
    %v5091 = vunpack.c.l.b16 %v4818
    %v5092 = vunpack.c.h.b16 %v4818
    %v5093 = vunpack.c.l.b16 %v4819
    %v5094 = vunpack.c.l.b16 %v4820
    %v5095 = vunpack.c.h.b16 %v4820
    %v5096 = vunpack.c.l.b16 %v4821
    %v5097 = vunpack.c.l.b16 %v4822
    %v5098 = vunpack.c.h.b16 %v4822
    %v5099 = vunpack.c.l.b16 %v4823
    %v5100 = vunpack.c.l.b16 %v4824
    %v5101 = vunpack.c.h.b16 %v4824
    %v5102 = vunpack.c.l.b16 %v4825
    %v5103 = vunpack.c.l.b16 %v4826
    %v5104 = vunpack.c.h.b16 %v4826
    %v5105 = vunpack.c.l.b16 %v4827
    %v5106 = vunpack.c.l.b16 %v4828
    %v5107 = vunpack.c.h.b16 %v4828
    %v5108 = vunpack.c.l.b16 %v4829
    %v5109 = vunpack.c.l.b16 %v4830
    %v5110 = vunpack.c.h.b16 %v4830
    %v5111 = vunpack.c.l.b16 %v4831
    %v5112 = vpack.c.b16 %v4947, %v4944
    %v5113 = vpack.c.b16 %v4948, %v4945
    %v5114 = vpack.c.b16 %v4949, %v4946
    %v5115 = vpack.c.b16 %v4953, %v4950
    %v5116 = vpack.c.b16 %v4954, %v4951
    %v5117 = vpack.c.b16 %v4955, %v4952
    %v5118 = vpack.c.b16 %v4959, %v4956
    %v5119 = vpack.c.b16 %v4960, %v4957
    %v5120 = vpack.c.b16 %v4961, %v4958
    %v5121 = vpack.c.b16 %v4965, %v4962
    %v5122 = vpack.c.b16 %v4966, %v4963
    %v5123 = vpack.c.b16 %v4967, %v4964
    %v5124 = vpack.c.b16 %v4971, %v4968
    %v5125 = vpack.c.b16 %v4972, %v4969
    %v5126 = vpack.c.b16 %v4973, %v4970
    %v5127 = vpack.c.b16 %v4977, %v4974
    %v5128 = vpack.c.b16 %v4978, %v4975
    %v5129 = vpack.c.b16 %v4979, %v4976
    %v5130 = vpack.c.b16 %v4983, %v4980
    %v5131 = vpack.c.b16 %v4984, %v4981
    %v5132 = vpack.c.b16 %v4985, %v4982
    %v5133 = vpack.c.b16 %v4989, %v4986
    %v5134 = vpack.c.b16 %v4990, %v4987
    %v5135 = vpack.c.b16 %v4991, %v4988
    %v5136 = vpack.c.b16 %v4995, %v4992
    %v5137 = vpack.c.b16 %v4996, %v4993
    %v5138 = vpack.c.b16 %v4997, %v4994
    %v5139 = vpack.c.b16 %v5001, %v4998
    %v5140 = vpack.c.b16 %v5002, %v4999
    %v5141 = vpack.c.b16 %v5003, %v5000
    %v5142 = vpack.c.b16 %v5007, %v5004
    %v5143 = vpack.c.b16 %v5008, %v5005
    %v5144 = vpack.c.b16 %v5009, %v5006
    %v5145 = vpack.c.b16 %v5013, %v5010
    %v5146 = vpack.c.b16 %v5014, %v5011
    %v5147 = vpack.c.b16 %v5015, %v5012
    %v5148 = vpack.c.b16 %v5019, %v5016
    %v5149 = vpack.c.b16 %v5020, %v5017
    %v5150 = vpack.c.b16 %v5021, %v5018
    %v5151 = vpack.c.b16 %v5025, %v5022
    %v5152 = vpack.c.b16 %v5026, %v5023
    %v5153 = vpack.c.b16 %v5027, %v5024
    %v5154 = vpack.c.b16 %v5031, %v5028
    %v5155 = vpack.c.b16 %v5032, %v5029
    %v5156 = vpack.c.b16 %v5033, %v5030
    %v5157 = vpack.c.b16 %v5037, %v5034
    %v5158 = vpack.c.b16 %v5038, %v5035
    %v5159 = vpack.c.b16 %v5039, %v5036
    %v5160 = vpack.c.b16 %v5043, %v5040
    %v5161 = vpack.c.b16 %v5044, %v5041
    %v5162 = vpack.c.b16 %v5045, %v5042
    %v5163 = vpack.c.b16 %v5049, %v5046
    %v5164 = vpack.c.b16 %v5050, %v5047
    %v5165 = vpack.c.b16 %v5051, %v5048
    %v5166 = vpack.c.b16 %v5055, %v5052
    %v5167 = vpack.c.b16 %v5056, %v5053
    %v5168 = vpack.c.b16 %v5057, %v5054
    %v5169 = vpack.c.b16 %v5061, %v5058
    %v5170 = vpack.c.b16 %v5062, %v5059
    %v5171 = vpack.c.b16 %v5063, %v5060
    %v5172 = vpack.c.b16 %v5067, %v5064
    %v5173 = vpack.c.b16 %v5068, %v5065
    %v5174 = vpack.c.b16 %v5069, %v5066
    %v5175 = vpack.c.b16 %v5073, %v5070
    %v5176 = vpack.c.b16 %v5074, %v5071
    %v5177 = vpack.c.b16 %v5075, %v5072
    %v5178 = vpack.c.b16 %v5079, %v5076
    %v5179 = vpack.c.b16 %v5080, %v5077
    %v5180 = vpack.c.b16 %v5081, %v5078
    %v5181 = vpack.c.b16 %v5085, %v5082
    %v5182 = vpack.c.b16 %v5086, %v5083
    %v5183 = vpack.c.b16 %v5087, %v5084
    %v5184 = vpack.c.b16 %v5091, %v5088
    %v5185 = vpack.c.b16 %v5092, %v5089
    %v5186 = vpack.c.b16 %v5093, %v5090
    %v5187 = vpack.c.b16 %v5097, %v5094
    %v5188 = vpack.c.b16 %v5098, %v5095
    %v5189 = vpack.c.b16 %v5099, %v5096
    %v5190 = vpack.c.b16 %v5103, %v5100
    %v5191 = vpack.c.b16 %v5104, %v5101
    %v5192 = vpack.c.b16 %v5105, %v5102
    %v5193 = vpack.c.b16 %v5109, %v5106
    %v5194 = vpack.c.b16 %v5110, %v5107
    %v5195 = vpack.c.b16 %v5111, %v5108
    %5280 = vmatprep.subr.bf16.mxu0 %v5113
    %5281 = vmatpush1.bf16.msra.mxu0 %v5112
    %5282 = vmatprep.subr.bf16.mxu0 %v5116
    %5283 = vmatpush1.bf16.msra.mxu0 %v5115
    %5284 = vmatprep.subr.bf16.mxu0 %v5119
    %5285 = vmatpush1.bf16.msra.mxu0 %v5118
    %5286 = vmatprep.subr.bf16.mxu0 %v5122
    %5287 = vmatpush1.bf16.msra.mxu0 %v5121
    %5288 = vmatprep.subr.bf16.mxu0 %v5125
    %5289 = vmatpush1.bf16.msra.mxu0 %v5124
    %5290 = vmatprep.subr.bf16.mxu0 %v5128
    %5291 = vmatpush1.bf16.msra.mxu0 %v5127
    %5292 = vmatprep.subr.bf16.mxu0 %v5131
    %5293 = vmatpush1.bf16.msra.mxu0 %v5130
    %5294 = vmatprep.subr.bf16.mxu0 %v5134
    %5295 = vmatpush1.bf16.msra.mxu0 %v5133
    %5296 = vmatprep.subr.bf16.mxu0 %v5137
    %5297 = vmatpush1.bf16.msra.mxu0 %v5136
    %5298 = vmatprep.subr.bf16.mxu0 %v5140
    %5299 = vmatpush1.bf16.msra.mxu0 %v5139
    %5300 = vmatprep.subr.bf16.mxu0 %v5143
    %5301 = vmatpush1.bf16.msra.mxu0 %v5142
    %5302 = vmatprep.subr.bf16.mxu0 %v5146
    %5303 = vmatpush1.bf16.msra.mxu0 %v5145
    %5304 = vmatprep.subr.bf16.mxu0 %v5149
    %5305 = vmatpush1.bf16.msra.mxu0 %v5148
    %5306 = vmatprep.subr.bf16.mxu0 %v5152
    %5307 = vmatpush1.bf16.msra.mxu0 %v5151
    %5308 = vmatprep.subr.bf16.mxu0 %v5155
    %5309 = vmatpush1.bf16.msra.mxu0 %v5154
    %5310 = vmatprep.subr.bf16.mxu0 %v5158
    %5311 = vmatpush1.bf16.msra.mxu0 %v5157
    %5312 = vmatprep.mubr.bf16.mxu0 %v4045
    %5313 = vmatmul.mubr.bf16.gmra.mrb[0].mxu0 %v4042
    %v5314 = vpop.f32.mrb[0].mxu0
    %v5315 = vadd.f32 0.0, %v5314
    %v5316 = vpop.f32.mrb[0].mxu0
    %v5317 = vadd.f32 0.0, %v5316
    %v5318 = vpop.f32.mrb[0].mxu0
    %v5319 = vadd.f32 0.0, %v5318
    %v5320 = vpop.f32.mrb[0].mxu0
    %v5321 = vadd.f32 0.0, %v5320
    %5322 = vmatprep.mubr.bf16.mxu0 %v4044
    %5323 = vmatmul.mubr.bf16.gmra.mrb[0].mxu0 %v4041
    %v5324 = vpop.f32.mrb[0].mxu0
    %v5325 = vadd.f32 0.0, %v5324
    %v5326 = vpop.f32.mrb[0].mxu0
    %v5327 = vadd.f32 0.0, %v5326
    %v5328 = vpop.f32.mrb[0].mxu0
    %v5329 = vpop.f32.mrb[0].mxu0
    %5330 = vdwg.mxu0
    %5331 = vmatprep.subr.bf16.mxu0 %v5161
    %5332 = vmatpush1.bf16.msra.mxu0 %v5160
    %5333 = vmatprep.subr.bf16.mxu0 %v5164
    %5334 = vmatpush1.bf16.msra.mxu0 %v5163
    %5335 = vmatprep.subr.bf16.mxu0 %v5167
    %5336 = vmatpush1.bf16.msra.mxu0 %v5166
    %5337 = vmatprep.subr.bf16.mxu0 %v5170
    %5338 = vmatpush1.bf16.msra.mxu0 %v5169
    %5339 = vmatprep.subr.bf16.mxu0 %v5173
    %5340 = vmatpush1.bf16.msra.mxu0 %v5172
    %5341 = vmatprep.subr.bf16.mxu0 %v5176
    %5342 = vmatpush1.bf16.msra.mxu0 %v5175
    %5343 = vmatprep.subr.bf16.mxu0 %v5179
    %5344 = vmatpush1.bf16.msra.mxu0 %v5178
    %5345 = vmatprep.subr.bf16.mxu0 %v5182
    %5346 = vmatpush1.bf16.msra.mxu0 %v5181
    %5347 = vmatprep.subr.bf16.mxu0 %v5185
    %5348 = vmatpush1.bf16.msra.mxu0 %v5184
    %5349 = vmatprep.subr.bf16.mxu0 %v5188
    %5350 = vmatpush1.bf16.msra.mxu0 %v5187
    %5351 = vmatprep.subr.bf16.mxu0 %v5191
    %5352 = vmatpush1.bf16.msra.mxu0 %v5190
    %5353 = vmatprep.subr.bf16.mxu0 %v5194
    %5354 = vmatpush1.bf16.msra.mxu0 %v5193
    %5355 = vmatprep.subr.bf16.mxu0 0
    %5356 = vmatpush1.bf16.msra.mxu0 0
    %5357 = vmatprep.subr.bf16.mxu0 0
    %5358 = vmatpush1.bf16.msra.mxu0 0
    %5359 = vmatprep.subr.bf16.mxu0 0
    %5360 = vmatpush1.bf16.msra.mxu0 0
    %5361 = vmatprep.subr.bf16.mxu0 0
    %5362 = vmatpush1.bf16.msra.mxu0 0
    %5363 = vmatprep.mubr.bf16.mxu0 %v4507
    %5364 = vmatmul.mubr.bf16.gmra.mrb[0].mxu0 %v4048
    %v5365 = vpop.f32.mrb[0].mxu0
    %v5366 = vadd.f32 %v5315, %v5365
    %v5367 = vpop.f32.mrb[0].mxu0
    %v5368 = vadd.f32 %v5317, %v5367
    %v5369 = vpop.f32.mrb[0].mxu0
    %v5370 = vadd.f32 %v5319, %v5369
    %v5371 = vpop.f32.mrb[0].mxu0
    %v5372 = vadd.f32 %v5321, %v5371
    %5373 = vmatprep.mubr.bf16.mxu0 %v4510
    %5374 = vmatmul.mubr.bf16.gmra.mrb[0].mxu0 %v4047
    %v5375 = vpop.f32.mrb[0].mxu0
    %v5376 = vadd.f32 %v5325, %v5375
    %v5377 = vpop.f32.mrb[0].mxu0
    %v5378 = vadd.f32 %v5327, %v5377
    %v5379 = vpop.f32.mrb[0].mxu0
    %v5380 = vpop.f32.mrb[0].mxu0
    %5381 = vdwg.mxu0
    %5382 = vmatprep.subr.bf16.mxu0 0
    %5383 = vmatpush1.bf16.msra.mxu0 %v5114
    %5384 = vmatprep.subr.bf16.mxu0 0
    %5385 = vmatpush1.bf16.msra.mxu0 %v5117
    %5386 = vmatprep.subr.bf16.mxu0 0
    %5387 = vmatpush1.bf16.msra.mxu0 %v5120
    %5388 = vmatprep.subr.bf16.mxu0 0
    %5389 = vmatpush1.bf16.msra.mxu0 %v5123
    %5390 = vmatprep.subr.bf16.mxu0 0
    %5391 = vmatpush1.bf16.msra.mxu0 %v5126
    %5392 = vmatprep.subr.bf16.mxu0 0
    %5393 = vmatpush1.bf16.msra.mxu0 %v5129
    %5394 = vmatprep.subr.bf16.mxu0 0
    %5395 = vmatpush1.bf16.msra.mxu0 %v5132
    %5396 = vmatprep.subr.bf16.mxu0 0
    %5397 = vmatpush1.bf16.msra.mxu0 %v5135
    %5398 = vmatprep.subr.bf16.mxu0 0
    %5399 = vmatpush1.bf16.msra.mxu0 %v5138
    %5400 = vmatprep.subr.bf16.mxu0 0
    %5401 = vmatpush1.bf16.msra.mxu0 %v5141
    %5402 = vmatprep.subr.bf16.mxu0 0
    %5403 = vmatpush1.bf16.msra.mxu0 %v5144
    %5404 = vmatprep.subr.bf16.mxu0 0
    %5405 = vmatpush1.bf16.msra.mxu0 %v5147
    %5406 = vmatprep.subr.bf16.mxu0 0
    %5407 = vmatpush1.bf16.msra.mxu0 %v5150
    %5408 = vmatprep.subr.bf16.mxu0 0
    %5409 = vmatpush1.bf16.msra.mxu0 %v5153
    %5410 = vmatprep.subr.bf16.mxu0 0
    %5411 = vmatpush1.bf16.msra.mxu0 %v5156
    %5412 = vmatprep.subr.bf16.mxu0 0
    %5413 = vmatpush1.bf16.msra.mxu0 %v5159
    %5414 = vmatprep.mubr.bf16.mxu0 %v4045
    %5415 = vmatmul.mubr.bf16.gmra.mrb[0].mxu0 %v4042
    %v5416 = vpop.f32.mrb[0].mxu0
    %v5417 = vadd.f32 0.0, %v5416
    %v5418 = vpop.f32.mrb[0].mxu0
    %v5419 = vpop.f32.mrb[0].mxu0
    %v5420 = vadd.f32 0.0, %v5419
    %v5421 = vpop.f32.mrb[0].mxu0
    %5422 = vmatprep.mubr.bf16.mxu0 %v4044
    %5423 = vmatmul.mubr.bf16.gmra.mrb[0].mxu0 %v4041
    %v5424 = vpop.f32.mrb[0].mxu0
    %v5425 = vadd.f32 0.0, %v5424
    %v5426 = vpop.f32.mrb[0].mxu0
    %v5427 = vpop.f32.mrb[0].mxu0
    %v5428 = vpop.f32.mrb[0].mxu0
    %5429 = vdwg.mxu0
    %5430 = vmatprep.subr.bf16.mxu0 0
    %5431 = vmatpush1.bf16.msra.mxu0 %v5162
    %5432 = vmatprep.subr.bf16.mxu0 0
    %5433 = vmatpush1.bf16.msra.mxu0 %v5165
    %5434 = vmatprep.subr.bf16.mxu0 0
    %5435 = vmatpush1.bf16.msra.mxu0 %v5168
    %5436 = vmatprep.subr.bf16.mxu0 0
    %5437 = vmatpush1.bf16.msra.mxu0 %v5171
    %5438 = vmatprep.subr.bf16.mxu0 0
    %5439 = vmatpush1.bf16.msra.mxu0 %v5174
    %5440 = vmatprep.subr.bf16.mxu0 0
    %5441 = vmatpush1.bf16.msra.mxu0 %v5177
    %5442 = vmatprep.subr.bf16.mxu0 0
    %5443 = vmatpush1.bf16.msra.mxu0 %v5180
    %5444 = vmatprep.subr.bf16.mxu0 0
    %5445 = vmatpush1.bf16.msra.mxu0 %v5183
    %5446 = vmatprep.subr.bf16.mxu0 0
    %5447 = vmatpush1.bf16.msra.mxu0 %v5186
    %5448 = vmatprep.subr.bf16.mxu0 0
    %5449 = vmatpush1.bf16.msra.mxu0 %v5189
    %5450 = vmatprep.subr.bf16.mxu0 0
    %5451 = vmatpush1.bf16.msra.mxu0 %v5192
    %5452 = vmatprep.subr.bf16.mxu0 0
    %5453 = vmatpush1.bf16.msra.mxu0 %v5195
    %5454 = vmatprep.subr.bf16.mxu0 0
    %5455 = vmatpush1.bf16.msra.mxu0 0
    %5456 = vmatprep.subr.bf16.mxu0 0
    %5457 = vmatpush1.bf16.msra.mxu0 0
    %5458 = vmatprep.subr.bf16.mxu0 0
    %5459 = vmatpush1.bf16.msra.mxu0 0
    %5460 = vmatprep.subr.bf16.mxu0 0
    %5461 = vmatpush1.bf16.msra.mxu0 0
    %5462 = vmatprep.mubr.bf16.mxu0 %v4507
    %5463 = vmatmul.mubr.bf16.gmra.mrb[0].mxu0 %v4048
    %v5464 = vpop.f32.mrb[0].mxu0
    %v5465 = vadd.f32 %v5417, %v5464
    %v5466 = vpop.f32.mrb[0].mxu0
    %v5467 = vpop.f32.mrb[0].mxu0
    %v5468 = vadd.f32 %v5420, %v5467
    %v5469 = vpop.f32.mrb[0].mxu0
    %5470 = vmatprep.mubr.bf16.mxu0 %v4510
    %5471 = vmatmul.mubr.bf16.gmra.mrb[0].mxu0 %v4047
    %v5472 = vpop.f32.mrb[0].mxu0
    %v5473 = vadd.f32 %v5425, %v5472
    %v5474 = vpop.f32.mrb[0].mxu0
    %v5475 = vpop.f32.mrb[0].mxu0
    %v5476 = vpop.f32.mrb[0].mxu0
    %5477 = vdwg.mxu0
    %v5478 = vadd.f32 %v3814, %v5366
    %v5479 = vadd.f32 %v3816, %v5368
    %v5480 = vadd.f32 %v3913, %v5465
    %v5481 = vadd.f32 %v3818, %v5370
    %v5482 = vadd.f32 %v3820, %v5372
    %v5483 = vadd.f32 %v3916, %v5468
    %v5484 = vadd.f32 %v3824, %v5376
    %v5485 = vadd.f32 %v3826, %v5378
    %v5486 = vadd.f32 %v3921, %v5473
    %v5487 = vmax.f32 %v4710, %v5478
    %v5488 = vmax.f32 %v4711, %v5479
    %v5489 = vmax.f32 %v4712, %v5480
    %v5490 = vmax.f32 %v4713, %v5481
    %v5491 = vmax.f32 %v4714, %v5482
    %v5492 = vmax.f32 %v4715, %v5483
    %v5493 = vmax.f32 %v4716, %v5484
    %v5494 = vmax.f32 %v4717, %v5485
    %v5495 = vmax.f32 %v4718, %v5486
    %v5496 = vld [vmem:[#allocation11] sm:$0x7]
    %v5498 = vlaneseq
    %v5499 = vshrl.u32 %v5498, 7
    %v5500 = vsub.s32 0, %v5499
    %v5501 = vrot.slane %v5496, %v5500
    %v5502 = vlaneseq
    %v5503 = vshrl.u32 %v5502, 7
    %v5504 = vsub.s32 1, %v5503
    %v5505 = vrot.slane %v5496, %v5504
    %v5506 = vlaneseq
    %v5507 = vshrl.u32 %v5506, 7
    %v5508 = vsub.s32 2, %v5507
    %v5509 = vrot.slane %v5496, %v5508
    %v5513 = vadd.f32 %v5487, %v5501
    %v5514 = vadd.f32 %v5488, %v5505
    %v5515 = vadd.f32 %v5489, %v5509
    %v5516 = vadd.f32 %v5490, %v5501
    %v5517 = vadd.f32 %v5491, %v5505
    %v5518 = vadd.f32 %v5492, %v5509
    %v5519 = vadd.f32 %v5493, %v5501
    %v5520 = vadd.f32 %v5494, %v5505
    %v5521 = vadd.f32 %v5495, %v5509
    %v5522 = vmax.f32 %v5513, 0.0
    %v5523 = vmax.f32 %v5514, 0.0
    %v5524 = vmax.f32 %v5515, 0.0
    %v5525 = vmax.f32 %v5516, 0.0
    %v5526 = vmax.f32 %v5517, 0.0
    %v5527 = vmax.f32 %v5518, 0.0
    %v5528 = vmax.f32 %v5519, 0.0
    %v5529 = vmax.f32 %v5520, 0.0
    %v5530 = vmax.f32 %v5521, 0.0
    %v5534 = vrot.slane %v5522, 2
    %v5535 = vrot.slane %v5523, 2
    %v5536 = vrot.slane %v5524, 2
    %v5540 = vmax.f32 %v5522, %v5534
    %v5541 = vmax.f32 %v5523, %v5535
    %v5542 = vmax.f32 %v5524, %v5536
    %v5543 = vpack.c.bf16 %v5540, %v5540
    %v5544 = vpack.c.bf16 %v5541, %v5541
    %v5545 = vpack.c.bf16 %v5542, %v5542
    %v5546 = vld [vmem:[#allocation13] sm:$0xf]
    %v5547 = vld [vmem:[#allocation13 + $0x4] sm:$0xf]
    %v5548 = vld [vmem:[#allocation13 + $0x8] sm:$0xf]
    %v5549 = vld [vmem:[#allocation13 + $0xc] sm:$0xf]
    %v5550 = vld [vmem:[#allocation13 + $0x10] sm:$0xf]
    %v5551 = vld [vmem:[#allocation13 + $0x14] sm:$0xf]
    %v5552 = vld [vmem:[#allocation13 + $0x18] sm:$0xf]
    %v5553 = vld [vmem:[#allocation13 + $0x1c] sm:$0xf]
    %v5554 = vld [vmem:[#allocation13 + $0x20] sm:$0xf]
    %v5555 = vld [vmem:[#allocation13 + $0x24] sm:$0xf]
    %v5556 = vld [vmem:[#allocation13 + $0x28] sm:$0xf]
    %v5557 = vld [vmem:[#allocation13 + $0x2c] sm:$0xf]
    %v5558 = vld [vmem:[#allocation13 + $0x30] sm:$0xf]
    %v5559 = vld [vmem:[#allocation13 + $0x34] sm:$0xf]
    %v5560 = vld [vmem:[#allocation13 + $0x38] sm:$0xf]
    %v5561 = vld [vmem:[#allocation13 + $0x3c] sm:$0xf]
    %v5562 = vld [vmem:[#allocation13 + $0x40] sm:$0xf]
    %v5563 = vld [vmem:[#allocation13 + $0x44] sm:$0xf]
    %v5564 = vld [vmem:[#allocation13 + $0x48] sm:$0xf]
    %v5565 = vld [vmem:[#allocation13 + $0x4c] sm:$0xf]
    %v5566 = vld [vmem:[#allocation13 + $0x50] sm:$0xf]
    %v5567 = vld [vmem:[#allocation13 + $0x54] sm:$0xf]
    %v5568 = vld [vmem:[#allocation13 + $0x58] sm:$0xf]
    %v5569 = vld [vmem:[#allocation13 + $0x5c] sm:$0xf]
    %v5570 = vld [vmem:[#allocation13 + $0x60] sm:$0xf]
    %v5571 = vld [vmem:[#allocation13 + $0x64] sm:$0xf]
    %v5572 = vld [vmem:[#allocation13 + $0x68] sm:$0xf]
    %v5573 = vld [vmem:[#allocation13 + $0x6c] sm:$0xf]
    %v5574 = vld [vmem:[#allocation13 + $0x70] sm:$0xf]
    %v5575 = vld [vmem:[#allocation13 + $0x74] sm:$0xf]
    %v5576 = vld [vmem:[#allocation13 + $0x78] sm:$0xf]
    %v5577 = vld [vmem:[#allocation13 + $0x7c] sm:$0xf]
    %v5578 = vld [vmem:[#allocation13 + $0x80] sm:$0xf]
    %v5579 = vld [vmem:[#allocation13 + $0x84] sm:$0xf]
    %v5580 = vld [vmem:[#allocation13 + $0x88] sm:$0xf]
    %v5581 = vld [vmem:[#allocation13 + $0x8c] sm:$0xf]
    %v5582 = vld [vmem:[#allocation13 + $0x90] sm:$0xf]
    %v5583 = vld [vmem:[#allocation13 + $0x94] sm:$0xf]
    %v5584 = vld [vmem:[#allocation13 + $0x98] sm:$0xf]
    %v5585 = vld [vmem:[#allocation13 + $0x9c] sm:$0xf]
    %v5586 = vld [vmem:[#allocation13 + $0xa0] sm:$0xf]
    %v5587 = vld [vmem:[#allocation13 + $0xa4] sm:$0xf]
    %v5588 = vld [vmem:[#allocation13 + $0xa8] sm:$0xf]
    %v5589 = vld [vmem:[#allocation13 + $0xac] sm:$0xf]
    %v5590 = vld [vmem:[#allocation13 + $0xb0] sm:$0xf]
    %v5591 = vld [vmem:[#allocation13 + $0xb4] sm:$0xf]
    %v5592 = vld [vmem:[#allocation13 + $0xb8] sm:$0xf]
    %v5593 = vld [vmem:[#allocation13 + $0xbc] sm:$0xf]
    %s5594 = scalar_lea.vmem [#allocation13], 192
    %v5595 = vld [vmem:[%s5594] sm:$0xf]
    %v5596 = vld [vmem:[%s5594 + $0x4] sm:$0xf]
    %v5597 = vld [vmem:[%s5594 + $0x8] sm:$0xf]
    %v5598 = vld [vmem:[%s5594 + $0xc] sm:$0xf]
    %v5599 = vld [vmem:[%s5594 + $0x10] sm:$0xf]
    %v5600 = vld [vmem:[%s5594 + $0x14] sm:$0xf]
    %v5601 = vld [vmem:[%s5594 + $0x18] sm:$0xf]
    %v5602 = vld [vmem:[%s5594 + $0x1c] sm:$0xf]
    %v5603 = vld [vmem:[%s5594 + $0x20] sm:$0xf]
    %v5604 = vld [vmem:[%s5594 + $0x24] sm:$0xf]
    %v5605 = vld [vmem:[%s5594 + $0x28] sm:$0xf]
    %v5606 = vld [vmem:[%s5594 + $0x2c] sm:$0xf]
    %v5607 = vld [vmem:[%s5594 + $0x30] sm:$0xf]
    %v5608 = vld [vmem:[%s5594 + $0x34] sm:$0xf]
    %v5609 = vld [vmem:[%s5594 + $0x38] sm:$0xf]
    %v5610 = vld [vmem:[%s5594 + $0x3c] sm:$0xf]
    %v5611 = vld [vmem:[%s5594 + $0x40] sm:$0xf]
    %v5612 = vld [vmem:[%s5594 + $0x44] sm:$0xf]
    %v5613 = vld [vmem:[%s5594 + $0x48] sm:$0xf]
    %v5614 = vld [vmem:[%s5594 + $0x4c] sm:$0xf]
    %v5615 = vld [vmem:[%s5594 + $0x50] sm:$0xf]
    %v5616 = vld [vmem:[%s5594 + $0x54] sm:$0xf]
    %v5617 = vld [vmem:[%s5594 + $0x58] sm:$0xf]
    %v5618 = vld [vmem:[%s5594 + $0x5c] sm:$0xf]
    %v5619 = vld [vmem:[%s5594 + $0x60] sm:$0xf]
    %v5620 = vld [vmem:[%s5594 + $0x64] sm:$0xf]
    %v5621 = vld [vmem:[%s5594 + $0x68] sm:$0xf]
    %v5622 = vld [vmem:[%s5594 + $0x6c] sm:$0xf]
    %v5623 = vld [vmem:[%s5594 + $0x70] sm:$0xf]
    %v5624 = vld [vmem:[%s5594 + $0x74] sm:$0xf]
    %v5625 = vld [vmem:[%s5594 + $0x78] sm:$0xf]
    %v5626 = vld [vmem:[%s5594 + $0x7c] sm:$0xf]
    %v5627 = vld [vmem:[%s5594 + $0x80] sm:$0xf]
    %v5628 = vld [vmem:[%s5594 + $0x84] sm:$0xf]
    %v5629 = vld [vmem:[%s5594 + $0x88] sm:$0xf]
    %v5630 = vld [vmem:[%s5594 + $0x8c] sm:$0xf]
    %v5631 = vld [vmem:[%s5594 + $0x90] sm:$0xf]
    %v5632 = vld [vmem:[%s5594 + $0x94] sm:$0xf]
    %v5633 = vld [vmem:[%s5594 + $0x98] sm:$0xf]
    %v5634 = vld [vmem:[%s5594 + $0x9c] sm:$0xf]
    %v5635 = vld [vmem:[%s5594 + $0xa0] sm:$0xf]
    %v5636 = vld [vmem:[%s5594 + $0xa4] sm:$0xf]
    %v5637 = vld [vmem:[%s5594 + $0xa8] sm:$0xf]
    %v5638 = vld [vmem:[%s5594 + $0xac] sm:$0xf]
    %v5639 = vld [vmem:[%s5594 + $0xb0] sm:$0xf]
    %v5640 = vld [vmem:[%s5594 + $0xb4] sm:$0xf]
    %v5641 = vld [vmem:[%s5594 + $0xb8] sm:$0xf]
    %v5642 = vld [vmem:[%s5594 + $0xbc] sm:$0xf]
    %v5646 = vrot.slane %v5543, 2
    %v5647 = vrot.slane %v5544, 2
    %v5648 = vrot.slane %v5545, 2
    %v5700 = vunpack.c.l.b16 %v5595
    %v5701 = vunpack.c.l.b16 %v5596
    %v5702 = vunpack.c.l.b16 %v5597
    %v5703 = vunpack.c.l.b16 %v5598
    %v5704 = vunpack.c.l.b16 %v5599
    %v5705 = vunpack.c.l.b16 %v5600
    %v5706 = vunpack.c.l.b16 %v5601
    %v5707 = vunpack.c.l.b16 %v5602
    %v5708 = vunpack.c.l.b16 %v5603
    %v5709 = vunpack.c.l.b16 %v5604
    %v5710 = vunpack.c.l.b16 %v5605
    %v5711 = vunpack.c.l.b16 %v5606
    %v5712 = vunpack.c.l.b16 %v5607
    %v5713 = vunpack.c.l.b16 %v5608
    %v5714 = vunpack.c.l.b16 %v5609
    %v5715 = vunpack.c.l.b16 %v5610
    %v5716 = vunpack.c.l.b16 %v5611
    %v5717 = vunpack.c.l.b16 %v5612
    %v5718 = vunpack.c.l.b16 %v5613
    %v5719 = vunpack.c.l.b16 %v5614
    %v5720 = vunpack.c.l.b16 %v5615
    %v5721 = vunpack.c.l.b16 %v5616
    %v5722 = vunpack.c.l.b16 %v5617
    %v5723 = vunpack.c.l.b16 %v5618
    %v5724 = vunpack.c.l.b16 %v5619
    %v5725 = vunpack.c.l.b16 %v5620
    %v5726 = vunpack.c.l.b16 %v5621
    %v5727 = vunpack.c.l.b16 %v5622
    %v5728 = vunpack.c.l.b16 %v5623
    %v5729 = vunpack.c.l.b16 %v5624
    %v5730 = vunpack.c.l.b16 %v5625
    %v5731 = vunpack.c.l.b16 %v5626
    %v5732 = vunpack.c.l.b16 %v5627
    %v5733 = vunpack.c.l.b16 %v5628
    %v5734 = vunpack.c.l.b16 %v5629
    %v5735 = vunpack.c.l.b16 %v5630
    %v5736 = vunpack.c.l.b16 %v5631
    %v5737 = vunpack.c.l.b16 %v5632
    %v5738 = vunpack.c.l.b16 %v5633
    %v5739 = vunpack.c.l.b16 %v5634
    %v5740 = vunpack.c.l.b16 %v5635
    %v5741 = vunpack.c.l.b16 %v5636
    %v5742 = vunpack.c.l.b16 %v5637
    %v5743 = vunpack.c.l.b16 %v5638
    %v5744 = vunpack.c.l.b16 %v5639
    %v5745 = vunpack.c.l.b16 %v5640
    %v5746 = vunpack.c.l.b16 %v5641
    %v5747 = vunpack.c.l.b16 %v5642
    %v5748 = vpack.c.b16 %v5701, %v5700
    %v5749 = vpack.c.b16 %v5703, %v5702
    %v5750 = vpack.c.b16 %v5705, %v5704
    %v5751 = vpack.c.b16 %v5707, %v5706
    %v5752 = vpack.c.b16 %v5709, %v5708
    %v5753 = vpack.c.b16 %v5711, %v5710
    %v5754 = vpack.c.b16 %v5713, %v5712
    %v5755 = vpack.c.b16 %v5715, %v5714
    %v5756 = vpack.c.b16 %v5717, %v5716
    %v5757 = vpack.c.b16 %v5719, %v5718
    %v5758 = vpack.c.b16 %v5721, %v5720
    %v5759 = vpack.c.b16 %v5723, %v5722
    %v5760 = vpack.c.b16 %v5725, %v5724
    %v5761 = vpack.c.b16 %v5727, %v5726
    %v5762 = vpack.c.b16 %v5729, %v5728
    %v5763 = vpack.c.b16 %v5731, %v5730
    %v5764 = vpack.c.b16 %v5733, %v5732
    %v5765 = vpack.c.b16 %v5735, %v5734
    %v5766 = vpack.c.b16 %v5737, %v5736
    %v5767 = vpack.c.b16 %v5739, %v5738
    %v5768 = vpack.c.b16 %v5741, %v5740
    %v5769 = vpack.c.b16 %v5743, %v5742
    %v5770 = vpack.c.b16 %v5745, %v5744
    %v5771 = vpack.c.b16 %v5747, %v5746
    %5796 = vmatprep.subr.bf16.mxu0 0
    %5797 = vmatpush1.bf16.msra.mxu0 %v5748
    %5798 = vmatprep.subr.bf16.mxu0 0
    %5799 = vmatpush1.bf16.msra.mxu0 %v5749
    %5800 = vmatprep.subr.bf16.mxu0 0
    %5801 = vmatpush1.bf16.msra.mxu0 %v5750
    %5802 = vmatprep.subr.bf16.mxu0 0
    %5803 = vmatpush1.bf16.msra.mxu0 %v5751
    %5804 = vmatprep.subr.bf16.mxu0 0
    %5805 = vmatpush1.bf16.msra.mxu0 %v5752
    %5806 = vmatprep.subr.bf16.mxu0 0
    %5807 = vmatpush1.bf16.msra.mxu0 %v5753
    %5808 = vmatprep.subr.bf16.mxu0 0
    %5809 = vmatpush1.bf16.msra.mxu0 %v5754
    %5810 = vmatprep.subr.bf16.mxu0 0
    %5811 = vmatpush1.bf16.msra.mxu0 %v5755
    %5812 = vmatprep.subr.bf16.mxu0 0
    %5813 = vmatpush1.bf16.msra.mxu0 %v5756
    %5814 = vmatprep.subr.bf16.mxu0 0
    %5815 = vmatpush1.bf16.msra.mxu0 %v5757
    %5816 = vmatprep.subr.bf16.mxu0 0
    %5817 = vmatpush1.bf16.msra.mxu0 %v5758
    %5818 = vmatprep.subr.bf16.mxu0 0
    %5819 = vmatpush1.bf16.msra.mxu0 %v5759
    %5820 = vmatprep.subr.bf16.mxu0 0
    %5821 = vmatpush1.bf16.msra.mxu0 %v5760
    %5822 = vmatprep.subr.bf16.mxu0 0
    %5823 = vmatpush1.bf16.msra.mxu0 %v5761
    %5824 = vmatprep.subr.bf16.mxu0 0
    %5825 = vmatpush1.bf16.msra.mxu0 %v5762
    %5826 = vmatprep.subr.bf16.mxu0 0
    %5827 = vmatpush1.bf16.msra.mxu0 %v5763
    %5828 = vmatprep.mubr.bf16.mxu0 %v5647
    %5829 = vmatmul.mubr.bf16.gmra.mrb[0].mxu0 %v5646
    %v5830 = vpop.f32.mrb[0].mxu0
    %v5831 = vadd.f32 0.0, %v5830
    %v5832 = vpop.f32.mrb[0].mxu0
    %v5833 = vpop.f32.mrb[0].mxu0
    %v5834 = vpop.f32.mrb[0].mxu0
    %5835 = vdwg.mxu0
    %5836 = vmatprep.subr.bf16.mxu0 0
    %5837 = vmatpush1.bf16.msra.mxu0 %v5764
    %5838 = vmatprep.subr.bf16.mxu0 0
    %5839 = vmatpush1.bf16.msra.mxu0 %v5765
    %5840 = vmatprep.subr.bf16.mxu0 0
    %5841 = vmatpush1.bf16.msra.mxu0 %v5766
    %5842 = vmatprep.subr.bf16.mxu0 0
    %5843 = vmatpush1.bf16.msra.mxu0 %v5767
    %5844 = vmatprep.subr.bf16.mxu0 0
    %5845 = vmatpush1.bf16.msra.mxu0 %v5768
    %5846 = vmatprep.subr.bf16.mxu0 0
    %5847 = vmatpush1.bf16.msra.mxu0 %v5769
    %5848 = vmatprep.subr.bf16.mxu0 0
    %5849 = vmatpush1.bf16.msra.mxu0 %v5770
    %5850 = vmatprep.subr.bf16.mxu0 0
    %5851 = vmatpush1.bf16.msra.mxu0 %v5771
    %5852 = vmatprep.subr.bf16.mxu0 0
    %5853 = vmatpush1.bf16.msra.mxu0 0
    %5854 = vmatprep.subr.bf16.mxu0 0
    %5855 = vmatpush1.bf16.msra.mxu0 0
    %5856 = vmatprep.subr.bf16.mxu0 0
    %5857 = vmatpush1.bf16.msra.mxu0 0
    %5858 = vmatprep.subr.bf16.mxu0 0
    %5859 = vmatpush1.bf16.msra.mxu0 0
    %5860 = vmatprep.subr.bf16.mxu0 0
    %5861 = vmatpush1.bf16.msra.mxu0 0
    %5862 = vmatprep.subr.bf16.mxu0 0
    %5863 = vmatpush1.bf16.msra.mxu0 0
    %5864 = vmatprep.subr.bf16.mxu0 0
    %5865 = vmatpush1.bf16.msra.mxu0 0
    %5866 = vmatprep.subr.bf16.mxu0 0
    %5867 = vmatpush1.bf16.msra.mxu0 0
    %5868 = vmatprep.mubr.bf16.mxu0 0
    %5869 = vmatmul.mubr.bf16.gmra.mrb[0].mxu0 %v5648
    %v5870 = vpop.f32.mrb[0].mxu0
    %v5871 = vadd.f32 %v5831, %v5870
    %v5872 = vpop.f32.mrb[0].mxu0
    %v5873 = vpop.f32.mrb[0].mxu0
    %v5874 = vpop.f32.mrb[0].mxu0
    %5875 = vdwg.mxu0
    %v5924 = vunpack.c.l.b16 %v5546
    %v5925 = vunpack.c.l.b16 %v5547
    %v5926 = vunpack.c.l.b16 %v5548
    %v5927 = vunpack.c.l.b16 %v5549
    %v5928 = vunpack.c.l.b16 %v5550
    %v5929 = vunpack.c.l.b16 %v5551
    %v5930 = vunpack.c.l.b16 %v5552
    %v5931 = vunpack.c.l.b16 %v5553
    %v5932 = vunpack.c.l.b16 %v5554
    %v5933 = vunpack.c.l.b16 %v5555
    %v5934 = vunpack.c.l.b16 %v5556
    %v5935 = vunpack.c.l.b16 %v5557
    %v5936 = vunpack.c.l.b16 %v5558
    %v5937 = vunpack.c.l.b16 %v5559
    %v5938 = vunpack.c.l.b16 %v5560
    %v5939 = vunpack.c.l.b16 %v5561
    %v5940 = vunpack.c.l.b16 %v5562
    %v5941 = vunpack.c.l.b16 %v5563
    %v5942 = vunpack.c.l.b16 %v5564
    %v5943 = vunpack.c.l.b16 %v5565
    %v5944 = vunpack.c.l.b16 %v5566
    %v5945 = vunpack.c.l.b16 %v5567
    %v5946 = vunpack.c.l.b16 %v5568
    %v5947 = vunpack.c.l.b16 %v5569
    %v5948 = vunpack.c.l.b16 %v5570
    %v5949 = vunpack.c.l.b16 %v5571
    %v5950 = vunpack.c.l.b16 %v5572
    %v5951 = vunpack.c.l.b16 %v5573
    %v5952 = vunpack.c.l.b16 %v5574
    %v5953 = vunpack.c.l.b16 %v5575
    %v5954 = vunpack.c.l.b16 %v5576
    %v5955 = vunpack.c.l.b16 %v5577
    %v5956 = vunpack.c.l.b16 %v5578
    %v5957 = vunpack.c.l.b16 %v5579
    %v5958 = vunpack.c.l.b16 %v5580
    %v5959 = vunpack.c.l.b16 %v5581
    %v5960 = vunpack.c.l.b16 %v5582
    %v5961 = vunpack.c.l.b16 %v5583
    %v5962 = vunpack.c.l.b16 %v5584
    %v5963 = vunpack.c.l.b16 %v5585
    %v5964 = vunpack.c.l.b16 %v5586
    %v5965 = vunpack.c.l.b16 %v5587
    %v5966 = vunpack.c.l.b16 %v5588
    %v5967 = vunpack.c.l.b16 %v5589
    %v5968 = vunpack.c.l.b16 %v5590
    %v5969 = vunpack.c.l.b16 %v5591
    %v5970 = vunpack.c.l.b16 %v5592
    %v5971 = vunpack.c.l.b16 %v5593
    %v5972 = vpack.c.b16 %v5925, %v5924
    %v5973 = vpack.c.b16 %v5927, %v5926
    %v5974 = vpack.c.b16 %v5929, %v5928
    %v5975 = vpack.c.b16 %v5931, %v5930
    %v5976 = vpack.c.b16 %v5933, %v5932
    %v5977 = vpack.c.b16 %v5935, %v5934
    %v5978 = vpack.c.b16 %v5937, %v5936
    %v5979 = vpack.c.b16 %v5939, %v5938
    %v5980 = vpack.c.b16 %v5941, %v5940
    %v5981 = vpack.c.b16 %v5943, %v5942
    %v5982 = vpack.c.b16 %v5945, %v5944
    %v5983 = vpack.c.b16 %v5947, %v5946
    %v5984 = vpack.c.b16 %v5949, %v5948
    %v5985 = vpack.c.b16 %v5951, %v5950
    %v5986 = vpack.c.b16 %v5953, %v5952
    %v5987 = vpack.c.b16 %v5955, %v5954
    %v5988 = vpack.c.b16 %v5957, %v5956
    %v5989 = vpack.c.b16 %v5959, %v5958
    %v5990 = vpack.c.b16 %v5961, %v5960
    %v5991 = vpack.c.b16 %v5963, %v5962
    %v5992 = vpack.c.b16 %v5965, %v5964
    %v5993 = vpack.c.b16 %v5967, %v5966
    %v5994 = vpack.c.b16 %v5969, %v5968
    %v5995 = vpack.c.b16 %v5971, %v5970
    %6020 = vmatprep.subr.bf16.mxu0 0
    %6021 = vmatpush1.bf16.msra.mxu0 %v5972
    %6022 = vmatprep.subr.bf16.mxu0 0
    %6023 = vmatpush1.bf16.msra.mxu0 %v5973
    %6024 = vmatprep.subr.bf16.mxu0 0
    %6025 = vmatpush1.bf16.msra.mxu0 %v5974
    %6026 = vmatprep.subr.bf16.mxu0 0
    %6027 = vmatpush1.bf16.msra.mxu0 %v5975
    %6028 = vmatprep.subr.bf16.mxu0 0
    %6029 = vmatpush1.bf16.msra.mxu0 %v5976
    %6030 = vmatprep.subr.bf16.mxu0 0
    %6031 = vmatpush1.bf16.msra.mxu0 %v5977
    %6032 = vmatprep.subr.bf16.mxu0 0
    %6033 = vmatpush1.bf16.msra.mxu0 %v5978
    %6034 = vmatprep.subr.bf16.mxu0 0
    %6035 = vmatpush1.bf16.msra.mxu0 %v5979
    %6036 = vmatprep.subr.bf16.mxu0 0
    %6037 = vmatpush1.bf16.msra.mxu0 %v5980
    %6038 = vmatprep.subr.bf16.mxu0 0
    %6039 = vmatpush1.bf16.msra.mxu0 %v5981
    %6040 = vmatprep.subr.bf16.mxu0 0
    %6041 = vmatpush1.bf16.msra.mxu0 %v5982
    %6042 = vmatprep.subr.bf16.mxu0 0
    %6043 = vmatpush1.bf16.msra.mxu0 %v5983
    %6044 = vmatprep.subr.bf16.mxu0 0
    %6045 = vmatpush1.bf16.msra.mxu0 %v5984
    %6046 = vmatprep.subr.bf16.mxu0 0
    %6047 = vmatpush1.bf16.msra.mxu0 %v5985
    %6048 = vmatprep.subr.bf16.mxu0 0
    %6049 = vmatpush1.bf16.msra.mxu0 %v5986
    %6050 = vmatprep.subr.bf16.mxu0 0
    %6051 = vmatpush1.bf16.msra.mxu0 %v5987
    %6052 = vmatprep.mubr.bf16.mxu0 %v5544
    %6053 = vmatmul.mubr.bf16.gmra.mrb[0].mxu0 %v5543
    %v6054 = vpop.f32.mrb[0].mxu0
    %v6055 = vadd.f32 %v5871, %v6054
    %v6056 = vpop.f32.mrb[0].mxu0
    %v6057 = vpop.f32.mrb[0].mxu0
    %v6058 = vpop.f32.mrb[0].mxu0
    %6059 = vdwg.mxu0
    %6060 = vmatprep.subr.bf16.mxu0 0
    %6061 = vmatpush1.bf16.msra.mxu0 %v5988
    %6062 = vmatprep.subr.bf16.mxu0 0
    %6063 = vmatpush1.bf16.msra.mxu0 %v5989
    %6064 = vmatprep.subr.bf16.mxu0 0
    %6065 = vmatpush1.bf16.msra.mxu0 %v5990
    %6066 = vmatprep.subr.bf16.mxu0 0
    %6067 = vmatpush1.bf16.msra.mxu0 %v5991
    %6068 = vmatprep.subr.bf16.mxu0 0
    %6069 = vmatpush1.bf16.msra.mxu0 %v5992
    %6070 = vmatprep.subr.bf16.mxu0 0
    %6071 = vmatpush1.bf16.msra.mxu0 %v5993
    %6072 = vmatprep.subr.bf16.mxu0 0
    %6073 = vmatpush1.bf16.msra.mxu0 %v5994
    %6074 = vmatprep.subr.bf16.mxu0 0
    %6075 = vmatpush1.bf16.msra.mxu0 %v5995
    %6076 = vmatprep.subr.bf16.mxu0 0
    %6077 = vmatpush1.bf16.msra.mxu0 0
    %6078 = vmatprep.subr.bf16.mxu0 0
    %6079 = vmatpush1.bf16.msra.mxu0 0
    %6080 = vmatprep.subr.bf16.mxu0 0
    %6081 = vmatpush1.bf16.msra.mxu0 0
    %6082 = vmatprep.subr.bf16.mxu0 0
    %6083 = vmatpush1.bf16.msra.mxu0 0
    %6084 = vmatprep.subr.bf16.mxu0 0
    %6085 = vmatpush1.bf16.msra.mxu0 0
    %6086 = vmatprep.subr.bf16.mxu0 0
    %6087 = vmatpush1.bf16.msra.mxu0 0
    %6088 = vmatprep.subr.bf16.mxu0 0
    %6089 = vmatpush1.bf16.msra.mxu0 0
    %6090 = vmatprep.subr.bf16.mxu0 0
    %6091 = vmatpush1.bf16.msra.mxu0 0
    %6092 = vmatprep.mubr.bf16.mxu0 0
    %6093 = vmatmul.mubr.bf16.gmra.mrb[0].mxu0 %v5545
    %v6094 = vpop.f32.mrb[0].mxu0
    %v6095 = vadd.f32 %v6055, %v6094
    %v6096 = vpop.f32.mrb[0].mxu0
    %v6097 = vpop.f32.mrb[0].mxu0
    %v6098 = vpop.f32.mrb[0].mxu0
    %6099 = vdwg.mxu0
    %v6103 = vrot.slane %v5525, 2
    %v6104 = vrot.slane %v5526, 2
    %v6105 = vrot.slane %v5527, 2
    %v6109 = vmax.f32 %v5525, %v6103
    %v6110 = vmax.f32 %v5526, %v6104
    %v6111 = vmax.f32 %v5527, %v6105
    %v6112 = vpack.c.bf16 %v6109, %v6109
    %v6113 = vpack.c.bf16 %v6110, %v6110
    %v6114 = vpack.c.bf16 %v6111, %v6111
    %s6115 = scalar_lea.vmem [#allocation13], 384
    %v6116 = vld [vmem:[%s6115] sm:$0xf]
    %v6117 = vld [vmem:[%s6115 + $0x4] sm:$0xf]
    %v6118 = vld [vmem:[%s6115 + $0x8] sm:$0xf]
    %v6119 = vld [vmem:[%s6115 + $0xc] sm:$0xf]
    %v6120 = vld [vmem:[%s6115 + $0x10] sm:$0xf]
    %v6121 = vld [vmem:[%s6115 + $0x14] sm:$0xf]
    %v6122 = vld [vmem:[%s6115 + $0x18] sm:$0xf]
    %v6123 = vld [vmem:[%s6115 + $0x1c] sm:$0xf]
    %v6124 = vld [vmem:[%s6115 + $0x20] sm:$0xf]
    %v6125 = vld [vmem:[%s6115 + $0x24] sm:$0xf]
    %v6126 = vld [vmem:[%s6115 + $0x28] sm:$0xf]
    %v6127 = vld [vmem:[%s6115 + $0x2c] sm:$0xf]
    %v6128 = vld [vmem:[%s6115 + $0x30] sm:$0xf]
    %v6129 = vld [vmem:[%s6115 + $0x34] sm:$0xf]
    %v6130 = vld [vmem:[%s6115 + $0x38] sm:$0xf]
    %v6131 = vld [vmem:[%s6115 + $0x3c] sm:$0xf]
    %v6132 = vld [vmem:[%s6115 + $0x40] sm:$0xf]
    %v6133 = vld [vmem:[%s6115 + $0x44] sm:$0xf]
    %v6134 = vld [vmem:[%s6115 + $0x48] sm:$0xf]
    %v6135 = vld [vmem:[%s6115 + $0x4c] sm:$0xf]
    %v6136 = vld [vmem:[%s6115 + $0x50] sm:$0xf]
    %v6137 = vld [vmem:[%s6115 + $0x54] sm:$0xf]
    %v6138 = vld [vmem:[%s6115 + $0x58] sm:$0xf]
    %v6139 = vld [vmem:[%s6115 + $0x5c] sm:$0xf]
    %v6140 = vld [vmem:[%s6115 + $0x60] sm:$0xf]
    %v6141 = vld [vmem:[%s6115 + $0x64] sm:$0xf]
    %v6142 = vld [vmem:[%s6115 + $0x68] sm:$0xf]
    %v6143 = vld [vmem:[%s6115 + $0x6c] sm:$0xf]
    %v6144 = vld [vmem:[%s6115 + $0x70] sm:$0xf]
    %v6145 = vld [vmem:[%s6115 + $0x74] sm:$0xf]
    %v6146 = vld [vmem:[%s6115 + $0x78] sm:$0xf]
    %v6147 = vld [vmem:[%s6115 + $0x7c] sm:$0xf]
    %v6148 = vld [vmem:[%s6115 + $0x80] sm:$0xf]
    %v6149 = vld [vmem:[%s6115 + $0x84] sm:$0xf]
    %v6150 = vld [vmem:[%s6115 + $0x88] sm:$0xf]
    %v6151 = vld [vmem:[%s6115 + $0x8c] sm:$0xf]
    %v6152 = vld [vmem:[%s6115 + $0x90] sm:$0xf]
    %v6153 = vld [vmem:[%s6115 + $0x94] sm:$0xf]
    %v6154 = vld [vmem:[%s6115 + $0x98] sm:$0xf]
    %v6155 = vld [vmem:[%s6115 + $0x9c] sm:$0xf]
    %v6156 = vld [vmem:[%s6115 + $0xa0] sm:$0xf]
    %v6157 = vld [vmem:[%s6115 + $0xa4] sm:$0xf]
    %v6158 = vld [vmem:[%s6115 + $0xa8] sm:$0xf]
    %v6159 = vld [vmem:[%s6115 + $0xac] sm:$0xf]
    %v6160 = vld [vmem:[%s6115 + $0xb0] sm:$0xf]
    %v6161 = vld [vmem:[%s6115 + $0xb4] sm:$0xf]
    %v6162 = vld [vmem:[%s6115 + $0xb8] sm:$0xf]
    %v6163 = vld [vmem:[%s6115 + $0xbc] sm:$0xf]
    %v6212 = vunpack.c.l.b16 %v6116
    %v6213 = vunpack.c.l.b16 %v6117
    %v6214 = vunpack.c.l.b16 %v6118
    %v6215 = vunpack.c.l.b16 %v6119
    %v6216 = vunpack.c.l.b16 %v6120
    %v6217 = vunpack.c.l.b16 %v6121
    %v6218 = vunpack.c.l.b16 %v6122
    %v6219 = vunpack.c.l.b16 %v6123
    %v6220 = vunpack.c.l.b16 %v6124
    %v6221 = vunpack.c.l.b16 %v6125
    %v6222 = vunpack.c.l.b16 %v6126
    %v6223 = vunpack.c.l.b16 %v6127
    %v6224 = vunpack.c.l.b16 %v6128
    %v6225 = vunpack.c.l.b16 %v6129
    %v6226 = vunpack.c.l.b16 %v6130
    %v6227 = vunpack.c.l.b16 %v6131
    %v6228 = vunpack.c.l.b16 %v6132
    %v6229 = vunpack.c.l.b16 %v6133
    %v6230 = vunpack.c.l.b16 %v6134
    %v6231 = vunpack.c.l.b16 %v6135
    %v6232 = vunpack.c.l.b16 %v6136
    %v6233 = vunpack.c.l.b16 %v6137
    %v6234 = vunpack.c.l.b16 %v6138
    %v6235 = vunpack.c.l.b16 %v6139
    %v6236 = vunpack.c.l.b16 %v6140
    %v6237 = vunpack.c.l.b16 %v6141
    %v6238 = vunpack.c.l.b16 %v6142
    %v6239 = vunpack.c.l.b16 %v6143
    %v6240 = vunpack.c.l.b16 %v6144
    %v6241 = vunpack.c.l.b16 %v6145
    %v6242 = vunpack.c.l.b16 %v6146
    %v6243 = vunpack.c.l.b16 %v6147
    %v6244 = vunpack.c.l.b16 %v6148
    %v6245 = vunpack.c.l.b16 %v6149
    %v6246 = vunpack.c.l.b16 %v6150
    %v6247 = vunpack.c.l.b16 %v6151
    %v6248 = vunpack.c.l.b16 %v6152
    %v6249 = vunpack.c.l.b16 %v6153
    %v6250 = vunpack.c.l.b16 %v6154
    %v6251 = vunpack.c.l.b16 %v6155
    %v6252 = vunpack.c.l.b16 %v6156
    %v6253 = vunpack.c.l.b16 %v6157
    %v6254 = vunpack.c.l.b16 %v6158
    %v6255 = vunpack.c.l.b16 %v6159
    %v6256 = vunpack.c.l.b16 %v6160
    %v6257 = vunpack.c.l.b16 %v6161
    %v6258 = vunpack.c.l.b16 %v6162
    %v6259 = vunpack.c.l.b16 %v6163
    %v6260 = vpack.c.b16 %v6213, %v6212
    %v6261 = vpack.c.b16 %v6215, %v6214
    %v6262 = vpack.c.b16 %v6217, %v6216
    %v6263 = vpack.c.b16 %v6219, %v6218
    %v6264 = vpack.c.b16 %v6221, %v6220
    %v6265 = vpack.c.b16 %v6223, %v6222
    %v6266 = vpack.c.b16 %v6225, %v6224
    %v6267 = vpack.c.b16 %v6227, %v6226
    %v6268 = vpack.c.b16 %v6229, %v6228
    %v6269 = vpack.c.b16 %v6231, %v6230
    %v6270 = vpack.c.b16 %v6233, %v6232
    %v6271 = vpack.c.b16 %v6235, %v6234
    %v6272 = vpack.c.b16 %v6237, %v6236
    %v6273 = vpack.c.b16 %v6239, %v6238
    %v6274 = vpack.c.b16 %v6241, %v6240
    %v6275 = vpack.c.b16 %v6243, %v6242
    %v6276 = vpack.c.b16 %v6245, %v6244
    %v6277 = vpack.c.b16 %v6247, %v6246
    %v6278 = vpack.c.b16 %v6249, %v6248
    %v6279 = vpack.c.b16 %v6251, %v6250
    %v6280 = vpack.c.b16 %v6253, %v6252
    %v6281 = vpack.c.b16 %v6255, %v6254
    %v6282 = vpack.c.b16 %v6257, %v6256
    %v6283 = vpack.c.b16 %v6259, %v6258
    %6308 = vmatprep.subr.bf16.mxu0 0
    %6309 = vmatpush1.bf16.msra.mxu0 %v6260
    %6310 = vmatprep.subr.bf16.mxu0 0
    %6311 = vmatpush1.bf16.msra.mxu0 %v6261
    %6312 = vmatprep.subr.bf16.mxu0 0
    %6313 = vmatpush1.bf16.msra.mxu0 %v6262
    %6314 = vmatprep.subr.bf16.mxu0 0
    %6315 = vmatpush1.bf16.msra.mxu0 %v6263
    %6316 = vmatprep.subr.bf16.mxu0 0
    %6317 = vmatpush1.bf16.msra.mxu0 %v6264
    %6318 = vmatprep.subr.bf16.mxu0 0
    %6319 = vmatpush1.bf16.msra.mxu0 %v6265
    %6320 = vmatprep.subr.bf16.mxu0 0
    %6321 = vmatpush1.bf16.msra.mxu0 %v6266
    %6322 = vmatprep.subr.bf16.mxu0 0
    %6323 = vmatpush1.bf16.msra.mxu0 %v6267
    %6324 = vmatprep.subr.bf16.mxu0 0
    %6325 = vmatpush1.bf16.msra.mxu0 %v6268
    %6326 = vmatprep.subr.bf16.mxu0 0
    %6327 = vmatpush1.bf16.msra.mxu0 %v6269
    %6328 = vmatprep.subr.bf16.mxu0 0
    %6329 = vmatpush1.bf16.msra.mxu0 %v6270
    %6330 = vmatprep.subr.bf16.mxu0 0
    %6331 = vmatpush1.bf16.msra.mxu0 %v6271
    %6332 = vmatprep.subr.bf16.mxu0 0
    %6333 = vmatpush1.bf16.msra.mxu0 %v6272
    %6334 = vmatprep.subr.bf16.mxu0 0
    %6335 = vmatpush1.bf16.msra.mxu0 %v6273
    %6336 = vmatprep.subr.bf16.mxu0 0
    %6337 = vmatpush1.bf16.msra.mxu0 %v6274
    %6338 = vmatprep.subr.bf16.mxu0 0
    %6339 = vmatpush1.bf16.msra.mxu0 %v6275
    %6340 = vmatprep.mubr.bf16.mxu0 %v6113
    %6341 = vmatmul.mubr.bf16.gmra.mrb[0].mxu0 %v6112
    %v6342 = vpop.f32.mrb[0].mxu0
    %v6343 = vadd.f32 0.0, %v6342
    %v6344 = vpop.f32.mrb[0].mxu0
    %v6345 = vpop.f32.mrb[0].mxu0
    %v6346 = vpop.f32.mrb[0].mxu0
    %6347 = vdwg.mxu0
    %6348 = vmatprep.subr.bf16.mxu0 0
    %6349 = vmatpush1.bf16.msra.mxu0 %v6276
    %6350 = vmatprep.subr.bf16.mxu0 0
    %6351 = vmatpush1.bf16.msra.mxu0 %v6277
    %6352 = vmatprep.subr.bf16.mxu0 0
    %6353 = vmatpush1.bf16.msra.mxu0 %v6278
    %6354 = vmatprep.subr.bf16.mxu0 0
    %6355 = vmatpush1.bf16.msra.mxu0 %v6279
    %6356 = vmatprep.subr.bf16.mxu0 0
    %6357 = vmatpush1.bf16.msra.mxu0 %v6280
    %6358 = vmatprep.subr.bf16.mxu0 0
    %6359 = vmatpush1.bf16.msra.mxu0 %v6281
    %6360 = vmatprep.subr.bf16.mxu0 0
    %6361 = vmatpush1.bf16.msra.mxu0 %v6282
    %6362 = vmatprep.subr.bf16.mxu0 0
    %6363 = vmatpush1.bf16.msra.mxu0 %v6283
    %6364 = vmatprep.subr.bf16.mxu0 0
    %6365 = vmatpush1.bf16.msra.mxu0 0
    %6366 = vmatprep.subr.bf16.mxu0 0
    %6367 = vmatpush1.bf16.msra.mxu0 0
    %6368 = vmatprep.subr.bf16.mxu0 0
    %6369 = vmatpush1.bf16.msra.mxu0 0
    %6370 = vmatprep.subr.bf16.mxu0 0
    %6371 = vmatpush1.bf16.msra.mxu0 0
    %6372 = vmatprep.subr.bf16.mxu0 0
    %6373 = vmatpush1.bf16.msra.mxu0 0
    %6374 = vmatprep.subr.bf16.mxu0 0
    %6375 = vmatpush1.bf16.msra.mxu0 0
    %6376 = vmatprep.subr.bf16.mxu0 0
    %6377 = vmatpush1.bf16.msra.mxu0 0
    %6378 = vmatprep.subr.bf16.mxu0 0
    %6379 = vmatpush1.bf16.msra.mxu0 0
    %6380 = vmatprep.mubr.bf16.mxu0 0
    %6381 = vmatmul.mubr.bf16.gmra.mrb[0].mxu0 %v6114
    %v6382 = vpop.f32.mrb[0].mxu0
    %v6383 = vadd.f32 %v6343, %v6382
    %v6384 = vpop.f32.mrb[0].mxu0
    %v6385 = vpop.f32.mrb[0].mxu0
    %v6386 = vpop.f32.mrb[0].mxu0
    %6387 = vdwg.mxu0
    %v6388 = vadd.f32 %v6095, %v6383
    %s6389 = scalar_lea.vmem [#allocation13], 576
    %v6390 = vld [vmem:[%s6389] sm:$0xf]
    %v6391 = vld [vmem:[%s6389 + $0x4] sm:$0xf]
    %v6392 = vld [vmem:[%s6389 + $0x8] sm:$0xf]
    %v6393 = vld [vmem:[%s6389 + $0xc] sm:$0xf]
    %v6394 = vld [vmem:[%s6389 + $0x10] sm:$0xf]
    %v6395 = vld [vmem:[%s6389 + $0x14] sm:$0xf]
    %v6396 = vld [vmem:[%s6389 + $0x18] sm:$0xf]
    %v6397 = vld [vmem:[%s6389 + $0x1c] sm:$0xf]
    %v6398 = vld [vmem:[%s6389 + $0x20] sm:$0xf]
    %v6399 = vld [vmem:[%s6389 + $0x24] sm:$0xf]
    %v6400 = vld [vmem:[%s6389 + $0x28] sm:$0xf]
    %v6401 = vld [vmem:[%s6389 + $0x2c] sm:$0xf]
    %v6402 = vld [vmem:[%s6389 + $0x30] sm:$0xf]
    %v6403 = vld [vmem:[%s6389 + $0x34] sm:$0xf]
    %v6404 = vld [vmem:[%s6389 + $0x38] sm:$0xf]
    %v6405 = vld [vmem:[%s6389 + $0x3c] sm:$0xf]
    %v6406 = vld [vmem:[%s6389 + $0x40] sm:$0xf]
    %v6407 = vld [vmem:[%s6389 + $0x44] sm:$0xf]
    %v6408 = vld [vmem:[%s6389 + $0x48] sm:$0xf]
    %v6409 = vld [vmem:[%s6389 + $0x4c] sm:$0xf]
    %v6410 = vld [vmem:[%s6389 + $0x50] sm:$0xf]
    %v6411 = vld [vmem:[%s6389 + $0x54] sm:$0xf]
    %v6412 = vld [vmem:[%s6389 + $0x58] sm:$0xf]
    %v6413 = vld [vmem:[%s6389 + $0x5c] sm:$0xf]
    %v6414 = vld [vmem:[%s6389 + $0x60] sm:$0xf]
    %v6415 = vld [vmem:[%s6389 + $0x64] sm:$0xf]
    %v6416 = vld [vmem:[%s6389 + $0x68] sm:$0xf]
    %v6417 = vld [vmem:[%s6389 + $0x6c] sm:$0xf]
    %v6418 = vld [vmem:[%s6389 + $0x70] sm:$0xf]
    %v6419 = vld [vmem:[%s6389 + $0x74] sm:$0xf]
    %v6420 = vld [vmem:[%s6389 + $0x78] sm:$0xf]
    %v6421 = vld [vmem:[%s6389 + $0x7c] sm:$0xf]
    %v6422 = vld [vmem:[%s6389 + $0x80] sm:$0xf]
    %v6423 = vld [vmem:[%s6389 + $0x84] sm:$0xf]
    %v6424 = vld [vmem:[%s6389 + $0x88] sm:$0xf]
    %v6425 = vld [vmem:[%s6389 + $0x8c] sm:$0xf]
    %v6426 = vld [vmem:[%s6389 + $0x90] sm:$0xf]
    %v6427 = vld [vmem:[%s6389 + $0x94] sm:$0xf]
    %v6428 = vld [vmem:[%s6389 + $0x98] sm:$0xf]
    %v6429 = vld [vmem:[%s6389 + $0x9c] sm:$0xf]
    %v6430 = vld [vmem:[%s6389 + $0xa0] sm:$0xf]
    %v6431 = vld [vmem:[%s6389 + $0xa4] sm:$0xf]
    %v6432 = vld [vmem:[%s6389 + $0xa8] sm:$0xf]
    %v6433 = vld [vmem:[%s6389 + $0xac] sm:$0xf]
    %v6434 = vld [vmem:[%s6389 + $0xb0] sm:$0xf]
    %v6435 = vld [vmem:[%s6389 + $0xb4] sm:$0xf]
    %v6436 = vld [vmem:[%s6389 + $0xb8] sm:$0xf]
    %v6437 = vld [vmem:[%s6389 + $0xbc] sm:$0xf]
    %v6441 = vrot.slane %v6112, 2
    %v6442 = vrot.slane %v6113, 2
    %v6443 = vrot.slane %v6114, 2
    %v6495 = vunpack.c.l.b16 %v6390
    %v6496 = vunpack.c.l.b16 %v6391
    %v6497 = vunpack.c.l.b16 %v6392
    %v6498 = vunpack.c.l.b16 %v6393
    %v6499 = vunpack.c.l.b16 %v6394
    %v6500 = vunpack.c.l.b16 %v6395
    %v6501 = vunpack.c.l.b16 %v6396
    %v6502 = vunpack.c.l.b16 %v6397
    %v6503 = vunpack.c.l.b16 %v6398
    %v6504 = vunpack.c.l.b16 %v6399
    %v6505 = vunpack.c.l.b16 %v6400
    %v6506 = vunpack.c.l.b16 %v6401
    %v6507 = vunpack.c.l.b16 %v6402
    %v6508 = vunpack.c.l.b16 %v6403
    %v6509 = vunpack.c.l.b16 %v6404
    %v6510 = vunpack.c.l.b16 %v6405
    %v6511 = vunpack.c.l.b16 %v6406
    %v6512 = vunpack.c.l.b16 %v6407
    %v6513 = vunpack.c.l.b16 %v6408
    %v6514 = vunpack.c.l.b16 %v6409
    %v6515 = vunpack.c.l.b16 %v6410
    %v6516 = vunpack.c.l.b16 %v6411
    %v6517 = vunpack.c.l.b16 %v6412
    %v6518 = vunpack.c.l.b16 %v6413
    %v6519 = vunpack.c.l.b16 %v6414
    %v6520 = vunpack.c.l.b16 %v6415
    %v6521 = vunpack.c.l.b16 %v6416
    %v6522 = vunpack.c.l.b16 %v6417
    %v6523 = vunpack.c.l.b16 %v6418
    %v6524 = vunpack.c.l.b16 %v6419
    %v6525 = vunpack.c.l.b16 %v6420
    %v6526 = vunpack.c.l.b16 %v6421
    %v6527 = vunpack.c.l.b16 %v6422
    %v6528 = vunpack.c.l.b16 %v6423
    %v6529 = vunpack.c.l.b16 %v6424
    %v6530 = vunpack.c.l.b16 %v6425
    %v6531 = vunpack.c.l.b16 %v6426
    %v6532 = vunpack.c.l.b16 %v6427
    %v6533 = vunpack.c.l.b16 %v6428
    %v6534 = vunpack.c.l.b16 %v6429
    %v6535 = vunpack.c.l.b16 %v6430
    %v6536 = vunpack.c.l.b16 %v6431
    %v6537 = vunpack.c.l.b16 %v6432
    %v6538 = vunpack.c.l.b16 %v6433
    %v6539 = vunpack.c.l.b16 %v6434
    %v6540 = vunpack.c.l.b16 %v6435
    %v6541 = vunpack.c.l.b16 %v6436
    %v6542 = vunpack.c.l.b16 %v6437
    %v6543 = vpack.c.b16 %v6496, %v6495
    %v6544 = vpack.c.b16 %v6498, %v6497
    %v6545 = vpack.c.b16 %v6500, %v6499
    %v6546 = vpack.c.b16 %v6502, %v6501
    %v6547 = vpack.c.b16 %v6504, %v6503
    %v6548 = vpack.c.b16 %v6506, %v6505
    %v6549 = vpack.c.b16 %v6508, %v6507
    %v6550 = vpack.c.b16 %v6510, %v6509
    %v6551 = vpack.c.b16 %v6512, %v6511
    %v6552 = vpack.c.b16 %v6514, %v6513
    %v6553 = vpack.c.b16 %v6516, %v6515
    %v6554 = vpack.c.b16 %v6518, %v6517
    %v6555 = vpack.c.b16 %v6520, %v6519
    %v6556 = vpack.c.b16 %v6522, %v6521
    %v6557 = vpack.c.b16 %v6524, %v6523
    %v6558 = vpack.c.b16 %v6526, %v6525
    %v6559 = vpack.c.b16 %v6528, %v6527
    %v6560 = vpack.c.b16 %v6530, %v6529
    %v6561 = vpack.c.b16 %v6532, %v6531
    %v6562 = vpack.c.b16 %v6534, %v6533
    %v6563 = vpack.c.b16 %v6536, %v6535
    %v6564 = vpack.c.b16 %v6538, %v6537
    %v6565 = vpack.c.b16 %v6540, %v6539
    %v6566 = vpack.c.b16 %v6542, %v6541
    %6591 = vmatprep.subr.bf16.mxu0 0
    %6592 = vmatpush1.bf16.msra.mxu0 %v6543
    %6593 = vmatprep.subr.bf16.mxu0 0
    %6594 = vmatpush1.bf16.msra.mxu0 %v6544
    %6595 = vmatprep.subr.bf16.mxu0 0
    %6596 = vmatpush1.bf16.msra.mxu0 %v6545
    %6597 = vmatprep.subr.bf16.mxu0 0
    %6598 = vmatpush1.bf16.msra.mxu0 %v6546
    %6599 = vmatprep.subr.bf16.mxu0 0
    %6600 = vmatpush1.bf16.msra.mxu0 %v6547
    %6601 = vmatprep.subr.bf16.mxu0 0
    %6602 = vmatpush1.bf16.msra.mxu0 %v6548
    %6603 = vmatprep.subr.bf16.mxu0 0
    %6604 = vmatpush1.bf16.msra.mxu0 %v6549
    %6605 = vmatprep.subr.bf16.mxu0 0
    %6606 = vmatpush1.bf16.msra.mxu0 %v6550
    %6607 = vmatprep.subr.bf16.mxu0 0
    %6608 = vmatpush1.bf16.msra.mxu0 %v6551
    %6609 = vmatprep.subr.bf16.mxu0 0
    %6610 = vmatpush1.bf16.msra.mxu0 %v6552
    %6611 = vmatprep.subr.bf16.mxu0 0
    %6612 = vmatpush1.bf16.msra.mxu0 %v6553
    %6613 = vmatprep.subr.bf16.mxu0 0
    %6614 = vmatpush1.bf16.msra.mxu0 %v6554
    %6615 = vmatprep.subr.bf16.mxu0 0
    %6616 = vmatpush1.bf16.msra.mxu0 %v6555
    %6617 = vmatprep.subr.bf16.mxu0 0
    %6618 = vmatpush1.bf16.msra.mxu0 %v6556
    %6619 = vmatprep.subr.bf16.mxu0 0
    %6620 = vmatpush1.bf16.msra.mxu0 %v6557
    %6621 = vmatprep.subr.bf16.mxu0 0
    %6622 = vmatpush1.bf16.msra.mxu0 %v6558
    %6623 = vmatprep.mubr.bf16.mxu0 %v6442
    %6624 = vmatmul.mubr.bf16.gmra.mrb[0].mxu0 %v6441
    %v6625 = vpop.f32.mrb[0].mxu0
    %v6626 = vadd.f32 0.0, %v6625
    %v6627 = vpop.f32.mrb[0].mxu0
    %v6628 = vpop.f32.mrb[0].mxu0
    %v6629 = vpop.f32.mrb[0].mxu0
    %6630 = vdwg.mxu0
    %6631 = vmatprep.subr.bf16.mxu0 0
    %6632 = vmatpush1.bf16.msra.mxu0 %v6559
    %6633 = vmatprep.subr.bf16.mxu0 0
    %6634 = vmatpush1.bf16.msra.mxu0 %v6560
    %6635 = vmatprep.subr.bf16.mxu0 0
    %6636 = vmatpush1.bf16.msra.mxu0 %v6561
    %6637 = vmatprep.subr.bf16.mxu0 0
    %6638 = vmatpush1.bf16.msra.mxu0 %v6562
    %6639 = vmatprep.subr.bf16.mxu0 0
    %6640 = vmatpush1.bf16.msra.mxu0 %v6563
    %6641 = vmatprep.subr.bf16.mxu0 0
    %6642 = vmatpush1.bf16.msra.mxu0 %v6564
    %6643 = vmatprep.subr.bf16.mxu0 0
    %6644 = vmatpush1.bf16.msra.mxu0 %v6565
    %6645 = vmatprep.subr.bf16.mxu0 0
    %6646 = vmatpush1.bf16.msra.mxu0 %v6566
    %6647 = vmatprep.subr.bf16.mxu0 0
    %6648 = vmatpush1.bf16.msra.mxu0 0
    %6649 = vmatprep.subr.bf16.mxu0 0
    %6650 = vmatpush1.bf16.msra.mxu0 0
    %6651 = vmatprep.subr.bf16.mxu0 0
    %6652 = vmatpush1.bf16.msra.mxu0 0
    %6653 = vmatprep.subr.bf16.mxu0 0
    %6654 = vmatpush1.bf16.msra.mxu0 0
    %6655 = vmatprep.subr.bf16.mxu0 0
    %6656 = vmatpush1.bf16.msra.mxu0 0
    %6657 = vmatprep.subr.bf16.mxu0 0
    %6658 = vmatpush1.bf16.msra.mxu0 0
    %6659 = vmatprep.subr.bf16.mxu0 0
    %6660 = vmatpush1.bf16.msra.mxu0 0
    %6661 = vmatprep.subr.bf16.mxu0 0
    %6662 = vmatpush1.bf16.msra.mxu0 0
    %6663 = vmatprep.mubr.bf16.mxu0 0
    %6664 = vmatmul.mubr.bf16.gmra.mrb[0].mxu0 %v6443
    %v6665 = vpop.f32.mrb[0].mxu0
    %v6666 = vadd.f32 %v6626, %v6665
    %v6667 = vpop.f32.mrb[0].mxu0
    %v6668 = vpop.f32.mrb[0].mxu0
    %v6669 = vpop.f32.mrb[0].mxu0
    %6670 = vdwg.mxu0
    %v6671 = vadd.f32 %v6388, %v6666
    %v6675 = vrot.slane %v5528, 2
    %v6676 = vrot.slane %v5529, 2
    %v6677 = vrot.slane %v5530, 2
    %v6681 = vmax.f32 %v5528, %v6675
    %v6682 = vmax.f32 %v5529, %v6676
    %v6683 = vmax.f32 %v5530, %v6677
    %v6684 = vpack.c.bf16 %v6681, %v6681
    %v6685 = vpack.c.bf16 %v6682, %v6682
    %v6686 = vpack.c.bf16 %v6683, %v6683
    %s6687 = scalar_lea.vmem [#allocation13], 768
    %v6688 = vld [vmem:[%s6687] sm:$0xf]
    %v6689 = vld [vmem:[%s6687 + $0x4] sm:$0xf]
    %v6690 = vld [vmem:[%s6687 + $0x8] sm:$0xf]
    %v6691 = vld [vmem:[%s6687 + $0xc] sm:$0xf]
    %v6692 = vld [vmem:[%s6687 + $0x10] sm:$0xf]
    %v6693 = vld [vmem:[%s6687 + $0x14] sm:$0xf]
    %v6694 = vld [vmem:[%s6687 + $0x18] sm:$0xf]
    %v6695 = vld [vmem:[%s6687 + $0x1c] sm:$0xf]
    %v6696 = vld [vmem:[%s6687 + $0x20] sm:$0xf]
    %v6697 = vld [vmem:[%s6687 + $0x24] sm:$0xf]
    %v6698 = vld [vmem:[%s6687 + $0x28] sm:$0xf]
    %v6699 = vld [vmem:[%s6687 + $0x2c] sm:$0xf]
    %v6700 = vld [vmem:[%s6687 + $0x30] sm:$0xf]
    %v6701 = vld [vmem:[%s6687 + $0x34] sm:$0xf]
    %v6702 = vld [vmem:[%s6687 + $0x38] sm:$0xf]
    %v6703 = vld [vmem:[%s6687 + $0x3c] sm:$0xf]
    %v6704 = vld [vmem:[%s6687 + $0x40] sm:$0xf]
    %v6705 = vld [vmem:[%s6687 + $0x44] sm:$0xf]
    %v6706 = vld [vmem:[%s6687 + $0x48] sm:$0xf]
    %v6707 = vld [vmem:[%s6687 + $0x4c] sm:$0xf]
    %v6708 = vld [vmem:[%s6687 + $0x50] sm:$0xf]
    %v6709 = vld [vmem:[%s6687 + $0x54] sm:$0xf]
    %v6710 = vld [vmem:[%s6687 + $0x58] sm:$0xf]
    %v6711 = vld [vmem:[%s6687 + $0x5c] sm:$0xf]
    %v6712 = vld [vmem:[%s6687 + $0x60] sm:$0xf]
    %v6713 = vld [vmem:[%s6687 + $0x64] sm:$0xf]
    %v6714 = vld [vmem:[%s6687 + $0x68] sm:$0xf]
    %v6715 = vld [vmem:[%s6687 + $0x6c] sm:$0xf]
    %v6716 = vld [vmem:[%s6687 + $0x70] sm:$0xf]
    %v6717 = vld [vmem:[%s6687 + $0x74] sm:$0xf]
    %v6718 = vld [vmem:[%s6687 + $0x78] sm:$0xf]
    %v6719 = vld [vmem:[%s6687 + $0x7c] sm:$0xf]
    %v6720 = vld [vmem:[%s6687 + $0x80] sm:$0xf]
    %v6721 = vld [vmem:[%s6687 + $0x84] sm:$0xf]
    %v6722 = vld [vmem:[%s6687 + $0x88] sm:$0xf]
    %v6723 = vld [vmem:[%s6687 + $0x8c] sm:$0xf]
    %v6724 = vld [vmem:[%s6687 + $0x90] sm:$0xf]
    %v6725 = vld [vmem:[%s6687 + $0x94] sm:$0xf]
    %v6726 = vld [vmem:[%s6687 + $0x98] sm:$0xf]
    %v6727 = vld [vmem:[%s6687 + $0x9c] sm:$0xf]
    %v6728 = vld [vmem:[%s6687 + $0xa0] sm:$0xf]
    %v6729 = vld [vmem:[%s6687 + $0xa4] sm:$0xf]
    %v6730 = vld [vmem:[%s6687 + $0xa8] sm:$0xf]
    %v6731 = vld [vmem:[%s6687 + $0xac] sm:$0xf]
    %v6732 = vld [vmem:[%s6687 + $0xb0] sm:$0xf]
    %v6733 = vld [vmem:[%s6687 + $0xb4] sm:$0xf]
    %v6734 = vld [vmem:[%s6687 + $0xb8] sm:$0xf]
    %v6735 = vld [vmem:[%s6687 + $0xbc] sm:$0xf]
    %v6784 = vunpack.c.l.b16 %v6688
    %v6785 = vunpack.c.l.b16 %v6689
    %v6786 = vunpack.c.l.b16 %v6690
    %v6787 = vunpack.c.l.b16 %v6691
    %v6788 = vunpack.c.l.b16 %v6692
    %v6789 = vunpack.c.l.b16 %v6693
    %v6790 = vunpack.c.l.b16 %v6694
    %v6791 = vunpack.c.l.b16 %v6695
    %v6792 = vunpack.c.l.b16 %v6696
    %v6793 = vunpack.c.l.b16 %v6697
    %v6794 = vunpack.c.l.b16 %v6698
    %v6795 = vunpack.c.l.b16 %v6699
    %v6796 = vunpack.c.l.b16 %v6700
    %v6797 = vunpack.c.l.b16 %v6701
    %v6798 = vunpack.c.l.b16 %v6702
    %v6799 = vunpack.c.l.b16 %v6703
    %v6800 = vunpack.c.l.b16 %v6704
    %v6801 = vunpack.c.l.b16 %v6705
    %v6802 = vunpack.c.l.b16 %v6706
    %v6803 = vunpack.c.l.b16 %v6707
    %v6804 = vunpack.c.l.b16 %v6708
    %v6805 = vunpack.c.l.b16 %v6709
    %v6806 = vunpack.c.l.b16 %v6710
    %v6807 = vunpack.c.l.b16 %v6711
    %v6808 = vunpack.c.l.b16 %v6712
    %v6809 = vunpack.c.l.b16 %v6713
    %v6810 = vunpack.c.l.b16 %v6714
    %v6811 = vunpack.c.l.b16 %v6715
    %v6812 = vunpack.c.l.b16 %v6716
    %v6813 = vunpack.c.l.b16 %v6717
    %v6814 = vunpack.c.l.b16 %v6718
    %v6815 = vunpack.c.l.b16 %v6719
    %v6816 = vunpack.c.l.b16 %v6720
    %v6817 = vunpack.c.l.b16 %v6721
    %v6818 = vunpack.c.l.b16 %v6722
    %v6819 = vunpack.c.l.b16 %v6723
    %v6820 = vunpack.c.l.b16 %v6724
    %v6821 = vunpack.c.l.b16 %v6725
    %v6822 = vunpack.c.l.b16 %v6726
    %v6823 = vunpack.c.l.b16 %v6727
    %v6824 = vunpack.c.l.b16 %v6728
    %v6825 = vunpack.c.l.b16 %v6729
    %v6826 = vunpack.c.l.b16 %v6730
    %v6827 = vunpack.c.l.b16 %v6731
    %v6828 = vunpack.c.l.b16 %v6732
    %v6829 = vunpack.c.l.b16 %v6733
    %v6830 = vunpack.c.l.b16 %v6734
    %v6831 = vunpack.c.l.b16 %v6735
    %v6832 = vpack.c.b16 %v6785, %v6784
    %v6833 = vpack.c.b16 %v6787, %v6786
    %v6834 = vpack.c.b16 %v6789, %v6788
    %v6835 = vpack.c.b16 %v6791, %v6790
    %v6836 = vpack.c.b16 %v6793, %v6792
    %v6837 = vpack.c.b16 %v6795, %v6794
    %v6838 = vpack.c.b16 %v6797, %v6796
    %v6839 = vpack.c.b16 %v6799, %v6798
    %v6840 = vpack.c.b16 %v6801, %v6800
    %v6841 = vpack.c.b16 %v6803, %v6802
    %v6842 = vpack.c.b16 %v6805, %v6804
    %v6843 = vpack.c.b16 %v6807, %v6806
    %v6844 = vpack.c.b16 %v6809, %v6808
    %v6845 = vpack.c.b16 %v6811, %v6810
    %v6846 = vpack.c.b16 %v6813, %v6812
    %v6847 = vpack.c.b16 %v6815, %v6814
    %v6848 = vpack.c.b16 %v6817, %v6816
    %v6849 = vpack.c.b16 %v6819, %v6818
    %v6850 = vpack.c.b16 %v6821, %v6820
    %v6851 = vpack.c.b16 %v6823, %v6822
    %v6852 = vpack.c.b16 %v6825, %v6824
    %v6853 = vpack.c.b16 %v6827, %v6826
    %v6854 = vpack.c.b16 %v6829, %v6828
    %v6855 = vpack.c.b16 %v6831, %v6830
    %6880 = vmatprep.subr.bf16.mxu0 0
    %6881 = vmatpush1.bf16.msra.mxu0 %v6832
    %6882 = vmatprep.subr.bf16.mxu0 0
    %6883 = vmatpush1.bf16.msra.mxu0 %v6833
    %6884 = vmatprep.subr.bf16.mxu0 0
    %6885 = vmatpush1.bf16.msra.mxu0 %v6834
    %6886 = vmatprep.subr.bf16.mxu0 0
    %6887 = vmatpush1.bf16.msra.mxu0 %v6835
    %6888 = vmatprep.subr.bf16.mxu0 0
    %6889 = vmatpush1.bf16.msra.mxu0 %v6836
    %6890 = vmatprep.subr.bf16.mxu0 0
    %6891 = vmatpush1.bf16.msra.mxu0 %v6837
    %6892 = vmatprep.subr.bf16.mxu0 0
    %6893 = vmatpush1.bf16.msra.mxu0 %v6838
    %6894 = vmatprep.subr.bf16.mxu0 0
    %6895 = vmatpush1.bf16.msra.mxu0 %v6839
    %6896 = vmatprep.subr.bf16.mxu0 0
    %6897 = vmatpush1.bf16.msra.mxu0 %v6840
    %6898 = vmatprep.subr.bf16.mxu0 0
    %6899 = vmatpush1.bf16.msra.mxu0 %v6841
    %6900 = vmatprep.subr.bf16.mxu0 0
    %6901 = vmatpush1.bf16.msra.mxu0 %v6842
    %6902 = vmatprep.subr.bf16.mxu0 0
    %6903 = vmatpush1.bf16.msra.mxu0 %v6843
    %6904 = vmatprep.subr.bf16.mxu0 0
    %6905 = vmatpush1.bf16.msra.mxu0 %v6844
    %6906 = vmatprep.subr.bf16.mxu0 0
    %6907 = vmatpush1.bf16.msra.mxu0 %v6845
    %6908 = vmatprep.subr.bf16.mxu0 0
    %6909 = vmatpush1.bf16.msra.mxu0 %v6846
    %6910 = vmatprep.subr.bf16.mxu0 0
    %6911 = vmatpush1.bf16.msra.mxu0 %v6847
    %6912 = vmatprep.mubr.bf16.mxu0 %v6685
    %6913 = vmatmul.mubr.bf16.gmra.mrb[0].mxu0 %v6684
    %v6914 = vpop.f32.mrb[0].mxu0
    %v6915 = vadd.f32 0.0, %v6914
    %v6916 = vpop.f32.mrb[0].mxu0
    %v6917 = vpop.f32.mrb[0].mxu0
    %v6918 = vpop.f32.mrb[0].mxu0
    %6919 = vdwg.mxu0
    %6920 = vmatprep.subr.bf16.mxu0 0
    %6921 = vmatpush1.bf16.msra.mxu0 %v6848
    %6922 = vmatprep.subr.bf16.mxu0 0
    %6923 = vmatpush1.bf16.msra.mxu0 %v6849
    %6924 = vmatprep.subr.bf16.mxu0 0
    %6925 = vmatpush1.bf16.msra.mxu0 %v6850
    %6926 = vmatprep.subr.bf16.mxu0 0
    %6927 = vmatpush1.bf16.msra.mxu0 %v6851
    %6928 = vmatprep.subr.bf16.mxu0 0
    %6929 = vmatpush1.bf16.msra.mxu0 %v6852
    %6930 = vmatprep.subr.bf16.mxu0 0
    %6931 = vmatpush1.bf16.msra.mxu0 %v6853
    %6932 = vmatprep.subr.bf16.mxu0 0
    %6933 = vmatpush1.bf16.msra.mxu0 %v6854
    %6934 = vmatprep.subr.bf16.mxu0 0
    %6935 = vmatpush1.bf16.msra.mxu0 %v6855
    %6936 = vmatprep.subr.bf16.mxu0 0
    %6937 = vmatpush1.bf16.msra.mxu0 0
    %6938 = vmatprep.subr.bf16.mxu0 0
    %6939 = vmatpush1.bf16.msra.mxu0 0
    %6940 = vmatprep.subr.bf16.mxu0 0
    %6941 = vmatpush1.bf16.msra.mxu0 0
    %6942 = vmatprep.subr.bf16.mxu0 0
    %6943 = vmatpush1.bf16.msra.mxu0 0
    %6944 = vmatprep.subr.bf16.mxu0 0
    %6945 = vmatpush1.bf16.msra.mxu0 0
    %6946 = vmatprep.subr.bf16.mxu0 0
    %6947 = vmatpush1.bf16.msra.mxu0 0
    %6948 = vmatprep.subr.bf16.mxu0 0
    %6949 = vmatpush1.bf16.msra.mxu0 0
    %6950 = vmatprep.subr.bf16.mxu0 0
    %6951 = vmatpush1.bf16.msra.mxu0 0
    %6952 = vmatprep.mubr.bf16.mxu0 0
    %6953 = vmatmul.mubr.bf16.gmra.mrb[0].mxu0 %v6686
    %v6954 = vpop.f32.mrb[0].mxu0
    %v6955 = vadd.f32 %v6915, %v6954
    %v6956 = vpop.f32.mrb[0].mxu0
    %v6957 = vpop.f32.mrb[0].mxu0
    %v6958 = vpop.f32.mrb[0].mxu0
    %6959 = vdwg.mxu0
    %v6960 = vadd.f32 %v6671, %v6955
    %s6961 = scalar_lea.vmem [#allocation13], 960
    %v6962 = vld [vmem:[%s6961] sm:$0xf]
    %v6963 = vld [vmem:[%s6961 + $0x4] sm:$0xf]
    %v6964 = vld [vmem:[%s6961 + $0x8] sm:$0xf]
    %v6965 = vld [vmem:[%s6961 + $0xc] sm:$0xf]
    %v6966 = vld [vmem:[%s6961 + $0x10] sm:$0xf]
    %v6967 = vld [vmem:[%s6961 + $0x14] sm:$0xf]
    %v6968 = vld [vmem:[%s6961 + $0x18] sm:$0xf]
    %v6969 = vld [vmem:[%s6961 + $0x1c] sm:$0xf]
    %v6970 = vld [vmem:[%s6961 + $0x20] sm:$0xf]
    %v6971 = vld [vmem:[%s6961 + $0x24] sm:$0xf]
    %v6972 = vld [vmem:[%s6961 + $0x28] sm:$0xf]
    %v6973 = vld [vmem:[%s6961 + $0x2c] sm:$0xf]
    %v6974 = vld [vmem:[%s6961 + $0x30] sm:$0xf]
    %v6975 = vld [vmem:[%s6961 + $0x34] sm:$0xf]
    %v6976 = vld [vmem:[%s6961 + $0x38] sm:$0xf]
    %v6977 = vld [vmem:[%s6961 + $0x3c] sm:$0xf]
    %v6978 = vld [vmem:[%s6961 + $0x40] sm:$0xf]
    %v6979 = vld [vmem:[%s6961 + $0x44] sm:$0xf]
    %v6980 = vld [vmem:[%s6961 + $0x48] sm:$0xf]
    %v6981 = vld [vmem:[%s6961 + $0x4c] sm:$0xf]
    %v6982 = vld [vmem:[%s6961 + $0x50] sm:$0xf]
    %v6983 = vld [vmem:[%s6961 + $0x54] sm:$0xf]
    %v6984 = vld [vmem:[%s6961 + $0x58] sm:$0xf]
    %v6985 = vld [vmem:[%s6961 + $0x5c] sm:$0xf]
    %v6986 = vld [vmem:[%s6961 + $0x60] sm:$0xf]
    %v6987 = vld [vmem:[%s6961 + $0x64] sm:$0xf]
    %v6988 = vld [vmem:[%s6961 + $0x68] sm:$0xf]
    %v6989 = vld [vmem:[%s6961 + $0x6c] sm:$0xf]
    %v6990 = vld [vmem:[%s6961 + $0x70] sm:$0xf]
    %v6991 = vld [vmem:[%s6961 + $0x74] sm:$0xf]
    %v6992 = vld [vmem:[%s6961 + $0x78] sm:$0xf]
    %v6993 = vld [vmem:[%s6961 + $0x7c] sm:$0xf]
    %v6994 = vld [vmem:[%s6961 + $0x80] sm:$0xf]
    %v6995 = vld [vmem:[%s6961 + $0x84] sm:$0xf]
    %v6996 = vld [vmem:[%s6961 + $0x88] sm:$0xf]
    %v6997 = vld [vmem:[%s6961 + $0x8c] sm:$0xf]
    %v6998 = vld [vmem:[%s6961 + $0x90] sm:$0xf]
    %v6999 = vld [vmem:[%s6961 + $0x94] sm:$0xf]
    %v7000 = vld [vmem:[%s6961 + $0x98] sm:$0xf]
    %v7001 = vld [vmem:[%s6961 + $0x9c] sm:$0xf]
    %v7002 = vld [vmem:[%s6961 + $0xa0] sm:$0xf]
    %v7003 = vld [vmem:[%s6961 + $0xa4] sm:$0xf]
    %v7004 = vld [vmem:[%s6961 + $0xa8] sm:$0xf]
    %v7005 = vld [vmem:[%s6961 + $0xac] sm:$0xf]
    %v7006 = vld [vmem:[%s6961 + $0xb0] sm:$0xf]
    %v7007 = vld [vmem:[%s6961 + $0xb4] sm:$0xf]
    %v7008 = vld [vmem:[%s6961 + $0xb8] sm:$0xf]
    %v7009 = vld [vmem:[%s6961 + $0xbc] sm:$0xf]
    %v7013 = vrot.slane %v6684, 2
    %v7014 = vrot.slane %v6685, 2
    %v7015 = vrot.slane %v6686, 2
    %v7067 = vunpack.c.l.b16 %v6962
    %v7068 = vunpack.c.l.b16 %v6963
    %v7069 = vunpack.c.l.b16 %v6964
    %v7070 = vunpack.c.l.b16 %v6965
    %v7071 = vunpack.c.l.b16 %v6966
    %v7072 = vunpack.c.l.b16 %v6967
    %v7073 = vunpack.c.l.b16 %v6968
    %v7074 = vunpack.c.l.b16 %v6969
    %v7075 = vunpack.c.l.b16 %v6970
    %v7076 = vunpack.c.l.b16 %v6971
    %v7077 = vunpack.c.l.b16 %v6972
    %v7078 = vunpack.c.l.b16 %v6973
    %v7079 = vunpack.c.l.b16 %v6974
    %v7080 = vunpack.c.l.b16 %v6975
    %v7081 = vunpack.c.l.b16 %v6976
    %v7082 = vunpack.c.l.b16 %v6977
    %v7083 = vunpack.c.l.b16 %v6978
    %v7084 = vunpack.c.l.b16 %v6979
    %v7085 = vunpack.c.l.b16 %v6980
    %v7086 = vunpack.c.l.b16 %v6981
    %v7087 = vunpack.c.l.b16 %v6982
    %v7088 = vunpack.c.l.b16 %v6983
    %v7089 = vunpack.c.l.b16 %v6984
    %v7090 = vunpack.c.l.b16 %v6985
    %v7091 = vunpack.c.l.b16 %v6986
    %v7092 = vunpack.c.l.b16 %v6987
    %v7093 = vunpack.c.l.b16 %v6988
    %v7094 = vunpack.c.l.b16 %v6989
    %v7095 = vunpack.c.l.b16 %v6990
    %v7096 = vunpack.c.l.b16 %v6991
    %v7097 = vunpack.c.l.b16 %v6992
    %v7098 = vunpack.c.l.b16 %v6993
    %v7099 = vunpack.c.l.b16 %v6994
    %v7100 = vunpack.c.l.b16 %v6995
    %v7101 = vunpack.c.l.b16 %v6996
    %v7102 = vunpack.c.l.b16 %v6997
    %v7103 = vunpack.c.l.b16 %v6998
    %v7104 = vunpack.c.l.b16 %v6999
    %v7105 = vunpack.c.l.b16 %v7000
    %v7106 = vunpack.c.l.b16 %v7001
    %v7107 = vunpack.c.l.b16 %v7002
    %v7108 = vunpack.c.l.b16 %v7003
    %v7109 = vunpack.c.l.b16 %v7004
    %v7110 = vunpack.c.l.b16 %v7005
    %v7111 = vunpack.c.l.b16 %v7006
    %v7112 = vunpack.c.l.b16 %v7007
    %v7113 = vunpack.c.l.b16 %v7008
    %v7114 = vunpack.c.l.b16 %v7009
    %v7115 = vpack.c.b16 %v7068, %v7067
    %v7116 = vpack.c.b16 %v7070, %v7069
    %v7117 = vpack.c.b16 %v7072, %v7071
    %v7118 = vpack.c.b16 %v7074, %v7073
    %v7119 = vpack.c.b16 %v7076, %v7075
    %v7120 = vpack.c.b16 %v7078, %v7077
    %v7121 = vpack.c.b16 %v7080, %v7079
    %v7122 = vpack.c.b16 %v7082, %v7081
    %v7123 = vpack.c.b16 %v7084, %v7083
    %v7124 = vpack.c.b16 %v7086, %v7085
    %v7125 = vpack.c.b16 %v7088, %v7087
    %v7126 = vpack.c.b16 %v7090, %v7089
    %v7127 = vpack.c.b16 %v7092, %v7091
    %v7128 = vpack.c.b16 %v7094, %v7093
    %v7129 = vpack.c.b16 %v7096, %v7095
    %v7130 = vpack.c.b16 %v7098, %v7097
    %v7131 = vpack.c.b16 %v7100, %v7099
    %v7132 = vpack.c.b16 %v7102, %v7101
    %v7133 = vpack.c.b16 %v7104, %v7103
    %v7134 = vpack.c.b16 %v7106, %v7105
    %v7135 = vpack.c.b16 %v7108, %v7107
    %v7136 = vpack.c.b16 %v7110, %v7109
    %v7137 = vpack.c.b16 %v7112, %v7111
    %v7138 = vpack.c.b16 %v7114, %v7113
    %7163 = vmatprep.subr.bf16.mxu0 0
    %7164 = vmatpush1.bf16.msra.mxu0 %v7115
    %7165 = vmatprep.subr.bf16.mxu0 0
    %7166 = vmatpush1.bf16.msra.mxu0 %v7116
    %7167 = vmatprep.subr.bf16.mxu0 0
    %7168 = vmatpush1.bf16.msra.mxu0 %v7117
    %7169 = vmatprep.subr.bf16.mxu0 0
    %7170 = vmatpush1.bf16.msra.mxu0 %v7118
    %7171 = vmatprep.subr.bf16.mxu0 0
    %7172 = vmatpush1.bf16.msra.mxu0 %v7119
    %7173 = vmatprep.subr.bf16.mxu0 0
    %7174 = vmatpush1.bf16.msra.mxu0 %v7120
    %7175 = vmatprep.subr.bf16.mxu0 0
    %7176 = vmatpush1.bf16.msra.mxu0 %v7121
    %7177 = vmatprep.subr.bf16.mxu0 0
    %7178 = vmatpush1.bf16.msra.mxu0 %v7122
    %7179 = vmatprep.subr.bf16.mxu0 0
    %7180 = vmatpush1.bf16.msra.mxu0 %v7123
    %7181 = vmatprep.subr.bf16.mxu0 0
    %7182 = vmatpush1.bf16.msra.mxu0 %v7124
    %7183 = vmatprep.subr.bf16.mxu0 0
    %7184 = vmatpush1.bf16.msra.mxu0 %v7125
    %7185 = vmatprep.subr.bf16.mxu0 0
    %7186 = vmatpush1.bf16.msra.mxu0 %v7126
    %7187 = vmatprep.subr.bf16.mxu0 0
    %7188 = vmatpush1.bf16.msra.mxu0 %v7127
    %7189 = vmatprep.subr.bf16.mxu0 0
    %7190 = vmatpush1.bf16.msra.mxu0 %v7128
    %7191 = vmatprep.subr.bf16.mxu0 0
    %7192 = vmatpush1.bf16.msra.mxu0 %v7129
    %7193 = vmatprep.subr.bf16.mxu0 0
    %7194 = vmatpush1.bf16.msra.mxu0 %v7130
    %7195 = vmatprep.mubr.bf16.mxu0 %v7014
    %7196 = vmatmul.mubr.bf16.gmra.mrb[0].mxu0 %v7013
    %v7197 = vpop.f32.mrb[0].mxu0
    %v7198 = vadd.f32 0.0, %v7197
    %v7199 = vpop.f32.mrb[0].mxu0
    %v7200 = vpop.f32.mrb[0].mxu0
    %v7201 = vpop.f32.mrb[0].mxu0
    %7202 = vdwg.mxu0
    %7203 = vmatprep.subr.bf16.mxu0 0
    %7204 = vmatpush1.bf16.msra.mxu0 %v7131
    %7205 = vmatprep.subr.bf16.mxu0 0
    %7206 = vmatpush1.bf16.msra.mxu0 %v7132
    %7207 = vmatprep.subr.bf16.mxu0 0
    %7208 = vmatpush1.bf16.msra.mxu0 %v7133
    %7209 = vmatprep.subr.bf16.mxu0 0
    %7210 = vmatpush1.bf16.msra.mxu0 %v7134
    %7211 = vmatprep.subr.bf16.mxu0 0
    %7212 = vmatpush1.bf16.msra.mxu0 %v7135
    %7213 = vmatprep.subr.bf16.mxu0 0
    %7214 = vmatpush1.bf16.msra.mxu0 %v7136
    %7215 = vmatprep.subr.bf16.mxu0 0
    %7216 = vmatpush1.bf16.msra.mxu0 %v7137
    %7217 = vmatprep.subr.bf16.mxu0 0
    %7218 = vmatpush1.bf16.msra.mxu0 %v7138
    %7219 = vmatprep.subr.bf16.mxu0 0
    %7220 = vmatpush1.bf16.msra.mxu0 0
    %7221 = vmatprep.subr.bf16.mxu0 0
    %7222 = vmatpush1.bf16.msra.mxu0 0
    %7223 = vmatprep.subr.bf16.mxu0 0
    %7224 = vmatpush1.bf16.msra.mxu0 0
    %7225 = vmatprep.subr.bf16.mxu0 0
    %7226 = vmatpush1.bf16.msra.mxu0 0
    %7227 = vmatprep.subr.bf16.mxu0 0
    %7228 = vmatpush1.bf16.msra.mxu0 0
    %7229 = vmatprep.subr.bf16.mxu0 0
    %7230 = vmatpush1.bf16.msra.mxu0 0
    %7231 = vmatprep.subr.bf16.mxu0 0
    %7232 = vmatpush1.bf16.msra.mxu0 0
    %7233 = vmatprep.subr.bf16.mxu0 0
    %7234 = vmatpush1.bf16.msra.mxu0 0
    %7235 = vmatprep.mubr.bf16.mxu0 0
    %7236 = vmatmul.mubr.bf16.gmra.mrb[0].mxu0 %v7015
    %v7237 = vpop.f32.mrb[0].mxu0
    %v7238 = vadd.f32 %v7198, %v7237
    %v7239 = vpop.f32.mrb[0].mxu0
    %v7240 = vpop.f32.mrb[0].mxu0
    %v7241 = vpop.f32.mrb[0].mxu0
    %7242 = vdwg.mxu0
    %v7243 = vadd.f32 %v6960, %v7238
    %v7244 = vld [vmem:[#allocation14] sm:$0x1]
    %v7246 = vlaneseq
    %v7247 = vshrl.u32 %v7246, 7
    %v7248 = vsub.s32 0, %v7247
    %v7249 = vrot.slane %v7244, %v7248
    %v7251 = vadd.f32 %v7243, %v7249
    %v7252 = vmax.f32 %v7251, 0.0
    %v7253 = vpack.c.bf16 %v7252, %v7252
    %v7254 = vld [vmem:[#allocation16] sm:$0xf]
    %v7255 = vld [vmem:[#allocation16 + $0x4] sm:$0xf]
    %v7256 = vld [vmem:[#allocation16 + $0x8] sm:$0xf]
    %v7257 = vld [vmem:[#allocation16 + $0xc] sm:$0xf]
    %v7258 = vld [vmem:[#allocation16 + $0x10] sm:$0xf]
    %v7259 = vld [vmem:[#allocation16 + $0x14] sm:$0xf]
    %v7260 = vld [vmem:[#allocation16 + $0x18] sm:$0xf]
    %v7261 = vld [vmem:[#allocation16 + $0x1c] sm:$0xf]
    %v7262 = vld [vmem:[#allocation16 + $0x20] sm:$0xf]
    %v7263 = vld [vmem:[#allocation16 + $0x24] sm:$0xf]
    %v7264 = vld [vmem:[#allocation16 + $0x28] sm:$0xf]
    %v7265 = vld [vmem:[#allocation16 + $0x2c] sm:$0xf]
    %v7266 = vld [vmem:[#allocation16 + $0x30] sm:$0xf]
    %v7267 = vld [vmem:[#allocation16 + $0x34] sm:$0xf]
    %v7268 = vld [vmem:[#allocation16 + $0x38] sm:$0xf]
    %v7269 = vld [vmem:[#allocation16 + $0x3c] sm:$0xf]
    %v7270 = vld [vmem:[#allocation17] sm:$0x1]
    %v7272 = vlaneseq
    %v7273 = vshrl.u32 %v7272, 7
    %v7274 = vsub.s32 0, %v7273
    %v7275 = vrot.slane %v7270, %v7274
    %v7293 = vunpack.c.l.b16 %v7254
    %v7294 = vunpack.c.l.b16 %v7255
    %v7295 = vunpack.c.l.b16 %v7256
    %v7296 = vunpack.c.l.b16 %v7257
    %v7297 = vunpack.c.l.b16 %v7258
    %v7298 = vunpack.c.l.b16 %v7259
    %v7299 = vunpack.c.l.b16 %v7260
    %v7300 = vunpack.c.l.b16 %v7261
    %v7301 = vunpack.c.l.b16 %v7262
    %v7302 = vunpack.c.l.b16 %v7263
    %v7303 = vunpack.c.l.b16 %v7264
    %v7304 = vunpack.c.l.b16 %v7265
    %v7305 = vunpack.c.l.b16 %v7266
    %v7306 = vunpack.c.l.b16 %v7267
    %v7307 = vunpack.c.l.b16 %v7268
    %v7308 = vunpack.c.l.b16 %v7269
    %v7309 = vpack.c.b16 %v7294, %v7293
    %v7310 = vpack.c.b16 %v7296, %v7295
    %v7311 = vpack.c.b16 %v7298, %v7297
    %v7312 = vpack.c.b16 %v7300, %v7299
    %v7313 = vpack.c.b16 %v7302, %v7301
    %v7314 = vpack.c.b16 %v7304, %v7303
    %v7315 = vpack.c.b16 %v7306, %v7305
    %v7316 = vpack.c.b16 %v7308, %v7307
    %7325 = vmatprep.subr.bf16.mxu0 0
    %7326 = vmatpush1.bf16.msra.mxu0 %v7309
    %7327 = vmatprep.subr.bf16.mxu0 0
    %7328 = vmatpush1.bf16.msra.mxu0 %v7310
    %7329 = vmatprep.subr.bf16.mxu0 0
    %7330 = vmatpush1.bf16.msra.mxu0 %v7311
    %7331 = vmatprep.subr.bf16.mxu0 0
    %7332 = vmatpush1.bf16.msra.mxu0 %v7312
    %7333 = vmatprep.subr.bf16.mxu0 0
    %7334 = vmatpush1.bf16.msra.mxu0 %v7313
    %7335 = vmatprep.subr.bf16.mxu0 0
    %7336 = vmatpush1.bf16.msra.mxu0 %v7314
    %7337 = vmatprep.subr.bf16.mxu0 0
    %7338 = vmatpush1.bf16.msra.mxu0 %v7315
    %7339 = vmatprep.subr.bf16.mxu0 0
    %7340 = vmatpush1.bf16.msra.mxu0 %v7316
    %7341 = vmatprep.subr.bf16.mxu0 0
    %7342 = vmatpush1.bf16.msra.mxu0 0
    %7343 = vmatprep.subr.bf16.mxu0 0
    %7344 = vmatpush1.bf16.msra.mxu0 0
    %7345 = vmatprep.subr.bf16.mxu0 0
    %7346 = vmatpush1.bf16.msra.mxu0 0
    %7347 = vmatprep.subr.bf16.mxu0 0
    %7348 = vmatpush1.bf16.msra.mxu0 0
    %7349 = vmatprep.subr.bf16.mxu0 0
    %7350 = vmatpush1.bf16.msra.mxu0 0
    %7351 = vmatprep.subr.bf16.mxu0 0
    %7352 = vmatpush1.bf16.msra.mxu0 0
    %7353 = vmatprep.subr.bf16.mxu0 0
    %7354 = vmatpush1.bf16.msra.mxu0 0
    %7355 = vmatprep.subr.bf16.mxu0 0
    %7356 = vmatpush1.bf16.msra.mxu0 0
    %7357 = vmatprep.mubr.bf16.mxu0 0
    %7358 = vmatmul.mubr.bf16.gmra.mrb[0].mxu0 %v7253
    %v7359 = vpop.f32.mrb[0].mxu0
    %v7360 = vadd.f32 %v7275, %v7359
    %v7361 = vpop.f32.mrb[0].mxu0
    %v7362 = vpop.f32.mrb[0].mxu0
    %v7363 = vpop.f32.mrb[0].mxu0
    %7364 = vdwg.mxu0
    %vm7365 = vcmask 74752
    %v7366 = vsel %vm7365, %v7360, -inf
    %7367 = vmax.xlane.f32.xlu0 %v7366
    %v7368 = vpop.xlane.xlu0 %7367
    %v7369 = vsub.f32 %v7360, %v7368
    %v7370 = vmul.f32 %v7369, 1.442695
    %v7371 = vpow.pop %v7370
    %v7372 = vsel %vm7365, %v7371, 0.0
    %7373 = vadd.xlane.f32.xlu0 %v7372
    %v7374 = vpop.xlane.xlu0 %7373
    %v7375 = vlog2.pop %v7374
    %v7376 = vmul.f32 %v7375, 0.6931472
    %v7377 = vsub.f32 %v7369, %v7376
    %7378 = vst.msk [vmem:[#allocation19] sm:$0x3] %vm7365, %v7377
    // Predicated region
    $region82: #{tpu_custom_call.1} parent=1 // pred_check
      _
    $region83: #{tpu_custom_call.1} parent=1 // pred_check_branch
      %7380 = sbr.rel (0) target = $region85
    $region84: #{tpu_custom_call.1} parent=1 // pred_region
      %s7382 = ssub.s32 32, 32
      %7383 = vsyncadd [#allocation4], %s7382
      %s7385 = sshll.u32 [#allocation19], 4
      %s7386 = int_to_ptr.vmem [resolvable:$true] %s7385
      %7388 = dma.vmem_to_hbm [thread:$0]  %s7386, 32, %s10, [#allocation4]
    $region85: #{tpu_custom_call.1} parent=1 // pred_fallthru
      _
    // Predicated region
    $region86: #{tpu_custom_call.1} parent=1 // pred_check
      _
    $region87: #{tpu_custom_call.1} parent=1 // pred_check_branch
      %7390 = sbr.rel (0) target = $region89
    $region88: #{tpu_custom_call.1} parent=1 // pred_region
      %7391 = dma.done [#allocation4], 32
    $region89: #{tpu_custom_call.1} parent=1 // pred_fallthru
      _
    %7392 = vsyncpa [#allocation3], 1
    %7393 = vsyncpa [#allocation6], 1
    %7394 = vsyncpa [#allocation9], 1
    %7395 = vsyncpa [#allocation12], 1
    %7396 = vsyncpa [#allocation15], 1
    %7397 = vsyncpa [#allocation18], 1
    %7398 = vsyncpa [#allocation4], 1

</llo_original>
